<compile_context>
chip_gen: v6e
topology: v6e:2x2x1
jax: 0.10.0
libtpu: 0.0.40
codegen_flags: <defaults>
</compile_context>

<pallas_src>
import functools

import jax
import jax.numpy as jnp
from jax import lax
from jax.experimental import pallas as pl
from jax.experimental.pallas import tpu as pltpu

C_HID = 32   # hidden channel width
C_OUT = 4    # final conv output channels (R: 3, L: 1)


def _decom_strip_kernel(x_ref, w1_ref, w2_ref, w3_ref, w4_ref,
                        b123_ref, b4_ref, rowid_ref, colid_ref,
                        o_ref, in_buf, buf_a, buf_b, *, H, W, TH):
    """Fused 4-layer Retinex head for one (batch, row-strip) grid point.

    x_ref    : (1, 3, HP, W+2)  whole padded input image (resident across strips)
    wN_ref   : (9, Cout, Cin)   per-tap transposed conv weights of layer N
    b123_ref : (3, 32, 1)       biases of layers 1..3 (column vectors)
    b4_ref   : (4, 1)           bias of layer 4
    rowid/colid : (1, NMAX)     row / padded-column index of each flat position
    o_ref    : (1, 4, TH, W)    output strip (NCHW)
    in_buf   : (3,  (TH+10)*(W+2)) staged input strip (flat, padded width)
    buf_a/b  : (32, (TH+8)*(W+2))  ping-pong flat activation buffers
    """
    WP = W + 2
    s = pl.program_id(1)
    row0 = pl.multiple_of(s * TH, TH)

    # --- stage this strip's input rows (4-row conv halo + 1 guard row/side) ---
    xs = x_ref[0, :, pl.ds(row0, TH + 10), :]               # (3, TH+10, W+2)
    in_buf[...] = xs.reshape(3, (TH + 10) * WP)

    # Defensive: keep the (never-written) guard rows of the activation buffers
    # finite.  Only 2 rows per buffer — NOT a full-buffer clear.
    zrow = jnp.zeros((C_HID, WP), jnp.float32)
    top = (TH + 7) * WP
    buf_a[:, 0:WP] = zrow
    buf_a[:, top:top + WP] = zrow
    buf_b[:, 0:WP] = zrow
    buf_b[:, top:top + WP] = zrow

    def conv_layer(src_ref, w_ref, b_col, cout, r_out, slope, row_lo, masked):
        """3x3 conv + activation on a flat channels-first padded-width buffer.

        Valid source rows live at buffer rows 1..r_out+2.  Returns
        (cout, r_out*(W+2)) whose halo columns (and out-of-image rows when
        `masked`) are exactly 0 — this IS the zero padding the next layer sees.
        """
        N = r_out * WP
        acc = jnp.broadcast_to(b_col, (cout, N))             # bias-initialized acc
        for dy in range(3):
            for dx in range(3):
                start = (1 + dy) * WP + (dx - 1)             # static lane offset
                rhs = src_ref[:, start:start + N]            # contiguous window
                acc = acc + jnp.dot(w_ref[dy * 3 + dx], rhs,
                                    preferred_element_type=jnp.float32)
        y = jnp.where(acc > 0, acc, slope * acc)             # LeakyReLU / ReLU
        if masked:
            col = colid_ref[:, :N]
            row = rowid_ref[:, :N]
            valid = ((col >= 1) & (col <= W) &
                     (row >= row_lo) & (row < row_lo + H))
            y = jnp.where(valid, y, 0.0)
        return y

    # --- layer 1: conv3x3(3->32) + LeakyReLU(0.2) ----------------------------
    y1 = conv_layer(in_buf, w1_ref, b123_ref[0], C_HID, TH + 6, 0.2, 3 - row0, True)
    buf_a[:, WP:WP + (TH + 6) * WP] = y1
    # --- layer 2: conv3x3(32->32) + LeakyReLU(0.2) ----------------------------
    y2 = conv_layer(buf_a, w2_ref, b123_ref[1], C_HID, TH + 4, 0.2, 2 - row0, True)
    buf_b[:, WP:WP + (TH + 4) * WP] = y2
    # --- layer 3: conv3x3(32->32) + LeakyReLU(0.2) ----------------------------
    y3 = conv_layer(buf_b, w3_ref, b123_ref[2], C_HID, TH + 2, 0.2, 1 - row0, True)
    buf_a[:, WP:WP + (TH + 2) * WP] = y3
    # --- layer 4: conv3x3(32->4) + ReLU; halo columns sliced away -------------
    y4 = conv_layer(buf_a, w4_ref, b4_ref[...], C_OUT, TH, 0.0, 0, False)
    o_ref[0] = y4.reshape(C_OUT, TH, WP)[:, :, 1:W + 1]


def _vmem_limit_bytes():
    try:
        info = pltpu.get_tpu_info()
        cap = getattr(info, "vmem_capacity_bytes", None)
        if cap:
            return min(int(cap * 0.8), 100 * 1024 * 1024)
    except Exception:
        pass
    return 64 * 1024 * 1024


def _pick_strip_height(H, W, vmem_limit):
    WP = W + 2
    # rough per-strip-row VMEM cost: 2 ping-pong buffers (32ch) + staged input
    # (3ch) + ~3 f32 temporaries (acc / matmul result / masked copy)
    per_row = WP * 4 * (2 * C_HID + 3 + 3 * C_HID)
    th = int(vmem_limit * 0.35) // max(per_row, 1)
    th = max(8, min(256, (th // 8) * 8))
    return H if th >= H else th


def decom_pallas(x_nchw, params):
    """Fused Decom head.  NCHW in -> (B, 4, H, W) NCHW out, single pallas_call."""
    B, cin, H, W = x_nchw.shape
    assert cin == 3
    (w1, b1), (w2, b2), (w3, b3), (w4, b4) = params

    vmem_limit = _vmem_limit_bytes()
    TH = _pick_strip_height(H, W, vmem_limit)
    n_strips = -(-H // TH)
    WP = W + 2
    HP = n_strips * TH + 10                 # 5 zero rows top, >=5 bottom
    NMAX = (TH + 8) * WP

    # Zero-pad once in HBM: 4-row conv halo (+1 guard row) top/bottom and the
    # 1-column 'same' padding left/right.  Input stays NCHW (W on lanes).
    x_pad = jnp.pad(x_nchw.astype(jnp.float32),
                    ((0, 0), (0, 0), (5, HP - H - 5), (1, 1)))

    def prep_w(w):  # HWIO (3,3,ci,co) -> (9, co, ci): per-tap LHS for the MXU
        return jnp.transpose(w, (0, 1, 3, 2)).reshape(9, w.shape[3], w.shape[2])

    w1t, w2t, w3t, w4t = (prep_w(w) for w in (w1, w2, w3, w4))
    b123 = jnp.stack([b1, b2, b3]).reshape(3, C_HID, 1)
    b4c = b4.reshape(C_OUT, 1)

    flat = jnp.arange(NMAX, dtype=jnp.int32)
    rowidx = (flat // WP).reshape(1, NMAX)
    colidx = (flat % WP).reshape(1, NMAX)

    kernel = functools.partial(_decom_strip_kernel, H=H, W=W, TH=TH)

    flops = 2 * 9 * B * H * W * (3 * C_HID + C_HID * C_HID * 2 + C_HID * C_OUT)
    bytes_accessed = 4 * B * H * W * (3 + C_OUT)

    return pl.pallas_call(
        kernel,
        out_shape=jax.ShapeDtypeStruct((B, C_OUT, H, W), jnp.float32),
        grid=(B, n_strips),
        in_specs=[
            pl.BlockSpec((1, 3, HP, WP), lambda b, s: (b, 0, 0, 0)),   # input (revisited)
            pl.BlockSpec((9, C_HID, 3), lambda b, s: (0, 0, 0)),       # w1
            pl.BlockSpec((9, C_HID, C_HID), lambda b, s: (0, 0, 0)),   # w2
            pl.BlockSpec((9, C_HID, C_HID), lambda b, s: (0, 0, 0)),   # w3
            pl.BlockSpec((9, C_OUT, C_HID), lambda b, s: (0, 0, 0)),   # w4
            pl.BlockSpec((3, C_HID, 1), lambda b, s: (0, 0, 0)),       # b1..b3
            pl.BlockSpec((C_OUT, 1), lambda b, s: (0, 0)),             # b4
            pl.BlockSpec((1, NMAX), lambda b, s: (0, 0)),              # row index
            pl.BlockSpec((1, NMAX), lambda b, s: (0, 0)),              # col index
        ],
        out_specs=pl.BlockSpec((1, C_OUT, TH, W), lambda b, s: (b, 0, s, 0)),
        scratch_shapes=[
            pltpu.VMEM((3, (TH + 10) * WP), jnp.float32),       # staged input strip
            pltpu.VMEM((C_HID, (TH + 8) * WP), jnp.float32),    # ping activations
            pltpu.VMEM((C_HID, (TH + 8) * WP), jnp.float32),    # pong activations
        ],
        compiler_params=pltpu.CompilerParams(
            dimension_semantics=("parallel", "parallel"),
            vmem_limit_bytes=vmem_limit),
        cost_estimate=pl.CostEstimate(flops=flops, transcendentals=0,
                                      bytes_accessed=bytes_accessed),
    )(x_pad, w1t, w2t, w3t, w4t, b123, b4c, rowidx, colidx)


def init_decom_params(key):
    """Deterministic synthetic weights matching the module's layer shapes (HWIO)."""
    shapes = [(3, 3, 3, 32), (3, 3, 32, 32), (3, 3, 32, 32), (3, 3, 32, 4)]
    params = []
    for i, shp in enumerate(shapes):
        kw, kb = jax.random.split(jax.random.fold_in(key, i))
        fan_in = shp[0] * shp[1] * shp[2]
        w = jax.random.normal(kw, shp, jnp.float32) * (1.0 / jnp.sqrt(fan_in))
        b = jax.random.normal(kb, (shp[3],), jnp.float32) * 0.01
        params.append((w, b))
    return params


@jax.jit
def decom_forward(x_nchw, params):
    """Forward pass of Decom. Input NCHW (B, 3, H, W); returns (R, L) in NCHW."""
    out = decom_pallas(x_nchw, params)          # (B, 4, H, W), already NCHW
    return out[:, 0:3, :, :], out[:, 3:4, :, :]


def _reference_forward(x_nchw, params):
    """Pure-JAX (XLA conv) reference for correctness check."""
    x = x_nchw
    slopes = (0.2, 0.2, 0.2, 0.0)
    for (w, b), slope in zip(params, slopes):
        y = lax.conv_general_dilated(
            x, w, window_strides=(1, 1), padding="SAME",
            dimension_numbers=("NCHW", "HWIO", "NCHW"),
            precision=lax.Precision.HIGHEST)
        y = y + b[None, :, None, None]
        x = jnp.where(y > 0, y, slope * y)
    return x[:, 0:3, :, :], x[:, 3:4, :, :]


if __name__ == "__main__":
    key = jax.random.PRNGKey(0)
    k_x, k_p = jax.random.split(key)

    B, Cin, H, W = 2, 3, 16, 16
    x = jax.random.uniform(k_x, (B, Cin, H, W), jnp.float32)
    params = init_decom_params(k_p)

    R, L = decom_forward(x, params)
    jax.block_until_ready((R, L))

    R_ref, L_ref = _reference_forward(x, params)
    assert R.shape == (B, 3, H, W) and L.shape == (B, 1, H, W)
    assert jnp.allclose(R, R_ref, atol=2e-2, rtol=2e-2), \
        float(jnp.max(jnp.abs(R - R_ref)))
    assert jnp.allclose(L, L_ref, atol=2e-2, rtol=2e-2), \
        float(jnp.max(jnp.abs(L - L_ref)))

    print("KERNEL_OK")
</pallas_src>

<mosaic_0001>
module attributes {stable_mosaic.version = 11 : i64} {
  func.func @_decom_strip_kernel(%arg0: i32, %arg1: i32, %arg2: memref<1x3x26x18xf32, #tpu.memory_space<vmem>>, %arg3: memref<9x32x3xf32, #tpu.memory_space<vmem>>, %arg4: memref<9x32x32xf32, #tpu.memory_space<vmem>>, %arg5: memref<9x32x32xf32, #tpu.memory_space<vmem>>, %arg6: memref<9x4x32xf32, #tpu.memory_space<vmem>>, %arg7: memref<3x32x1xf32, #tpu.memory_space<vmem>>, %arg8: memref<4x1xf32, #tpu.memory_space<vmem>>, %arg9: memref<1x432xi32, #tpu.memory_space<vmem>>, %arg10: memref<1x432xi32, #tpu.memory_space<vmem>>, %arg11: memref<1x4x16x16xf32, #tpu.memory_space<vmem>>, %arg12: memref<3x468xf32, #tpu.memory_space<vmem>>, %arg13: memref<32x432xf32, #tpu.memory_space<vmem>>, %arg14: memref<32x432xf32, #tpu.memory_space<vmem>>) attributes {dimension_semantics = [#tpu.dimension_semantics<parallel>, #tpu.dimension_semantics<parallel>], iteration_bounds = array<i64: 2, 1>, scalar_prefetch = 0 : i64, scratch_operands = 3 : i64, tpu.core_type = #tpu.core_type<tc>, window_params = [{transform_indices = @transform_0, window_bounds = array<i64: 1, 3, 26, 18>}, {pipeline_mode = #tpu.pipeline_mode<synchronous>, transform_indices = @transform_1, window_bounds = array<i64: 9, 32, 3>}, {pipeline_mode = #tpu.pipeline_mode<synchronous>, transform_indices = @transform_2, window_bounds = array<i64: 9, 32, 32>}, {pipeline_mode = #tpu.pipeline_mode<synchronous>, transform_indices = @transform_3, window_bounds = array<i64: 9, 32, 32>}, {pipeline_mode = #tpu.pipeline_mode<synchronous>, transform_indices = @transform_4, window_bounds = array<i64: 9, 4, 32>}, {pipeline_mode = #tpu.pipeline_mode<synchronous>, transform_indices = @transform_5, window_bounds = array<i64: 3, 32, 1>}, {pipeline_mode = #tpu.pipeline_mode<synchronous>, transform_indices = @transform_6, window_bounds = array<i64: 4, 1>}, {pipeline_mode = #tpu.pipeline_mode<synchronous>, transform_indices = @transform_7, window_bounds = array<i64: 1, 432>}, {pipeline_mode = #tpu.pipeline_mode<synchronous>, transform_indices = @transform_8, window_bounds = array<i64: 1, 432>}, {transform_indices = @transform_9, window_bounds = array<i64: 1, 4, 16, 16>}]} {
    %c16_i32 = arith.constant 16 : i32
    %0 = arith.muli %arg1, %c16_i32 : i32
    %1 = tpu.assume_multiple %0, 16 : i32
    %c0 = arith.constant 0 : index
    %c0_0 = arith.constant 0 : index
    %2 = arith.index_cast %1 : i32 to index
    %c0_1 = arith.constant 0 : index
    %3 = vector.load %arg2[%c0, %c0_0, %2, %c0_1] : memref<1x3x26x18xf32, #tpu.memory_space<vmem>>, vector<1x3x26x18xf32>
    %4 = vector.shape_cast %3 : vector<1x3x26x18xf32> to vector<3x26x18xf32>
    %5 = vector.shape_cast %4 : vector<3x26x18xf32> to vector<3x468xf32>
    %c0_2 = arith.constant 0 : index
    %c0_3 = arith.constant 0 : index
    %6 = vector.load %arg12[%c0_2, %c0_3] : memref<3x468xf32, #tpu.memory_space<vmem>>, vector<3x468xf32>
    tpu.vector_store %arg12[%c0_2, %c0_3], %5 {strides = array<i32>} : memref<3x468xf32, #tpu.memory_space<vmem>>, vector<3x468xf32>,
    %cst = arith.constant 0.000000e+00 : f32
    %7 = vector.broadcast %cst : f32 to vector<32x18xf32>
    %c0_4 = arith.constant 0 : index
    %c0_5 = arith.constant 0 : index
    %8 = vector.load %arg13[%c0_4, %c0_5] : memref<32x432xf32, #tpu.memory_space<vmem>>, vector<32x18xf32>
    tpu.vector_store %arg13[%c0_4, %c0_5], %7 {strides = array<i32>} : memref<32x432xf32, #tpu.memory_space<vmem>>, vector<32x18xf32>,
    %c0_6 = arith.constant 0 : index
    %c414 = arith.constant 414 : index
    %9 = vector.load %arg13[%c0_6, %c414] : memref<32x432xf32, #tpu.memory_space<vmem>>, vector<32x18xf32>
    tpu.vector_store %arg13[%c0_6, %c414], %7 {strides = array<i32>} : memref<32x432xf32, #tpu.memory_space<vmem>>, vector<32x18xf32>,
    %c0_7 = arith.constant 0 : index
    %c0_8 = arith.constant 0 : index
    %10 = vector.load %arg14[%c0_7, %c0_8] : memref<32x432xf32, #tpu.memory_space<vmem>>, vector<32x18xf32>
    tpu.vector_store %arg14[%c0_7, %c0_8], %7 {strides = array<i32>} : memref<32x432xf32, #tpu.memory_space<vmem>>, vector<32x18xf32>,
    %c0_9 = arith.constant 0 : index
    %c414_10 = arith.constant 414 : index
    %11 = vector.load %arg14[%c0_9, %c414_10] : memref<32x432xf32, #tpu.memory_space<vmem>>, vector<32x18xf32>
    tpu.vector_store %arg14[%c0_9, %c414_10], %7 {strides = array<i32>} : memref<32x432xf32, #tpu.memory_space<vmem>>, vector<32x18xf32>,
    %c0_11 = arith.constant 0 : index
    %c0_12 = arith.constant 0 : index
    %c0_13 = arith.constant 0 : index
    %12 = vector.load %arg7[%c0_11, %c0_12, %c0_13] : memref<3x32x1xf32, #tpu.memory_space<vmem>>, vector<1x32x1xf32>
    %13 = vector.shape_cast %12 : vector<1x32x1xf32> to vector<32x1xf32>
    %c3_i32 = arith.constant 3 : i32
    %14 = arith.subi %c3_i32, %1 : i32
    %15 = vector.shape_cast %13 : vector<32x1xf32> to vector<32x1xf32>
    %16 = vector.broadcast %15 : vector<32x1xf32> to vector<32x396xf32>
    %c0_14 = arith.constant 0 : index
    %c17 = arith.constant 17 : index
    %17 = vector.load %arg12[%c0_14, %c17] : memref<3x468xf32, #tpu.memory_space<vmem>>, vector<3x396xf32>
    %c0_15 = arith.constant 0 : index
    %c0_16 = arith.constant 0 : index
    %c0_17 = arith.constant 0 : index
    %18 = vector.load %arg3[%c0_15, %c0_16, %c0_17] : memref<9x32x3xf32, #tpu.memory_space<vmem>>, vector<1x32x3xf32>
    %19 = vector.shape_cast %18 : vector<1x32x3xf32> to vector<32x3xf32>
    %cst_18 = arith.constant dense<0.000000e+00> : vector<32x396xf32>
    %20 = tpu.matmul %19, %17, %cst_18 {dimension_numbers = #tpu.dot_dimension_numbers<[1], [0], [0], [1], [0, 0, 1, 1], [], []>} : vector<32x3xf32>, vector<3x396xf32>, vector<32x396xf32> -> vector<32x396xf32>
    %21 = arith.addf %16, %20 : vector<32x396xf32>
    %c0_19 = arith.constant 0 : index
    %c18 = arith.constant 18 : index
    %22 = vector.load %arg12[%c0_19, %c18] : memref<3x468xf32, #tpu.memory_space<vmem>>, vector<3x396xf32>
    %c1 = arith.constant 1 : index
    %c0_20 = arith.constant 0 : index
    %c0_21 = arith.constant 0 : index
    %23 = vector.load %arg3[%c1, %c0_20, %c0_21] : memref<9x32x3xf32, #tpu.memory_space<vmem>>, vector<1x32x3xf32>
    %24 = vector.shape_cast %23 : vector<1x32x3xf32> to vector<32x3xf32>
    %cst_22 = arith.constant dense<0.000000e+00> : vector<32x396xf32>
    %25 = tpu.matmul %24, %22, %cst_22 {dimension_numbers = #tpu.dot_dimension_numbers<[1], [0], [0], [1], [0, 0, 1, 1], [], []>} : vector<32x3xf32>, vector<3x396xf32>, vector<32x396xf32> -> vector<32x396xf32>
    %26 = arith.addf %21, %25 : vector<32x396xf32>
    %c0_23 = arith.constant 0 : index
    %c19 = arith.constant 19 : index
    %27 = vector.load %arg12[%c0_23, %c19] : memref<3x468xf32, #tpu.memory_space<vmem>>, vector<3x396xf32>
    %c2 = arith.constant 2 : index
    %c0_24 = arith.constant 0 : index
    %c0_25 = arith.constant 0 : index
    %28 = vector.load %arg3[%c2, %c0_24, %c0_25] : memref<9x32x3xf32, #tpu.memory_space<vmem>>, vector<1x32x3xf32>
    %29 = vector.shape_cast %28 : vector<1x32x3xf32> to vector<32x3xf32>
    %cst_26 = arith.constant dense<0.000000e+00> : vector<32x396xf32>
    %30 = tpu.matmul %29, %27, %cst_26 {dimension_numbers = #tpu.dot_dimension_numbers<[1], [0], [0], [1], [0, 0, 1, 1], [], []>} : vector<32x3xf32>, vector<3x396xf32>, vector<32x396xf32> -> vector<32x396xf32>
    %31 = arith.addf %26, %30 : vector<32x396xf32>
    %c0_27 = arith.constant 0 : index
    %c35 = arith.constant 35 : index
    %32 = vector.load %arg12[%c0_27, %c35] : memref<3x468xf32, #tpu.memory_space<vmem>>, vector<3x396xf32>
    %c3 = arith.constant 3 : index
    %c0_28 = arith.constant 0 : index
    %c0_29 = arith.constant 0 : index
    %33 = vector.load %arg3[%c3, %c0_28, %c0_29] : memref<9x32x3xf32, #tpu.memory_space<vmem>>, vector<1x32x3xf32>
    %34 = vector.shape_cast %33 : vector<1x32x3xf32> to vector<32x3xf32>
    %cst_30 = arith.constant dense<0.000000e+00> : vector<32x396xf32>
    %35 = tpu.matmul %34, %32, %cst_30 {dimension_numbers = #tpu.dot_dimension_numbers<[1], [0], [0], [1], [0, 0, 1, 1], [], []>} : vector<32x3xf32>, vector<3x396xf32>, vector<32x396xf32> -> vector<32x396xf32>
    %36 = arith.addf %31, %35 : vector<32x396xf32>
    %c0_31 = arith.constant 0 : index
    %c36 = arith.constant 36 : index
    %37 = vector.load %arg12[%c0_31, %c36] : memref<3x468xf32, #tpu.memory_space<vmem>>, vector<3x396xf32>
    %c4 = arith.constant 4 : index
    %c0_32 = arith.constant 0 : index
    %c0_33 = arith.constant 0 : index
    %38 = vector.load %arg3[%c4, %c0_32, %c0_33] : memref<9x32x3xf32, #tpu.memory_space<vmem>>, vector<1x32x3xf32>
    %39 = vector.shape_cast %38 : vector<1x32x3xf32> to vector<32x3xf32>
    %cst_34 = arith.constant dense<0.000000e+00> : vector<32x396xf32>
    %40 = tpu.matmul %39, %37, %cst_34 {dimension_numbers = #tpu.dot_dimension_numbers<[1], [0], [0], [1], [0, 0, 1, 1], [], []>} : vector<32x3xf32>, vector<3x396xf32>, vector<32x396xf32> -> vector<32x396xf32>
    %41 = arith.addf %36, %40 : vector<32x396xf32>
    %c0_35 = arith.constant 0 : index
    %c37 = arith.constant 37 : index
    %42 = vector.load %arg12[%c0_35, %c37] : memref<3x468xf32, #tpu.memory_space<vmem>>, vector<3x396xf32>
    %c5 = arith.constant 5 : index
    %c0_36 = arith.constant 0 : index
    %c0_37 = arith.constant 0 : index
    %43 = vector.load %arg3[%c5, %c0_36, %c0_37] : memref<9x32x3xf32, #tpu.memory_space<vmem>>, vector<1x32x3xf32>
    %44 = vector.shape_cast %43 : vector<1x32x3xf32> to vector<32x3xf32>
    %cst_38 = arith.constant dense<0.000000e+00> : vector<32x396xf32>
    %45 = tpu.matmul %44, %42, %cst_38 {dimension_numbers = #tpu.dot_dimension_numbers<[1], [0], [0], [1], [0, 0, 1, 1], [], []>} : vector<32x3xf32>, vector<3x396xf32>, vector<32x396xf32> -> vector<32x396xf32>
    %46 = arith.addf %41, %45 : vector<32x396xf32>
    %c0_39 = arith.constant 0 : index
    %c53 = arith.constant 53 : index
    %47 = vector.load %arg12[%c0_39, %c53] : memref<3x468xf32, #tpu.memory_space<vmem>>, vector<3x396xf32>
    %c6 = arith.constant 6 : index
    %c0_40 = arith.constant 0 : index
    %c0_41 = arith.constant 0 : index
    %48 = vector.load %arg3[%c6, %c0_40, %c0_41] : memref<9x32x3xf32, #tpu.memory_space<vmem>>, vector<1x32x3xf32>
    %49 = vector.shape_cast %48 : vector<1x32x3xf32> to vector<32x3xf32>
    %cst_42 = arith.constant dense<0.000000e+00> : vector<32x396xf32>
    %50 = tpu.matmul %49, %47, %cst_42 {dimension_numbers = #tpu.dot_dimension_numbers<[1], [0], [0], [1], [0, 0, 1, 1], [], []>} : vector<32x3xf32>, vector<3x396xf32>, vector<32x396xf32> -> vector<32x396xf32>
    %51 = arith.addf %46, %50 : vector<32x396xf32>
    %c0_43 = arith.constant 0 : index
    %c54 = arith.constant 54 : index
    %52 = vector.load %arg12[%c0_43, %c54] : memref<3x468xf32, #tpu.memory_space<vmem>>, vector<3x396xf32>
    %c7 = arith.constant 7 : index
    %c0_44 = arith.constant 0 : index
    %c0_45 = arith.constant 0 : index
    %53 = vector.load %arg3[%c7, %c0_44, %c0_45] : memref<9x32x3xf32, #tpu.memory_space<vmem>>, vector<1x32x3xf32>
    %54 = vector.shape_cast %53 : vector<1x32x3xf32> to vector<32x3xf32>
    %cst_46 = arith.constant dense<0.000000e+00> : vector<32x396xf32>
    %55 = tpu.matmul %54, %52, %cst_46 {dimension_numbers = #tpu.dot_dimension_numbers<[1], [0], [0], [1], [0, 0, 1, 1], [], []>} : vector<32x3xf32>, vector<3x396xf32>, vector<32x396xf32> -> vector<32x396xf32>
    %56 = arith.addf %51, %55 : vector<32x396xf32>
    %c0_47 = arith.constant 0 : index
    %c55 = arith.constant 55 : index
    %57 = vector.load %arg12[%c0_47, %c55] : memref<3x468xf32, #tpu.memory_space<vmem>>, vector<3x396xf32>
    %c8 = arith.constant 8 : index
    %c0_48 = arith.constant 0 : index
    %c0_49 = arith.constant 0 : index
    %58 = vector.load %arg3[%c8, %c0_48, %c0_49] : memref<9x32x3xf32, #tpu.memory_space<vmem>>, vector<1x32x3xf32>
    %59 = vector.shape_cast %58 : vector<1x32x3xf32> to vector<32x3xf32>
    %cst_50 = arith.constant dense<0.000000e+00> : vector<32x396xf32>
    %60 = tpu.matmul %59, %57, %cst_50 {dimension_numbers = #tpu.dot_dimension_numbers<[1], [0], [0], [1], [0, 0, 1, 1], [], []>} : vector<32x3xf32>, vector<3x396xf32>, vector<32x396xf32> -> vector<32x396xf32>
    %61 = arith.addf %56, %60 : vector<32x396xf32>
    %cst_51 = arith.constant 0.000000e+00 : f32
    %62 = vector.broadcast %cst_51 : f32 to vector<32x396xf32>
    %63 = arith.cmpf ogt, %61, %62 : vector<32x396xf32>
    %cst_52 = arith.constant 2.000000e-01 : f32
    %64 = vector.broadcast %cst_52 : f32 to vector<32x396xf32>
    %65 = arith.mulf %64, %61 : vector<32x396xf32>
    %66 = arith.select %63, %61, %65 : vector<32x396xi1>, vector<32x396xf32>
    %c0_53 = arith.constant 0 : index
    %c0_54 = arith.constant 0 : index
    %67 = vector.load %arg10[%c0_53, %c0_54] : memref<1x432xi32, #tpu.memory_space<vmem>>, vector<1x396xi32>
    %c0_55 = arith.constant 0 : index
    %c0_56 = arith.constant 0 : index
    %68 = vector.load %arg9[%c0_55, %c0_56] : memref<1x432xi32, #tpu.memory_space<vmem>>, vector<1x396xi32>
    %c1_i32 = arith.constant 1 : i32
    %69 = vector.broadcast %c1_i32 : i32 to vector<1x396xi32>
    %70 = arith.cmpi sge, %67, %69 : vector<1x396xi32>
    %c16_i32_57 = arith.constant 16 : i32
    %71 = vector.broadcast %c16_i32_57 : i32 to vector<1x396xi32>
    %72 = arith.cmpi sle, %67, %71 : vector<1x396xi32>
    %73 = arith.andi %70, %72 : vector<1x396xi1>
    %74 = vector.broadcast %14 : i32 to vector<1x396xi32>
    %75 = arith.cmpi sge, %68, %74 : vector<1x396xi32>
    %76 = arith.andi %73, %75 : vector<1x396xi1>
    %c16_i32_58 = arith.constant 16 : i32
    %77 = arith.addi %14, %c16_i32_58 : i32
    %78 = vector.broadcast %77 : i32 to vector<1x396xi32>
    %79 = arith.cmpi slt, %68, %78 : vector<1x396xi32>
    %80 = arith.andi %76, %79 : vector<1x396xi1>
    %cst_59 = arith.constant 0.000000e+00 : f32
    %81 = vector.shape_cast %80 : vector<1x396xi1> to vector<1x396xi1>
    %82 = vector.broadcast %81 : vector<1x396xi1> to vector<32x396xi1>
    %83 = vector.broadcast %cst_59 : f32 to vector<32x396xf32>
    %84 = arith.select %82, %66, %83 : vector<32x396xi1>, vector<32x396xf32>
    %c0_60 = arith.constant 0 : index
    %c18_61 = arith.constant 18 : index
    %85 = vector.load %arg13[%c0_60, %c18_61] : memref<32x432xf32, #tpu.memory_space<vmem>>, vector<32x396xf32>
    tpu.vector_store %arg13[%c0_60, %c18_61], %84 {strides = array<i32>} : memref<32x432xf32, #tpu.memory_space<vmem>>, vector<32x396xf32>,
    %c1_62 = arith.constant 1 : index
    %c0_63 = arith.constant 0 : index
    %c0_64 = arith.constant 0 : index
    %86 = vector.load %arg7[%c1_62, %c0_63, %c0_64] : memref<3x32x1xf32, #tpu.memory_space<vmem>>, vector<1x32x1xf32>
    %87 = vector.shape_cast %86 : vector<1x32x1xf32> to vector<32x1xf32>
    %c2_i32 = arith.constant 2 : i32
    %88 = arith.subi %c2_i32, %1 : i32
    %89 = vector.shape_cast %87 : vector<32x1xf32> to vector<32x1xf32>
    %90 = vector.broadcast %89 : vector<32x1xf32> to vector<32x360xf32>
    %c0_65 = arith.constant 0 : index
    %c17_66 = arith.constant 17 : index
    %91 = vector.load %arg13[%c0_65, %c17_66] : memref<32x432xf32, #tpu.memory_space<vmem>>, vector<32x360xf32>
    %c0_67 = arith.constant 0 : index
    %c0_68 = arith.constant 0 : index
    %c0_69 = arith.constant 0 : index
    %92 = vector.load %arg4[%c0_67, %c0_68, %c0_69] : memref<9x32x32xf32, #tpu.memory_space<vmem>>, vector<1x32x32xf32>
    %93 = vector.shape_cast %92 : vector<1x32x32xf32> to vector<32x32xf32>
    %cst_70 = arith.constant dense<0.000000e+00> : vector<32x360xf32>
    %94 = tpu.matmul %93, %91, %cst_70 {dimension_numbers = #tpu.dot_dimension_numbers<[1], [0], [0], [1], [0, 0, 1, 1], [], []>} : vector<32x32xf32>, vector<32x360xf32>, vector<32x360xf32> -> vector<32x360xf32>
    %95 = arith.addf %90, %94 : vector<32x360xf32>
    %c0_71 = arith.constant 0 : index
    %c18_72 = arith.constant 18 : index
    %96 = vector.load %arg13[%c0_71, %c18_72] : memref<32x432xf32, #tpu.memory_space<vmem>>, vector<32x360xf32>
    %c1_73 = arith.constant 1 : index
    %c0_74 = arith.constant 0 : index
    %c0_75 = arith.constant 0 : index
    %97 = vector.load %arg4[%c1_73, %c0_74, %c0_75] : memref<9x32x32xf32, #tpu.memory_space<vmem>>, vector<1x32x32xf32>
    %98 = vector.shape_cast %97 : vector<1x32x32xf32> to vector<32x32xf32>
    %cst_76 = arith.constant dense<0.000000e+00> : vector<32x360xf32>
    %99 = tpu.matmul %98, %96, %cst_76 {dimension_numbers = #tpu.dot_dimension_numbers<[1], [0], [0], [1], [0, 0, 1, 1], [], []>} : vector<32x32xf32>, vector<32x360xf32>, vector<32x360xf32> -> vector<32x360xf32>
    %100 = arith.addf %95, %99 : vector<32x360xf32>
    %c0_77 = arith.constant 0 : index
    %c19_78 = arith.constant 19 : index
    %101 = vector.load %arg13[%c0_77, %c19_78] : memref<32x432xf32, #tpu.memory_space<vmem>>, vector<32x360xf32>
    %c2_79 = arith.constant 2 : index
    %c0_80 = arith.constant 0 : index
    %c0_81 = arith.constant 0 : index
    %102 = vector.load %arg4[%c2_79, %c0_80, %c0_81] : memref<9x32x32xf32, #tpu.memory_space<vmem>>, vector<1x32x32xf32>
    %103 = vector.shape_cast %102 : vector<1x32x32xf32> to vector<32x32xf32>
    %cst_82 = arith.constant dense<0.000000e+00> : vector<32x360xf32>
    %104 = tpu.matmul %103, %101, %cst_82 {dimension_numbers = #tpu.dot_dimension_numbers<[1], [0], [0], [1], [0, 0, 1, 1], [], []>} : vector<32x32xf32>, vector<32x360xf32>, vector<32x360xf32> -> vector<32x360xf32>
    %105 = arith.addf %100, %104 : vector<32x360xf32>
    %c0_83 = arith.constant 0 : index
    %c35_84 = arith.constant 35 : index
    %106 = vector.load %arg13[%c0_83, %c35_84] : memref<32x432xf32, #tpu.memory_space<vmem>>, vector<32x360xf32>
    %c3_85 = arith.constant 3 : index
    %c0_86 = arith.constant 0 : index
    %c0_87 = arith.constant 0 : index
    %107 = vector.load %arg4[%c3_85, %c0_86, %c0_87] : memref<9x32x32xf32, #tpu.memory_space<vmem>>, vector<1x32x32xf32>
    %108 = vector.shape_cast %107 : vector<1x32x32xf32> to vector<32x32xf32>
    %cst_88 = arith.constant dense<0.000000e+00> : vector<32x360xf32>
    %109 = tpu.matmul %108, %106, %cst_88 {dimension_numbers = #tpu.dot_dimension_numbers<[1], [0], [0], [1], [0, 0, 1, 1], [], []>} : vector<32x32xf32>, vector<32x360xf32>, vector<32x360xf32> -> vector<32x360xf32>
    %110 = arith.addf %105, %109 : vector<32x360xf32>
    %c0_89 = arith.constant 0 : index
    %c36_90 = arith.constant 36 : index
    %111 = vector.load %arg13[%c0_89, %c36_90] : memref<32x432xf32, #tpu.memory_space<vmem>>, vector<32x360xf32>
    %c4_91 = arith.constant 4 : index
    %c0_92 = arith.constant 0 : index
    %c0_93 = arith.constant 0 : index
    %112 = vector.load %arg4[%c4_91, %c0_92, %c0_93] : memref<9x32x32xf32, #tpu.memory_space<vmem>>, vector<1x32x32xf32>
    %113 = vector.shape_cast %112 : vector<1x32x32xf32> to vector<32x32xf32>
    %cst_94 = arith.constant dense<0.000000e+00> : vector<32x360xf32>
    %114 = tpu.matmul %113, %111, %cst_94 {dimension_numbers = #tpu.dot_dimension_numbers<[1], [0], [0], [1], [0, 0, 1, 1], [], []>} : vector<32x32xf32>, vector<32x360xf32>, vector<32x360xf32> -> vector<32x360xf32>
    %115 = arith.addf %110, %114 : vector<32x360xf32>
    %c0_95 = arith.constant 0 : index
    %c37_96 = arith.constant 37 : index
    %116 = vector.load %arg13[%c0_95, %c37_96] : memref<32x432xf32, #tpu.memory_space<vmem>>, vector<32x360xf32>
    %c5_97 = arith.constant 5 : index
    %c0_98 = arith.constant 0 : index
    %c0_99 = arith.constant 0 : index
    %117 = vector.load %arg4[%c5_97, %c0_98, %c0_99] : memref<9x32x32xf32, #tpu.memory_space<vmem>>, vector<1x32x32xf32>
    %118 = vector.shape_cast %117 : vector<1x32x32xf32> to vector<32x32xf32>
    %cst_100 = arith.constant dense<0.000000e+00> : vector<32x360xf32>
    %119 = tpu.matmul %118, %116, %cst_100 {dimension_numbers = #tpu.dot_dimension_numbers<[1], [0], [0], [1], [0, 0, 1, 1], [], []>} : vector<32x32xf32>, vector<32x360xf32>, vector<32x360xf32> -> vector<32x360xf32>
    %120 = arith.addf %115, %119 : vector<32x360xf32>
    %c0_101 = arith.constant 0 : index
    %c53_102 = arith.constant 53 : index
    %121 = vector.load %arg13[%c0_101, %c53_102] : memref<32x432xf32, #tpu.memory_space<vmem>>, vector<32x360xf32>
    %c6_103 = arith.constant 6 : index
    %c0_104 = arith.constant 0 : index
    %c0_105 = arith.constant 0 : index
    %122 = vector.load %arg4[%c6_103, %c0_104, %c0_105] : memref<9x32x32xf32, #tpu.memory_space<vmem>>, vector<1x32x32xf32>
    %123 = vector.shape_cast %122 : vector<1x32x32xf32> to vector<32x32xf32>
    %cst_106 = arith.constant dense<0.000000e+00> : vector<32x360xf32>
    %124 = tpu.matmul %123, %121, %cst_106 {dimension_numbers = #tpu.dot_dimension_numbers<[1], [0], [0], [1], [0, 0, 1, 1], [], []>} : vector<32x32xf32>, vector<32x360xf32>, vector<32x360xf32> -> vector<32x360xf32>
    %125 = arith.addf %120, %124 : vector<32x360xf32>
    %c0_107 = arith.constant 0 : index
    %c54_108 = arith.constant 54 : index
    %126 = vector.load %arg13[%c0_107, %c54_108] : memref<32x432xf32, #tpu.memory_space<vmem>>, vector<32x360xf32>
    %c7_109 = arith.constant 7 : index
    %c0_110 = arith.constant 0 : index
    %c0_111 = arith.constant 0 : index
    %127 = vector.load %arg4[%c7_109, %c0_110, %c0_111] : memref<9x32x32xf32, #tpu.memory_space<vmem>>, vector<1x32x32xf32>
    %128 = vector.shape_cast %127 : vector<1x32x32xf32> to vector<32x32xf32>
    %cst_112 = arith.constant dense<0.000000e+00> : vector<32x360xf32>
    %129 = tpu.matmul %128, %126, %cst_112 {dimension_numbers = #tpu.dot_dimension_numbers<[1], [0], [0], [1], [0, 0, 1, 1], [], []>} : vector<32x32xf32>, vector<32x360xf32>, vector<32x360xf32> -> vector<32x360xf32>
    %130 = arith.addf %125, %129 : vector<32x360xf32>
    %c0_113 = arith.constant 0 : index
    %c55_114 = arith.constant 55 : index
    %131 = vector.load %arg13[%c0_113, %c55_114] : memref<32x432xf32, #tpu.memory_space<vmem>>, vector<32x360xf32>
    %c8_115 = arith.constant 8 : index
    %c0_116 = arith.constant 0 : index
    %c0_117 = arith.constant 0 : index
    %132 = vector.load %arg4[%c8_115, %c0_116, %c0_117] : memref<9x32x32xf32, #tpu.memory_space<vmem>>, vector<1x32x32xf32>
    %133 = vector.shape_cast %132 : vector<1x32x32xf32> to vector<32x32xf32>
    %cst_118 = arith.constant dense<0.000000e+00> : vector<32x360xf32>
    %134 = tpu.matmul %133, %131, %cst_118 {dimension_numbers = #tpu.dot_dimension_numbers<[1], [0], [0], [1], [0, 0, 1, 1], [], []>} : vector<32x32xf32>, vector<32x360xf32>, vector<32x360xf32> -> vector<32x360xf32>
    %135 = arith.addf %130, %134 : vector<32x360xf32>
    %cst_119 = arith.constant 0.000000e+00 : f32
    %136 = vector.broadcast %cst_119 : f32 to vector<32x360xf32>
    %137 = arith.cmpf ogt, %135, %136 : vector<32x360xf32>
    %cst_120 = arith.constant 2.000000e-01 : f32
    %138 = vector.broadcast %cst_120 : f32 to vector<32x360xf32>
    %139 = arith.mulf %138, %135 : vector<32x360xf32>
    %140 = arith.select %137, %135, %139 : vector<32x360xi1>, vector<32x360xf32>
    %c0_121 = arith.constant 0 : index
    %c0_122 = arith.constant 0 : index
    %141 = vector.load %arg10[%c0_121, %c0_122] : memref<1x432xi32, #tpu.memory_space<vmem>>, vector<1x360xi32>
    %c0_123 = arith.constant 0 : index
    %c0_124 = arith.constant 0 : index
    %142 = vector.load %arg9[%c0_123, %c0_124] : memref<1x432xi32, #tpu.memory_space<vmem>>, vector<1x360xi32>
    %c1_i32_125 = arith.constant 1 : i32
    %143 = vector.broadcast %c1_i32_125 : i32 to vector<1x360xi32>
    %144 = arith.cmpi sge, %141, %143 : vector<1x360xi32>
    %c16_i32_126 = arith.constant 16 : i32
    %145 = vector.broadcast %c16_i32_126 : i32 to vector<1x360xi32>
    %146 = arith.cmpi sle, %141, %145 : vector<1x360xi32>
    %147 = arith.andi %144, %146 : vector<1x360xi1>
    %148 = vector.broadcast %88 : i32 to vector<1x360xi32>
    %149 = arith.cmpi sge, %142, %148 : vector<1x360xi32>
    %150 = arith.andi %147, %149 : vector<1x360xi1>
    %c16_i32_127 = arith.constant 16 : i32
    %151 = arith.addi %88, %c16_i32_127 : i32
    %152 = vector.broadcast %151 : i32 to vector<1x360xi32>
    %153 = arith.cmpi slt, %142, %152 : vector<1x360xi32>
    %154 = arith.andi %150, %153 : vector<1x360xi1>
    %cst_128 = arith.constant 0.000000e+00 : f32
    %155 = vector.shape_cast %154 : vector<1x360xi1> to vector<1x360xi1>
    %156 = vector.broadcast %155 : vector<1x360xi1> to vector<32x360xi1>
    %157 = vector.broadcast %cst_128 : f32 to vector<32x360xf32>
    %158 = arith.select %156, %140, %157 : vector<32x360xi1>, vector<32x360xf32>
    %c0_129 = arith.constant 0 : index
    %c18_130 = arith.constant 18 : index
    %159 = vector.load %arg14[%c0_129, %c18_130] : memref<32x432xf32, #tpu.memory_space<vmem>>, vector<32x360xf32>
    tpu.vector_store %arg14[%c0_129, %c18_130], %158 {strides = array<i32>} : memref<32x432xf32, #tpu.memory_space<vmem>>, vector<32x360xf32>,
    %c2_131 = arith.constant 2 : index
    %c0_132 = arith.constant 0 : index
    %c0_133 = arith.constant 0 : index
    %160 = vector.load %arg7[%c2_131, %c0_132, %c0_133] : memref<3x32x1xf32, #tpu.memory_space<vmem>>, vector<1x32x1xf32>
    %161 = vector.shape_cast %160 : vector<1x32x1xf32> to vector<32x1xf32>
    %c1_i32_134 = arith.constant 1 : i32
    %162 = arith.subi %c1_i32_134, %1 : i32
    %163 = vector.shape_cast %161 : vector<32x1xf32> to vector<32x1xf32>
    %164 = vector.broadcast %163 : vector<32x1xf32> to vector<32x324xf32>
    %c0_135 = arith.constant 0 : index
    %c17_136 = arith.constant 17 : index
    %165 = vector.load %arg14[%c0_135, %c17_136] : memref<32x432xf32, #tpu.memory_space<vmem>>, vector<32x324xf32>
    %c0_137 = arith.constant 0 : index
    %c0_138 = arith.constant 0 : index
    %c0_139 = arith.constant 0 : index
    %166 = vector.load %arg5[%c0_137, %c0_138, %c0_139] : memref<9x32x32xf32, #tpu.memory_space<vmem>>, vector<1x32x32xf32>
    %167 = vector.shape_cast %166 : vector<1x32x32xf32> to vector<32x32xf32>
    %cst_140 = arith.constant dense<0.000000e+00> : vector<32x324xf32>
    %168 = tpu.matmul %167, %165, %cst_140 {dimension_numbers = #tpu.dot_dimension_numbers<[1], [0], [0], [1], [0, 0, 1, 1], [], []>} : vector<32x32xf32>, vector<32x324xf32>, vector<32x324xf32> -> vector<32x324xf32>
    %169 = arith.addf %164, %168 : vector<32x324xf32>
    %c0_141 = arith.constant 0 : index
    %c18_142 = arith.constant 18 : index
    %170 = vector.load %arg14[%c0_141, %c18_142] : memref<32x432xf32, #tpu.memory_space<vmem>>, vector<32x324xf32>
    %c1_143 = arith.constant 1 : index
    %c0_144 = arith.constant 0 : index
    %c0_145 = arith.constant 0 : index
    %171 = vector.load %arg5[%c1_143, %c0_144, %c0_145] : memref<9x32x32xf32, #tpu.memory_space<vmem>>, vector<1x32x32xf32>
    %172 = vector.shape_cast %171 : vector<1x32x32xf32> to vector<32x32xf32>
    %cst_146 = arith.constant dense<0.000000e+00> : vector<32x324xf32>
    %173 = tpu.matmul %172, %170, %cst_146 {dimension_numbers = #tpu.dot_dimension_numbers<[1], [0], [0], [1], [0, 0, 1, 1], [], []>} : vector<32x32xf32>, vector<32x324xf32>, vector<32x324xf32> -> vector<32x324xf32>
    %174 = arith.addf %169, %173 : vector<32x324xf32>
    %c0_147 = arith.constant 0 : index
    %c19_148 = arith.constant 19 : index
    %175 = vector.load %arg14[%c0_147, %c19_148] : memref<32x432xf32, #tpu.memory_space<vmem>>, vector<32x324xf32>
    %c2_149 = arith.constant 2 : index
    %c0_150 = arith.constant 0 : index
    %c0_151 = arith.constant 0 : index
    %176 = vector.load %arg5[%c2_149, %c0_150, %c0_151] : memref<9x32x32xf32, #tpu.memory_space<vmem>>, vector<1x32x32xf32>
    %177 = vector.shape_cast %176 : vector<1x32x32xf32> to vector<32x32xf32>
    %cst_152 = arith.constant dense<0.000000e+00> : vector<32x324xf32>
    %178 = tpu.matmul %177, %175, %cst_152 {dimension_numbers = #tpu.dot_dimension_numbers<[1], [0], [0], [1], [0, 0, 1, 1], [], []>} : vector<32x32xf32>, vector<32x324xf32>, vector<32x324xf32> -> vector<32x324xf32>
    %179 = arith.addf %174, %178 : vector<32x324xf32>
    %c0_153 = arith.constant 0 : index
    %c35_154 = arith.constant 35 : index
    %180 = vector.load %arg14[%c0_153, %c35_154] : memref<32x432xf32, #tpu.memory_space<vmem>>, vector<32x324xf32>
    %c3_155 = arith.constant 3 : index
    %c0_156 = arith.constant 0 : index
    %c0_157 = arith.constant 0 : index
    %181 = vector.load %arg5[%c3_155, %c0_156, %c0_157] : memref<9x32x32xf32, #tpu.memory_space<vmem>>, vector<1x32x32xf32>
    %182 = vector.shape_cast %181 : vector<1x32x32xf32> to vector<32x32xf32>
    %cst_158 = arith.constant dense<0.000000e+00> : vector<32x324xf32>
    %183 = tpu.matmul %182, %180, %cst_158 {dimension_numbers = #tpu.dot_dimension_numbers<[1], [0], [0], [1], [0, 0, 1, 1], [], []>} : vector<32x32xf32>, vector<32x324xf32>, vector<32x324xf32> -> vector<32x324xf32>
    %184 = arith.addf %179, %183 : vector<32x324xf32>
    %c0_159 = arith.constant 0 : index
    %c36_160 = arith.constant 36 : index
    %185 = vector.load %arg14[%c0_159, %c36_160] : memref<32x432xf32, #tpu.memory_space<vmem>>, vector<32x324xf32>
    %c4_161 = arith.constant 4 : index
    %c0_162 = arith.constant 0 : index
    %c0_163 = arith.constant 0 : index
    %186 = vector.load %arg5[%c4_161, %c0_162, %c0_163] : memref<9x32x32xf32, #tpu.memory_space<vmem>>, vector<1x32x32xf32>
    %187 = vector.shape_cast %186 : vector<1x32x32xf32> to vector<32x32xf32>
    %cst_164 = arith.constant dense<0.000000e+00> : vector<32x324xf32>
    %188 = tpu.matmul %187, %185, %cst_164 {dimension_numbers = #tpu.dot_dimension_numbers<[1], [0], [0], [1], [0, 0, 1, 1], [], []>} : vector<32x32xf32>, vector<32x324xf32>, vector<32x324xf32> -> vector<32x324xf32>
    %189 = arith.addf %184, %188 : vector<32x324xf32>
    %c0_165 = arith.constant 0 : index
    %c37_166 = arith.constant 37 : index
    %190 = vector.load %arg14[%c0_165, %c37_166] : memref<32x432xf32, #tpu.memory_space<vmem>>, vector<32x324xf32>
    %c5_167 = arith.constant 5 : index
    %c0_168 = arith.constant 0 : index
    %c0_169 = arith.constant 0 : index
    %191 = vector.load %arg5[%c5_167, %c0_168, %c0_169] : memref<9x32x32xf32, #tpu.memory_space<vmem>>, vector<1x32x32xf32>
    %192 = vector.shape_cast %191 : vector<1x32x32xf32> to vector<32x32xf32>
    %cst_170 = arith.constant dense<0.000000e+00> : vector<32x324xf32>
    %193 = tpu.matmul %192, %190, %cst_170 {dimension_numbers = #tpu.dot_dimension_numbers<[1], [0], [0], [1], [0, 0, 1, 1], [], []>} : vector<32x32xf32>, vector<32x324xf32>, vector<32x324xf32> -> vector<32x324xf32>
    %194 = arith.addf %189, %193 : vector<32x324xf32>
    %c0_171 = arith.constant 0 : index
    %c53_172 = arith.constant 53 : index
    %195 = vector.load %arg14[%c0_171, %c53_172] : memref<32x432xf32, #tpu.memory_space<vmem>>, vector<32x324xf32>
    %c6_173 = arith.constant 6 : index
    %c0_174 = arith.constant 0 : index
    %c0_175 = arith.constant 0 : index
    %196 = vector.load %arg5[%c6_173, %c0_174, %c0_175] : memref<9x32x32xf32, #tpu.memory_space<vmem>>, vector<1x32x32xf32>
    %197 = vector.shape_cast %196 : vector<1x32x32xf32> to vector<32x32xf32>
    %cst_176 = arith.constant dense<0.000000e+00> : vector<32x324xf32>
    %198 = tpu.matmul %197, %195, %cst_176 {dimension_numbers = #tpu.dot_dimension_numbers<[1], [0], [0], [1], [0, 0, 1, 1], [], []>} : vector<32x32xf32>, vector<32x324xf32>, vector<32x324xf32> -> vector<32x324xf32>
    %199 = arith.addf %194, %198 : vector<32x324xf32>
    %c0_177 = arith.constant 0 : index
    %c54_178 = arith.constant 54 : index
    %200 = vector.load %arg14[%c0_177, %c54_178] : memref<32x432xf32, #tpu.memory_space<vmem>>, vector<32x324xf32>
    %c7_179 = arith.constant 7 : index
    %c0_180 = arith.constant 0 : index
    %c0_181 = arith.constant 0 : index
    %201 = vector.load %arg5[%c7_179, %c0_180, %c0_181] : memref<9x32x32xf32, #tpu.memory_space<vmem>>, vector<1x32x32xf32>
    %202 = vector.shape_cast %201 : vector<1x32x32xf32> to vector<32x32xf32>
    %cst_182 = arith.constant dense<0.000000e+00> : vector<32x324xf32>
    %203 = tpu.matmul %202, %200, %cst_182 {dimension_numbers = #tpu.dot_dimension_numbers<[1], [0], [0], [1], [0, 0, 1, 1], [], []>} : vector<32x32xf32>, vector<32x324xf32>, vector<32x324xf32> -> vector<32x324xf32>
    %204 = arith.addf %199, %203 : vector<32x324xf32>
    %c0_183 = arith.constant 0 : index
    %c55_184 = arith.constant 55 : index
    %205 = vector.load %arg14[%c0_183, %c55_184] : memref<32x432xf32, #tpu.memory_space<vmem>>, vector<32x324xf32>
    %c8_185 = arith.constant 8 : index
    %c0_186 = arith.constant 0 : index
    %c0_187 = arith.constant 0 : index
    %206 = vector.load %arg5[%c8_185, %c0_186, %c0_187] : memref<9x32x32xf32, #tpu.memory_space<vmem>>, vector<1x32x32xf32>
    %207 = vector.shape_cast %206 : vector<1x32x32xf32> to vector<32x32xf32>
    %cst_188 = arith.constant dense<0.000000e+00> : vector<32x324xf32>
    %208 = tpu.matmul %207, %205, %cst_188 {dimension_numbers = #tpu.dot_dimension_numbers<[1], [0], [0], [1], [0, 0, 1, 1], [], []>} : vector<32x32xf32>, vector<32x324xf32>, vector<32x324xf32> -> vector<32x324xf32>
    %209 = arith.addf %204, %208 : vector<32x324xf32>
    %cst_189 = arith.constant 0.000000e+00 : f32
    %210 = vector.broadcast %cst_189 : f32 to vector<32x324xf32>
    %211 = arith.cmpf ogt, %209, %210 : vector<32x324xf32>
    %cst_190 = arith.constant 2.000000e-01 : f32
    %212 = vector.broadcast %cst_190 : f32 to vector<32x324xf32>
    %213 = arith.mulf %212, %209 : vector<32x324xf32>
    %214 = arith.select %211, %209, %213 : vector<32x324xi1>, vector<32x324xf32>
    %c0_191 = arith.constant 0 : index
    %c0_192 = arith.constant 0 : index
    %215 = vector.load %arg10[%c0_191, %c0_192] : memref<1x432xi32, #tpu.memory_space<vmem>>, vector<1x324xi32>
    %c0_193 = arith.constant 0 : index
    %c0_194 = arith.constant 0 : index
    %216 = vector.load %arg9[%c0_193, %c0_194] : memref<1x432xi32, #tpu.memory_space<vmem>>, vector<1x324xi32>
    %c1_i32_195 = arith.constant 1 : i32
    %217 = vector.broadcast %c1_i32_195 : i32 to vector<1x324xi32>
    %218 = arith.cmpi sge, %215, %217 : vector<1x324xi32>
    %c16_i32_196 = arith.constant 16 : i32
    %219 = vector.broadcast %c16_i32_196 : i32 to vector<1x324xi32>
    %220 = arith.cmpi sle, %215, %219 : vector<1x324xi32>
    %221 = arith.andi %218, %220 : vector<1x324xi1>
    %222 = vector.broadcast %162 : i32 to vector<1x324xi32>
    %223 = arith.cmpi sge, %216, %222 : vector<1x324xi32>
    %224 = arith.andi %221, %223 : vector<1x324xi1>
    %c16_i32_197 = arith.constant 16 : i32
    %225 = arith.addi %162, %c16_i32_197 : i32
    %226 = vector.broadcast %225 : i32 to vector<1x324xi32>
    %227 = arith.cmpi slt, %216, %226 : vector<1x324xi32>
    %228 = arith.andi %224, %227 : vector<1x324xi1>
    %cst_198 = arith.constant 0.000000e+00 : f32
    %229 = vector.shape_cast %228 : vector<1x324xi1> to vector<1x324xi1>
    %230 = vector.broadcast %229 : vector<1x324xi1> to vector<32x324xi1>
    %231 = vector.broadcast %cst_198 : f32 to vector<32x324xf32>
    %232 = arith.select %230, %214, %231 : vector<32x324xi1>, vector<32x324xf32>
    %c0_199 = arith.constant 0 : index
    %c18_200 = arith.constant 18 : index
    %233 = vector.load %arg13[%c0_199, %c18_200] : memref<32x432xf32, #tpu.memory_space<vmem>>, vector<32x324xf32>
    tpu.vector_store %arg13[%c0_199, %c18_200], %232 {strides = array<i32>} : memref<32x432xf32, #tpu.memory_space<vmem>>, vector<32x324xf32>,
    %c0_201 = arith.constant 0 : index
    %c0_202 = arith.constant 0 : index
    %234 = vector.load %arg8[%c0_201, %c0_202] : memref<4x1xf32, #tpu.memory_space<vmem>>, vector<4x1xf32>
    %235 = vector.shape_cast %234 : vector<4x1xf32> to vector<4x1xf32>
    %236 = vector.broadcast %235 : vector<4x1xf32> to vector<4x288xf32>
    %c0_203 = arith.constant 0 : index
    %c17_204 = arith.constant 17 : index
    %237 = vector.load %arg13[%c0_203, %c17_204] : memref<32x432xf32, #tpu.memory_space<vmem>>, vector<32x288xf32>
    %c0_205 = arith.constant 0 : index
    %c0_206 = arith.constant 0 : index
    %c0_207 = arith.constant 0 : index
    %238 = vector.load %arg6[%c0_205, %c0_206, %c0_207] : memref<9x4x32xf32, #tpu.memory_space<vmem>>, vector<1x4x32xf32>
    %239 = vector.shape_cast %238 : vector<1x4x32xf32> to vector<4x32xf32>
    %cst_208 = arith.constant dense<0.000000e+00> : vector<4x288xf32>
    %240 = tpu.matmul %239, %237, %cst_208 {dimension_numbers = #tpu.dot_dimension_numbers<[1], [0], [0], [1], [0, 0, 1, 1], [], []>} : vector<4x32xf32>, vector<32x288xf32>, vector<4x288xf32> -> vector<4x288xf32>
    %241 = arith.addf %236, %240 : vector<4x288xf32>
    %c0_209 = arith.constant 0 : index
    %c18_210 = arith.constant 18 : index
    %242 = vector.load %arg13[%c0_209, %c18_210] : memref<32x432xf32, #tpu.memory_space<vmem>>, vector<32x288xf32>
    %c1_211 = arith.constant 1 : index
    %c0_212 = arith.constant 0 : index
    %c0_213 = arith.constant 0 : index
    %243 = vector.load %arg6[%c1_211, %c0_212, %c0_213] : memref<9x4x32xf32, #tpu.memory_space<vmem>>, vector<1x4x32xf32>
    %244 = vector.shape_cast %243 : vector<1x4x32xf32> to vector<4x32xf32>
    %cst_214 = arith.constant dense<0.000000e+00> : vector<4x288xf32>
    %245 = tpu.matmul %244, %242, %cst_214 {dimension_numbers = #tpu.dot_dimension_numbers<[1], [0], [0], [1], [0, 0, 1, 1], [], []>} : vector<4x32xf32>, vector<32x288xf32>, vector<4x288xf32> -> vector<4x288xf32>
    %246 = arith.addf %241, %245 : vector<4x288xf32>
    %c0_215 = arith.constant 0 : index
    %c19_216 = arith.constant 19 : index
    %247 = vector.load %arg13[%c0_215, %c19_216] : memref<32x432xf32, #tpu.memory_space<vmem>>, vector<32x288xf32>
    %c2_217 = arith.constant 2 : index
    %c0_218 = arith.constant 0 : index
    %c0_219 = arith.constant 0 : index
    %248 = vector.load %arg6[%c2_217, %c0_218, %c0_219] : memref<9x4x32xf32, #tpu.memory_space<vmem>>, vector<1x4x32xf32>
    %249 = vector.shape_cast %248 : vector<1x4x32xf32> to vector<4x32xf32>
    %cst_220 = arith.constant dense<0.000000e+00> : vector<4x288xf32>
    %250 = tpu.matmul %249, %247, %cst_220 {dimension_numbers = #tpu.dot_dimension_numbers<[1], [0], [0], [1], [0, 0, 1, 1], [], []>} : vector<4x32xf32>, vector<32x288xf32>, vector<4x288xf32> -> vector<4x288xf32>
    %251 = arith.addf %246, %250 : vector<4x288xf32>
    %c0_221 = arith.constant 0 : index
    %c35_222 = arith.constant 35 : index
    %252 = vector.load %arg13[%c0_221, %c35_222] : memref<32x432xf32, #tpu.memory_space<vmem>>, vector<32x288xf32>
    %c3_223 = arith.constant 3 : index
    %c0_224 = arith.constant 0 : index
    %c0_225 = arith.constant 0 : index
    %253 = vector.load %arg6[%c3_223, %c0_224, %c0_225] : memref<9x4x32xf32, #tpu.memory_space<vmem>>, vector<1x4x32xf32>
    %254 = vector.shape_cast %253 : vector<1x4x32xf32> to vector<4x32xf32>
    %cst_226 = arith.constant dense<0.000000e+00> : vector<4x288xf32>
    %255 = tpu.matmul %254, %252, %cst_226 {dimension_numbers = #tpu.dot_dimension_numbers<[1], [0], [0], [1], [0, 0, 1, 1], [], []>} : vector<4x32xf32>, vector<32x288xf32>, vector<4x288xf32> -> vector<4x288xf32>
    %256 = arith.addf %251, %255 : vector<4x288xf32>
    %c0_227 = arith.constant 0 : index
    %c36_228 = arith.constant 36 : index
    %257 = vector.load %arg13[%c0_227, %c36_228] : memref<32x432xf32, #tpu.memory_space<vmem>>, vector<32x288xf32>
    %c4_229 = arith.constant 4 : index
    %c0_230 = arith.constant 0 : index
    %c0_231 = arith.constant 0 : index
    %258 = vector.load %arg6[%c4_229, %c0_230, %c0_231] : memref<9x4x32xf32, #tpu.memory_space<vmem>>, vector<1x4x32xf32>
    %259 = vector.shape_cast %258 : vector<1x4x32xf32> to vector<4x32xf32>
    %cst_232 = arith.constant dense<0.000000e+00> : vector<4x288xf32>
    %260 = tpu.matmul %259, %257, %cst_232 {dimension_numbers = #tpu.dot_dimension_numbers<[1], [0], [0], [1], [0, 0, 1, 1], [], []>} : vector<4x32xf32>, vector<32x288xf32>, vector<4x288xf32> -> vector<4x288xf32>
    %261 = arith.addf %256, %260 : vector<4x288xf32>
    %c0_233 = arith.constant 0 : index
    %c37_234 = arith.constant 37 : index
    %262 = vector.load %arg13[%c0_233, %c37_234] : memref<32x432xf32, #tpu.memory_space<vmem>>, vector<32x288xf32>
    %c5_235 = arith.constant 5 : index
    %c0_236 = arith.constant 0 : index
    %c0_237 = arith.constant 0 : index
    %263 = vector.load %arg6[%c5_235, %c0_236, %c0_237] : memref<9x4x32xf32, #tpu.memory_space<vmem>>, vector<1x4x32xf32>
    %264 = vector.shape_cast %263 : vector<1x4x32xf32> to vector<4x32xf32>
    %cst_238 = arith.constant dense<0.000000e+00> : vector<4x288xf32>
    %265 = tpu.matmul %264, %262, %cst_238 {dimension_numbers = #tpu.dot_dimension_numbers<[1], [0], [0], [1], [0, 0, 1, 1], [], []>} : vector<4x32xf32>, vector<32x288xf32>, vector<4x288xf32> -> vector<4x288xf32>
    %266 = arith.addf %261, %265 : vector<4x288xf32>
    %c0_239 = arith.constant 0 : index
    %c53_240 = arith.constant 53 : index
    %267 = vector.load %arg13[%c0_239, %c53_240] : memref<32x432xf32, #tpu.memory_space<vmem>>, vector<32x288xf32>
    %c6_241 = arith.constant 6 : index
    %c0_242 = arith.constant 0 : index
    %c0_243 = arith.constant 0 : index
    %268 = vector.load %arg6[%c6_241, %c0_242, %c0_243] : memref<9x4x32xf32, #tpu.memory_space<vmem>>, vector<1x4x32xf32>
    %269 = vector.shape_cast %268 : vector<1x4x32xf32> to vector<4x32xf32>
    %cst_244 = arith.constant dense<0.000000e+00> : vector<4x288xf32>
    %270 = tpu.matmul %269, %267, %cst_244 {dimension_numbers = #tpu.dot_dimension_numbers<[1], [0], [0], [1], [0, 0, 1, 1], [], []>} : vector<4x32xf32>, vector<32x288xf32>, vector<4x288xf32> -> vector<4x288xf32>
    %271 = arith.addf %266, %270 : vector<4x288xf32>
    %c0_245 = arith.constant 0 : index
    %c54_246 = arith.constant 54 : index
    %272 = vector.load %arg13[%c0_245, %c54_246] : memref<32x432xf32, #tpu.memory_space<vmem>>, vector<32x288xf32>
    %c7_247 = arith.constant 7 : index
    %c0_248 = arith.constant 0 : index
    %c0_249 = arith.constant 0 : index
    %273 = vector.load %arg6[%c7_247, %c0_248, %c0_249] : memref<9x4x32xf32, #tpu.memory_space<vmem>>, vector<1x4x32xf32>
    %274 = vector.shape_cast %273 : vector<1x4x32xf32> to vector<4x32xf32>
    %cst_250 = arith.constant dense<0.000000e+00> : vector<4x288xf32>
    %275 = tpu.matmul %274, %272, %cst_250 {dimension_numbers = #tpu.dot_dimension_numbers<[1], [0], [0], [1], [0, 0, 1, 1], [], []>} : vector<4x32xf32>, vector<32x288xf32>, vector<4x288xf32> -> vector<4x288xf32>
    %276 = arith.addf %271, %275 : vector<4x288xf32>
    %c0_251 = arith.constant 0 : index
    %c55_252 = arith.constant 55 : index
    %277 = vector.load %arg13[%c0_251, %c55_252] : memref<32x432xf32, #tpu.memory_space<vmem>>, vector<32x288xf32>
    %c8_253 = arith.constant 8 : index
    %c0_254 = arith.constant 0 : index
    %c0_255 = arith.constant 0 : index
    %278 = vector.load %arg6[%c8_253, %c0_254, %c0_255] : memref<9x4x32xf32, #tpu.memory_space<vmem>>, vector<1x4x32xf32>
    %279 = vector.shape_cast %278 : vector<1x4x32xf32> to vector<4x32xf32>
    %cst_256 = arith.constant dense<0.000000e+00> : vector<4x288xf32>
    %280 = tpu.matmul %279, %277, %cst_256 {dimension_numbers = #tpu.dot_dimension_numbers<[1], [0], [0], [1], [0, 0, 1, 1], [], []>} : vector<4x32xf32>, vector<32x288xf32>, vector<4x288xf32> -> vector<4x288xf32>
    %281 = arith.addf %276, %280 : vector<4x288xf32>
    %cst_257 = arith.constant 0.000000e+00 : f32
    %282 = vector.broadcast %cst_257 : f32 to vector<4x288xf32>
    %283 = arith.cmpf ogt, %281, %282 : vector<4x288xf32>
    %cst_258 = arith.constant 0.000000e+00 : f32
    %284 = vector.broadcast %cst_258 : f32 to vector<4x288xf32>
    %285 = arith.mulf %284, %281 : vector<4x288xf32>
    %286 = arith.select %283, %281, %285 : vector<4x288xi1>, vector<4x288xf32>
    %287 = vector.shape_cast %286 : vector<4x288xf32> to vector<4x16x18xf32>
    %288 = vector.extract_strided_slice %287 {offsets = [0, 0, 1], sizes = [4, 16, 16], strides = [1, 1, 1]} : vector<4x16x18xf32> to vector<4x16x16xf32>
    %c0_259 = arith.constant 0 : index
    %c0_260 = arith.constant 0 : index
    %c0_261 = arith.constant 0 : index
    %c0_262 = arith.constant 0 : index
    %289 = vector.load %arg11[%c0_259, %c0_260, %c0_261, %c0_262] : memref<1x4x16x16xf32, #tpu.memory_space<vmem>>, vector<1x4x16x16xf32>
    %290 = vector.shape_cast %289 : vector<1x4x16x16xf32> to vector<4x16x16xf32>
    %291 = vector.shape_cast %288 : vector<4x16x16xf32> to vector<1x4x16x16xf32>
    tpu.vector_store %arg11[%c0_259, %c0_260, %c0_261, %c0_262], %291 {strides = array<i32>} : memref<1x4x16x16xf32, #tpu.memory_space<vmem>>, vector<1x4x16x16xf32>,
    return
  }
  func.func @transform_0(%arg0: i32, %arg1: i32) -> (i32, i32, i32, i32) {
    %c0_i32 = arith.constant 0 : i32
    %c0_i32_0 = arith.constant 0 : i32
    %c0_i32_1 = arith.constant 0 : i32
    %c0_i32_2 = arith.constant 0 : i32
    return %arg0, %c0_i32, %c0_i32_0, %c0_i32_1 : i32, i32, i32, i32
  }
  func.func @transform_1(%arg0: i32, %arg1: i32) -> (i32, i32, i32) {
    %c0_i32 = arith.constant 0 : i32
    %c0_i32_0 = arith.constant 0 : i32
    %c0_i32_1 = arith.constant 0 : i32
    %c0_i32_2 = arith.constant 0 : i32
    return %c0_i32, %c0_i32_0, %c0_i32_1 : i32, i32, i32
  }
  func.func @transform_2(%arg0: i32, %arg1: i32) -> (i32, i32, i32) {
    %c0_i32 = arith.constant 0 : i32
    %c0_i32_0 = arith.constant 0 : i32
    %c0_i32_1 = arith.constant 0 : i32
    %c0_i32_2 = arith.constant 0 : i32
    return %c0_i32, %c0_i32_0, %c0_i32_1 : i32, i32, i32
  }
  func.func @transform_3(%arg0: i32, %arg1: i32) -> (i32, i32, i32) {
    %c0_i32 = arith.constant 0 : i32
    %c0_i32_0 = arith.constant 0 : i32
    %c0_i32_1 = arith.constant 0 : i32
    %c0_i32_2 = arith.constant 0 : i32
    return %c0_i32, %c0_i32_0, %c0_i32_1 : i32, i32, i32
  }
  func.func @transform_4(%arg0: i32, %arg1: i32) -> (i32, i32, i32) {
    %c0_i32 = arith.constant 0 : i32
    %c0_i32_0 = arith.constant 0 : i32
    %c0_i32_1 = arith.constant 0 : i32
    %c0_i32_2 = arith.constant 0 : i32
    return %c0_i32, %c0_i32_0, %c0_i32_1 : i32, i32, i32
  }
  func.func @transform_5(%arg0: i32, %arg1: i32) -> (i32, i32, i32) {
    %c0_i32 = arith.constant 0 : i32
    %c0_i32_0 = arith.constant 0 : i32
    %c0_i32_1 = arith.constant 0 : i32
    %c0_i32_2 = arith.constant 0 : i32
    return %c0_i32, %c0_i32_0, %c0_i32_1 : i32, i32, i32
  }
  func.func @transform_6(%arg0: i32, %arg1: i32) -> (i32, i32) {
    %c0_i32 = arith.constant 0 : i32
    %c0_i32_0 = arith.constant 0 : i32
    %c0_i32_1 = arith.constant 0 : i32
    return %c0_i32, %c0_i32_0 : i32, i32
  }
  func.func @transform_7(%arg0: i32, %arg1: i32) -> (i32, i32) {
    %c0_i32 = arith.constant 0 : i32
    %c0_i32_0 = arith.constant 0 : i32
    %c0_i32_1 = arith.constant 0 : i32
    return %c0_i32, %c0_i32_0 : i32, i32
  }
  func.func @transform_8(%arg0: i32, %arg1: i32) -> (i32, i32) {
    %c0_i32 = arith.constant 0 : i32
    %c0_i32_0 = arith.constant 0 : i32
    %c0_i32_1 = arith.constant 0 : i32
    return %c0_i32, %c0_i32_0 : i32, i32
  }
  func.func @transform_9(%arg0: i32, %arg1: i32) -> (i32, i32, i32, i32) {
    %c0_i32 = arith.constant 0 : i32
    %c0_i32_0 = arith.constant 0 : i32
    %c0_i32_1 = arith.constant 0 : i32
    return %arg0, %c0_i32, %arg1, %c0_i32_0 : i32, i32, i32, i32
  }
}

</mosaic_0001>

<llo_original>
// kernel: decom_forward.1
$region0: #{decom_forward.1}
  #allocation0 [shape = 'u32[]', space=smem, size = 0x4, offset = 0x4, fixed_abs, tag = 'smem constant byte address 0x4 - core index']
  #allocation1 [shape = 'u32[144,128]{1,0:T(1,128)}', space=vmem, size = 0x12000, scoped, tag = 'internal scratch']
  #allocation2 [shape = 'f32[3,468]{1,0:T(4,128)}', space=vmem, size = 0x2000, scoped, tag = 'scratch operand']
  #allocation3 [shape = 'f32[32,432]{1,0:T(8,128)}', space=vmem, size = 0x10000, scoped, tag = 'scratch operand']
  #allocation4 [shape = 'f32[32,432]{1,0:T(8,128)}', space=vmem, size = 0x10000, scoped, tag = 'scratch operand']
  %s0 = inlined_call_operand.vmem [shape: f32[2,3,26,18], index: 0, kind: input, shape index: {}]
  %s1 = inlined_call_operand.vmem [shape: f32[9,32,3], index: 1, kind: input, shape index: {}]
  %s2 = inlined_call_operand.vmem [shape: f32[9,32,32], index: 2, kind: input, shape index: {}]
  %s3 = inlined_call_operand.vmem [shape: f32[9,32,32], index: 3, kind: input, shape index: {}]
  %s4 = inlined_call_operand.vmem [shape: f32[9,4,32], index: 4, kind: input, shape index: {}]
  %s5 = inlined_call_operand.vmem [shape: f32[3,32,1], index: 5, kind: input, shape index: {}]
  %s6 = inlined_call_operand.vmem [shape: f32[4,1], index: 6, kind: input, shape index: {}]
  %s7 = inlined_call_operand.vmem [shape: s32[1,432], index: 7, kind: input, shape index: {}]
  %s8 = inlined_call_operand.vmem [shape: s32[1,432], index: 8, kind: input, shape index: {}]
  %s9 = inlined_call_operand.vmem [shape: f32[2,4,16,16], index: 9, kind: output, shape index: {}]
  %s10 = sld [smem:[#allocation0]]
  $region69: #{decom_forward.1} parent=0
    _
  %s12 = ssub.s32 1, %s10
  %s13 = scalar_select 0, %s12, %s10
  loop: start=0, step=1, limit=4
  $region2: #{decom_forward.1} parent=0 // loop_pre_header
    _
  $region3: #{decom_forward.1} parent=0 // loop_header
    %s15 = sphi 0, %s19
    %p16 = scmp.ge.s32.totalorder %s15, 4
    %s22 = sphi 0, %s34
    %s23 = sphi 0, %s30
    %s24 = sphi 0, %s22
    %s25 = sphi 0, %s23
    %s26 = sphi 0, %s24
    %s27 = sphi 0, %s25
    %s37 = sphi 0, %s39
    %s40 = sphi 0, %s37
    %s41 = sphi 0, %s40
    %s57 = sphi 0, %s41
    %s61 = sphi 0, %s61
    %s63 = sphi 0, %s61
    %s64 = sphi 0, %s63
    %s78 = sphi 0, %s64
    %s82 = sphi 0, %s82
    %s84 = sphi 0, %s82
    %s85 = sphi 0, %s84
    %s99 = sphi 0, %s85
    %s103 = sphi 0, %s103
    %s105 = sphi 0, %s103
    %s106 = sphi 0, %s105
    %s120 = sphi 0, %s106
    %s124 = sphi 0, %s124
    %s126 = sphi 0, %s124
    %s127 = sphi 0, %s126
    %s141 = sphi 0, %s127
    %s145 = sphi 0, %s145
    %s147 = sphi 0, %s145
    %s148 = sphi 0, %s147
    %s162 = sphi 0, %s148
    %s166 = sphi 0, %s166
    %s168 = sphi 0, %s166
    %s169 = sphi 0, %s168
    %s183 = sphi 0, %s169
    %s187 = sphi 0, %s187
    %s189 = sphi 0, %s187
    %s190 = sphi 0, %s189
    %s204 = sphi 0, %s190
    %s208 = sphi 0, %s208
    %s210 = sphi 0, %s208
    %s211 = sphi 0, %s210
    %s225 = sphi 0, %s211
    %s233 = sphi 0, %s235
    %s236 = sphi 0, %s233
    %s237 = sphi 0, %s236
    %s253 = sphi 0, %s237
  $region4: #{decom_forward.1} parent=0 // loop_header_branch
    %18 = sbr.rel (%p16) target = $region8
  $region5: #{decom_forward.1} parent=0 // loop_body
    %s20 = ssub.s32 %s15, 1
    %s21 = ssub.s32 %s15, 2
    %s28 = sadd.s32 1, %s23
    %p29 = scmp.ge.s32.totalorder %s28, 1
    %s30 = scalar_select %p29, 0, %s28
    %s31 = sadd.s32 1, %s22
    %s32 = scalar_select %p29, %s31, %s22
    %p33 = scmp.ge.s32.totalorder %s32, 2
    %s34 = scalar_select %p33, 0, %s32
    %s35 = ssub.s32 %s22, %s34
    %p36 = scmp.eq.s32.totalorder %s35, 0
    %s38 = sadd.s32 %s37, 1
    %s39 = scalar_select %p36, %s37, %s38
    %p42 = pneg %p36
    %p43 = scmp.eq.s32.totalorder %s15, 1
    %p44 = por %p42, %p43
    %p45 = scmp.ne.s32.totalorder %s37, %s40
    %p46 = scmp.eq.s32.totalorder %s15, 0
    %p47 = por %p45, %p46
    %p48 = scmp.ne.s32.totalorder %s37, %s40
    %p49 = scmp.eq.s32.totalorder %s20, 1
    %p50 = por %p48, %p49
    %p51 = scmp.ne.s32.totalorder %s40, %s41
    %p52 = scmp.eq.s32.totalorder %s20, 0
    %p53 = por %p51, %p52
    %p54 = scmp.ne.s32.totalorder %s40, %s41
    %p55 = scmp.eq.s32.totalorder %s21, 1
    %p56 = por %p54, %p55
    %p58 = scmp.ne.s32.totalorder %s41, %s57
    %p59 = scmp.eq.s32.totalorder %s21, 0
    %p60 = por %p58, %p59
    %s62 = sadd.s32 %s61, 1
    %p65 = scmp.eq.s32.totalorder %s15, 1
    %p66 = scmp.ne.s32.totalorder %s61, %s63
    %p67 = scmp.eq.s32.totalorder %s15, 0
    %p68 = por %p66, %p67
    %p69 = scmp.ne.s32.totalorder %s61, %s63
    %p70 = scmp.eq.s32.totalorder %s20, 1
    %p71 = por %p69, %p70
    %p72 = scmp.ne.s32.totalorder %s63, %s64
    %p73 = scmp.eq.s32.totalorder %s20, 0
    %p74 = por %p72, %p73
    %p75 = scmp.ne.s32.totalorder %s63, %s64
    %p76 = scmp.eq.s32.totalorder %s21, 1
    %p77 = por %p75, %p76
    %p79 = scmp.ne.s32.totalorder %s64, %s78
    %p80 = scmp.eq.s32.totalorder %s21, 0
    %p81 = por %p79, %p80
    %s83 = sadd.s32 %s82, 1
    %p86 = scmp.eq.s32.totalorder %s15, 1
    %p87 = scmp.ne.s32.totalorder %s82, %s84
    %p88 = scmp.eq.s32.totalorder %s15, 0
    %p89 = por %p87, %p88
    %p90 = scmp.ne.s32.totalorder %s82, %s84
    %p91 = scmp.eq.s32.totalorder %s20, 1
    %p92 = por %p90, %p91
    %p93 = scmp.ne.s32.totalorder %s84, %s85
    %p94 = scmp.eq.s32.totalorder %s20, 0
    %p95 = por %p93, %p94
    %p96 = scmp.ne.s32.totalorder %s84, %s85
    %p97 = scmp.eq.s32.totalorder %s21, 1
    %p98 = por %p96, %p97
    %p100 = scmp.ne.s32.totalorder %s85, %s99
    %p101 = scmp.eq.s32.totalorder %s21, 0
    %p102 = por %p100, %p101
    %s104 = sadd.s32 %s103, 1
    %p107 = scmp.eq.s32.totalorder %s15, 1
    %p108 = scmp.ne.s32.totalorder %s103, %s105
    %p109 = scmp.eq.s32.totalorder %s15, 0
    %p110 = por %p108, %p109
    %p111 = scmp.ne.s32.totalorder %s103, %s105
    %p112 = scmp.eq.s32.totalorder %s20, 1
    %p113 = por %p111, %p112
    %p114 = scmp.ne.s32.totalorder %s105, %s106
    %p115 = scmp.eq.s32.totalorder %s20, 0
    %p116 = por %p114, %p115
    %p117 = scmp.ne.s32.totalorder %s105, %s106
    %p118 = scmp.eq.s32.totalorder %s21, 1
    %p119 = por %p117, %p118
    %p121 = scmp.ne.s32.totalorder %s106, %s120
    %p122 = scmp.eq.s32.totalorder %s21, 0
    %p123 = por %p121, %p122
    %s125 = sadd.s32 %s124, 1
    %p128 = scmp.eq.s32.totalorder %s15, 1
    %p129 = scmp.ne.s32.totalorder %s124, %s126
    %p130 = scmp.eq.s32.totalorder %s15, 0
    %p131 = por %p129, %p130
    %p132 = scmp.ne.s32.totalorder %s124, %s126
    %p133 = scmp.eq.s32.totalorder %s20, 1
    %p134 = por %p132, %p133
    %p135 = scmp.ne.s32.totalorder %s126, %s127
    %p136 = scmp.eq.s32.totalorder %s20, 0
    %p137 = por %p135, %p136
    %p138 = scmp.ne.s32.totalorder %s126, %s127
    %p139 = scmp.eq.s32.totalorder %s21, 1
    %p140 = por %p138, %p139
    %p142 = scmp.ne.s32.totalorder %s127, %s141
    %p143 = scmp.eq.s32.totalorder %s21, 0
    %p144 = por %p142, %p143
    %s146 = sadd.s32 %s145, 1
    %p149 = scmp.eq.s32.totalorder %s15, 1
    %p150 = scmp.ne.s32.totalorder %s145, %s147
    %p151 = scmp.eq.s32.totalorder %s15, 0
    %p152 = por %p150, %p151
    %p153 = scmp.ne.s32.totalorder %s145, %s147
    %p154 = scmp.eq.s32.totalorder %s20, 1
    %p155 = por %p153, %p154
    %p156 = scmp.ne.s32.totalorder %s147, %s148
    %p157 = scmp.eq.s32.totalorder %s20, 0
    %p158 = por %p156, %p157
    %p159 = scmp.ne.s32.totalorder %s147, %s148
    %p160 = scmp.eq.s32.totalorder %s21, 1
    %p161 = por %p159, %p160
    %p163 = scmp.ne.s32.totalorder %s148, %s162
    %p164 = scmp.eq.s32.totalorder %s21, 0
    %p165 = por %p163, %p164
    %s167 = sadd.s32 %s166, 1
    %p170 = scmp.eq.s32.totalorder %s15, 1
    %p171 = scmp.ne.s32.totalorder %s166, %s168
    %p172 = scmp.eq.s32.totalorder %s15, 0
    %p173 = por %p171, %p172
    %p174 = scmp.ne.s32.totalorder %s166, %s168
    %p175 = scmp.eq.s32.totalorder %s20, 1
    %p176 = por %p174, %p175
    %p177 = scmp.ne.s32.totalorder %s168, %s169
    %p178 = scmp.eq.s32.totalorder %s20, 0
    %p179 = por %p177, %p178
    %p180 = scmp.ne.s32.totalorder %s168, %s169
    %p181 = scmp.eq.s32.totalorder %s21, 1
    %p182 = por %p180, %p181
    %p184 = scmp.ne.s32.totalorder %s169, %s183
    %p185 = scmp.eq.s32.totalorder %s21, 0
    %p186 = por %p184, %p185
    %s188 = sadd.s32 %s187, 1
    %p191 = scmp.eq.s32.totalorder %s15, 1
    %p192 = scmp.ne.s32.totalorder %s187, %s189
    %p193 = scmp.eq.s32.totalorder %s15, 0
    %p194 = por %p192, %p193
    %p195 = scmp.ne.s32.totalorder %s187, %s189
    %p196 = scmp.eq.s32.totalorder %s20, 1
    %p197 = por %p195, %p196
    %p198 = scmp.ne.s32.totalorder %s189, %s190
    %p199 = scmp.eq.s32.totalorder %s20, 0
    %p200 = por %p198, %p199
    %p201 = scmp.ne.s32.totalorder %s189, %s190
    %p202 = scmp.eq.s32.totalorder %s21, 1
    %p203 = por %p201, %p202
    %p205 = scmp.ne.s32.totalorder %s190, %s204
    %p206 = scmp.eq.s32.totalorder %s21, 0
    %p207 = por %p205, %p206
    %s209 = sadd.s32 %s208, 1
    %p212 = scmp.eq.s32.totalorder %s15, 1
    %p213 = scmp.ne.s32.totalorder %s208, %s210
    %p214 = scmp.eq.s32.totalorder %s15, 0
    %p215 = por %p213, %p214
    %p216 = scmp.ne.s32.totalorder %s208, %s210
    %p217 = scmp.eq.s32.totalorder %s20, 1
    %p218 = por %p216, %p217
    %p219 = scmp.ne.s32.totalorder %s210, %s211
    %p220 = scmp.eq.s32.totalorder %s20, 0
    %p221 = por %p219, %p220
    %p222 = scmp.ne.s32.totalorder %s210, %s211
    %p223 = scmp.eq.s32.totalorder %s21, 1
    %p224 = por %p222, %p223
    %p226 = scmp.ne.s32.totalorder %s211, %s225
    %p227 = scmp.eq.s32.totalorder %s21, 0
    %p228 = por %p226, %p227
    %s229 = ssub.s32 %s22, %s34
    %s230 = ssub.s32 %s23, %s30
    %s231 = sor.u32 %s229, %s230
    %p232 = scmp.eq.s32.totalorder %s231, 0
    %s234 = sadd.s32 %s233, 1
    %s235 = scalar_select %p232, %s233, %s234
    %p238 = pneg %p232
    %p239 = scmp.eq.s32.totalorder %s15, 1
    %p240 = por %p238, %p239
    %p241 = scmp.ne.s32.totalorder %s233, %s236
    %p242 = scmp.eq.s32.totalorder %s15, 0
    %p243 = por %p241, %p242
    %p244 = scmp.ne.s32.totalorder %s233, %s236
    %p245 = scmp.eq.s32.totalorder %s20, 1
    %p246 = por %p244, %p245
    %p247 = scmp.ne.s32.totalorder %s236, %s237
    %p248 = scmp.eq.s32.totalorder %s20, 0
    %p249 = por %p247, %p248
    %p250 = scmp.ne.s32.totalorder %s236, %s237
    %p251 = scmp.eq.s32.totalorder %s21, 1
    %p252 = por %p250, %p251
    %p254 = scmp.ne.s32.totalorder %s237, %s253
    %p255 = scmp.eq.s32.totalorder %s21, 0
    %p256 = por %p254, %p255
    %p257 = scmp.le.s32.totalorder 1, %s15
    %p258 = scmp.lt.s32.totalorder %s15, 3
    %p259 = pnand %p257, %p258
    %p260 = pneg %p259
    // Predicated region
    $region9: #{decom_forward.1} parent=5 // pred_check
      _
    $region10: #{decom_forward.1} parent=5 // pred_check_branch
      %262 = sbr.rel (%p259) target = $region12
    $region11: #{decom_forward.1} parent=5 // pred_region
      %s263 = ssub.s32 %s15, 1
      // Predicated region
      $region13: #{decom_forward.1} parent=11 // pred_check
        %p264 = pneg %p74
      $region14: #{decom_forward.1} parent=11 // pred_check_branch
        %266 = sbr.rel (%p264) target = $region16
      $region15: #{decom_forward.1} parent=11 // pred_region
        _
      $region16: #{decom_forward.1} parent=11 // pred_fallthru
        _
      // Predicated region
      $region17: #{decom_forward.1} parent=11 // pred_check
        %p267 = pneg %p95
      $region18: #{decom_forward.1} parent=11 // pred_check_branch
        %269 = sbr.rel (%p267) target = $region20
      $region19: #{decom_forward.1} parent=11 // pred_region
        _
      $region20: #{decom_forward.1} parent=11 // pred_fallthru
        _
      // Predicated region
      $region21: #{decom_forward.1} parent=11 // pred_check
        %p270 = pneg %p116
      $region22: #{decom_forward.1} parent=11 // pred_check_branch
        %272 = sbr.rel (%p270) target = $region24
      $region23: #{decom_forward.1} parent=11 // pred_region
        _
      $region24: #{decom_forward.1} parent=11 // pred_fallthru
        _
      // Predicated region
      $region25: #{decom_forward.1} parent=11 // pred_check
        %p273 = pneg %p137
      $region26: #{decom_forward.1} parent=11 // pred_check_branch
        %275 = sbr.rel (%p273) target = $region28
      $region27: #{decom_forward.1} parent=11 // pred_region
        _
      $region28: #{decom_forward.1} parent=11 // pred_fallthru
        _
      // Predicated region
      $region29: #{decom_forward.1} parent=11 // pred_check
        %p276 = pneg %p158
      $region30: #{decom_forward.1} parent=11 // pred_check_branch
        %278 = sbr.rel (%p276) target = $region32
      $region31: #{decom_forward.1} parent=11 // pred_region
        _
      $region32: #{decom_forward.1} parent=11 // pred_fallthru
        _
      // Predicated region
      $region33: #{decom_forward.1} parent=11 // pred_check
        %p279 = pneg %p179
      $region34: #{decom_forward.1} parent=11 // pred_check_branch
        %281 = sbr.rel (%p279) target = $region36
      $region35: #{decom_forward.1} parent=11 // pred_region
        _
      $region36: #{decom_forward.1} parent=11 // pred_fallthru
        _
      // Predicated region
      $region37: #{decom_forward.1} parent=11 // pred_check
        %p282 = pneg %p200
      $region38: #{decom_forward.1} parent=11 // pred_check_branch
        %284 = sbr.rel (%p282) target = $region40
      $region39: #{decom_forward.1} parent=11 // pred_region
        _
      $region40: #{decom_forward.1} parent=11 // pred_fallthru
        _
      // Predicated region
      $region41: #{decom_forward.1} parent=11 // pred_check
        %p285 = pneg %p221
      $region42: #{decom_forward.1} parent=11 // pred_check_branch
        %287 = sbr.rel (%p285) target = $region44
      $region43: #{decom_forward.1} parent=11 // pred_region
        _
      $region44: #{decom_forward.1} parent=11 // pred_fallthru
        _
    $region12: #{decom_forward.1} parent=5 // pred_fallthru
      _
    %p288 = scmp.lt.s32.totalorder %s15, 2
    // Predicated region
    $region45: #{decom_forward.1} parent=5 // pred_check
      %p289 = pneg %p288
    $region46: #{decom_forward.1} parent=5 // pred_check_branch
      %291 = sbr.rel (%p289) target = $region48
    $region47: #{decom_forward.1} parent=5 // pred_region
      // Predicated region
      $region49: #{decom_forward.1} parent=47 // pred_check
        %p292 = pneg %p47
      $region50: #{decom_forward.1} parent=47 // pred_check_branch
        %294 = sbr.rel (%p292) target = $region52
      $region51: #{decom_forward.1} parent=47 // pred_region
        %p295 = scmp.lt.s32.totalorder %s22, 1
        %s296 = scalar_select %p295, %s22, 1
        %s297 = smul.addr %s296, 12
        %s298 = smul.addr %s297, 8
        %s299 = scalar_lea.vmem %s0, %s298
      $region52: #{decom_forward.1} parent=47 // pred_fallthru
        _
    $region48: #{decom_forward.1} parent=5 // pred_fallthru
      _
    %p300 = scmp.le.s32.totalorder 1, %s15
    %p301 = scmp.lt.s32.totalorder %s15, 3
    %p302 = pnand %p300, %p301
    %p303 = pneg %p302
    // Predicated region
    $region53: #{decom_forward.1} parent=5 // pred_check
      _
    $region54: #{decom_forward.1} parent=5 // pred_check_branch
      %305 = sbr.rel (%p302) target = $region56
    $region55: #{decom_forward.1} parent=5 // pred_region
      %s306 = ssub.s32 %s15, 1
      %p307 = scmp.lt.s32.totalorder %s24, 1
      %s308 = scalar_select %p307, %s24, 1
      %s309 = smul.addr %s308, 12
      %s310 = smul.addr %s309, 8
      %s311 = scalar_lea.vmem %s0, %s310
      %p312 = pneg %p53
      %p313 = pneg %p50
      %p314 = pneg %p74
      %p315 = pneg %p71
      %p316 = pneg %p95
      %p317 = pneg %p92
      %p318 = pneg %p116
      %p319 = pneg %p113
      %p320 = pneg %p137
      %p321 = pneg %p134
      %p322 = pneg %p158
      %p323 = pneg %p155
      %p324 = pneg %p179
      %p325 = pneg %p176
      %p326 = pneg %p200
      %p327 = pneg %p197
      %p328 = pneg %p221
      %p329 = pneg %p218
      %p330 = pneg %p249
      %p331 = pneg %p246
      %s332 = smul.u32 2, %s25
      %p333 = scmp.lt.s32.totalorder %s24, 1
      %s334 = scalar_select %p333, %s24, 1
      %p335 = scmp.lt.s32.totalorder %s332, 1
      %s336 = scalar_select %p335, %s332, 1
      %s337 = smul.addr %s334, 8
      %s338 = sadd.s32 %s336, %s337
      %s339 = smul.addr %s338, 8
      %s340 = scalar_lea.vmem %s9, %s339
      %p341 = scmp.lt.s32.totalorder %s24, 1
      %s342 = scalar_select %p341, %s24, 1
      %s343 = smul.addr %s342, 12
      %s344 = smul.addr %s343, 8
      %s345 = scalar_lea.vmem %s0, %s344
      %s346 = smul.u32 2, %s25
      %p347 = scmp.lt.s32.totalorder %s24, 1
      %s348 = scalar_select %p347, %s24, 1
      %p349 = scmp.lt.s32.totalorder %s346, 1
      %s350 = scalar_select %p349, %s346, 1
      %s351 = smul.addr %s348, 8
      %s352 = sadd.s32 %s350, %s351
      %s353 = smul.addr %s352, 8
      %s354 = scalar_lea.vmem %s9, %s353
      %s355 = smul.u32 2, %s25
      %s356 = smul.u32 %s25, 16
      %s357 = scalar_lea.vmem %s345, %s356
      %v358 = vld [vmem:[%s357] sm:$0xff]
      %v359 = vld [vmem:[%s357 + $0x8] sm:$0xff]
      %v360 = vld [vmem:[%s357 + $0x10] sm:$0xff]
      %v361 = vld [vmem:[%s357 + $0x18] sm:$0x3]
      %v362 = vld [vmem:[%s357 + $0x20] sm:$0xff]
      %v363 = vld [vmem:[%s357 + $0x28] sm:$0xff]
      %v364 = vld [vmem:[%s357 + $0x30] sm:$0xff]
      %v365 = vld [vmem:[%s357 + $0x40] sm:$0xff]
      %v366 = vld [vmem:[%s357 + $0x48] sm:$0xff]
      %v367 = vld [vmem:[%s357 + $0x50] sm:$0xff]
      %v368 = vld [vmem:[%s357 + $0x58] sm:$0x3]
      %v369 = vcombine.low %v358, %v365
      %v370 = vcombine.high %v358, %v365
      %v372 = vunpack.c.l.s4 1983009808
      %v373 = vunpack.c.0.s8 %v372
      %v374 = vlaneseq
      %v375 = vshrl.u32 %v374, 7
      %v376 = vsub.s32 %v373, %v375
      %v377 = vrot.slane %v369, %v376
      %v379 = vunpack.c.l.s4 1983009808
      %v380 = vunpack.c.0.s8 %v379
      %v381 = vlaneseq
      %v382 = vshrl.u32 %v381, 7
      %v383 = vsub.s32 %v380, %v382
      %v384 = vrot.slane %v370, %v383
      %v385 = vcombine.high %v362, 0.0
      %v387 = vunpack.c.l.s4 1983009808
      %v388 = vunpack.c.0.s8 %v387
      %v389 = vlaneseq
      %v390 = vshrl.u32 %v389, 7
      %v391 = vsub.s32 %v388, %v390
      %v392 = vrot.slane %v362, %v391
      %v394 = vunpack.c.l.s4 1983009808
      %v395 = vunpack.c.0.s8 %v394
      %v396 = vlaneseq
      %v397 = vshrl.u32 %v396, 7
      %v398 = vsub.s32 %v395, %v397
      %v399 = vrot.slane %v385, %v398
      %v400 = vcombine.low %v377, %v392
      %v401 = vcombine.high %v377, %v392
      %v403 = vunpack.c.l.s4 1934713408
      %v404 = vunpack.c.0.s8 %v403
      %v405 = vlaneseq
      %v406 = vshrl.u32 %v405, 7
      %v407 = vsub.s32 %v404, %v406
      %v408 = vrot.slane %v400, %v407
      %v410 = vunpack.c.l.s4 1934713408
      %v411 = vunpack.c.0.s8 %v410
      %v412 = vlaneseq
      %v413 = vshrl.u32 %v412, 7
      %v414 = vsub.s32 %v411, %v413
      %v415 = vrot.slane %v401, %v414
      %v416 = vcombine.low %v384, %v399
      %v417 = vcombine.high %v384, %v399
      %v419 = vunpack.c.l.s4 1934713408
      %v420 = vunpack.c.0.s8 %v419
      %v421 = vlaneseq
      %v422 = vshrl.u32 %v421, 7
      %v423 = vsub.s32 %v420, %v422
      %v424 = vrot.slane %v416, %v423
      %v426 = vunpack.c.l.s4 1934713408
      %v427 = vunpack.c.0.s8 %v426
      %v428 = vlaneseq
      %v429 = vshrl.u32 %v428, 7
      %v430 = vsub.s32 %v427, %v429
      %v431 = vrot.slane %v417, %v430
      %v432 = vcombine.high %v408, 0.0
      %v433 = vcombine.high %v415, 0.0
      %v434 = vcombine.high %v424, 0.0
      %v435 = vcombine.high %v431, 0.0
      %v436 = vcombine.low %v359, %v366
      %v437 = vcombine.high %v359, %v366
      %v439 = vunpack.c.l.s4 1983009808
      %v440 = vunpack.c.0.s8 %v439
      %v441 = vlaneseq
      %v442 = vshrl.u32 %v441, 7
      %v443 = vsub.s32 %v440, %v442
      %v444 = vrot.slane %v436, %v443
      %v446 = vunpack.c.l.s4 1983009808
      %v447 = vunpack.c.0.s8 %v446
      %v448 = vlaneseq
      %v449 = vshrl.u32 %v448, 7
      %v450 = vsub.s32 %v447, %v449
      %v451 = vrot.slane %v437, %v450
      %v452 = vcombine.high %v363, 0.0
      %v454 = vunpack.c.l.s4 1983009808
      %v455 = vunpack.c.0.s8 %v454
      %v456 = vlaneseq
      %v457 = vshrl.u32 %v456, 7
      %v458 = vsub.s32 %v455, %v457
      %v459 = vrot.slane %v363, %v458
      %v461 = vunpack.c.l.s4 1983009808
      %v462 = vunpack.c.0.s8 %v461
      %v463 = vlaneseq
      %v464 = vshrl.u32 %v463, 7
      %v465 = vsub.s32 %v462, %v464
      %v466 = vrot.slane %v452, %v465
      %v467 = vcombine.low %v444, %v459
      %v468 = vcombine.high %v444, %v459
      %v470 = vunpack.c.l.s4 1934713408
      %v471 = vunpack.c.0.s8 %v470
      %v472 = vlaneseq
      %v473 = vshrl.u32 %v472, 7
      %v474 = vsub.s32 %v471, %v473
      %v475 = vrot.slane %v467, %v474
      %v477 = vunpack.c.l.s4 1934713408
      %v478 = vunpack.c.0.s8 %v477
      %v479 = vlaneseq
      %v480 = vshrl.u32 %v479, 7
      %v481 = vsub.s32 %v478, %v480
      %v482 = vrot.slane %v468, %v481
      %v483 = vcombine.low %v451, %v466
      %v484 = vcombine.high %v451, %v466
      %v486 = vunpack.c.l.s4 1934713408
      %v487 = vunpack.c.0.s8 %v486
      %v488 = vlaneseq
      %v489 = vshrl.u32 %v488, 7
      %v490 = vsub.s32 %v487, %v489
      %v491 = vrot.slane %v483, %v490
      %v493 = vunpack.c.l.s4 1934713408
      %v494 = vunpack.c.0.s8 %v493
      %v495 = vlaneseq
      %v496 = vshrl.u32 %v495, 7
      %v497 = vsub.s32 %v494, %v496
      %v498 = vrot.slane %v484, %v497
      %v499 = vcombine.high %v475, 0.0
      %v500 = vcombine.high %v482, 0.0
      %v501 = vcombine.high %v491, 0.0
      %v502 = vcombine.high %v498, 0.0
      %v503 = vcombine.low %v360, %v367
      %v504 = vcombine.high %v360, %v367
      %v506 = vunpack.c.l.s4 1983009808
      %v507 = vunpack.c.0.s8 %v506
      %v508 = vlaneseq
      %v509 = vshrl.u32 %v508, 7
      %v510 = vsub.s32 %v507, %v509
      %v511 = vrot.slane %v503, %v510
      %v513 = vunpack.c.l.s4 1983009808
      %v514 = vunpack.c.0.s8 %v513
      %v515 = vlaneseq
      %v516 = vshrl.u32 %v515, 7
      %v517 = vsub.s32 %v514, %v516
      %v518 = vrot.slane %v504, %v517
      %v519 = vcombine.high %v364, 0.0
      %v521 = vunpack.c.l.s4 1983009808
      %v522 = vunpack.c.0.s8 %v521
      %v523 = vlaneseq
      %v524 = vshrl.u32 %v523, 7
      %v525 = vsub.s32 %v522, %v524
      %v526 = vrot.slane %v364, %v525
      %v528 = vunpack.c.l.s4 1983009808
      %v529 = vunpack.c.0.s8 %v528
      %v530 = vlaneseq
      %v531 = vshrl.u32 %v530, 7
      %v532 = vsub.s32 %v529, %v531
      %v533 = vrot.slane %v519, %v532
      %v534 = vcombine.low %v511, %v526
      %v535 = vcombine.high %v511, %v526
      %v537 = vunpack.c.l.s4 1934713408
      %v538 = vunpack.c.0.s8 %v537
      %v539 = vlaneseq
      %v540 = vshrl.u32 %v539, 7
      %v541 = vsub.s32 %v538, %v540
      %v542 = vrot.slane %v534, %v541
      %v544 = vunpack.c.l.s4 1934713408
      %v545 = vunpack.c.0.s8 %v544
      %v546 = vlaneseq
      %v547 = vshrl.u32 %v546, 7
      %v548 = vsub.s32 %v545, %v547
      %v549 = vrot.slane %v535, %v548
      %v550 = vcombine.low %v518, %v533
      %v551 = vcombine.high %v518, %v533
      %v553 = vunpack.c.l.s4 1934713408
      %v554 = vunpack.c.0.s8 %v553
      %v555 = vlaneseq
      %v556 = vshrl.u32 %v555, 7
      %v557 = vsub.s32 %v554, %v556
      %v558 = vrot.slane %v550, %v557
      %v560 = vunpack.c.l.s4 1934713408
      %v561 = vunpack.c.0.s8 %v560
      %v562 = vlaneseq
      %v563 = vshrl.u32 %v562, 7
      %v564 = vsub.s32 %v561, %v563
      %v565 = vrot.slane %v551, %v564
      %v566 = vcombine.high %v542, 0.0
      %v567 = vcombine.high %v549, 0.0
      %v568 = vcombine.high %v558, 0.0
      %v569 = vcombine.high %v565, 0.0
      %v570 = vcombine.low %v361, %v368
      %v572 = vunpack.c.l.s4 1983009808
      %v573 = vunpack.c.0.s8 %v572
      %v574 = vlaneseq
      %v575 = vshrl.u32 %v574, 7
      %v576 = vsub.s32 %v573, %v575
      %v577 = vrot.slane %v570, %v576
      %v578 = vld [vmem:[%s357 + $0x38] sm:$0x3]
      %v579 = vcombine.low %v577, %v578
      %v581 = vunpack.c.l.s4 1934713408
      %v582 = vunpack.c.0.s8 %v581
      %v583 = vlaneseq
      %v584 = vshrl.u32 %v583, 7
      %v585 = vsub.s32 %v582, %v584
      %v586 = vrot.slane %v579, %v585
      %v587 = vcombine.high %v586, 0.0
      %589 = vrot.lane.b32.xlu0 %v432, 18
      %v590 = vpop.permute.xlu0 %589
      %593 = vrot.lane.b32.xlu0 %v415, 36
      %v594 = vpop.permute.xlu0 %593
      %597 = vrot.lane.b32.xlu0 %v433, 54
      %v598 = vpop.permute.xlu0 %597
      %601 = vrot.lane.b32.xlu0 %v424, 72
      %v602 = vpop.permute.xlu0 %601
      %605 = vrot.lane.b32.xlu0 %v434, 90
      %v606 = vpop.permute.xlu0 %605
      %609 = vrot.lane.b32.xlu0 %v431, 108
      %v610 = vpop.permute.xlu0 %609
      %613 = vrot.lane.b32.xlu0 %v435, 126
      %v614 = vpop.permute.xlu0 %613
      %617 = vrot.lane.b32.xlu0 %v475, 16
      %v618 = vpop.permute.xlu0 %617
      %621 = vrot.lane.b32.xlu0 %v499, 34
      %v622 = vpop.permute.xlu0 %621
      %625 = vrot.lane.b32.xlu0 %v482, 52
      %v626 = vpop.permute.xlu0 %625
      %629 = vrot.lane.b32.xlu0 %v500, 70
      %v630 = vpop.permute.xlu0 %629
      %633 = vrot.lane.b32.xlu0 %v491, 88
      %v634 = vpop.permute.xlu0 %633
      %637 = vrot.lane.b32.xlu0 %v501, 106
      %v638 = vpop.permute.xlu0 %637
      %641 = vrot.lane.b32.xlu0 %v498, 124
      %v642 = vpop.permute.xlu0 %641
      %645 = vrot.lane.b32.xlu0 %v502, 14
      %v646 = vpop.permute.xlu0 %645
      %649 = vrot.lane.b32.xlu0 %v542, 32
      %v650 = vpop.permute.xlu0 %649
      %653 = vrot.lane.b32.xlu0 %v566, 50
      %v654 = vpop.permute.xlu0 %653
      %657 = vrot.lane.b32.xlu0 %v549, 68
      %v658 = vpop.permute.xlu0 %657
      %661 = vrot.lane.b32.xlu0 %v567, 86
      %v662 = vpop.permute.xlu0 %661
      %665 = vrot.lane.b32.xlu0 %v558, 104
      %v666 = vpop.permute.xlu0 %665
      %669 = vrot.lane.b32.xlu0 %v568, 122
      %v670 = vpop.permute.xlu0 %669
      %673 = vrot.lane.b32.xlu0 %v565, 12
      %v674 = vpop.permute.xlu0 %673
      %677 = vrot.lane.b32.xlu0 %v569, 30
      %v678 = vpop.permute.xlu0 %677
      %681 = vrot.lane.b32.xlu0 %v586, 48
      %v682 = vpop.permute.xlu0 %681
      %685 = vrot.lane.b32.xlu0 %v587, 66
      %v686 = vpop.permute.xlu0 %685
      %vm688 = vcmask 146432
      %v689 = vsel %vm688, %v408, %v590
      %vm690 = vcmask 293888
      %v691 = vsel %vm690, %v689, %v594
      %vm692 = vcmask 441344
      %v693 = vsel %vm692, %v691, %v598
      %vm694 = vcmask 588800
      %v695 = vsel %vm694, %v693, %v602
      %vm696 = vcmask 736256
      %v697 = vsel %vm696, %v695, %v606
      %vm698 = vcmask 883712
      %v699 = vsel %vm698, %v697, %v610
      %vm700 = vcmask 1031168
      %v701 = vsel %vm700, %v699, %v614
      %vm702 = vcmask 130048
      %v703 = vsel %vm702, %v614, %v618
      %vm704 = vcmask 277504
      %v705 = vsel %vm704, %v703, %v622
      %vm706 = vcmask 424960
      %v707 = vsel %vm706, %v705, %v626
      %vm708 = vcmask 572416
      %v709 = vsel %vm708, %v707, %v630
      %vm710 = vcmask 719872
      %v711 = vsel %vm710, %v709, %v634
      %vm712 = vcmask 867328
      %v713 = vsel %vm712, %v711, %v638
      %vm714 = vcmask 1014784
      %v715 = vsel %vm714, %v713, %v642
      %vm716 = vcmask 113664
      %v717 = vsel %vm716, %v642, %v646
      %vm718 = vcmask 261120
      %v719 = vsel %vm718, %v717, %v650
      %vm720 = vcmask 408576
      %v721 = vsel %vm720, %v719, %v654
      %vm722 = vcmask 556032
      %v723 = vsel %vm722, %v721, %v658
      %vm724 = vcmask 703488
      %v725 = vsel %vm724, %v723, %v662
      %vm726 = vcmask 850944
      %v727 = vsel %vm726, %v725, %v666
      %vm728 = vcmask 998400
      %v729 = vsel %vm728, %v727, %v670
      %vm730 = vcmask 97280
      %v731 = vsel %vm730, %v670, %v674
      %vm732 = vcmask 244736
      %v733 = vsel %vm732, %v731, %v678
      %vm734 = vcmask 392192
      %v735 = vsel %vm734, %v733, %v682
      %vm736 = vcmask 539648
      %v737 = vsel %vm736, %v735, %v686
      %v742 = vcombine.low %v701, %v715
      %v743 = vcombine.low %v729, %v737
      %746 = vst [vmem:[#allocation2] sm:$0x77] %v742
      %vm747 = vcmask 1042432
      %vm748 = vcmask 686084
      %vm749 = vmor %vm748, %vm747
      %750 = vst.msk [vmem:[#allocation2 + $0x8] sm:$0x77] %vm749, %v743
      %751 = vst.msk [vmem:[#allocation3] sm:$0xff] %vm688, 0.0
      %752 = vst.msk [vmem:[#allocation3 + $0x20] sm:$0xff] %vm688, 0.0
      %753 = vst.msk [vmem:[#allocation3 + $0x40] sm:$0xff] %vm688, 0.0
      %754 = vst.msk [vmem:[#allocation3 + $0x60] sm:$0xff] %vm688, 0.0
      %vm755 = vcmask 392432
      %756 = vst.msk [vmem:[#allocation3 + $0x18] sm:$0xff] %vm755, 0.0
      %757 = vst.msk [vmem:[#allocation3 + $0x38] sm:$0xff] %vm755, 0.0
      %758 = vst.msk [vmem:[#allocation3 + $0x58] sm:$0xff] %vm755, 0.0
      %759 = vst.msk [vmem:[#allocation3 + $0x78] sm:$0xff] %vm755, 0.0
      %760 = vst.msk [vmem:[#allocation4] sm:$0xff] %vm688, 0.0
      %761 = vst.msk [vmem:[#allocation4 + $0x20] sm:$0xff] %vm688, 0.0
      %762 = vst.msk [vmem:[#allocation4 + $0x40] sm:$0xff] %vm688, 0.0
      %763 = vst.msk [vmem:[#allocation4 + $0x60] sm:$0xff] %vm688, 0.0
      %764 = vst.msk [vmem:[#allocation4 + $0x18] sm:$0xff] %vm755, 0.0
      %765 = vst.msk [vmem:[#allocation4 + $0x38] sm:$0xff] %vm755, 0.0
      %766 = vst.msk [vmem:[#allocation4 + $0x58] sm:$0xff] %vm755, 0.0
      %767 = vst.msk [vmem:[#allocation4 + $0x78] sm:$0xff] %vm755, 0.0
      %v768 = vld [vmem:[%s5] sm:$0xff]
      %v769 = vld [vmem:[%s5 + $0x8] sm:$0xff]
      %v770 = vld [vmem:[%s5 + $0x10] sm:$0xff]
      %v771 = vld [vmem:[%s5 + $0x18] sm:$0xff]
      %s772 = ssub.s32 3, %s356
      %774 = vset.pattern.permute.xlu0 0
      %775 = vperm.xlu0 %774, %v768
      %v776 = vpop.permute.xlu0 %775
      %779 = vset.pattern.permute.xlu0 0
      %780 = vperm.xlu0 %779, %v769
      %v781 = vpop.permute.xlu0 %780
      %784 = vset.pattern.permute.xlu0 0
      %785 = vperm.xlu0 %784, %v770
      %v786 = vpop.permute.xlu0 %785
      %789 = vset.pattern.permute.xlu0 0
      %790 = vperm.xlu0 %789, %v771
      %v791 = vpop.permute.xlu0 %790
      %v793 = vld [vmem:[#allocation2] sm:$0x77]
      %v794 = vld [vmem:[#allocation2 + $0x8] sm:$0x77]
      %v795 = vld [vmem:[%s1] sm:$0xff]
      %v796 = vld [vmem:[%s1 + $0x8] sm:$0xff]
      %v797 = vld [vmem:[%s1 + $0x10] sm:$0xff]
      %v798 = vld [vmem:[%s1 + $0x18] sm:$0xff]
      %v801 = vcombine.high %v793, %v793
      %v802 = vcombine.high %v794, %v794
      %803 = vrot.lane.b32.xlu0 %v793, 111
      %v804 = vpop.permute.xlu0 %803
      %805 = vrot.lane.b32.xlu0 %v801, 111
      %v806 = vpop.permute.xlu0 %805
      %807 = vrot.lane.b32.xlu0 %v794, 111
      %v808 = vpop.permute.xlu0 %807
      %809 = vrot.lane.b32.xlu0 %v802, 111
      %v810 = vpop.permute.xlu0 %809
      %vm811 = vcmask 908288
      %v812 = vsel %vm811, %v804, %v806
      %v813 = vsel %vm811, %v806, %v808
      %v814 = vsel %vm811, %v808, %v810
      %vm815 = vcmask 23552
      %v817 = vsel %vm815, %v795, 0
      %v820 = vsel %vm815, %v796, 0
      %v823 = vsel %vm815, %v797, 0
      %v826 = vsel %vm815, %v798, 0
      %v828 = vsel %vm747, %v812, 0
      %v830 = vsel %vm747, %v813, 0
      %v832 = vsel %vm747, %v814, 0
      %v834 = vsel %vm747, %v810, 0
      %836 = vmatprep.subr.mxu0 0.0
      %837 = vmatpush1.msra.mxu0 0.0
      %838 = vmatprep.subr.mxu0 0.0
      %839 = vmatpush1.msra.mxu0 0.0
      %840 = vmatprep.subr.mxu0 0.0
      %841 = vmatpush1.msra.mxu0 0.0
      %842 = vmatprep.subr.mxu0 0.0
      %843 = vmatpush1.msra.mxu0 0.0
      %844 = vmatprep.subr.mxu0 0.0
      %845 = vmatpush1.msra.mxu0 0.0
      %846 = vmatprep.subr.mxu0 0.0
      %847 = vmatpush1.msra.mxu0 0.0
      %848 = vmatprep.subr.mxu0 0.0
      %849 = vmatpush1.msra.mxu0 0.0
      %850 = vmatprep.subr.mxu0 0.0
      %851 = vmatpush1.msra.mxu0 0.0
      %852 = vmatprep.subr.mxu0 0.0
      %853 = vmatpush1.msra.mxu0 0.0
      %854 = vmatprep.subr.mxu0 0.0
      %855 = vmatpush1.msra.mxu0 0.0
      %856 = vmatprep.subr.mxu0 0.0
      %857 = vmatpush1.msra.mxu0 0.0
      %858 = vmatprep.subr.mxu0 0.0
      %859 = vmatpush1.msra.mxu0 0.0
      %860 = vmatprep.subr.mxu0 0.0
      %861 = vmatpush1.msra.mxu0 0.0
      %862 = vmatprep.subr.mxu0 0.0
      %863 = vmatpush1.msra.mxu0 0.0
      %864 = vmatprep.subr.mxu0 0.0
      %865 = vmatpush1.msra.mxu0 0.0
      %866 = vmatprep.subr.mxu0 %v830
      %867 = vmatpush1.msra.mxu0 %v828
      %868 = vmatprep.subr.mxu0 0.0
      %869 = vmatpush2.msra.mxu0 0.0
      %870 = vmatprep.subr.mxu0 0.0
      %871 = vmatpush2.msra.mxu0 0.0
      %872 = vmatprep.subr.mxu0 0.0
      %873 = vmatpush2.msra.mxu0 0.0
      %874 = vmatprep.subr.mxu0 0.0
      %875 = vmatpush2.msra.mxu0 0.0
      %876 = vmatprep.subr.mxu0 0.0
      %877 = vmatpush2.msra.mxu0 0.0
      %878 = vmatprep.subr.mxu0 0.0
      %879 = vmatpush2.msra.mxu0 0.0
      %880 = vmatprep.subr.mxu0 0.0
      %881 = vmatpush2.msra.mxu0 0.0
      %882 = vmatprep.subr.mxu0 0.0
      %883 = vmatpush2.msra.mxu0 0.0
      %884 = vmatprep.subr.mxu0 0.0
      %885 = vmatpush2.msra.mxu0 0.0
      %886 = vmatprep.subr.mxu0 0.0
      %887 = vmatpush2.msra.mxu0 0.0
      %888 = vmatprep.subr.mxu0 0.0
      %889 = vmatpush2.msra.mxu0 0.0
      %890 = vmatprep.subr.mxu0 0.0
      %891 = vmatpush2.msra.mxu0 0.0
      %892 = vmatprep.subr.mxu0 0.0
      %893 = vmatpush2.msra.mxu0 0.0
      %894 = vmatprep.subr.mxu0 0.0
      %895 = vmatpush2.msra.mxu0 0.0
      %896 = vmatprep.subr.mxu0 0.0
      %897 = vmatpush2.msra.mxu0 0.0
      %898 = vmatprep.subr.mxu0 0.0
      %899 = vmatpush2.msra.mxu0 0.0
      %900 = vmatprep.mubr.f32.mxu0 0.0
      %901 = vmatmul.mubr.f32.gmra.mxu0 %v817
      %v902 = vpop.f32.mrf.mxu0
      %v903 = vadd.f32 0.0, %v902
      %v904 = vpop.f32.mrf.mxu0
      %v905 = vadd.f32 0.0, %v904
      %906 = vmatprep.mubr.f32.mxu0 0.0
      %907 = vmatmul.mubr.f32.gmra.mxu0 %v820
      %v908 = vpop.f32.mrf.mxu0
      %v909 = vadd.f32 0.0, %v908
      %v910 = vpop.f32.mrf.mxu0
      %v911 = vadd.f32 0.0, %v910
      %912 = vmatprep.mubr.f32.mxu0 0.0
      %913 = vmatmul.mubr.f32.gmra.mxu0 %v823
      %v914 = vpop.f32.mrf.mxu0
      %v915 = vadd.f32 0.0, %v914
      %v916 = vpop.f32.mrf.mxu0
      %v917 = vadd.f32 0.0, %v916
      %918 = vmatprep.mubr.f32.mxu0 0.0
      %919 = vmatmul.mubr.f32.gmra.mxu0 %v826
      %v920 = vpop.f32.mrf.mxu0
      %v921 = vadd.f32 0.0, %v920
      %v922 = vpop.f32.mrf.mxu0
      %v923 = vadd.f32 0.0, %v922
      %924 = vdwg.mxu0
      %925 = vmatprep.subr.mxu0 0.0
      %926 = vmatpush1.msra.mxu0 0.0
      %927 = vmatprep.subr.mxu0 0.0
      %928 = vmatpush1.msra.mxu0 0.0
      %929 = vmatprep.subr.mxu0 0.0
      %930 = vmatpush1.msra.mxu0 0.0
      %931 = vmatprep.subr.mxu0 0.0
      %932 = vmatpush1.msra.mxu0 0.0
      %933 = vmatprep.subr.mxu0 0.0
      %934 = vmatpush1.msra.mxu0 0.0
      %935 = vmatprep.subr.mxu0 0.0
      %936 = vmatpush1.msra.mxu0 0.0
      %937 = vmatprep.subr.mxu0 0.0
      %938 = vmatpush1.msra.mxu0 0.0
      %939 = vmatprep.subr.mxu0 0.0
      %940 = vmatpush1.msra.mxu0 0.0
      %941 = vmatprep.subr.mxu0 0.0
      %942 = vmatpush1.msra.mxu0 0.0
      %943 = vmatprep.subr.mxu0 0.0
      %944 = vmatpush1.msra.mxu0 0.0
      %945 = vmatprep.subr.mxu0 0.0
      %946 = vmatpush1.msra.mxu0 0.0
      %947 = vmatprep.subr.mxu0 0.0
      %948 = vmatpush1.msra.mxu0 0.0
      %949 = vmatprep.subr.mxu0 0.0
      %950 = vmatpush1.msra.mxu0 0.0
      %951 = vmatprep.subr.mxu0 0.0
      %952 = vmatpush1.msra.mxu0 0.0
      %953 = vmatprep.subr.mxu0 0.0
      %954 = vmatpush1.msra.mxu0 0.0
      %955 = vmatprep.subr.mxu0 %v834
      %956 = vmatpush1.msra.mxu0 %v832
      %957 = vmatprep.subr.mxu0 0.0
      %958 = vmatpush2.msra.mxu0 0.0
      %959 = vmatprep.subr.mxu0 0.0
      %960 = vmatpush2.msra.mxu0 0.0
      %961 = vmatprep.subr.mxu0 0.0
      %962 = vmatpush2.msra.mxu0 0.0
      %963 = vmatprep.subr.mxu0 0.0
      %964 = vmatpush2.msra.mxu0 0.0
      %965 = vmatprep.subr.mxu0 0.0
      %966 = vmatpush2.msra.mxu0 0.0
      %967 = vmatprep.subr.mxu0 0.0
      %968 = vmatpush2.msra.mxu0 0.0
      %969 = vmatprep.subr.mxu0 0.0
      %970 = vmatpush2.msra.mxu0 0.0
      %971 = vmatprep.subr.mxu0 0.0
      %972 = vmatpush2.msra.mxu0 0.0
      %973 = vmatprep.subr.mxu0 0.0
      %974 = vmatpush2.msra.mxu0 0.0
      %975 = vmatprep.subr.mxu0 0.0
      %976 = vmatpush2.msra.mxu0 0.0
      %977 = vmatprep.subr.mxu0 0.0
      %978 = vmatpush2.msra.mxu0 0.0
      %979 = vmatprep.subr.mxu0 0.0
      %980 = vmatpush2.msra.mxu0 0.0
      %981 = vmatprep.subr.mxu0 0.0
      %982 = vmatpush2.msra.mxu0 0.0
      %983 = vmatprep.subr.mxu0 0.0
      %984 = vmatpush2.msra.mxu0 0.0
      %985 = vmatprep.subr.mxu0 0.0
      %986 = vmatpush2.msra.mxu0 0.0
      %987 = vmatprep.subr.mxu0 0.0
      %988 = vmatpush2.msra.mxu0 0.0
      %989 = vmatprep.mubr.f32.mxu0 0.0
      %990 = vmatmul.mubr.f32.gmra.mxu0 %v817
      %v991 = vpop.f32.mrf.mxu0
      %v992 = vadd.f32 0.0, %v991
      %v993 = vpop.f32.mrf.mxu0
      %v994 = vadd.f32 0.0, %v993
      %995 = vmatprep.mubr.f32.mxu0 0.0
      %996 = vmatmul.mubr.f32.gmra.mxu0 %v820
      %v997 = vpop.f32.mrf.mxu0
      %v998 = vadd.f32 0.0, %v997
      %v999 = vpop.f32.mrf.mxu0
      %v1000 = vadd.f32 0.0, %v999
      %1001 = vmatprep.mubr.f32.mxu0 0.0
      %1002 = vmatmul.mubr.f32.gmra.mxu0 %v823
      %v1003 = vpop.f32.mrf.mxu0
      %v1004 = vadd.f32 0.0, %v1003
      %v1005 = vpop.f32.mrf.mxu0
      %v1006 = vadd.f32 0.0, %v1005
      %1007 = vmatprep.mubr.f32.mxu0 0.0
      %1008 = vmatmul.mubr.f32.gmra.mxu0 %v826
      %v1009 = vpop.f32.mrf.mxu0
      %v1010 = vadd.f32 0.0, %v1009
      %v1011 = vpop.f32.mrf.mxu0
      %v1012 = vadd.f32 0.0, %v1011
      %1013 = vdwg.mxu0
      %v1014 = vadd.f32 %v776, %v903
      %v1015 = vadd.f32 %v776, %v905
      %v1016 = vadd.f32 %v776, %v992
      %v1017 = vadd.f32 %v776, %v994
      %v1018 = vadd.f32 %v781, %v909
      %v1019 = vadd.f32 %v781, %v911
      %v1020 = vadd.f32 %v781, %v998
      %v1021 = vadd.f32 %v781, %v1000
      %v1022 = vadd.f32 %v786, %v915
      %v1023 = vadd.f32 %v786, %v917
      %v1024 = vadd.f32 %v786, %v1004
      %v1025 = vadd.f32 %v786, %v1006
      %v1026 = vadd.f32 %v791, %v921
      %v1027 = vadd.f32 %v791, %v923
      %v1028 = vadd.f32 %v791, %v1010
      %v1029 = vadd.f32 %v791, %v1012
      %v1030 = vld [vmem:[#allocation2] sm:$0x77]
      %v1031 = vld [vmem:[#allocation2 + $0x8] sm:$0x77]
      %s1032 = scalar_lea.vmem %s1, 32
      %v1033 = vld [vmem:[%s1032] sm:$0xff]
      %v1034 = vld [vmem:[%s1032 + $0x8] sm:$0xff]
      %v1035 = vld [vmem:[%s1032 + $0x10] sm:$0xff]
      %v1036 = vld [vmem:[%s1032 + $0x18] sm:$0xff]
      %v1039 = vcombine.high %v1030, %v1030
      %v1040 = vcombine.high %v1031, %v1031
      %1041 = vrot.lane.b32.xlu0 %v1030, 110
      %v1042 = vpop.permute.xlu0 %1041
      %1043 = vrot.lane.b32.xlu0 %v1039, 110
      %v1044 = vpop.permute.xlu0 %1043
      %1045 = vrot.lane.b32.xlu0 %v1031, 110
      %v1046 = vpop.permute.xlu0 %1045
      %1047 = vrot.lane.b32.xlu0 %v1040, 110
      %v1048 = vpop.permute.xlu0 %1047
      %vm1049 = vcmask 900096
      %v1050 = vsel %vm1049, %v1042, %v1044
      %v1051 = vsel %vm1049, %v1044, %v1046
      %v1052 = vsel %vm1049, %v1046, %v1048
      %v1054 = vsel %vm815, %v1033, 0
      %v1057 = vsel %vm815, %v1034, 0
      %v1060 = vsel %vm815, %v1035, 0
      %v1063 = vsel %vm815, %v1036, 0
      %v1065 = vsel %vm747, %v1050, 0
      %v1067 = vsel %vm747, %v1051, 0
      %v1069 = vsel %vm747, %v1052, 0
      %v1071 = vsel %vm747, %v1048, 0
      %1073 = vmatprep.subr.mxu0 0.0
      %1074 = vmatpush1.msra.mxu0 0.0
      %1075 = vmatprep.subr.mxu0 0.0
      %1076 = vmatpush1.msra.mxu0 0.0
      %1077 = vmatprep.subr.mxu0 0.0
      %1078 = vmatpush1.msra.mxu0 0.0
      %1079 = vmatprep.subr.mxu0 0.0
      %1080 = vmatpush1.msra.mxu0 0.0
      %1081 = vmatprep.subr.mxu0 0.0
      %1082 = vmatpush1.msra.mxu0 0.0
      %1083 = vmatprep.subr.mxu0 0.0
      %1084 = vmatpush1.msra.mxu0 0.0
      %1085 = vmatprep.subr.mxu0 0.0
      %1086 = vmatpush1.msra.mxu0 0.0
      %1087 = vmatprep.subr.mxu0 0.0
      %1088 = vmatpush1.msra.mxu0 0.0
      %1089 = vmatprep.subr.mxu0 0.0
      %1090 = vmatpush1.msra.mxu0 0.0
      %1091 = vmatprep.subr.mxu0 0.0
      %1092 = vmatpush1.msra.mxu0 0.0
      %1093 = vmatprep.subr.mxu0 0.0
      %1094 = vmatpush1.msra.mxu0 0.0
      %1095 = vmatprep.subr.mxu0 0.0
      %1096 = vmatpush1.msra.mxu0 0.0
      %1097 = vmatprep.subr.mxu0 0.0
      %1098 = vmatpush1.msra.mxu0 0.0
      %1099 = vmatprep.subr.mxu0 0.0
      %1100 = vmatpush1.msra.mxu0 0.0
      %1101 = vmatprep.subr.mxu0 0.0
      %1102 = vmatpush1.msra.mxu0 0.0
      %1103 = vmatprep.subr.mxu0 %v1067
      %1104 = vmatpush1.msra.mxu0 %v1065
      %1105 = vmatprep.subr.mxu0 0.0
      %1106 = vmatpush2.msra.mxu0 0.0
      %1107 = vmatprep.subr.mxu0 0.0
      %1108 = vmatpush2.msra.mxu0 0.0
      %1109 = vmatprep.subr.mxu0 0.0
      %1110 = vmatpush2.msra.mxu0 0.0
      %1111 = vmatprep.subr.mxu0 0.0
      %1112 = vmatpush2.msra.mxu0 0.0
      %1113 = vmatprep.subr.mxu0 0.0
      %1114 = vmatpush2.msra.mxu0 0.0
      %1115 = vmatprep.subr.mxu0 0.0
      %1116 = vmatpush2.msra.mxu0 0.0
      %1117 = vmatprep.subr.mxu0 0.0
      %1118 = vmatpush2.msra.mxu0 0.0
      %1119 = vmatprep.subr.mxu0 0.0
      %1120 = vmatpush2.msra.mxu0 0.0
      %1121 = vmatprep.subr.mxu0 0.0
      %1122 = vmatpush2.msra.mxu0 0.0
      %1123 = vmatprep.subr.mxu0 0.0
      %1124 = vmatpush2.msra.mxu0 0.0
      %1125 = vmatprep.subr.mxu0 0.0
      %1126 = vmatpush2.msra.mxu0 0.0
      %1127 = vmatprep.subr.mxu0 0.0
      %1128 = vmatpush2.msra.mxu0 0.0
      %1129 = vmatprep.subr.mxu0 0.0
      %1130 = vmatpush2.msra.mxu0 0.0
      %1131 = vmatprep.subr.mxu0 0.0
      %1132 = vmatpush2.msra.mxu0 0.0
      %1133 = vmatprep.subr.mxu0 0.0
      %1134 = vmatpush2.msra.mxu0 0.0
      %1135 = vmatprep.subr.mxu0 0.0
      %1136 = vmatpush2.msra.mxu0 0.0
      %1137 = vmatprep.mubr.f32.mxu0 0.0
      %1138 = vmatmul.mubr.f32.gmra.mxu0 %v1054
      %v1139 = vpop.f32.mrf.mxu0
      %v1140 = vadd.f32 0.0, %v1139
      %v1141 = vpop.f32.mrf.mxu0
      %v1142 = vadd.f32 0.0, %v1141
      %1143 = vmatprep.mubr.f32.mxu0 0.0
      %1144 = vmatmul.mubr.f32.gmra.mxu0 %v1057
      %v1145 = vpop.f32.mrf.mxu0
      %v1146 = vadd.f32 0.0, %v1145
      %v1147 = vpop.f32.mrf.mxu0
      %v1148 = vadd.f32 0.0, %v1147
      %1149 = vmatprep.mubr.f32.mxu0 0.0
      %1150 = vmatmul.mubr.f32.gmra.mxu0 %v1060
      %v1151 = vpop.f32.mrf.mxu0
      %v1152 = vadd.f32 0.0, %v1151
      %v1153 = vpop.f32.mrf.mxu0
      %v1154 = vadd.f32 0.0, %v1153
      %1155 = vmatprep.mubr.f32.mxu0 0.0
      %1156 = vmatmul.mubr.f32.gmra.mxu0 %v1063
      %v1157 = vpop.f32.mrf.mxu0
      %v1158 = vadd.f32 0.0, %v1157
      %v1159 = vpop.f32.mrf.mxu0
      %v1160 = vadd.f32 0.0, %v1159
      %1161 = vdwg.mxu0
      %1162 = vmatprep.subr.mxu0 0.0
      %1163 = vmatpush1.msra.mxu0 0.0
      %1164 = vmatprep.subr.mxu0 0.0
      %1165 = vmatpush1.msra.mxu0 0.0
      %1166 = vmatprep.subr.mxu0 0.0
      %1167 = vmatpush1.msra.mxu0 0.0
      %1168 = vmatprep.subr.mxu0 0.0
      %1169 = vmatpush1.msra.mxu0 0.0
      %1170 = vmatprep.subr.mxu0 0.0
      %1171 = vmatpush1.msra.mxu0 0.0
      %1172 = vmatprep.subr.mxu0 0.0
      %1173 = vmatpush1.msra.mxu0 0.0
      %1174 = vmatprep.subr.mxu0 0.0
      %1175 = vmatpush1.msra.mxu0 0.0
      %1176 = vmatprep.subr.mxu0 0.0
      %1177 = vmatpush1.msra.mxu0 0.0
      %1178 = vmatprep.subr.mxu0 0.0
      %1179 = vmatpush1.msra.mxu0 0.0
      %1180 = vmatprep.subr.mxu0 0.0
      %1181 = vmatpush1.msra.mxu0 0.0
      %1182 = vmatprep.subr.mxu0 0.0
      %1183 = vmatpush1.msra.mxu0 0.0
      %1184 = vmatprep.subr.mxu0 0.0
      %1185 = vmatpush1.msra.mxu0 0.0
      %1186 = vmatprep.subr.mxu0 0.0
      %1187 = vmatpush1.msra.mxu0 0.0
      %1188 = vmatprep.subr.mxu0 0.0
      %1189 = vmatpush1.msra.mxu0 0.0
      %1190 = vmatprep.subr.mxu0 0.0
      %1191 = vmatpush1.msra.mxu0 0.0
      %1192 = vmatprep.subr.mxu0 %v1071
      %1193 = vmatpush1.msra.mxu0 %v1069
      %1194 = vmatprep.subr.mxu0 0.0
      %1195 = vmatpush2.msra.mxu0 0.0
      %1196 = vmatprep.subr.mxu0 0.0
      %1197 = vmatpush2.msra.mxu0 0.0
      %1198 = vmatprep.subr.mxu0 0.0
      %1199 = vmatpush2.msra.mxu0 0.0
      %1200 = vmatprep.subr.mxu0 0.0
      %1201 = vmatpush2.msra.mxu0 0.0
      %1202 = vmatprep.subr.mxu0 0.0
      %1203 = vmatpush2.msra.mxu0 0.0
      %1204 = vmatprep.subr.mxu0 0.0
      %1205 = vmatpush2.msra.mxu0 0.0
      %1206 = vmatprep.subr.mxu0 0.0
      %1207 = vmatpush2.msra.mxu0 0.0
      %1208 = vmatprep.subr.mxu0 0.0
      %1209 = vmatpush2.msra.mxu0 0.0
      %1210 = vmatprep.subr.mxu0 0.0
      %1211 = vmatpush2.msra.mxu0 0.0
      %1212 = vmatprep.subr.mxu0 0.0
      %1213 = vmatpush2.msra.mxu0 0.0
      %1214 = vmatprep.subr.mxu0 0.0
      %1215 = vmatpush2.msra.mxu0 0.0
      %1216 = vmatprep.subr.mxu0 0.0
      %1217 = vmatpush2.msra.mxu0 0.0
      %1218 = vmatprep.subr.mxu0 0.0
      %1219 = vmatpush2.msra.mxu0 0.0
      %1220 = vmatprep.subr.mxu0 0.0
      %1221 = vmatpush2.msra.mxu0 0.0
      %1222 = vmatprep.subr.mxu0 0.0
      %1223 = vmatpush2.msra.mxu0 0.0
      %1224 = vmatprep.subr.mxu0 0.0
      %1225 = vmatpush2.msra.mxu0 0.0
      %1226 = vmatprep.mubr.f32.mxu0 0.0
      %1227 = vmatmul.mubr.f32.gmra.mxu0 %v1054
      %v1228 = vpop.f32.mrf.mxu0
      %v1229 = vadd.f32 0.0, %v1228
      %v1230 = vpop.f32.mrf.mxu0
      %v1231 = vadd.f32 0.0, %v1230
      %1232 = vmatprep.mubr.f32.mxu0 0.0
      %1233 = vmatmul.mubr.f32.gmra.mxu0 %v1057
      %v1234 = vpop.f32.mrf.mxu0
      %v1235 = vadd.f32 0.0, %v1234
      %v1236 = vpop.f32.mrf.mxu0
      %v1237 = vadd.f32 0.0, %v1236
      %1238 = vmatprep.mubr.f32.mxu0 0.0
      %1239 = vmatmul.mubr.f32.gmra.mxu0 %v1060
      %v1240 = vpop.f32.mrf.mxu0
      %v1241 = vadd.f32 0.0, %v1240
      %v1242 = vpop.f32.mrf.mxu0
      %v1243 = vadd.f32 0.0, %v1242
      %1244 = vmatprep.mubr.f32.mxu0 0.0
      %1245 = vmatmul.mubr.f32.gmra.mxu0 %v1063
      %v1246 = vpop.f32.mrf.mxu0
      %v1247 = vadd.f32 0.0, %v1246
      %v1248 = vpop.f32.mrf.mxu0
      %v1249 = vadd.f32 0.0, %v1248
      %1250 = vdwg.mxu0
      %v1251 = vadd.f32 %v1014, %v1140
      %v1252 = vadd.f32 %v1015, %v1142
      %v1253 = vadd.f32 %v1016, %v1229
      %v1254 = vadd.f32 %v1017, %v1231
      %v1255 = vadd.f32 %v1018, %v1146
      %v1256 = vadd.f32 %v1019, %v1148
      %v1257 = vadd.f32 %v1020, %v1235
      %v1258 = vadd.f32 %v1021, %v1237
      %v1259 = vadd.f32 %v1022, %v1152
      %v1260 = vadd.f32 %v1023, %v1154
      %v1261 = vadd.f32 %v1024, %v1241
      %v1262 = vadd.f32 %v1025, %v1243
      %v1263 = vadd.f32 %v1026, %v1158
      %v1264 = vadd.f32 %v1027, %v1160
      %v1265 = vadd.f32 %v1028, %v1247
      %v1266 = vadd.f32 %v1029, %v1249
      %v1267 = vld [vmem:[#allocation2] sm:$0x77]
      %v1268 = vld [vmem:[#allocation2 + $0x8] sm:$0x77]
      %s1269 = scalar_lea.vmem %s1, 64
      %v1270 = vld [vmem:[%s1269] sm:$0xff]
      %v1271 = vld [vmem:[%s1269 + $0x8] sm:$0xff]
      %v1272 = vld [vmem:[%s1269 + $0x10] sm:$0xff]
      %v1273 = vld [vmem:[%s1269 + $0x18] sm:$0xff]
      %v1276 = vcombine.high %v1267, %v1267
      %v1277 = vcombine.high %v1268, %v1268
      %1278 = vrot.lane.b32.xlu0 %v1267, 109
      %v1279 = vpop.permute.xlu0 %1278
      %1280 = vrot.lane.b32.xlu0 %v1276, 109
      %v1281 = vpop.permute.xlu0 %1280
      %1282 = vrot.lane.b32.xlu0 %v1268, 109
      %v1283 = vpop.permute.xlu0 %1282
      %1284 = vrot.lane.b32.xlu0 %v1277, 109
      %v1285 = vpop.permute.xlu0 %1284
      %vm1286 = vcmask 891904
      %v1287 = vsel %vm1286, %v1279, %v1281
      %v1288 = vsel %vm1286, %v1281, %v1283
      %v1289 = vsel %vm1286, %v1283, %v1285
      %v1291 = vsel %vm815, %v1270, 0
      %v1294 = vsel %vm815, %v1271, 0
      %v1297 = vsel %vm815, %v1272, 0
      %v1300 = vsel %vm815, %v1273, 0
      %v1302 = vsel %vm747, %v1287, 0
      %v1304 = vsel %vm747, %v1288, 0
      %v1306 = vsel %vm747, %v1289, 0
      %v1308 = vsel %vm747, %v1285, 0
      %1310 = vmatprep.subr.mxu0 0.0
      %1311 = vmatpush1.msra.mxu0 0.0
      %1312 = vmatprep.subr.mxu0 0.0
      %1313 = vmatpush1.msra.mxu0 0.0
      %1314 = vmatprep.subr.mxu0 0.0
      %1315 = vmatpush1.msra.mxu0 0.0
      %1316 = vmatprep.subr.mxu0 0.0
      %1317 = vmatpush1.msra.mxu0 0.0
      %1318 = vmatprep.subr.mxu0 0.0
      %1319 = vmatpush1.msra.mxu0 0.0
      %1320 = vmatprep.subr.mxu0 0.0
      %1321 = vmatpush1.msra.mxu0 0.0
      %1322 = vmatprep.subr.mxu0 0.0
      %1323 = vmatpush1.msra.mxu0 0.0
      %1324 = vmatprep.subr.mxu0 0.0
      %1325 = vmatpush1.msra.mxu0 0.0
      %1326 = vmatprep.subr.mxu0 0.0
      %1327 = vmatpush1.msra.mxu0 0.0
      %1328 = vmatprep.subr.mxu0 0.0
      %1329 = vmatpush1.msra.mxu0 0.0
      %1330 = vmatprep.subr.mxu0 0.0
      %1331 = vmatpush1.msra.mxu0 0.0
      %1332 = vmatprep.subr.mxu0 0.0
      %1333 = vmatpush1.msra.mxu0 0.0
      %1334 = vmatprep.subr.mxu0 0.0
      %1335 = vmatpush1.msra.mxu0 0.0
      %1336 = vmatprep.subr.mxu0 0.0
      %1337 = vmatpush1.msra.mxu0 0.0
      %1338 = vmatprep.subr.mxu0 0.0
      %1339 = vmatpush1.msra.mxu0 0.0
      %1340 = vmatprep.subr.mxu0 %v1304
      %1341 = vmatpush1.msra.mxu0 %v1302
      %1342 = vmatprep.subr.mxu0 0.0
      %1343 = vmatpush2.msra.mxu0 0.0
      %1344 = vmatprep.subr.mxu0 0.0
      %1345 = vmatpush2.msra.mxu0 0.0
      %1346 = vmatprep.subr.mxu0 0.0
      %1347 = vmatpush2.msra.mxu0 0.0
      %1348 = vmatprep.subr.mxu0 0.0
      %1349 = vmatpush2.msra.mxu0 0.0
      %1350 = vmatprep.subr.mxu0 0.0
      %1351 = vmatpush2.msra.mxu0 0.0
      %1352 = vmatprep.subr.mxu0 0.0
      %1353 = vmatpush2.msra.mxu0 0.0
      %1354 = vmatprep.subr.mxu0 0.0
      %1355 = vmatpush2.msra.mxu0 0.0
      %1356 = vmatprep.subr.mxu0 0.0
      %1357 = vmatpush2.msra.mxu0 0.0
      %1358 = vmatprep.subr.mxu0 0.0
      %1359 = vmatpush2.msra.mxu0 0.0
      %1360 = vmatprep.subr.mxu0 0.0
      %1361 = vmatpush2.msra.mxu0 0.0
      %1362 = vmatprep.subr.mxu0 0.0
      %1363 = vmatpush2.msra.mxu0 0.0
      %1364 = vmatprep.subr.mxu0 0.0
      %1365 = vmatpush2.msra.mxu0 0.0
      %1366 = vmatprep.subr.mxu0 0.0
      %1367 = vmatpush2.msra.mxu0 0.0
      %1368 = vmatprep.subr.mxu0 0.0
      %1369 = vmatpush2.msra.mxu0 0.0
      %1370 = vmatprep.subr.mxu0 0.0
      %1371 = vmatpush2.msra.mxu0 0.0
      %1372 = vmatprep.subr.mxu0 0.0
      %1373 = vmatpush2.msra.mxu0 0.0
      %1374 = vmatprep.mubr.f32.mxu0 0.0
      %1375 = vmatmul.mubr.f32.gmra.mxu0 %v1291
      %v1376 = vpop.f32.mrf.mxu0
      %v1377 = vadd.f32 0.0, %v1376
      %v1378 = vpop.f32.mrf.mxu0
      %v1379 = vadd.f32 0.0, %v1378
      %1380 = vmatprep.mubr.f32.mxu0 0.0
      %1381 = vmatmul.mubr.f32.gmra.mxu0 %v1294
      %v1382 = vpop.f32.mrf.mxu0
      %v1383 = vadd.f32 0.0, %v1382
      %v1384 = vpop.f32.mrf.mxu0
      %v1385 = vadd.f32 0.0, %v1384
      %1386 = vmatprep.mubr.f32.mxu0 0.0
      %1387 = vmatmul.mubr.f32.gmra.mxu0 %v1297
      %v1388 = vpop.f32.mrf.mxu0
      %v1389 = vadd.f32 0.0, %v1388
      %v1390 = vpop.f32.mrf.mxu0
      %v1391 = vadd.f32 0.0, %v1390
      %1392 = vmatprep.mubr.f32.mxu0 0.0
      %1393 = vmatmul.mubr.f32.gmra.mxu0 %v1300
      %v1394 = vpop.f32.mrf.mxu0
      %v1395 = vadd.f32 0.0, %v1394
      %v1396 = vpop.f32.mrf.mxu0
      %v1397 = vadd.f32 0.0, %v1396
      %1398 = vdwg.mxu0
      %1399 = vmatprep.subr.mxu0 0.0
      %1400 = vmatpush1.msra.mxu0 0.0
      %1401 = vmatprep.subr.mxu0 0.0
      %1402 = vmatpush1.msra.mxu0 0.0
      %1403 = vmatprep.subr.mxu0 0.0
      %1404 = vmatpush1.msra.mxu0 0.0
      %1405 = vmatprep.subr.mxu0 0.0
      %1406 = vmatpush1.msra.mxu0 0.0
      %1407 = vmatprep.subr.mxu0 0.0
      %1408 = vmatpush1.msra.mxu0 0.0
      %1409 = vmatprep.subr.mxu0 0.0
      %1410 = vmatpush1.msra.mxu0 0.0
      %1411 = vmatprep.subr.mxu0 0.0
      %1412 = vmatpush1.msra.mxu0 0.0
      %1413 = vmatprep.subr.mxu0 0.0
      %1414 = vmatpush1.msra.mxu0 0.0
      %1415 = vmatprep.subr.mxu0 0.0
      %1416 = vmatpush1.msra.mxu0 0.0
      %1417 = vmatprep.subr.mxu0 0.0
      %1418 = vmatpush1.msra.mxu0 0.0
      %1419 = vmatprep.subr.mxu0 0.0
      %1420 = vmatpush1.msra.mxu0 0.0
      %1421 = vmatprep.subr.mxu0 0.0
      %1422 = vmatpush1.msra.mxu0 0.0
      %1423 = vmatprep.subr.mxu0 0.0
      %1424 = vmatpush1.msra.mxu0 0.0
      %1425 = vmatprep.subr.mxu0 0.0
      %1426 = vmatpush1.msra.mxu0 0.0
      %1427 = vmatprep.subr.mxu0 0.0
      %1428 = vmatpush1.msra.mxu0 0.0
      %1429 = vmatprep.subr.mxu0 %v1308
      %1430 = vmatpush1.msra.mxu0 %v1306
      %1431 = vmatprep.subr.mxu0 0.0
      %1432 = vmatpush2.msra.mxu0 0.0
      %1433 = vmatprep.subr.mxu0 0.0
      %1434 = vmatpush2.msra.mxu0 0.0
      %1435 = vmatprep.subr.mxu0 0.0
      %1436 = vmatpush2.msra.mxu0 0.0
      %1437 = vmatprep.subr.mxu0 0.0
      %1438 = vmatpush2.msra.mxu0 0.0
      %1439 = vmatprep.subr.mxu0 0.0
      %1440 = vmatpush2.msra.mxu0 0.0
      %1441 = vmatprep.subr.mxu0 0.0
      %1442 = vmatpush2.msra.mxu0 0.0
      %1443 = vmatprep.subr.mxu0 0.0
      %1444 = vmatpush2.msra.mxu0 0.0
      %1445 = vmatprep.subr.mxu0 0.0
      %1446 = vmatpush2.msra.mxu0 0.0
      %1447 = vmatprep.subr.mxu0 0.0
      %1448 = vmatpush2.msra.mxu0 0.0
      %1449 = vmatprep.subr.mxu0 0.0
      %1450 = vmatpush2.msra.mxu0 0.0
      %1451 = vmatprep.subr.mxu0 0.0
      %1452 = vmatpush2.msra.mxu0 0.0
      %1453 = vmatprep.subr.mxu0 0.0
      %1454 = vmatpush2.msra.mxu0 0.0
      %1455 = vmatprep.subr.mxu0 0.0
      %1456 = vmatpush2.msra.mxu0 0.0
      %1457 = vmatprep.subr.mxu0 0.0
      %1458 = vmatpush2.msra.mxu0 0.0
      %1459 = vmatprep.subr.mxu0 0.0
      %1460 = vmatpush2.msra.mxu0 0.0
      %1461 = vmatprep.subr.mxu0 0.0
      %1462 = vmatpush2.msra.mxu0 0.0
      %1463 = vmatprep.mubr.f32.mxu0 0.0
      %1464 = vmatmul.mubr.f32.gmra.mxu0 %v1291
      %v1465 = vpop.f32.mrf.mxu0
      %v1466 = vadd.f32 0.0, %v1465
      %v1467 = vpop.f32.mrf.mxu0
      %v1468 = vadd.f32 0.0, %v1467
      %1469 = vmatprep.mubr.f32.mxu0 0.0
      %1470 = vmatmul.mubr.f32.gmra.mxu0 %v1294
      %v1471 = vpop.f32.mrf.mxu0
      %v1472 = vadd.f32 0.0, %v1471
      %v1473 = vpop.f32.mrf.mxu0
      %v1474 = vadd.f32 0.0, %v1473
      %1475 = vmatprep.mubr.f32.mxu0 0.0
      %1476 = vmatmul.mubr.f32.gmra.mxu0 %v1297
      %v1477 = vpop.f32.mrf.mxu0
      %v1478 = vadd.f32 0.0, %v1477
      %v1479 = vpop.f32.mrf.mxu0
      %v1480 = vadd.f32 0.0, %v1479
      %1481 = vmatprep.mubr.f32.mxu0 0.0
      %1482 = vmatmul.mubr.f32.gmra.mxu0 %v1300
      %v1483 = vpop.f32.mrf.mxu0
      %v1484 = vadd.f32 0.0, %v1483
      %v1485 = vpop.f32.mrf.mxu0
      %v1486 = vadd.f32 0.0, %v1485
      %1487 = vdwg.mxu0
      %v1488 = vadd.f32 %v1251, %v1377
      %v1489 = vadd.f32 %v1252, %v1379
      %v1490 = vadd.f32 %v1253, %v1466
      %v1491 = vadd.f32 %v1254, %v1468
      %v1492 = vadd.f32 %v1255, %v1383
      %v1493 = vadd.f32 %v1256, %v1385
      %v1494 = vadd.f32 %v1257, %v1472
      %v1495 = vadd.f32 %v1258, %v1474
      %v1496 = vadd.f32 %v1259, %v1389
      %v1497 = vadd.f32 %v1260, %v1391
      %v1498 = vadd.f32 %v1261, %v1478
      %v1499 = vadd.f32 %v1262, %v1480
      %v1500 = vadd.f32 %v1263, %v1395
      %v1501 = vadd.f32 %v1264, %v1397
      %v1502 = vadd.f32 %v1265, %v1484
      %v1503 = vadd.f32 %v1266, %v1486
      %v1504 = vld [vmem:[#allocation2] sm:$0x77]
      %v1505 = vld [vmem:[#allocation2 + $0x8] sm:$0x77]
      %s1506 = scalar_lea.vmem %s1, 96
      %v1507 = vld [vmem:[%s1506] sm:$0xff]
      %v1508 = vld [vmem:[%s1506 + $0x8] sm:$0xff]
      %v1509 = vld [vmem:[%s1506 + $0x10] sm:$0xff]
      %v1510 = vld [vmem:[%s1506 + $0x18] sm:$0xff]
      %v1513 = vcombine.high %v1504, %v1504
      %v1514 = vcombine.high %v1505, %v1505
      %1515 = vrot.lane.b32.xlu0 %v1504, 93
      %v1516 = vpop.permute.xlu0 %1515
      %1517 = vrot.lane.b32.xlu0 %v1513, 93
      %v1518 = vpop.permute.xlu0 %1517
      %1519 = vrot.lane.b32.xlu0 %v1505, 93
      %v1520 = vpop.permute.xlu0 %1519
      %1521 = vrot.lane.b32.xlu0 %v1514, 93
      %v1522 = vpop.permute.xlu0 %1521
      %vm1523 = vcmask 760832
      %v1524 = vsel %vm1523, %v1516, %v1518
      %v1525 = vsel %vm1523, %v1518, %v1520
      %v1526 = vsel %vm1523, %v1520, %v1522
      %v1528 = vsel %vm815, %v1507, 0
      %v1531 = vsel %vm815, %v1508, 0
      %v1534 = vsel %vm815, %v1509, 0
      %v1537 = vsel %vm815, %v1510, 0
      %v1539 = vsel %vm747, %v1524, 0
      %v1541 = vsel %vm747, %v1525, 0
      %v1543 = vsel %vm747, %v1526, 0
      %v1545 = vsel %vm747, %v1522, 0
      %1547 = vmatprep.subr.mxu0 0.0
      %1548 = vmatpush1.msra.mxu0 0.0
      %1549 = vmatprep.subr.mxu0 0.0
      %1550 = vmatpush1.msra.mxu0 0.0
      %1551 = vmatprep.subr.mxu0 0.0
      %1552 = vmatpush1.msra.mxu0 0.0
      %1553 = vmatprep.subr.mxu0 0.0
      %1554 = vmatpush1.msra.mxu0 0.0
      %1555 = vmatprep.subr.mxu0 0.0
      %1556 = vmatpush1.msra.mxu0 0.0
      %1557 = vmatprep.subr.mxu0 0.0
      %1558 = vmatpush1.msra.mxu0 0.0
      %1559 = vmatprep.subr.mxu0 0.0
      %1560 = vmatpush1.msra.mxu0 0.0
      %1561 = vmatprep.subr.mxu0 0.0
      %1562 = vmatpush1.msra.mxu0 0.0
      %1563 = vmatprep.subr.mxu0 0.0
      %1564 = vmatpush1.msra.mxu0 0.0
      %1565 = vmatprep.subr.mxu0 0.0
      %1566 = vmatpush1.msra.mxu0 0.0
      %1567 = vmatprep.subr.mxu0 0.0
      %1568 = vmatpush1.msra.mxu0 0.0
      %1569 = vmatprep.subr.mxu0 0.0
      %1570 = vmatpush1.msra.mxu0 0.0
      %1571 = vmatprep.subr.mxu0 0.0
      %1572 = vmatpush1.msra.mxu0 0.0
      %1573 = vmatprep.subr.mxu0 0.0
      %1574 = vmatpush1.msra.mxu0 0.0
      %1575 = vmatprep.subr.mxu0 0.0
      %1576 = vmatpush1.msra.mxu0 0.0
      %1577 = vmatprep.subr.mxu0 %v1541
      %1578 = vmatpush1.msra.mxu0 %v1539
      %1579 = vmatprep.subr.mxu0 0.0
      %1580 = vmatpush2.msra.mxu0 0.0
      %1581 = vmatprep.subr.mxu0 0.0
      %1582 = vmatpush2.msra.mxu0 0.0
      %1583 = vmatprep.subr.mxu0 0.0
      %1584 = vmatpush2.msra.mxu0 0.0
      %1585 = vmatprep.subr.mxu0 0.0
      %1586 = vmatpush2.msra.mxu0 0.0
      %1587 = vmatprep.subr.mxu0 0.0
      %1588 = vmatpush2.msra.mxu0 0.0
      %1589 = vmatprep.subr.mxu0 0.0
      %1590 = vmatpush2.msra.mxu0 0.0
      %1591 = vmatprep.subr.mxu0 0.0
      %1592 = vmatpush2.msra.mxu0 0.0
      %1593 = vmatprep.subr.mxu0 0.0
      %1594 = vmatpush2.msra.mxu0 0.0
      %1595 = vmatprep.subr.mxu0 0.0
      %1596 = vmatpush2.msra.mxu0 0.0
      %1597 = vmatprep.subr.mxu0 0.0
      %1598 = vmatpush2.msra.mxu0 0.0
      %1599 = vmatprep.subr.mxu0 0.0
      %1600 = vmatpush2.msra.mxu0 0.0
      %1601 = vmatprep.subr.mxu0 0.0
      %1602 = vmatpush2.msra.mxu0 0.0
      %1603 = vmatprep.subr.mxu0 0.0
      %1604 = vmatpush2.msra.mxu0 0.0
      %1605 = vmatprep.subr.mxu0 0.0
      %1606 = vmatpush2.msra.mxu0 0.0
      %1607 = vmatprep.subr.mxu0 0.0
      %1608 = vmatpush2.msra.mxu0 0.0
      %1609 = vmatprep.subr.mxu0 0.0
      %1610 = vmatpush2.msra.mxu0 0.0
      %1611 = vmatprep.mubr.f32.mxu0 0.0
      %1612 = vmatmul.mubr.f32.gmra.mxu0 %v1528
      %v1613 = vpop.f32.mrf.mxu0
      %v1614 = vadd.f32 0.0, %v1613
      %v1615 = vpop.f32.mrf.mxu0
      %v1616 = vadd.f32 0.0, %v1615
      %1617 = vmatprep.mubr.f32.mxu0 0.0
      %1618 = vmatmul.mubr.f32.gmra.mxu0 %v1531
      %v1619 = vpop.f32.mrf.mxu0
      %v1620 = vadd.f32 0.0, %v1619
      %v1621 = vpop.f32.mrf.mxu0
      %v1622 = vadd.f32 0.0, %v1621
      %1623 = vmatprep.mubr.f32.mxu0 0.0
      %1624 = vmatmul.mubr.f32.gmra.mxu0 %v1534
      %v1625 = vpop.f32.mrf.mxu0
      %v1626 = vadd.f32 0.0, %v1625
      %v1627 = vpop.f32.mrf.mxu0
      %v1628 = vadd.f32 0.0, %v1627
      %1629 = vmatprep.mubr.f32.mxu0 0.0
      %1630 = vmatmul.mubr.f32.gmra.mxu0 %v1537
      %v1631 = vpop.f32.mrf.mxu0
      %v1632 = vadd.f32 0.0, %v1631
      %v1633 = vpop.f32.mrf.mxu0
      %v1634 = vadd.f32 0.0, %v1633
      %1635 = vdwg.mxu0
      %1636 = vmatprep.subr.mxu0 0.0
      %1637 = vmatpush1.msra.mxu0 0.0
      %1638 = vmatprep.subr.mxu0 0.0
      %1639 = vmatpush1.msra.mxu0 0.0
      %1640 = vmatprep.subr.mxu0 0.0
      %1641 = vmatpush1.msra.mxu0 0.0
      %1642 = vmatprep.subr.mxu0 0.0
      %1643 = vmatpush1.msra.mxu0 0.0
      %1644 = vmatprep.subr.mxu0 0.0
      %1645 = vmatpush1.msra.mxu0 0.0
      %1646 = vmatprep.subr.mxu0 0.0
      %1647 = vmatpush1.msra.mxu0 0.0
      %1648 = vmatprep.subr.mxu0 0.0
      %1649 = vmatpush1.msra.mxu0 0.0
      %1650 = vmatprep.subr.mxu0 0.0
      %1651 = vmatpush1.msra.mxu0 0.0
      %1652 = vmatprep.subr.mxu0 0.0
      %1653 = vmatpush1.msra.mxu0 0.0
      %1654 = vmatprep.subr.mxu0 0.0
      %1655 = vmatpush1.msra.mxu0 0.0
      %1656 = vmatprep.subr.mxu0 0.0
      %1657 = vmatpush1.msra.mxu0 0.0
      %1658 = vmatprep.subr.mxu0 0.0
      %1659 = vmatpush1.msra.mxu0 0.0
      %1660 = vmatprep.subr.mxu0 0.0
      %1661 = vmatpush1.msra.mxu0 0.0
      %1662 = vmatprep.subr.mxu0 0.0
      %1663 = vmatpush1.msra.mxu0 0.0
      %1664 = vmatprep.subr.mxu0 0.0
      %1665 = vmatpush1.msra.mxu0 0.0
      %1666 = vmatprep.subr.mxu0 %v1545
      %1667 = vmatpush1.msra.mxu0 %v1543
      %1668 = vmatprep.subr.mxu0 0.0
      %1669 = vmatpush2.msra.mxu0 0.0
      %1670 = vmatprep.subr.mxu0 0.0
      %1671 = vmatpush2.msra.mxu0 0.0
      %1672 = vmatprep.subr.mxu0 0.0
      %1673 = vmatpush2.msra.mxu0 0.0
      %1674 = vmatprep.subr.mxu0 0.0
      %1675 = vmatpush2.msra.mxu0 0.0
      %1676 = vmatprep.subr.mxu0 0.0
      %1677 = vmatpush2.msra.mxu0 0.0
      %1678 = vmatprep.subr.mxu0 0.0
      %1679 = vmatpush2.msra.mxu0 0.0
      %1680 = vmatprep.subr.mxu0 0.0
      %1681 = vmatpush2.msra.mxu0 0.0
      %1682 = vmatprep.subr.mxu0 0.0
      %1683 = vmatpush2.msra.mxu0 0.0
      %1684 = vmatprep.subr.mxu0 0.0
      %1685 = vmatpush2.msra.mxu0 0.0
      %1686 = vmatprep.subr.mxu0 0.0
      %1687 = vmatpush2.msra.mxu0 0.0
      %1688 = vmatprep.subr.mxu0 0.0
      %1689 = vmatpush2.msra.mxu0 0.0
      %1690 = vmatprep.subr.mxu0 0.0
      %1691 = vmatpush2.msra.mxu0 0.0
      %1692 = vmatprep.subr.mxu0 0.0
      %1693 = vmatpush2.msra.mxu0 0.0
      %1694 = vmatprep.subr.mxu0 0.0
      %1695 = vmatpush2.msra.mxu0 0.0
      %1696 = vmatprep.subr.mxu0 0.0
      %1697 = vmatpush2.msra.mxu0 0.0
      %1698 = vmatprep.subr.mxu0 0.0
      %1699 = vmatpush2.msra.mxu0 0.0
      %1700 = vmatprep.mubr.f32.mxu0 0.0
      %1701 = vmatmul.mubr.f32.gmra.mxu0 %v1528
      %v1702 = vpop.f32.mrf.mxu0
      %v1703 = vadd.f32 0.0, %v1702
      %v1704 = vpop.f32.mrf.mxu0
      %v1705 = vadd.f32 0.0, %v1704
      %1706 = vmatprep.mubr.f32.mxu0 0.0
      %1707 = vmatmul.mubr.f32.gmra.mxu0 %v1531
      %v1708 = vpop.f32.mrf.mxu0
      %v1709 = vadd.f32 0.0, %v1708
      %v1710 = vpop.f32.mrf.mxu0
      %v1711 = vadd.f32 0.0, %v1710
      %1712 = vmatprep.mubr.f32.mxu0 0.0
      %1713 = vmatmul.mubr.f32.gmra.mxu0 %v1534
      %v1714 = vpop.f32.mrf.mxu0
      %v1715 = vadd.f32 0.0, %v1714
      %v1716 = vpop.f32.mrf.mxu0
      %v1717 = vadd.f32 0.0, %v1716
      %1718 = vmatprep.mubr.f32.mxu0 0.0
      %1719 = vmatmul.mubr.f32.gmra.mxu0 %v1537
      %v1720 = vpop.f32.mrf.mxu0
      %v1721 = vadd.f32 0.0, %v1720
      %v1722 = vpop.f32.mrf.mxu0
      %v1723 = vadd.f32 0.0, %v1722
      %1724 = vdwg.mxu0
      %v1725 = vadd.f32 %v1488, %v1614
      %v1726 = vadd.f32 %v1489, %v1616
      %v1727 = vadd.f32 %v1490, %v1703
      %v1728 = vadd.f32 %v1491, %v1705
      %v1729 = vadd.f32 %v1492, %v1620
      %v1730 = vadd.f32 %v1493, %v1622
      %v1731 = vadd.f32 %v1494, %v1709
      %v1732 = vadd.f32 %v1495, %v1711
      %v1733 = vadd.f32 %v1496, %v1626
      %v1734 = vadd.f32 %v1497, %v1628
      %v1735 = vadd.f32 %v1498, %v1715
      %v1736 = vadd.f32 %v1499, %v1717
      %v1737 = vadd.f32 %v1500, %v1632
      %v1738 = vadd.f32 %v1501, %v1634
      %v1739 = vadd.f32 %v1502, %v1721
      %v1740 = vadd.f32 %v1503, %v1723
      %v1741 = vld [vmem:[#allocation2] sm:$0x77]
      %v1742 = vld [vmem:[#allocation2 + $0x8] sm:$0x77]
      %s1743 = scalar_lea.vmem %s1, 128
      %v1744 = vld [vmem:[%s1743] sm:$0xff]
      %v1745 = vld [vmem:[%s1743 + $0x8] sm:$0xff]
      %v1746 = vld [vmem:[%s1743 + $0x10] sm:$0xff]
      %v1747 = vld [vmem:[%s1743 + $0x18] sm:$0xff]
      %v1750 = vcombine.high %v1741, %v1741
      %v1751 = vcombine.high %v1742, %v1742
      %1752 = vrot.lane.b32.xlu0 %v1741, 92
      %v1753 = vpop.permute.xlu0 %1752
      %1754 = vrot.lane.b32.xlu0 %v1750, 92
      %v1755 = vpop.permute.xlu0 %1754
      %1756 = vrot.lane.b32.xlu0 %v1742, 92
      %v1757 = vpop.permute.xlu0 %1756
      %1758 = vrot.lane.b32.xlu0 %v1751, 92
      %v1759 = vpop.permute.xlu0 %1758
      %vm1760 = vcmask 752640
      %v1761 = vsel %vm1760, %v1753, %v1755
      %v1762 = vsel %vm1760, %v1755, %v1757
      %v1763 = vsel %vm1760, %v1757, %v1759
      %v1765 = vsel %vm815, %v1744, 0
      %v1768 = vsel %vm815, %v1745, 0
      %v1771 = vsel %vm815, %v1746, 0
      %v1774 = vsel %vm815, %v1747, 0
      %v1776 = vsel %vm747, %v1761, 0
      %v1778 = vsel %vm747, %v1762, 0
      %v1780 = vsel %vm747, %v1763, 0
      %v1782 = vsel %vm747, %v1759, 0
      %1784 = vmatprep.subr.mxu0 0.0
      %1785 = vmatpush1.msra.mxu0 0.0
      %1786 = vmatprep.subr.mxu0 0.0
      %1787 = vmatpush1.msra.mxu0 0.0
      %1788 = vmatprep.subr.mxu0 0.0
      %1789 = vmatpush1.msra.mxu0 0.0
      %1790 = vmatprep.subr.mxu0 0.0
      %1791 = vmatpush1.msra.mxu0 0.0
      %1792 = vmatprep.subr.mxu0 0.0
      %1793 = vmatpush1.msra.mxu0 0.0
      %1794 = vmatprep.subr.mxu0 0.0
      %1795 = vmatpush1.msra.mxu0 0.0
      %1796 = vmatprep.subr.mxu0 0.0
      %1797 = vmatpush1.msra.mxu0 0.0
      %1798 = vmatprep.subr.mxu0 0.0
      %1799 = vmatpush1.msra.mxu0 0.0
      %1800 = vmatprep.subr.mxu0 0.0
      %1801 = vmatpush1.msra.mxu0 0.0
      %1802 = vmatprep.subr.mxu0 0.0
      %1803 = vmatpush1.msra.mxu0 0.0
      %1804 = vmatprep.subr.mxu0 0.0
      %1805 = vmatpush1.msra.mxu0 0.0
      %1806 = vmatprep.subr.mxu0 0.0
      %1807 = vmatpush1.msra.mxu0 0.0
      %1808 = vmatprep.subr.mxu0 0.0
      %1809 = vmatpush1.msra.mxu0 0.0
      %1810 = vmatprep.subr.mxu0 0.0
      %1811 = vmatpush1.msra.mxu0 0.0
      %1812 = vmatprep.subr.mxu0 0.0
      %1813 = vmatpush1.msra.mxu0 0.0
      %1814 = vmatprep.subr.mxu0 %v1778
      %1815 = vmatpush1.msra.mxu0 %v1776
      %1816 = vmatprep.subr.mxu0 0.0
      %1817 = vmatpush2.msra.mxu0 0.0
      %1818 = vmatprep.subr.mxu0 0.0
      %1819 = vmatpush2.msra.mxu0 0.0
      %1820 = vmatprep.subr.mxu0 0.0
      %1821 = vmatpush2.msra.mxu0 0.0
      %1822 = vmatprep.subr.mxu0 0.0
      %1823 = vmatpush2.msra.mxu0 0.0
      %1824 = vmatprep.subr.mxu0 0.0
      %1825 = vmatpush2.msra.mxu0 0.0
      %1826 = vmatprep.subr.mxu0 0.0
      %1827 = vmatpush2.msra.mxu0 0.0
      %1828 = vmatprep.subr.mxu0 0.0
      %1829 = vmatpush2.msra.mxu0 0.0
      %1830 = vmatprep.subr.mxu0 0.0
      %1831 = vmatpush2.msra.mxu0 0.0
      %1832 = vmatprep.subr.mxu0 0.0
      %1833 = vmatpush2.msra.mxu0 0.0
      %1834 = vmatprep.subr.mxu0 0.0
      %1835 = vmatpush2.msra.mxu0 0.0
      %1836 = vmatprep.subr.mxu0 0.0
      %1837 = vmatpush2.msra.mxu0 0.0
      %1838 = vmatprep.subr.mxu0 0.0
      %1839 = vmatpush2.msra.mxu0 0.0
      %1840 = vmatprep.subr.mxu0 0.0
      %1841 = vmatpush2.msra.mxu0 0.0
      %1842 = vmatprep.subr.mxu0 0.0
      %1843 = vmatpush2.msra.mxu0 0.0
      %1844 = vmatprep.subr.mxu0 0.0
      %1845 = vmatpush2.msra.mxu0 0.0
      %1846 = vmatprep.subr.mxu0 0.0
      %1847 = vmatpush2.msra.mxu0 0.0
      %1848 = vmatprep.mubr.f32.mxu0 0.0
      %1849 = vmatmul.mubr.f32.gmra.mxu0 %v1765
      %v1850 = vpop.f32.mrf.mxu0
      %v1851 = vadd.f32 0.0, %v1850
      %v1852 = vpop.f32.mrf.mxu0
      %v1853 = vadd.f32 0.0, %v1852
      %1854 = vmatprep.mubr.f32.mxu0 0.0
      %1855 = vmatmul.mubr.f32.gmra.mxu0 %v1768
      %v1856 = vpop.f32.mrf.mxu0
      %v1857 = vadd.f32 0.0, %v1856
      %v1858 = vpop.f32.mrf.mxu0
      %v1859 = vadd.f32 0.0, %v1858
      %1860 = vmatprep.mubr.f32.mxu0 0.0
      %1861 = vmatmul.mubr.f32.gmra.mxu0 %v1771
      %v1862 = vpop.f32.mrf.mxu0
      %v1863 = vadd.f32 0.0, %v1862
      %v1864 = vpop.f32.mrf.mxu0
      %v1865 = vadd.f32 0.0, %v1864
      %1866 = vmatprep.mubr.f32.mxu0 0.0
      %1867 = vmatmul.mubr.f32.gmra.mxu0 %v1774
      %v1868 = vpop.f32.mrf.mxu0
      %v1869 = vadd.f32 0.0, %v1868
      %v1870 = vpop.f32.mrf.mxu0
      %v1871 = vadd.f32 0.0, %v1870
      %1872 = vdwg.mxu0
      %1873 = vmatprep.subr.mxu0 0.0
      %1874 = vmatpush1.msra.mxu0 0.0
      %1875 = vmatprep.subr.mxu0 0.0
      %1876 = vmatpush1.msra.mxu0 0.0
      %1877 = vmatprep.subr.mxu0 0.0
      %1878 = vmatpush1.msra.mxu0 0.0
      %1879 = vmatprep.subr.mxu0 0.0
      %1880 = vmatpush1.msra.mxu0 0.0
      %1881 = vmatprep.subr.mxu0 0.0
      %1882 = vmatpush1.msra.mxu0 0.0
      %1883 = vmatprep.subr.mxu0 0.0
      %1884 = vmatpush1.msra.mxu0 0.0
      %1885 = vmatprep.subr.mxu0 0.0
      %1886 = vmatpush1.msra.mxu0 0.0
      %1887 = vmatprep.subr.mxu0 0.0
      %1888 = vmatpush1.msra.mxu0 0.0
      %1889 = vmatprep.subr.mxu0 0.0
      %1890 = vmatpush1.msra.mxu0 0.0
      %1891 = vmatprep.subr.mxu0 0.0
      %1892 = vmatpush1.msra.mxu0 0.0
      %1893 = vmatprep.subr.mxu0 0.0
      %1894 = vmatpush1.msra.mxu0 0.0
      %1895 = vmatprep.subr.mxu0 0.0
      %1896 = vmatpush1.msra.mxu0 0.0
      %1897 = vmatprep.subr.mxu0 0.0
      %1898 = vmatpush1.msra.mxu0 0.0
      %1899 = vmatprep.subr.mxu0 0.0
      %1900 = vmatpush1.msra.mxu0 0.0
      %1901 = vmatprep.subr.mxu0 0.0
      %1902 = vmatpush1.msra.mxu0 0.0
      %1903 = vmatprep.subr.mxu0 %v1782
      %1904 = vmatpush1.msra.mxu0 %v1780
      %1905 = vmatprep.subr.mxu0 0.0
      %1906 = vmatpush2.msra.mxu0 0.0
      %1907 = vmatprep.subr.mxu0 0.0
      %1908 = vmatpush2.msra.mxu0 0.0
      %1909 = vmatprep.subr.mxu0 0.0
      %1910 = vmatpush2.msra.mxu0 0.0
      %1911 = vmatprep.subr.mxu0 0.0
      %1912 = vmatpush2.msra.mxu0 0.0
      %1913 = vmatprep.subr.mxu0 0.0
      %1914 = vmatpush2.msra.mxu0 0.0
      %1915 = vmatprep.subr.mxu0 0.0
      %1916 = vmatpush2.msra.mxu0 0.0
      %1917 = vmatprep.subr.mxu0 0.0
      %1918 = vmatpush2.msra.mxu0 0.0
      %1919 = vmatprep.subr.mxu0 0.0
      %1920 = vmatpush2.msra.mxu0 0.0
      %1921 = vmatprep.subr.mxu0 0.0
      %1922 = vmatpush2.msra.mxu0 0.0
      %1923 = vmatprep.subr.mxu0 0.0
      %1924 = vmatpush2.msra.mxu0 0.0
      %1925 = vmatprep.subr.mxu0 0.0
      %1926 = vmatpush2.msra.mxu0 0.0
      %1927 = vmatprep.subr.mxu0 0.0
      %1928 = vmatpush2.msra.mxu0 0.0
      %1929 = vmatprep.subr.mxu0 0.0
      %1930 = vmatpush2.msra.mxu0 0.0
      %1931 = vmatprep.subr.mxu0 0.0
      %1932 = vmatpush2.msra.mxu0 0.0
      %1933 = vmatprep.subr.mxu0 0.0
      %1934 = vmatpush2.msra.mxu0 0.0
      %1935 = vmatprep.subr.mxu0 0.0
      %1936 = vmatpush2.msra.mxu0 0.0
      %1937 = vmatprep.mubr.f32.mxu0 0.0
      %1938 = vmatmul.mubr.f32.gmra.mxu0 %v1765
      %v1939 = vpop.f32.mrf.mxu0
      %v1940 = vadd.f32 0.0, %v1939
      %v1941 = vpop.f32.mrf.mxu0
      %v1942 = vadd.f32 0.0, %v1941
      %1943 = vmatprep.mubr.f32.mxu0 0.0
      %1944 = vmatmul.mubr.f32.gmra.mxu0 %v1768
      %v1945 = vpop.f32.mrf.mxu0
      %v1946 = vadd.f32 0.0, %v1945
      %v1947 = vpop.f32.mrf.mxu0
      %v1948 = vadd.f32 0.0, %v1947
      %1949 = vmatprep.mubr.f32.mxu0 0.0
      %1950 = vmatmul.mubr.f32.gmra.mxu0 %v1771
      %v1951 = vpop.f32.mrf.mxu0
      %v1952 = vadd.f32 0.0, %v1951
      %v1953 = vpop.f32.mrf.mxu0
      %v1954 = vadd.f32 0.0, %v1953
      %1955 = vmatprep.mubr.f32.mxu0 0.0
      %1956 = vmatmul.mubr.f32.gmra.mxu0 %v1774
      %v1957 = vpop.f32.mrf.mxu0
      %v1958 = vadd.f32 0.0, %v1957
      %v1959 = vpop.f32.mrf.mxu0
      %v1960 = vadd.f32 0.0, %v1959
      %1961 = vdwg.mxu0
      %v1962 = vadd.f32 %v1725, %v1851
      %v1963 = vadd.f32 %v1726, %v1853
      %v1964 = vadd.f32 %v1727, %v1940
      %v1965 = vadd.f32 %v1728, %v1942
      %v1966 = vadd.f32 %v1729, %v1857
      %v1967 = vadd.f32 %v1730, %v1859
      %v1968 = vadd.f32 %v1731, %v1946
      %v1969 = vadd.f32 %v1732, %v1948
      %v1970 = vadd.f32 %v1733, %v1863
      %v1971 = vadd.f32 %v1734, %v1865
      %v1972 = vadd.f32 %v1735, %v1952
      %v1973 = vadd.f32 %v1736, %v1954
      %v1974 = vadd.f32 %v1737, %v1869
      %v1975 = vadd.f32 %v1738, %v1871
      %v1976 = vadd.f32 %v1739, %v1958
      %v1977 = vadd.f32 %v1740, %v1960
      %v1978 = vld [vmem:[#allocation2] sm:$0x77]
      %v1979 = vld [vmem:[#allocation2 + $0x8] sm:$0x77]
      %s1980 = scalar_lea.vmem %s1, 160
      %v1981 = vld [vmem:[%s1980] sm:$0xff]
      %v1982 = vld [vmem:[%s1980 + $0x8] sm:$0xff]
      %v1983 = vld [vmem:[%s1980 + $0x10] sm:$0xff]
      %v1984 = vld [vmem:[%s1980 + $0x18] sm:$0xff]
      %v1987 = vcombine.high %v1978, %v1978
      %v1988 = vcombine.high %v1979, %v1979
      %1989 = vrot.lane.b32.xlu0 %v1978, 91
      %v1990 = vpop.permute.xlu0 %1989
      %1991 = vrot.lane.b32.xlu0 %v1987, 91
      %v1992 = vpop.permute.xlu0 %1991
      %1993 = vrot.lane.b32.xlu0 %v1979, 91
      %v1994 = vpop.permute.xlu0 %1993
      %1995 = vrot.lane.b32.xlu0 %v1988, 91
      %v1996 = vpop.permute.xlu0 %1995
      %vm1997 = vcmask 744448
      %v1998 = vsel %vm1997, %v1990, %v1992
      %v1999 = vsel %vm1997, %v1992, %v1994
      %v2000 = vsel %vm1997, %v1994, %v1996
      %v2002 = vsel %vm815, %v1981, 0
      %v2005 = vsel %vm815, %v1982, 0
      %v2008 = vsel %vm815, %v1983, 0
      %v2011 = vsel %vm815, %v1984, 0
      %v2013 = vsel %vm747, %v1998, 0
      %v2015 = vsel %vm747, %v1999, 0
      %v2017 = vsel %vm747, %v2000, 0
      %v2019 = vsel %vm747, %v1996, 0
      %2021 = vmatprep.subr.mxu0 0.0
      %2022 = vmatpush1.msra.mxu0 0.0
      %2023 = vmatprep.subr.mxu0 0.0
      %2024 = vmatpush1.msra.mxu0 0.0
      %2025 = vmatprep.subr.mxu0 0.0
      %2026 = vmatpush1.msra.mxu0 0.0
      %2027 = vmatprep.subr.mxu0 0.0
      %2028 = vmatpush1.msra.mxu0 0.0
      %2029 = vmatprep.subr.mxu0 0.0
      %2030 = vmatpush1.msra.mxu0 0.0
      %2031 = vmatprep.subr.mxu0 0.0
      %2032 = vmatpush1.msra.mxu0 0.0
      %2033 = vmatprep.subr.mxu0 0.0
      %2034 = vmatpush1.msra.mxu0 0.0
      %2035 = vmatprep.subr.mxu0 0.0
      %2036 = vmatpush1.msra.mxu0 0.0
      %2037 = vmatprep.subr.mxu0 0.0
      %2038 = vmatpush1.msra.mxu0 0.0
      %2039 = vmatprep.subr.mxu0 0.0
      %2040 = vmatpush1.msra.mxu0 0.0
      %2041 = vmatprep.subr.mxu0 0.0
      %2042 = vmatpush1.msra.mxu0 0.0
      %2043 = vmatprep.subr.mxu0 0.0
      %2044 = vmatpush1.msra.mxu0 0.0
      %2045 = vmatprep.subr.mxu0 0.0
      %2046 = vmatpush1.msra.mxu0 0.0
      %2047 = vmatprep.subr.mxu0 0.0
      %2048 = vmatpush1.msra.mxu0 0.0
      %2049 = vmatprep.subr.mxu0 0.0
      %2050 = vmatpush1.msra.mxu0 0.0
      %2051 = vmatprep.subr.mxu0 %v2015
      %2052 = vmatpush1.msra.mxu0 %v2013
      %2053 = vmatprep.subr.mxu0 0.0
      %2054 = vmatpush2.msra.mxu0 0.0
      %2055 = vmatprep.subr.mxu0 0.0
      %2056 = vmatpush2.msra.mxu0 0.0
      %2057 = vmatprep.subr.mxu0 0.0
      %2058 = vmatpush2.msra.mxu0 0.0
      %2059 = vmatprep.subr.mxu0 0.0
      %2060 = vmatpush2.msra.mxu0 0.0
      %2061 = vmatprep.subr.mxu0 0.0
      %2062 = vmatpush2.msra.mxu0 0.0
      %2063 = vmatprep.subr.mxu0 0.0
      %2064 = vmatpush2.msra.mxu0 0.0
      %2065 = vmatprep.subr.mxu0 0.0
      %2066 = vmatpush2.msra.mxu0 0.0
      %2067 = vmatprep.subr.mxu0 0.0
      %2068 = vmatpush2.msra.mxu0 0.0
      %2069 = vmatprep.subr.mxu0 0.0
      %2070 = vmatpush2.msra.mxu0 0.0
      %2071 = vmatprep.subr.mxu0 0.0
      %2072 = vmatpush2.msra.mxu0 0.0
      %2073 = vmatprep.subr.mxu0 0.0
      %2074 = vmatpush2.msra.mxu0 0.0
      %2075 = vmatprep.subr.mxu0 0.0
      %2076 = vmatpush2.msra.mxu0 0.0
      %2077 = vmatprep.subr.mxu0 0.0
      %2078 = vmatpush2.msra.mxu0 0.0
      %2079 = vmatprep.subr.mxu0 0.0
      %2080 = vmatpush2.msra.mxu0 0.0
      %2081 = vmatprep.subr.mxu0 0.0
      %2082 = vmatpush2.msra.mxu0 0.0
      %2083 = vmatprep.subr.mxu0 0.0
      %2084 = vmatpush2.msra.mxu0 0.0
      %2085 = vmatprep.mubr.f32.mxu0 0.0
      %2086 = vmatmul.mubr.f32.gmra.mxu0 %v2002
      %v2087 = vpop.f32.mrf.mxu0
      %v2088 = vadd.f32 0.0, %v2087
      %v2089 = vpop.f32.mrf.mxu0
      %v2090 = vadd.f32 0.0, %v2089
      %2091 = vmatprep.mubr.f32.mxu0 0.0
      %2092 = vmatmul.mubr.f32.gmra.mxu0 %v2005
      %v2093 = vpop.f32.mrf.mxu0
      %v2094 = vadd.f32 0.0, %v2093
      %v2095 = vpop.f32.mrf.mxu0
      %v2096 = vadd.f32 0.0, %v2095
      %2097 = vmatprep.mubr.f32.mxu0 0.0
      %2098 = vmatmul.mubr.f32.gmra.mxu0 %v2008
      %v2099 = vpop.f32.mrf.mxu0
      %v2100 = vadd.f32 0.0, %v2099
      %v2101 = vpop.f32.mrf.mxu0
      %v2102 = vadd.f32 0.0, %v2101
      %2103 = vmatprep.mubr.f32.mxu0 0.0
      %2104 = vmatmul.mubr.f32.gmra.mxu0 %v2011
      %v2105 = vpop.f32.mrf.mxu0
      %v2106 = vadd.f32 0.0, %v2105
      %v2107 = vpop.f32.mrf.mxu0
      %v2108 = vadd.f32 0.0, %v2107
      %2109 = vdwg.mxu0
      %2110 = vmatprep.subr.mxu0 0.0
      %2111 = vmatpush1.msra.mxu0 0.0
      %2112 = vmatprep.subr.mxu0 0.0
      %2113 = vmatpush1.msra.mxu0 0.0
      %2114 = vmatprep.subr.mxu0 0.0
      %2115 = vmatpush1.msra.mxu0 0.0
      %2116 = vmatprep.subr.mxu0 0.0
      %2117 = vmatpush1.msra.mxu0 0.0
      %2118 = vmatprep.subr.mxu0 0.0
      %2119 = vmatpush1.msra.mxu0 0.0
      %2120 = vmatprep.subr.mxu0 0.0
      %2121 = vmatpush1.msra.mxu0 0.0
      %2122 = vmatprep.subr.mxu0 0.0
      %2123 = vmatpush1.msra.mxu0 0.0
      %2124 = vmatprep.subr.mxu0 0.0
      %2125 = vmatpush1.msra.mxu0 0.0
      %2126 = vmatprep.subr.mxu0 0.0
      %2127 = vmatpush1.msra.mxu0 0.0
      %2128 = vmatprep.subr.mxu0 0.0
      %2129 = vmatpush1.msra.mxu0 0.0
      %2130 = vmatprep.subr.mxu0 0.0
      %2131 = vmatpush1.msra.mxu0 0.0
      %2132 = vmatprep.subr.mxu0 0.0
      %2133 = vmatpush1.msra.mxu0 0.0
      %2134 = vmatprep.subr.mxu0 0.0
      %2135 = vmatpush1.msra.mxu0 0.0
      %2136 = vmatprep.subr.mxu0 0.0
      %2137 = vmatpush1.msra.mxu0 0.0
      %2138 = vmatprep.subr.mxu0 0.0
      %2139 = vmatpush1.msra.mxu0 0.0
      %2140 = vmatprep.subr.mxu0 %v2019
      %2141 = vmatpush1.msra.mxu0 %v2017
      %2142 = vmatprep.subr.mxu0 0.0
      %2143 = vmatpush2.msra.mxu0 0.0
      %2144 = vmatprep.subr.mxu0 0.0
      %2145 = vmatpush2.msra.mxu0 0.0
      %2146 = vmatprep.subr.mxu0 0.0
      %2147 = vmatpush2.msra.mxu0 0.0
      %2148 = vmatprep.subr.mxu0 0.0
      %2149 = vmatpush2.msra.mxu0 0.0
      %2150 = vmatprep.subr.mxu0 0.0
      %2151 = vmatpush2.msra.mxu0 0.0
      %2152 = vmatprep.subr.mxu0 0.0
      %2153 = vmatpush2.msra.mxu0 0.0
      %2154 = vmatprep.subr.mxu0 0.0
      %2155 = vmatpush2.msra.mxu0 0.0
      %2156 = vmatprep.subr.mxu0 0.0
      %2157 = vmatpush2.msra.mxu0 0.0
      %2158 = vmatprep.subr.mxu0 0.0
      %2159 = vmatpush2.msra.mxu0 0.0
      %2160 = vmatprep.subr.mxu0 0.0
      %2161 = vmatpush2.msra.mxu0 0.0
      %2162 = vmatprep.subr.mxu0 0.0
      %2163 = vmatpush2.msra.mxu0 0.0
      %2164 = vmatprep.subr.mxu0 0.0
      %2165 = vmatpush2.msra.mxu0 0.0
      %2166 = vmatprep.subr.mxu0 0.0
      %2167 = vmatpush2.msra.mxu0 0.0
      %2168 = vmatprep.subr.mxu0 0.0
      %2169 = vmatpush2.msra.mxu0 0.0
      %2170 = vmatprep.subr.mxu0 0.0
      %2171 = vmatpush2.msra.mxu0 0.0
      %2172 = vmatprep.subr.mxu0 0.0
      %2173 = vmatpush2.msra.mxu0 0.0
      %2174 = vmatprep.mubr.f32.mxu0 0.0
      %2175 = vmatmul.mubr.f32.gmra.mxu0 %v2002
      %v2176 = vpop.f32.mrf.mxu0
      %v2177 = vadd.f32 0.0, %v2176
      %v2178 = vpop.f32.mrf.mxu0
      %v2179 = vadd.f32 0.0, %v2178
      %2180 = vmatprep.mubr.f32.mxu0 0.0
      %2181 = vmatmul.mubr.f32.gmra.mxu0 %v2005
      %v2182 = vpop.f32.mrf.mxu0
      %v2183 = vadd.f32 0.0, %v2182
      %v2184 = vpop.f32.mrf.mxu0
      %v2185 = vadd.f32 0.0, %v2184
      %2186 = vmatprep.mubr.f32.mxu0 0.0
      %2187 = vmatmul.mubr.f32.gmra.mxu0 %v2008
      %v2188 = vpop.f32.mrf.mxu0
      %v2189 = vadd.f32 0.0, %v2188
      %v2190 = vpop.f32.mrf.mxu0
      %v2191 = vadd.f32 0.0, %v2190
      %2192 = vmatprep.mubr.f32.mxu0 0.0
      %2193 = vmatmul.mubr.f32.gmra.mxu0 %v2011
      %v2194 = vpop.f32.mrf.mxu0
      %v2195 = vadd.f32 0.0, %v2194
      %v2196 = vpop.f32.mrf.mxu0
      %v2197 = vadd.f32 0.0, %v2196
      %2198 = vdwg.mxu0
      %v2199 = vadd.f32 %v1962, %v2088
      %v2200 = vadd.f32 %v1963, %v2090
      %v2201 = vadd.f32 %v1964, %v2177
      %v2202 = vadd.f32 %v1965, %v2179
      %v2203 = vadd.f32 %v1966, %v2094
      %v2204 = vadd.f32 %v1967, %v2096
      %v2205 = vadd.f32 %v1968, %v2183
      %v2206 = vadd.f32 %v1969, %v2185
      %v2207 = vadd.f32 %v1970, %v2100
      %v2208 = vadd.f32 %v1971, %v2102
      %v2209 = vadd.f32 %v1972, %v2189
      %v2210 = vadd.f32 %v1973, %v2191
      %v2211 = vadd.f32 %v1974, %v2106
      %v2212 = vadd.f32 %v1975, %v2108
      %v2213 = vadd.f32 %v1976, %v2195
      %v2214 = vadd.f32 %v1977, %v2197
      %v2215 = vld [vmem:[#allocation2] sm:$0x77]
      %v2216 = vld [vmem:[#allocation2 + $0x8] sm:$0x77]
      %s2217 = scalar_lea.vmem %s1, 192
      %v2218 = vld [vmem:[%s2217] sm:$0xff]
      %v2219 = vld [vmem:[%s2217 + $0x8] sm:$0xff]
      %v2220 = vld [vmem:[%s2217 + $0x10] sm:$0xff]
      %v2221 = vld [vmem:[%s2217 + $0x18] sm:$0xff]
      %v2224 = vcombine.high %v2215, %v2215
      %v2225 = vcombine.high %v2216, %v2216
      %2226 = vrot.lane.b32.xlu0 %v2215, 75
      %v2227 = vpop.permute.xlu0 %2226
      %2228 = vrot.lane.b32.xlu0 %v2224, 75
      %v2229 = vpop.permute.xlu0 %2228
      %2230 = vrot.lane.b32.xlu0 %v2216, 75
      %v2231 = vpop.permute.xlu0 %2230
      %2232 = vrot.lane.b32.xlu0 %v2225, 75
      %v2233 = vpop.permute.xlu0 %2232
      %vm2234 = vcmask 613376
      %v2235 = vsel %vm2234, %v2227, %v2229
      %v2236 = vsel %vm2234, %v2229, %v2231
      %v2237 = vsel %vm2234, %v2231, %v2233
      %v2239 = vsel %vm815, %v2218, 0
      %v2242 = vsel %vm815, %v2219, 0
      %v2245 = vsel %vm815, %v2220, 0
      %v2248 = vsel %vm815, %v2221, 0
      %v2250 = vsel %vm747, %v2235, 0
      %v2252 = vsel %vm747, %v2236, 0
      %v2254 = vsel %vm747, %v2237, 0
      %v2256 = vsel %vm747, %v2233, 0
      %2258 = vmatprep.subr.mxu0 0.0
      %2259 = vmatpush1.msra.mxu0 0.0
      %2260 = vmatprep.subr.mxu0 0.0
      %2261 = vmatpush1.msra.mxu0 0.0
      %2262 = vmatprep.subr.mxu0 0.0
      %2263 = vmatpush1.msra.mxu0 0.0
      %2264 = vmatprep.subr.mxu0 0.0
      %2265 = vmatpush1.msra.mxu0 0.0
      %2266 = vmatprep.subr.mxu0 0.0
      %2267 = vmatpush1.msra.mxu0 0.0
      %2268 = vmatprep.subr.mxu0 0.0
      %2269 = vmatpush1.msra.mxu0 0.0
      %2270 = vmatprep.subr.mxu0 0.0
      %2271 = vmatpush1.msra.mxu0 0.0
      %2272 = vmatprep.subr.mxu0 0.0
      %2273 = vmatpush1.msra.mxu0 0.0
      %2274 = vmatprep.subr.mxu0 0.0
      %2275 = vmatpush1.msra.mxu0 0.0
      %2276 = vmatprep.subr.mxu0 0.0
      %2277 = vmatpush1.msra.mxu0 0.0
      %2278 = vmatprep.subr.mxu0 0.0
      %2279 = vmatpush1.msra.mxu0 0.0
      %2280 = vmatprep.subr.mxu0 0.0
      %2281 = vmatpush1.msra.mxu0 0.0
      %2282 = vmatprep.subr.mxu0 0.0
      %2283 = vmatpush1.msra.mxu0 0.0
      %2284 = vmatprep.subr.mxu0 0.0
      %2285 = vmatpush1.msra.mxu0 0.0
      %2286 = vmatprep.subr.mxu0 0.0
      %2287 = vmatpush1.msra.mxu0 0.0
      %2288 = vmatprep.subr.mxu0 %v2252
      %2289 = vmatpush1.msra.mxu0 %v2250
      %2290 = vmatprep.subr.mxu0 0.0
      %2291 = vmatpush2.msra.mxu0 0.0
      %2292 = vmatprep.subr.mxu0 0.0
      %2293 = vmatpush2.msra.mxu0 0.0
      %2294 = vmatprep.subr.mxu0 0.0
      %2295 = vmatpush2.msra.mxu0 0.0
      %2296 = vmatprep.subr.mxu0 0.0
      %2297 = vmatpush2.msra.mxu0 0.0
      %2298 = vmatprep.subr.mxu0 0.0
      %2299 = vmatpush2.msra.mxu0 0.0
      %2300 = vmatprep.subr.mxu0 0.0
      %2301 = vmatpush2.msra.mxu0 0.0
      %2302 = vmatprep.subr.mxu0 0.0
      %2303 = vmatpush2.msra.mxu0 0.0
      %2304 = vmatprep.subr.mxu0 0.0
      %2305 = vmatpush2.msra.mxu0 0.0
      %2306 = vmatprep.subr.mxu0 0.0
      %2307 = vmatpush2.msra.mxu0 0.0
      %2308 = vmatprep.subr.mxu0 0.0
      %2309 = vmatpush2.msra.mxu0 0.0
      %2310 = vmatprep.subr.mxu0 0.0
      %2311 = vmatpush2.msra.mxu0 0.0
      %2312 = vmatprep.subr.mxu0 0.0
      %2313 = vmatpush2.msra.mxu0 0.0
      %2314 = vmatprep.subr.mxu0 0.0
      %2315 = vmatpush2.msra.mxu0 0.0
      %2316 = vmatprep.subr.mxu0 0.0
      %2317 = vmatpush2.msra.mxu0 0.0
      %2318 = vmatprep.subr.mxu0 0.0
      %2319 = vmatpush2.msra.mxu0 0.0
      %2320 = vmatprep.subr.mxu0 0.0
      %2321 = vmatpush2.msra.mxu0 0.0
      %2322 = vmatprep.mubr.f32.mxu0 0.0
      %2323 = vmatmul.mubr.f32.gmra.mxu0 %v2239
      %v2324 = vpop.f32.mrf.mxu0
      %v2325 = vadd.f32 0.0, %v2324
      %v2326 = vpop.f32.mrf.mxu0
      %v2327 = vadd.f32 0.0, %v2326
      %2328 = vmatprep.mubr.f32.mxu0 0.0
      %2329 = vmatmul.mubr.f32.gmra.mxu0 %v2242
      %v2330 = vpop.f32.mrf.mxu0
      %v2331 = vadd.f32 0.0, %v2330
      %v2332 = vpop.f32.mrf.mxu0
      %v2333 = vadd.f32 0.0, %v2332
      %2334 = vmatprep.mubr.f32.mxu0 0.0
      %2335 = vmatmul.mubr.f32.gmra.mxu0 %v2245
      %v2336 = vpop.f32.mrf.mxu0
      %v2337 = vadd.f32 0.0, %v2336
      %v2338 = vpop.f32.mrf.mxu0
      %v2339 = vadd.f32 0.0, %v2338
      %2340 = vmatprep.mubr.f32.mxu0 0.0
      %2341 = vmatmul.mubr.f32.gmra.mxu0 %v2248
      %v2342 = vpop.f32.mrf.mxu0
      %v2343 = vadd.f32 0.0, %v2342
      %v2344 = vpop.f32.mrf.mxu0
      %v2345 = vadd.f32 0.0, %v2344
      %2346 = vdwg.mxu0
      %2347 = vmatprep.subr.mxu0 0.0
      %2348 = vmatpush1.msra.mxu0 0.0
      %2349 = vmatprep.subr.mxu0 0.0
      %2350 = vmatpush1.msra.mxu0 0.0
      %2351 = vmatprep.subr.mxu0 0.0
      %2352 = vmatpush1.msra.mxu0 0.0
      %2353 = vmatprep.subr.mxu0 0.0
      %2354 = vmatpush1.msra.mxu0 0.0
      %2355 = vmatprep.subr.mxu0 0.0
      %2356 = vmatpush1.msra.mxu0 0.0
      %2357 = vmatprep.subr.mxu0 0.0
      %2358 = vmatpush1.msra.mxu0 0.0
      %2359 = vmatprep.subr.mxu0 0.0
      %2360 = vmatpush1.msra.mxu0 0.0
      %2361 = vmatprep.subr.mxu0 0.0
      %2362 = vmatpush1.msra.mxu0 0.0
      %2363 = vmatprep.subr.mxu0 0.0
      %2364 = vmatpush1.msra.mxu0 0.0
      %2365 = vmatprep.subr.mxu0 0.0
      %2366 = vmatpush1.msra.mxu0 0.0
      %2367 = vmatprep.subr.mxu0 0.0
      %2368 = vmatpush1.msra.mxu0 0.0
      %2369 = vmatprep.subr.mxu0 0.0
      %2370 = vmatpush1.msra.mxu0 0.0
      %2371 = vmatprep.subr.mxu0 0.0
      %2372 = vmatpush1.msra.mxu0 0.0
      %2373 = vmatprep.subr.mxu0 0.0
      %2374 = vmatpush1.msra.mxu0 0.0
      %2375 = vmatprep.subr.mxu0 0.0
      %2376 = vmatpush1.msra.mxu0 0.0
      %2377 = vmatprep.subr.mxu0 %v2256
      %2378 = vmatpush1.msra.mxu0 %v2254
      %2379 = vmatprep.subr.mxu0 0.0
      %2380 = vmatpush2.msra.mxu0 0.0
      %2381 = vmatprep.subr.mxu0 0.0
      %2382 = vmatpush2.msra.mxu0 0.0
      %2383 = vmatprep.subr.mxu0 0.0
      %2384 = vmatpush2.msra.mxu0 0.0
      %2385 = vmatprep.subr.mxu0 0.0
      %2386 = vmatpush2.msra.mxu0 0.0
      %2387 = vmatprep.subr.mxu0 0.0
      %2388 = vmatpush2.msra.mxu0 0.0
      %2389 = vmatprep.subr.mxu0 0.0
      %2390 = vmatpush2.msra.mxu0 0.0
      %2391 = vmatprep.subr.mxu0 0.0
      %2392 = vmatpush2.msra.mxu0 0.0
      %2393 = vmatprep.subr.mxu0 0.0
      %2394 = vmatpush2.msra.mxu0 0.0
      %2395 = vmatprep.subr.mxu0 0.0
      %2396 = vmatpush2.msra.mxu0 0.0
      %2397 = vmatprep.subr.mxu0 0.0
      %2398 = vmatpush2.msra.mxu0 0.0
      %2399 = vmatprep.subr.mxu0 0.0
      %2400 = vmatpush2.msra.mxu0 0.0
      %2401 = vmatprep.subr.mxu0 0.0
      %2402 = vmatpush2.msra.mxu0 0.0
      %2403 = vmatprep.subr.mxu0 0.0
      %2404 = vmatpush2.msra.mxu0 0.0
      %2405 = vmatprep.subr.mxu0 0.0
      %2406 = vmatpush2.msra.mxu0 0.0
      %2407 = vmatprep.subr.mxu0 0.0
      %2408 = vmatpush2.msra.mxu0 0.0
      %2409 = vmatprep.subr.mxu0 0.0
      %2410 = vmatpush2.msra.mxu0 0.0
      %2411 = vmatprep.mubr.f32.mxu0 0.0
      %2412 = vmatmul.mubr.f32.gmra.mxu0 %v2239
      %v2413 = vpop.f32.mrf.mxu0
      %v2414 = vadd.f32 0.0, %v2413
      %v2415 = vpop.f32.mrf.mxu0
      %v2416 = vadd.f32 0.0, %v2415
      %2417 = vmatprep.mubr.f32.mxu0 0.0
      %2418 = vmatmul.mubr.f32.gmra.mxu0 %v2242
      %v2419 = vpop.f32.mrf.mxu0
      %v2420 = vadd.f32 0.0, %v2419
      %v2421 = vpop.f32.mrf.mxu0
      %v2422 = vadd.f32 0.0, %v2421
      %2423 = vmatprep.mubr.f32.mxu0 0.0
      %2424 = vmatmul.mubr.f32.gmra.mxu0 %v2245
      %v2425 = vpop.f32.mrf.mxu0
      %v2426 = vadd.f32 0.0, %v2425
      %v2427 = vpop.f32.mrf.mxu0
      %v2428 = vadd.f32 0.0, %v2427
      %2429 = vmatprep.mubr.f32.mxu0 0.0
      %2430 = vmatmul.mubr.f32.gmra.mxu0 %v2248
      %v2431 = vpop.f32.mrf.mxu0
      %v2432 = vadd.f32 0.0, %v2431
      %v2433 = vpop.f32.mrf.mxu0
      %v2434 = vadd.f32 0.0, %v2433
      %2435 = vdwg.mxu0
      %v2436 = vadd.f32 %v2199, %v2325
      %v2437 = vadd.f32 %v2200, %v2327
      %v2438 = vadd.f32 %v2201, %v2414
      %v2439 = vadd.f32 %v2202, %v2416
      %v2440 = vadd.f32 %v2203, %v2331
      %v2441 = vadd.f32 %v2204, %v2333
      %v2442 = vadd.f32 %v2205, %v2420
      %v2443 = vadd.f32 %v2206, %v2422
      %v2444 = vadd.f32 %v2207, %v2337
      %v2445 = vadd.f32 %v2208, %v2339
      %v2446 = vadd.f32 %v2209, %v2426
      %v2447 = vadd.f32 %v2210, %v2428
      %v2448 = vadd.f32 %v2211, %v2343
      %v2449 = vadd.f32 %v2212, %v2345
      %v2450 = vadd.f32 %v2213, %v2432
      %v2451 = vadd.f32 %v2214, %v2434
      %v2452 = vld [vmem:[#allocation2] sm:$0x77]
      %v2453 = vld [vmem:[#allocation2 + $0x8] sm:$0x77]
      %s2454 = scalar_lea.vmem %s1, 224
      %v2455 = vld [vmem:[%s2454] sm:$0xff]
      %v2456 = vld [vmem:[%s2454 + $0x8] sm:$0xff]
      %v2457 = vld [vmem:[%s2454 + $0x10] sm:$0xff]
      %v2458 = vld [vmem:[%s2454 + $0x18] sm:$0xff]
      %v2461 = vcombine.high %v2452, %v2452
      %v2462 = vcombine.high %v2453, %v2453
      %2463 = vrot.lane.b32.xlu0 %v2452, 74
      %v2464 = vpop.permute.xlu0 %2463
      %2465 = vrot.lane.b32.xlu0 %v2461, 74
      %v2466 = vpop.permute.xlu0 %2465
      %2467 = vrot.lane.b32.xlu0 %v2453, 74
      %v2468 = vpop.permute.xlu0 %2467
      %2469 = vrot.lane.b32.xlu0 %v2462, 74
      %v2470 = vpop.permute.xlu0 %2469
      %vm2471 = vcmask 605184
      %v2472 = vsel %vm2471, %v2464, %v2466
      %v2473 = vsel %vm2471, %v2466, %v2468
      %v2474 = vsel %vm2471, %v2468, %v2470
      %v2476 = vsel %vm815, %v2455, 0
      %v2479 = vsel %vm815, %v2456, 0
      %v2482 = vsel %vm815, %v2457, 0
      %v2485 = vsel %vm815, %v2458, 0
      %v2487 = vsel %vm747, %v2472, 0
      %v2489 = vsel %vm747, %v2473, 0
      %v2491 = vsel %vm747, %v2474, 0
      %v2493 = vsel %vm747, %v2470, 0
      %2495 = vmatprep.subr.mxu0 0.0
      %2496 = vmatpush1.msra.mxu0 0.0
      %2497 = vmatprep.subr.mxu0 0.0
      %2498 = vmatpush1.msra.mxu0 0.0
      %2499 = vmatprep.subr.mxu0 0.0
      %2500 = vmatpush1.msra.mxu0 0.0
      %2501 = vmatprep.subr.mxu0 0.0
      %2502 = vmatpush1.msra.mxu0 0.0
      %2503 = vmatprep.subr.mxu0 0.0
      %2504 = vmatpush1.msra.mxu0 0.0
      %2505 = vmatprep.subr.mxu0 0.0
      %2506 = vmatpush1.msra.mxu0 0.0
      %2507 = vmatprep.subr.mxu0 0.0
      %2508 = vmatpush1.msra.mxu0 0.0
      %2509 = vmatprep.subr.mxu0 0.0
      %2510 = vmatpush1.msra.mxu0 0.0
      %2511 = vmatprep.subr.mxu0 0.0
      %2512 = vmatpush1.msra.mxu0 0.0
      %2513 = vmatprep.subr.mxu0 0.0
      %2514 = vmatpush1.msra.mxu0 0.0
      %2515 = vmatprep.subr.mxu0 0.0
      %2516 = vmatpush1.msra.mxu0 0.0
      %2517 = vmatprep.subr.mxu0 0.0
      %2518 = vmatpush1.msra.mxu0 0.0
      %2519 = vmatprep.subr.mxu0 0.0
      %2520 = vmatpush1.msra.mxu0 0.0
      %2521 = vmatprep.subr.mxu0 0.0
      %2522 = vmatpush1.msra.mxu0 0.0
      %2523 = vmatprep.subr.mxu0 0.0
      %2524 = vmatpush1.msra.mxu0 0.0
      %2525 = vmatprep.subr.mxu0 %v2489
      %2526 = vmatpush1.msra.mxu0 %v2487
      %2527 = vmatprep.subr.mxu0 0.0
      %2528 = vmatpush2.msra.mxu0 0.0
      %2529 = vmatprep.subr.mxu0 0.0
      %2530 = vmatpush2.msra.mxu0 0.0
      %2531 = vmatprep.subr.mxu0 0.0
      %2532 = vmatpush2.msra.mxu0 0.0
      %2533 = vmatprep.subr.mxu0 0.0
      %2534 = vmatpush2.msra.mxu0 0.0
      %2535 = vmatprep.subr.mxu0 0.0
      %2536 = vmatpush2.msra.mxu0 0.0
      %2537 = vmatprep.subr.mxu0 0.0
      %2538 = vmatpush2.msra.mxu0 0.0
      %2539 = vmatprep.subr.mxu0 0.0
      %2540 = vmatpush2.msra.mxu0 0.0
      %2541 = vmatprep.subr.mxu0 0.0
      %2542 = vmatpush2.msra.mxu0 0.0
      %2543 = vmatprep.subr.mxu0 0.0
      %2544 = vmatpush2.msra.mxu0 0.0
      %2545 = vmatprep.subr.mxu0 0.0
      %2546 = vmatpush2.msra.mxu0 0.0
      %2547 = vmatprep.subr.mxu0 0.0
      %2548 = vmatpush2.msra.mxu0 0.0
      %2549 = vmatprep.subr.mxu0 0.0
      %2550 = vmatpush2.msra.mxu0 0.0
      %2551 = vmatprep.subr.mxu0 0.0
      %2552 = vmatpush2.msra.mxu0 0.0
      %2553 = vmatprep.subr.mxu0 0.0
      %2554 = vmatpush2.msra.mxu0 0.0
      %2555 = vmatprep.subr.mxu0 0.0
      %2556 = vmatpush2.msra.mxu0 0.0
      %2557 = vmatprep.subr.mxu0 0.0
      %2558 = vmatpush2.msra.mxu0 0.0
      %2559 = vmatprep.mubr.f32.mxu0 0.0
      %2560 = vmatmul.mubr.f32.gmra.mxu0 %v2476
      %v2561 = vpop.f32.mrf.mxu0
      %v2562 = vadd.f32 0.0, %v2561
      %v2563 = vpop.f32.mrf.mxu0
      %v2564 = vadd.f32 0.0, %v2563
      %2565 = vmatprep.mubr.f32.mxu0 0.0
      %2566 = vmatmul.mubr.f32.gmra.mxu0 %v2479
      %v2567 = vpop.f32.mrf.mxu0
      %v2568 = vadd.f32 0.0, %v2567
      %v2569 = vpop.f32.mrf.mxu0
      %v2570 = vadd.f32 0.0, %v2569
      %2571 = vmatprep.mubr.f32.mxu0 0.0
      %2572 = vmatmul.mubr.f32.gmra.mxu0 %v2482
      %v2573 = vpop.f32.mrf.mxu0
      %v2574 = vadd.f32 0.0, %v2573
      %v2575 = vpop.f32.mrf.mxu0
      %v2576 = vadd.f32 0.0, %v2575
      %2577 = vmatprep.mubr.f32.mxu0 0.0
      %2578 = vmatmul.mubr.f32.gmra.mxu0 %v2485
      %v2579 = vpop.f32.mrf.mxu0
      %v2580 = vadd.f32 0.0, %v2579
      %v2581 = vpop.f32.mrf.mxu0
      %v2582 = vadd.f32 0.0, %v2581
      %2583 = vdwg.mxu0
      %2584 = vmatprep.subr.mxu0 0.0
      %2585 = vmatpush1.msra.mxu0 0.0
      %2586 = vmatprep.subr.mxu0 0.0
      %2587 = vmatpush1.msra.mxu0 0.0
      %2588 = vmatprep.subr.mxu0 0.0
      %2589 = vmatpush1.msra.mxu0 0.0
      %2590 = vmatprep.subr.mxu0 0.0
      %2591 = vmatpush1.msra.mxu0 0.0
      %2592 = vmatprep.subr.mxu0 0.0
      %2593 = vmatpush1.msra.mxu0 0.0
      %2594 = vmatprep.subr.mxu0 0.0
      %2595 = vmatpush1.msra.mxu0 0.0
      %2596 = vmatprep.subr.mxu0 0.0
      %2597 = vmatpush1.msra.mxu0 0.0
      %2598 = vmatprep.subr.mxu0 0.0
      %2599 = vmatpush1.msra.mxu0 0.0
      %2600 = vmatprep.subr.mxu0 0.0
      %2601 = vmatpush1.msra.mxu0 0.0
      %2602 = vmatprep.subr.mxu0 0.0
      %2603 = vmatpush1.msra.mxu0 0.0
      %2604 = vmatprep.subr.mxu0 0.0
      %2605 = vmatpush1.msra.mxu0 0.0
      %2606 = vmatprep.subr.mxu0 0.0
      %2607 = vmatpush1.msra.mxu0 0.0
      %2608 = vmatprep.subr.mxu0 0.0
      %2609 = vmatpush1.msra.mxu0 0.0
      %2610 = vmatprep.subr.mxu0 0.0
      %2611 = vmatpush1.msra.mxu0 0.0
      %2612 = vmatprep.subr.mxu0 0.0
      %2613 = vmatpush1.msra.mxu0 0.0
      %2614 = vmatprep.subr.mxu0 %v2493
      %2615 = vmatpush1.msra.mxu0 %v2491
      %2616 = vmatprep.subr.mxu0 0.0
      %2617 = vmatpush2.msra.mxu0 0.0
      %2618 = vmatprep.subr.mxu0 0.0
      %2619 = vmatpush2.msra.mxu0 0.0
      %2620 = vmatprep.subr.mxu0 0.0
      %2621 = vmatpush2.msra.mxu0 0.0
      %2622 = vmatprep.subr.mxu0 0.0
      %2623 = vmatpush2.msra.mxu0 0.0
      %2624 = vmatprep.subr.mxu0 0.0
      %2625 = vmatpush2.msra.mxu0 0.0
      %2626 = vmatprep.subr.mxu0 0.0
      %2627 = vmatpush2.msra.mxu0 0.0
      %2628 = vmatprep.subr.mxu0 0.0
      %2629 = vmatpush2.msra.mxu0 0.0
      %2630 = vmatprep.subr.mxu0 0.0
      %2631 = vmatpush2.msra.mxu0 0.0
      %2632 = vmatprep.subr.mxu0 0.0
      %2633 = vmatpush2.msra.mxu0 0.0
      %2634 = vmatprep.subr.mxu0 0.0
      %2635 = vmatpush2.msra.mxu0 0.0
      %2636 = vmatprep.subr.mxu0 0.0
      %2637 = vmatpush2.msra.mxu0 0.0
      %2638 = vmatprep.subr.mxu0 0.0
      %2639 = vmatpush2.msra.mxu0 0.0
      %2640 = vmatprep.subr.mxu0 0.0
      %2641 = vmatpush2.msra.mxu0 0.0
      %2642 = vmatprep.subr.mxu0 0.0
      %2643 = vmatpush2.msra.mxu0 0.0
      %2644 = vmatprep.subr.mxu0 0.0
      %2645 = vmatpush2.msra.mxu0 0.0
      %2646 = vmatprep.subr.mxu0 0.0
      %2647 = vmatpush2.msra.mxu0 0.0
      %2648 = vmatprep.mubr.f32.mxu0 0.0
      %2649 = vmatmul.mubr.f32.gmra.mxu0 %v2476
      %v2650 = vpop.f32.mrf.mxu0
      %v2651 = vadd.f32 0.0, %v2650
      %v2652 = vpop.f32.mrf.mxu0
      %v2653 = vadd.f32 0.0, %v2652
      %2654 = vmatprep.mubr.f32.mxu0 0.0
      %2655 = vmatmul.mubr.f32.gmra.mxu0 %v2479
      %v2656 = vpop.f32.mrf.mxu0
      %v2657 = vadd.f32 0.0, %v2656
      %v2658 = vpop.f32.mrf.mxu0
      %v2659 = vadd.f32 0.0, %v2658
      %2660 = vmatprep.mubr.f32.mxu0 0.0
      %2661 = vmatmul.mubr.f32.gmra.mxu0 %v2482
      %v2662 = vpop.f32.mrf.mxu0
      %v2663 = vadd.f32 0.0, %v2662
      %v2664 = vpop.f32.mrf.mxu0
      %v2665 = vadd.f32 0.0, %v2664
      %2666 = vmatprep.mubr.f32.mxu0 0.0
      %2667 = vmatmul.mubr.f32.gmra.mxu0 %v2485
      %v2668 = vpop.f32.mrf.mxu0
      %v2669 = vadd.f32 0.0, %v2668
      %v2670 = vpop.f32.mrf.mxu0
      %v2671 = vadd.f32 0.0, %v2670
      %2672 = vdwg.mxu0
      %v2673 = vadd.f32 %v2436, %v2562
      %v2674 = vadd.f32 %v2437, %v2564
      %v2675 = vadd.f32 %v2438, %v2651
      %v2676 = vadd.f32 %v2439, %v2653
      %v2677 = vadd.f32 %v2440, %v2568
      %v2678 = vadd.f32 %v2441, %v2570
      %v2679 = vadd.f32 %v2442, %v2657
      %v2680 = vadd.f32 %v2443, %v2659
      %v2681 = vadd.f32 %v2444, %v2574
      %v2682 = vadd.f32 %v2445, %v2576
      %v2683 = vadd.f32 %v2446, %v2663
      %v2684 = vadd.f32 %v2447, %v2665
      %v2685 = vadd.f32 %v2448, %v2580
      %v2686 = vadd.f32 %v2449, %v2582
      %v2687 = vadd.f32 %v2450, %v2669
      %v2688 = vadd.f32 %v2451, %v2671
      %v2689 = vld [vmem:[#allocation2] sm:$0x77]
      %v2690 = vld [vmem:[#allocation2 + $0x8] sm:$0x77]
      %s2691 = scalar_lea.vmem %s1, 256
      %v2692 = vld [vmem:[%s2691] sm:$0xff]
      %v2693 = vld [vmem:[%s2691 + $0x8] sm:$0xff]
      %v2694 = vld [vmem:[%s2691 + $0x10] sm:$0xff]
      %v2695 = vld [vmem:[%s2691 + $0x18] sm:$0xff]
      %v2698 = vcombine.high %v2689, %v2689
      %v2699 = vcombine.high %v2690, %v2690
      %2700 = vrot.lane.b32.xlu0 %v2689, 73
      %v2701 = vpop.permute.xlu0 %2700
      %2702 = vrot.lane.b32.xlu0 %v2698, 73
      %v2703 = vpop.permute.xlu0 %2702
      %2704 = vrot.lane.b32.xlu0 %v2690, 73
      %v2705 = vpop.permute.xlu0 %2704
      %2706 = vrot.lane.b32.xlu0 %v2699, 73
      %v2707 = vpop.permute.xlu0 %2706
      %vm2708 = vcmask 596992
      %v2709 = vsel %vm2708, %v2701, %v2703
      %v2710 = vsel %vm2708, %v2703, %v2705
      %v2711 = vsel %vm2708, %v2705, %v2707
      %v2713 = vsel %vm815, %v2692, 0
      %v2716 = vsel %vm815, %v2693, 0
      %v2719 = vsel %vm815, %v2694, 0
      %v2722 = vsel %vm815, %v2695, 0
      %v2724 = vsel %vm747, %v2709, 0
      %v2726 = vsel %vm747, %v2710, 0
      %v2728 = vsel %vm747, %v2711, 0
      %v2730 = vsel %vm747, %v2707, 0
      %2732 = vmatprep.subr.mxu0 0.0
      %2733 = vmatpush1.msra.mxu0 0.0
      %2734 = vmatprep.subr.mxu0 0.0
      %2735 = vmatpush1.msra.mxu0 0.0
      %2736 = vmatprep.subr.mxu0 0.0
      %2737 = vmatpush1.msra.mxu0 0.0
      %2738 = vmatprep.subr.mxu0 0.0
      %2739 = vmatpush1.msra.mxu0 0.0
      %2740 = vmatprep.subr.mxu0 0.0
      %2741 = vmatpush1.msra.mxu0 0.0
      %2742 = vmatprep.subr.mxu0 0.0
      %2743 = vmatpush1.msra.mxu0 0.0
      %2744 = vmatprep.subr.mxu0 0.0
      %2745 = vmatpush1.msra.mxu0 0.0
      %2746 = vmatprep.subr.mxu0 0.0
      %2747 = vmatpush1.msra.mxu0 0.0
      %2748 = vmatprep.subr.mxu0 0.0
      %2749 = vmatpush1.msra.mxu0 0.0
      %2750 = vmatprep.subr.mxu0 0.0
      %2751 = vmatpush1.msra.mxu0 0.0
      %2752 = vmatprep.subr.mxu0 0.0
      %2753 = vmatpush1.msra.mxu0 0.0
      %2754 = vmatprep.subr.mxu0 0.0
      %2755 = vmatpush1.msra.mxu0 0.0
      %2756 = vmatprep.subr.mxu0 0.0
      %2757 = vmatpush1.msra.mxu0 0.0
      %2758 = vmatprep.subr.mxu0 0.0
      %2759 = vmatpush1.msra.mxu0 0.0
      %2760 = vmatprep.subr.mxu0 0.0
      %2761 = vmatpush1.msra.mxu0 0.0
      %2762 = vmatprep.subr.mxu0 %v2726
      %2763 = vmatpush1.msra.mxu0 %v2724
      %2764 = vmatprep.subr.mxu0 0.0
      %2765 = vmatpush2.msra.mxu0 0.0
      %2766 = vmatprep.subr.mxu0 0.0
      %2767 = vmatpush2.msra.mxu0 0.0
      %2768 = vmatprep.subr.mxu0 0.0
      %2769 = vmatpush2.msra.mxu0 0.0
      %2770 = vmatprep.subr.mxu0 0.0
      %2771 = vmatpush2.msra.mxu0 0.0
      %2772 = vmatprep.subr.mxu0 0.0
      %2773 = vmatpush2.msra.mxu0 0.0
      %2774 = vmatprep.subr.mxu0 0.0
      %2775 = vmatpush2.msra.mxu0 0.0
      %2776 = vmatprep.subr.mxu0 0.0
      %2777 = vmatpush2.msra.mxu0 0.0
      %2778 = vmatprep.subr.mxu0 0.0
      %2779 = vmatpush2.msra.mxu0 0.0
      %2780 = vmatprep.subr.mxu0 0.0
      %2781 = vmatpush2.msra.mxu0 0.0
      %2782 = vmatprep.subr.mxu0 0.0
      %2783 = vmatpush2.msra.mxu0 0.0
      %2784 = vmatprep.subr.mxu0 0.0
      %2785 = vmatpush2.msra.mxu0 0.0
      %2786 = vmatprep.subr.mxu0 0.0
      %2787 = vmatpush2.msra.mxu0 0.0
      %2788 = vmatprep.subr.mxu0 0.0
      %2789 = vmatpush2.msra.mxu0 0.0
      %2790 = vmatprep.subr.mxu0 0.0
      %2791 = vmatpush2.msra.mxu0 0.0
      %2792 = vmatprep.subr.mxu0 0.0
      %2793 = vmatpush2.msra.mxu0 0.0
      %2794 = vmatprep.subr.mxu0 0.0
      %2795 = vmatpush2.msra.mxu0 0.0
      %2796 = vmatprep.mubr.f32.mxu0 0.0
      %2797 = vmatmul.mubr.f32.gmra.mxu0 %v2713
      %v2798 = vpop.f32.mrf.mxu0
      %v2799 = vadd.f32 0.0, %v2798
      %v2800 = vpop.f32.mrf.mxu0
      %v2801 = vadd.f32 0.0, %v2800
      %2802 = vmatprep.mubr.f32.mxu0 0.0
      %2803 = vmatmul.mubr.f32.gmra.mxu0 %v2716
      %v2804 = vpop.f32.mrf.mxu0
      %v2805 = vadd.f32 0.0, %v2804
      %v2806 = vpop.f32.mrf.mxu0
      %v2807 = vadd.f32 0.0, %v2806
      %2808 = vmatprep.mubr.f32.mxu0 0.0
      %2809 = vmatmul.mubr.f32.gmra.mxu0 %v2719
      %v2810 = vpop.f32.mrf.mxu0
      %v2811 = vadd.f32 0.0, %v2810
      %v2812 = vpop.f32.mrf.mxu0
      %v2813 = vadd.f32 0.0, %v2812
      %2814 = vmatprep.mubr.f32.mxu0 0.0
      %2815 = vmatmul.mubr.f32.gmra.mxu0 %v2722
      %v2816 = vpop.f32.mrf.mxu0
      %v2817 = vadd.f32 0.0, %v2816
      %v2818 = vpop.f32.mrf.mxu0
      %v2819 = vadd.f32 0.0, %v2818
      %2820 = vdwg.mxu0
      %2821 = vmatprep.subr.mxu0 0.0
      %2822 = vmatpush1.msra.mxu0 0.0
      %2823 = vmatprep.subr.mxu0 0.0
      %2824 = vmatpush1.msra.mxu0 0.0
      %2825 = vmatprep.subr.mxu0 0.0
      %2826 = vmatpush1.msra.mxu0 0.0
      %2827 = vmatprep.subr.mxu0 0.0
      %2828 = vmatpush1.msra.mxu0 0.0
      %2829 = vmatprep.subr.mxu0 0.0
      %2830 = vmatpush1.msra.mxu0 0.0
      %2831 = vmatprep.subr.mxu0 0.0
      %2832 = vmatpush1.msra.mxu0 0.0
      %2833 = vmatprep.subr.mxu0 0.0
      %2834 = vmatpush1.msra.mxu0 0.0
      %2835 = vmatprep.subr.mxu0 0.0
      %2836 = vmatpush1.msra.mxu0 0.0
      %2837 = vmatprep.subr.mxu0 0.0
      %2838 = vmatpush1.msra.mxu0 0.0
      %2839 = vmatprep.subr.mxu0 0.0
      %2840 = vmatpush1.msra.mxu0 0.0
      %2841 = vmatprep.subr.mxu0 0.0
      %2842 = vmatpush1.msra.mxu0 0.0
      %2843 = vmatprep.subr.mxu0 0.0
      %2844 = vmatpush1.msra.mxu0 0.0
      %2845 = vmatprep.subr.mxu0 0.0
      %2846 = vmatpush1.msra.mxu0 0.0
      %2847 = vmatprep.subr.mxu0 0.0
      %2848 = vmatpush1.msra.mxu0 0.0
      %2849 = vmatprep.subr.mxu0 0.0
      %2850 = vmatpush1.msra.mxu0 0.0
      %2851 = vmatprep.subr.mxu0 %v2730
      %2852 = vmatpush1.msra.mxu0 %v2728
      %2853 = vmatprep.subr.mxu0 0.0
      %2854 = vmatpush2.msra.mxu0 0.0
      %2855 = vmatprep.subr.mxu0 0.0
      %2856 = vmatpush2.msra.mxu0 0.0
      %2857 = vmatprep.subr.mxu0 0.0
      %2858 = vmatpush2.msra.mxu0 0.0
      %2859 = vmatprep.subr.mxu0 0.0
      %2860 = vmatpush2.msra.mxu0 0.0
      %2861 = vmatprep.subr.mxu0 0.0
      %2862 = vmatpush2.msra.mxu0 0.0
      %2863 = vmatprep.subr.mxu0 0.0
      %2864 = vmatpush2.msra.mxu0 0.0
      %2865 = vmatprep.subr.mxu0 0.0
      %2866 = vmatpush2.msra.mxu0 0.0
      %2867 = vmatprep.subr.mxu0 0.0
      %2868 = vmatpush2.msra.mxu0 0.0
      %2869 = vmatprep.subr.mxu0 0.0
      %2870 = vmatpush2.msra.mxu0 0.0
      %2871 = vmatprep.subr.mxu0 0.0
      %2872 = vmatpush2.msra.mxu0 0.0
      %2873 = vmatprep.subr.mxu0 0.0
      %2874 = vmatpush2.msra.mxu0 0.0
      %2875 = vmatprep.subr.mxu0 0.0
      %2876 = vmatpush2.msra.mxu0 0.0
      %2877 = vmatprep.subr.mxu0 0.0
      %2878 = vmatpush2.msra.mxu0 0.0
      %2879 = vmatprep.subr.mxu0 0.0
      %2880 = vmatpush2.msra.mxu0 0.0
      %2881 = vmatprep.subr.mxu0 0.0
      %2882 = vmatpush2.msra.mxu0 0.0
      %2883 = vmatprep.subr.mxu0 0.0
      %2884 = vmatpush2.msra.mxu0 0.0
      %2885 = vmatprep.mubr.f32.mxu0 0.0
      %2886 = vmatmul.mubr.f32.gmra.mxu0 %v2713
      %v2887 = vpop.f32.mrf.mxu0
      %v2888 = vadd.f32 0.0, %v2887
      %v2889 = vpop.f32.mrf.mxu0
      %v2890 = vadd.f32 0.0, %v2889
      %2891 = vmatprep.mubr.f32.mxu0 0.0
      %2892 = vmatmul.mubr.f32.gmra.mxu0 %v2716
      %v2893 = vpop.f32.mrf.mxu0
      %v2894 = vadd.f32 0.0, %v2893
      %v2895 = vpop.f32.mrf.mxu0
      %v2896 = vadd.f32 0.0, %v2895
      %2897 = vmatprep.mubr.f32.mxu0 0.0
      %2898 = vmatmul.mubr.f32.gmra.mxu0 %v2719
      %v2899 = vpop.f32.mrf.mxu0
      %v2900 = vadd.f32 0.0, %v2899
      %v2901 = vpop.f32.mrf.mxu0
      %v2902 = vadd.f32 0.0, %v2901
      %2903 = vmatprep.mubr.f32.mxu0 0.0
      %2904 = vmatmul.mubr.f32.gmra.mxu0 %v2722
      %v2905 = vpop.f32.mrf.mxu0
      %v2906 = vadd.f32 0.0, %v2905
      %v2907 = vpop.f32.mrf.mxu0
      %v2908 = vadd.f32 0.0, %v2907
      %2909 = vdwg.mxu0
      %v2910 = vadd.f32 %v2673, %v2799
      %v2911 = vadd.f32 %v2674, %v2801
      %v2912 = vadd.f32 %v2675, %v2888
      %v2913 = vadd.f32 %v2676, %v2890
      %v2914 = vadd.f32 %v2677, %v2805
      %v2915 = vadd.f32 %v2678, %v2807
      %v2916 = vadd.f32 %v2679, %v2894
      %v2917 = vadd.f32 %v2680, %v2896
      %v2918 = vadd.f32 %v2681, %v2811
      %v2919 = vadd.f32 %v2682, %v2813
      %v2920 = vadd.f32 %v2683, %v2900
      %v2921 = vadd.f32 %v2684, %v2902
      %v2922 = vadd.f32 %v2685, %v2817
      %v2923 = vadd.f32 %v2686, %v2819
      %v2924 = vadd.f32 %v2687, %v2906
      %v2925 = vadd.f32 %v2688, %v2908
      %vm2926 = vcmp.gt.f32.partialorder %v2910, 0.0
      %vm2927 = vcmp.gt.f32.partialorder %v2911, 0.0
      %vm2928 = vcmp.gt.f32.partialorder %v2912, 0.0
      %vm2929 = vcmp.gt.f32.partialorder %v2913, 0.0
      %vm2930 = vcmp.gt.f32.partialorder %v2914, 0.0
      %vm2931 = vcmp.gt.f32.partialorder %v2915, 0.0
      %vm2932 = vcmp.gt.f32.partialorder %v2916, 0.0
      %vm2933 = vcmp.gt.f32.partialorder %v2917, 0.0
      %vm2934 = vcmp.gt.f32.partialorder %v2918, 0.0
      %vm2935 = vcmp.gt.f32.partialorder %v2919, 0.0
      %vm2936 = vcmp.gt.f32.partialorder %v2920, 0.0
      %vm2937 = vcmp.gt.f32.partialorder %v2921, 0.0
      %vm2938 = vcmp.gt.f32.partialorder %v2922, 0.0
      %vm2939 = vcmp.gt.f32.partialorder %v2923, 0.0
      %vm2940 = vcmp.gt.f32.partialorder %v2924, 0.0
      %vm2941 = vcmp.gt.f32.partialorder %v2925, 0.0
      %v2942 = vmul.f32 %v2910, 0.2
      %v2943 = vmul.f32 %v2911, 0.2
      %v2944 = vmul.f32 %v2912, 0.2
      %v2945 = vmul.f32 %v2913, 0.2
      %v2946 = vmul.f32 %v2914, 0.2
      %v2947 = vmul.f32 %v2915, 0.2
      %v2948 = vmul.f32 %v2916, 0.2
      %v2949 = vmul.f32 %v2917, 0.2
      %v2950 = vmul.f32 %v2918, 0.2
      %v2951 = vmul.f32 %v2919, 0.2
      %v2952 = vmul.f32 %v2920, 0.2
      %v2953 = vmul.f32 %v2921, 0.2
      %v2954 = vmul.f32 %v2922, 0.2
      %v2955 = vmul.f32 %v2923, 0.2
      %v2956 = vmul.f32 %v2924, 0.2
      %v2957 = vmul.f32 %v2925, 0.2
      %v2958 = vsel %vm2926, %v2910, %v2942
      %v2959 = vsel %vm2927, %v2911, %v2943
      %v2960 = vsel %vm2928, %v2912, %v2944
      %v2961 = vsel %vm2929, %v2913, %v2945
      %v2962 = vsel %vm2930, %v2914, %v2946
      %v2963 = vsel %vm2931, %v2915, %v2947
      %v2964 = vsel %vm2932, %v2916, %v2948
      %v2965 = vsel %vm2933, %v2917, %v2949
      %v2966 = vsel %vm2934, %v2918, %v2950
      %v2967 = vsel %vm2935, %v2919, %v2951
      %v2968 = vsel %vm2936, %v2920, %v2952
      %v2969 = vsel %vm2937, %v2921, %v2953
      %v2970 = vsel %vm2938, %v2922, %v2954
      %v2971 = vsel %vm2939, %v2923, %v2955
      %v2972 = vsel %vm2940, %v2924, %v2956
      %v2973 = vsel %vm2941, %v2925, %v2957
      %v2974 = vld [vmem:[%s8] sm:$0xf]
      %v2975 = vld [vmem:[%s7] sm:$0xf]
      %vm2976 = vcmp.ge.s32.totalorder %v2974, 1
      %vm2977 = vcmp.le.s32.totalorder %v2974, 16
      %vm2978 = vmand %vm2976, %vm2977
      %v2979 = vstv %s772
      %vm2980 = vcmp.ge.s32.totalorder %v2975, %v2979
      %vm2981 = vmand %vm2978, %vm2980
      %s2982 = ssub.s32 19, %s356
      %v2983 = vstv %s2982
      %vm2984 = vcmp.lt.s32.totalorder %v2975, %v2983
      %vm2985 = vmand %vm2981, %vm2984
      %v2986 = vsel %vm2985, 1, 0
      %v2987 = vlaneseq
      %v2988 = vshrl.u32 %v2987, 7
      %v2989 = vsub.s32 0, %v2988
      %v2990 = vrot.slane %v2986, %v2989
      %v2991 = vlaneseq
      %v2992 = vshrl.u32 %v2991, 7
      %v2993 = vsub.s32 1, %v2992
      %v2994 = vrot.slane %v2986, %v2993
      %v2995 = vlaneseq
      %v2996 = vshrl.u32 %v2995, 7
      %v2997 = vsub.s32 2, %v2996
      %v2998 = vrot.slane %v2986, %v2997
      %v2999 = vlaneseq
      %v3000 = vshrl.u32 %v2999, 7
      %v3001 = vsub.s32 3, %v3000
      %v3002 = vrot.slane %v2986, %v3001
      %vm3003 = vcmp.eq.s32.totalorder %v2990, 1
      %vm3004 = vcmp.eq.s32.totalorder %v2994, 1
      %vm3005 = vcmp.eq.s32.totalorder %v2998, 1
      %vm3006 = vcmp.eq.s32.totalorder %v3002, 1
      %v3007 = vsel %vm3003, %v2958, 0.0
      %v3008 = vsel %vm3004, %v2959, 0.0
      %v3009 = vsel %vm3005, %v2960, 0.0
      %v3010 = vsel %vm3006, %v2961, 0.0
      %v3011 = vsel %vm3003, %v2962, 0.0
      %v3012 = vsel %vm3004, %v2963, 0.0
      %v3013 = vsel %vm3005, %v2964, 0.0
      %v3014 = vsel %vm3006, %v2965, 0.0
      %v3015 = vsel %vm3003, %v2966, 0.0
      %v3016 = vsel %vm3004, %v2967, 0.0
      %v3017 = vsel %vm3005, %v2968, 0.0
      %v3018 = vsel %vm3006, %v2969, 0.0
      %v3019 = vsel %vm3003, %v2970, 0.0
      %v3020 = vsel %vm3004, %v2971, 0.0
      %v3021 = vsel %vm3005, %v2972, 0.0
      %v3022 = vsel %vm3006, %v2973, 0.0
      %3039 = vrot.lane.b32.xlu0 %v3007, 18
      %v3040 = vpop.permute.xlu0 %3039
      %3041 = vrot.lane.b32.xlu0 %v3008, 18
      %v3042 = vpop.permute.xlu0 %3041
      %3043 = vrot.lane.b32.xlu0 %v3009, 18
      %v3044 = vpop.permute.xlu0 %3043
      %3045 = vrot.lane.b32.xlu0 %v3010, 18
      %v3046 = vpop.permute.xlu0 %3045
      %3047 = vrot.lane.b32.xlu0 %v3011, 18
      %v3048 = vpop.permute.xlu0 %3047
      %3049 = vrot.lane.b32.xlu0 %v3012, 18
      %v3050 = vpop.permute.xlu0 %3049
      %3051 = vrot.lane.b32.xlu0 %v3013, 18
      %v3052 = vpop.permute.xlu0 %3051
      %3053 = vrot.lane.b32.xlu0 %v3014, 18
      %v3054 = vpop.permute.xlu0 %3053
      %3055 = vrot.lane.b32.xlu0 %v3015, 18
      %v3056 = vpop.permute.xlu0 %3055
      %3057 = vrot.lane.b32.xlu0 %v3016, 18
      %v3058 = vpop.permute.xlu0 %3057
      %3059 = vrot.lane.b32.xlu0 %v3017, 18
      %v3060 = vpop.permute.xlu0 %3059
      %3061 = vrot.lane.b32.xlu0 %v3018, 18
      %v3062 = vpop.permute.xlu0 %3061
      %3063 = vrot.lane.b32.xlu0 %v3019, 18
      %v3064 = vpop.permute.xlu0 %3063
      %3065 = vrot.lane.b32.xlu0 %v3020, 18
      %v3066 = vpop.permute.xlu0 %3065
      %3067 = vrot.lane.b32.xlu0 %v3021, 18
      %v3068 = vpop.permute.xlu0 %3067
      %3069 = vrot.lane.b32.xlu0 %v3022, 18
      %v3070 = vpop.permute.xlu0 %3069
      %v3071 = vsel %vm688, %v3040, %v3042
      %v3072 = vsel %vm688, %v3042, %v3044
      %v3073 = vsel %vm688, %v3044, %v3046
      %v3074 = vsel %vm688, %v3048, %v3050
      %v3075 = vsel %vm688, %v3050, %v3052
      %v3076 = vsel %vm688, %v3052, %v3054
      %v3077 = vsel %vm688, %v3056, %v3058
      %v3078 = vsel %vm688, %v3058, %v3060
      %v3079 = vsel %vm688, %v3060, %v3062
      %v3080 = vsel %vm688, %v3064, %v3066
      %v3081 = vsel %vm688, %v3066, %v3068
      %v3082 = vsel %vm688, %v3068, %v3070
      %vm3099 = vcmask 1047696
      %3100 = vst.msk [vmem:[#allocation3] sm:$0xff] %vm3099, %v3040
      %3101 = vst [vmem:[#allocation3 + $0x8] sm:$0xff] %v3071
      %3102 = vst [vmem:[#allocation3 + $0x10] sm:$0xff] %v3072
      %3103 = vst.msk [vmem:[#allocation3 + $0x18] sm:$0xff] %vm732, %v3073
      %3104 = vst.msk [vmem:[#allocation3 + $0x20] sm:$0xff] %vm3099, %v3048
      %3105 = vst [vmem:[#allocation3 + $0x28] sm:$0xff] %v3074
      %3106 = vst [vmem:[#allocation3 + $0x30] sm:$0xff] %v3075
      %3107 = vst.msk [vmem:[#allocation3 + $0x38] sm:$0xff] %vm732, %v3076
      %3108 = vst.msk [vmem:[#allocation3 + $0x40] sm:$0xff] %vm3099, %v3056
      %3109 = vst [vmem:[#allocation3 + $0x48] sm:$0xff] %v3077
      %3110 = vst [vmem:[#allocation3 + $0x50] sm:$0xff] %v3078
      %3111 = vst.msk [vmem:[#allocation3 + $0x58] sm:$0xff] %vm732, %v3079
      %3112 = vst.msk [vmem:[#allocation3 + $0x60] sm:$0xff] %vm3099, %v3064
      %3113 = vst [vmem:[#allocation3 + $0x68] sm:$0xff] %v3080
      %3114 = vst [vmem:[#allocation3 + $0x70] sm:$0xff] %v3081
      %3115 = vst.msk [vmem:[#allocation3 + $0x78] sm:$0xff] %vm732, %v3082
      %s3116 = scalar_lea.vmem %s5, 32
      %v3117 = vld [vmem:[%s3116] sm:$0xff]
      %v3118 = vld [vmem:[%s3116 + $0x8] sm:$0xff]
      %v3119 = vld [vmem:[%s3116 + $0x10] sm:$0xff]
      %v3120 = vld [vmem:[%s3116 + $0x18] sm:$0xff]
      %s3121 = ssub.s32 2, %s356
      %3123 = vset.pattern.permute.xlu0 0
      %3124 = vperm.xlu0 %3123, %v3117
      %v3125 = vpop.permute.xlu0 %3124
      %3128 = vset.pattern.permute.xlu0 0
      %3129 = vperm.xlu0 %3128, %v3118
      %v3130 = vpop.permute.xlu0 %3129
      %3133 = vset.pattern.permute.xlu0 0
      %3134 = vperm.xlu0 %3133, %v3119
      %v3135 = vpop.permute.xlu0 %3134
      %3138 = vset.pattern.permute.xlu0 0
      %3139 = vperm.xlu0 %3138, %v3120
      %v3140 = vpop.permute.xlu0 %3139
      %v3142 = vld [vmem:[#allocation3] sm:$0xff]
      %v3143 = vld [vmem:[#allocation3 + $0x8] sm:$0xff]
      %v3144 = vld [vmem:[#allocation3 + $0x10] sm:$0xff]
      %v3145 = vld [vmem:[#allocation3 + $0x20] sm:$0xff]
      %v3146 = vld [vmem:[#allocation3 + $0x28] sm:$0xff]
      %v3147 = vld [vmem:[#allocation3 + $0x30] sm:$0xff]
      %v3148 = vld [vmem:[#allocation3 + $0x40] sm:$0xff]
      %v3149 = vld [vmem:[#allocation3 + $0x48] sm:$0xff]
      %v3150 = vld [vmem:[#allocation3 + $0x50] sm:$0xff]
      %v3151 = vld [vmem:[#allocation3 + $0x60] sm:$0xff]
      %v3152 = vld [vmem:[#allocation3 + $0x68] sm:$0xff]
      %v3153 = vld [vmem:[#allocation3 + $0x70] sm:$0xff]
      %v3154 = vld [vmem:[%s2] sm:$0xff]
      %v3155 = vld [vmem:[%s2 + $0x8] sm:$0xff]
      %v3156 = vld [vmem:[%s2 + $0x10] sm:$0xff]
      %v3157 = vld [vmem:[%s2 + $0x18] sm:$0xff]
      %3170 = vrot.lane.b32.xlu0 %v3142, 111
      %v3171 = vpop.permute.xlu0 %3170
      %3172 = vrot.lane.b32.xlu0 %v3143, 111
      %v3173 = vpop.permute.xlu0 %3172
      %3174 = vrot.lane.b32.xlu0 %v3144, 111
      %v3175 = vpop.permute.xlu0 %3174
      %3176 = vrot.lane.b32.xlu0 %v3145, 111
      %v3177 = vpop.permute.xlu0 %3176
      %3178 = vrot.lane.b32.xlu0 %v3146, 111
      %v3179 = vpop.permute.xlu0 %3178
      %3180 = vrot.lane.b32.xlu0 %v3147, 111
      %v3181 = vpop.permute.xlu0 %3180
      %3182 = vrot.lane.b32.xlu0 %v3148, 111
      %v3183 = vpop.permute.xlu0 %3182
      %3184 = vrot.lane.b32.xlu0 %v3149, 111
      %v3185 = vpop.permute.xlu0 %3184
      %3186 = vrot.lane.b32.xlu0 %v3150, 111
      %v3187 = vpop.permute.xlu0 %3186
      %3188 = vrot.lane.b32.xlu0 %v3151, 111
      %v3189 = vpop.permute.xlu0 %3188
      %3190 = vrot.lane.b32.xlu0 %v3152, 111
      %v3191 = vpop.permute.xlu0 %3190
      %3192 = vrot.lane.b32.xlu0 %v3153, 111
      %v3193 = vpop.permute.xlu0 %3192
      %v3194 = vsel %vm811, %v3171, %v3173
      %v3195 = vsel %vm811, %v3173, %v3175
      %v3196 = vsel %vm811, %v3177, %v3179
      %v3197 = vsel %vm811, %v3179, %v3181
      %v3198 = vsel %vm811, %v3183, %v3185
      %v3199 = vsel %vm811, %v3185, %v3187
      %v3200 = vsel %vm811, %v3189, %v3191
      %v3201 = vsel %vm811, %v3191, %v3193
      %v3215 = vsel %vm718, %v3154, 0
      %v3218 = vsel %vm718, %v3155, 0
      %v3221 = vsel %vm718, %v3156, 0
      %v3224 = vsel %vm718, %v3157, 0
      %3226 = vmatprep.subr.mxu0 0.0
      %3227 = vmatpush1.msra.mxu0 0.0
      %3228 = vmatprep.subr.mxu0 0.0
      %3229 = vmatpush1.msra.mxu0 0.0
      %3230 = vmatprep.subr.mxu0 0.0
      %3231 = vmatpush1.msra.mxu0 0.0
      %3232 = vmatprep.subr.mxu0 0.0
      %3233 = vmatpush1.msra.mxu0 0.0
      %3234 = vmatprep.subr.mxu0 0.0
      %3235 = vmatpush1.msra.mxu0 0.0
      %3236 = vmatprep.subr.mxu0 0.0
      %3237 = vmatpush1.msra.mxu0 0.0
      %3238 = vmatprep.subr.mxu0 0.0
      %3239 = vmatpush1.msra.mxu0 0.0
      %3240 = vmatprep.subr.mxu0 0.0
      %3241 = vmatpush1.msra.mxu0 0.0
      %3242 = vmatprep.subr.mxu0 0.0
      %3243 = vmatpush1.msra.mxu0 0.0
      %3244 = vmatprep.subr.mxu0 0.0
      %3245 = vmatpush1.msra.mxu0 0.0
      %3246 = vmatprep.subr.mxu0 0.0
      %3247 = vmatpush1.msra.mxu0 0.0
      %3248 = vmatprep.subr.mxu0 0.0
      %3249 = vmatpush1.msra.mxu0 0.0
      %3250 = vmatprep.subr.mxu0 %v3201
      %3251 = vmatpush1.msra.mxu0 %v3200
      %3252 = vmatprep.subr.mxu0 %v3199
      %3253 = vmatpush1.msra.mxu0 %v3198
      %3254 = vmatprep.subr.mxu0 %v3197
      %3255 = vmatpush1.msra.mxu0 %v3196
      %3256 = vmatprep.subr.mxu0 %v3195
      %3257 = vmatpush1.msra.mxu0 %v3194
      %3258 = vmatprep.subr.mxu0 0.0
      %3259 = vmatpush2.msra.mxu0 0.0
      %3260 = vmatprep.subr.mxu0 0.0
      %3261 = vmatpush2.msra.mxu0 0.0
      %3262 = vmatprep.subr.mxu0 0.0
      %3263 = vmatpush2.msra.mxu0 0.0
      %3264 = vmatprep.subr.mxu0 0.0
      %3265 = vmatpush2.msra.mxu0 0.0
      %3266 = vmatprep.subr.mxu0 0.0
      %3267 = vmatpush2.msra.mxu0 0.0
      %3268 = vmatprep.subr.mxu0 0.0
      %3269 = vmatpush2.msra.mxu0 0.0
      %3270 = vmatprep.subr.mxu0 0.0
      %3271 = vmatpush2.msra.mxu0 0.0
      %3272 = vmatprep.subr.mxu0 0.0
      %3273 = vmatpush2.msra.mxu0 0.0
      %3274 = vmatprep.subr.mxu0 0.0
      %3275 = vmatpush2.msra.mxu0 0.0
      %3276 = vmatprep.subr.mxu0 0.0
      %3277 = vmatpush2.msra.mxu0 0.0
      %3278 = vmatprep.subr.mxu0 0.0
      %3279 = vmatpush2.msra.mxu0 0.0
      %3280 = vmatprep.subr.mxu0 0.0
      %3281 = vmatpush2.msra.mxu0 0.0
      %3282 = vmatprep.subr.mxu0 0.0
      %3283 = vmatpush2.msra.mxu0 0.0
      %3284 = vmatprep.subr.mxu0 0.0
      %3285 = vmatpush2.msra.mxu0 0.0
      %3286 = vmatprep.subr.mxu0 0.0
      %3287 = vmatpush2.msra.mxu0 0.0
      %3288 = vmatprep.subr.mxu0 0.0
      %3289 = vmatpush2.msra.mxu0 0.0
      %3290 = vmatprep.mubr.f32.mxu0 0.0
      %3291 = vmatmul.mubr.f32.gmra.mxu0 %v3215
      %v3292 = vpop.f32.mrf.mxu0
      %v3293 = vadd.f32 0.0, %v3292
      %v3294 = vpop.f32.mrf.mxu0
      %v3295 = vadd.f32 0.0, %v3294
      %3296 = vmatprep.mubr.f32.mxu0 0.0
      %3297 = vmatmul.mubr.f32.gmra.mxu0 %v3218
      %v3298 = vpop.f32.mrf.mxu0
      %v3299 = vadd.f32 0.0, %v3298
      %v3300 = vpop.f32.mrf.mxu0
      %v3301 = vadd.f32 0.0, %v3300
      %3302 = vmatprep.mubr.f32.mxu0 0.0
      %3303 = vmatmul.mubr.f32.gmra.mxu0 %v3221
      %v3304 = vpop.f32.mrf.mxu0
      %v3305 = vadd.f32 0.0, %v3304
      %v3306 = vpop.f32.mrf.mxu0
      %v3307 = vadd.f32 0.0, %v3306
      %3308 = vmatprep.mubr.f32.mxu0 0.0
      %3309 = vmatmul.mubr.f32.gmra.mxu0 %v3224
      %v3310 = vpop.f32.mrf.mxu0
      %v3311 = vadd.f32 0.0, %v3310
      %v3312 = vpop.f32.mrf.mxu0
      %v3313 = vadd.f32 0.0, %v3312
      %3314 = vdwg.mxu0
      %3315 = vmatprep.subr.mxu0 0.0
      %3316 = vmatpush1.msra.mxu0 0.0
      %3317 = vmatprep.subr.mxu0 0.0
      %3318 = vmatpush1.msra.mxu0 0.0
      %3319 = vmatprep.subr.mxu0 0.0
      %3320 = vmatpush1.msra.mxu0 0.0
      %3321 = vmatprep.subr.mxu0 0.0
      %3322 = vmatpush1.msra.mxu0 0.0
      %3323 = vmatprep.subr.mxu0 0.0
      %3324 = vmatpush1.msra.mxu0 0.0
      %3325 = vmatprep.subr.mxu0 0.0
      %3326 = vmatpush1.msra.mxu0 0.0
      %3327 = vmatprep.subr.mxu0 0.0
      %3328 = vmatpush1.msra.mxu0 0.0
      %3329 = vmatprep.subr.mxu0 0.0
      %3330 = vmatpush1.msra.mxu0 0.0
      %3331 = vmatprep.subr.mxu0 0.0
      %3332 = vmatpush1.msra.mxu0 0.0
      %3333 = vmatprep.subr.mxu0 0.0
      %3334 = vmatpush1.msra.mxu0 0.0
      %3335 = vmatprep.subr.mxu0 0.0
      %3336 = vmatpush1.msra.mxu0 0.0
      %3337 = vmatprep.subr.mxu0 0.0
      %3338 = vmatpush1.msra.mxu0 0.0
      %3339 = vmatprep.subr.mxu0 0.0
      %3340 = vmatpush1.msra.mxu0 %v3193
      %3341 = vmatprep.subr.mxu0 0.0
      %3342 = vmatpush1.msra.mxu0 %v3187
      %3343 = vmatprep.subr.mxu0 0.0
      %3344 = vmatpush1.msra.mxu0 %v3181
      %3345 = vmatprep.subr.mxu0 0.0
      %3346 = vmatpush1.msra.mxu0 %v3175
      %3347 = vmatprep.subr.mxu0 0.0
      %3348 = vmatpush2.msra.mxu0 0.0
      %3349 = vmatprep.subr.mxu0 0.0
      %3350 = vmatpush2.msra.mxu0 0.0
      %3351 = vmatprep.subr.mxu0 0.0
      %3352 = vmatpush2.msra.mxu0 0.0
      %3353 = vmatprep.subr.mxu0 0.0
      %3354 = vmatpush2.msra.mxu0 0.0
      %3355 = vmatprep.subr.mxu0 0.0
      %3356 = vmatpush2.msra.mxu0 0.0
      %3357 = vmatprep.subr.mxu0 0.0
      %3358 = vmatpush2.msra.mxu0 0.0
      %3359 = vmatprep.subr.mxu0 0.0
      %3360 = vmatpush2.msra.mxu0 0.0
      %3361 = vmatprep.subr.mxu0 0.0
      %3362 = vmatpush2.msra.mxu0 0.0
      %3363 = vmatprep.subr.mxu0 0.0
      %3364 = vmatpush2.msra.mxu0 0.0
      %3365 = vmatprep.subr.mxu0 0.0
      %3366 = vmatpush2.msra.mxu0 0.0
      %3367 = vmatprep.subr.mxu0 0.0
      %3368 = vmatpush2.msra.mxu0 0.0
      %3369 = vmatprep.subr.mxu0 0.0
      %3370 = vmatpush2.msra.mxu0 0.0
      %3371 = vmatprep.subr.mxu0 0.0
      %3372 = vmatpush2.msra.mxu0 0.0
      %3373 = vmatprep.subr.mxu0 0.0
      %3374 = vmatpush2.msra.mxu0 0.0
      %3375 = vmatprep.subr.mxu0 0.0
      %3376 = vmatpush2.msra.mxu0 0.0
      %3377 = vmatprep.subr.mxu0 0.0
      %3378 = vmatpush2.msra.mxu0 0.0
      %3379 = vmatprep.mubr.f32.mxu0 0.0
      %3380 = vmatmul.mubr.f32.gmra.mxu0 %v3215
      %v3381 = vpop.f32.mrf.mxu0
      %v3382 = vadd.f32 0.0, %v3381
      %v3383 = vpop.f32.mrf.mxu0
      %3384 = vmatprep.mubr.f32.mxu0 0.0
      %3385 = vmatmul.mubr.f32.gmra.mxu0 %v3218
      %v3386 = vpop.f32.mrf.mxu0
      %v3387 = vadd.f32 0.0, %v3386
      %v3388 = vpop.f32.mrf.mxu0
      %3389 = vmatprep.mubr.f32.mxu0 0.0
      %3390 = vmatmul.mubr.f32.gmra.mxu0 %v3221
      %v3391 = vpop.f32.mrf.mxu0
      %v3392 = vadd.f32 0.0, %v3391
      %v3393 = vpop.f32.mrf.mxu0
      %3394 = vmatprep.mubr.f32.mxu0 0.0
      %3395 = vmatmul.mubr.f32.gmra.mxu0 %v3224
      %v3396 = vpop.f32.mrf.mxu0
      %v3397 = vadd.f32 0.0, %v3396
      %v3398 = vpop.f32.mrf.mxu0
      %3399 = vdwg.mxu0
      %v3400 = vadd.f32 %v3125, %v3293
      %v3401 = vadd.f32 %v3125, %v3295
      %v3402 = vadd.f32 %v3125, %v3382
      %v3403 = vadd.f32 %v3130, %v3299
      %v3404 = vadd.f32 %v3130, %v3301
      %v3405 = vadd.f32 %v3130, %v3387
      %v3406 = vadd.f32 %v3135, %v3305
      %v3407 = vadd.f32 %v3135, %v3307
      %v3408 = vadd.f32 %v3135, %v3392
      %v3409 = vadd.f32 %v3140, %v3311
      %v3410 = vadd.f32 %v3140, %v3313
      %v3411 = vadd.f32 %v3140, %v3397
      %s3412 = scalar_lea.vmem %s2, 32
      %v3413 = vld [vmem:[%s3412] sm:$0xff]
      %v3414 = vld [vmem:[%s3412 + $0x8] sm:$0xff]
      %v3415 = vld [vmem:[%s3412 + $0x10] sm:$0xff]
      %v3416 = vld [vmem:[%s3412 + $0x18] sm:$0xff]
      %3417 = vrot.lane.b32.xlu0 %v3142, 110
      %v3418 = vpop.permute.xlu0 %3417
      %3419 = vrot.lane.b32.xlu0 %v3143, 110
      %v3420 = vpop.permute.xlu0 %3419
      %3421 = vrot.lane.b32.xlu0 %v3144, 110
      %v3422 = vpop.permute.xlu0 %3421
      %3423 = vrot.lane.b32.xlu0 %v3145, 110
      %v3424 = vpop.permute.xlu0 %3423
      %3425 = vrot.lane.b32.xlu0 %v3146, 110
      %v3426 = vpop.permute.xlu0 %3425
      %3427 = vrot.lane.b32.xlu0 %v3147, 110
      %v3428 = vpop.permute.xlu0 %3427
      %3429 = vrot.lane.b32.xlu0 %v3148, 110
      %v3430 = vpop.permute.xlu0 %3429
      %3431 = vrot.lane.b32.xlu0 %v3149, 110
      %v3432 = vpop.permute.xlu0 %3431
      %3433 = vrot.lane.b32.xlu0 %v3150, 110
      %v3434 = vpop.permute.xlu0 %3433
      %3435 = vrot.lane.b32.xlu0 %v3151, 110
      %v3436 = vpop.permute.xlu0 %3435
      %3437 = vrot.lane.b32.xlu0 %v3152, 110
      %v3438 = vpop.permute.xlu0 %3437
      %3439 = vrot.lane.b32.xlu0 %v3153, 110
      %v3440 = vpop.permute.xlu0 %3439
      %v3441 = vsel %vm1049, %v3418, %v3420
      %v3442 = vsel %vm1049, %v3420, %v3422
      %v3443 = vsel %vm1049, %v3424, %v3426
      %v3444 = vsel %vm1049, %v3426, %v3428
      %v3445 = vsel %vm1049, %v3430, %v3432
      %v3446 = vsel %vm1049, %v3432, %v3434
      %v3447 = vsel %vm1049, %v3436, %v3438
      %v3448 = vsel %vm1049, %v3438, %v3440
      %v3462 = vsel %vm718, %v3413, 0
      %v3465 = vsel %vm718, %v3414, 0
      %v3468 = vsel %vm718, %v3415, 0
      %v3471 = vsel %vm718, %v3416, 0
      %3473 = vmatprep.subr.mxu0 0.0
      %3474 = vmatpush1.msra.mxu0 0.0
      %3475 = vmatprep.subr.mxu0 0.0
      %3476 = vmatpush1.msra.mxu0 0.0
      %3477 = vmatprep.subr.mxu0 0.0
      %3478 = vmatpush1.msra.mxu0 0.0
      %3479 = vmatprep.subr.mxu0 0.0
      %3480 = vmatpush1.msra.mxu0 0.0
      %3481 = vmatprep.subr.mxu0 0.0
      %3482 = vmatpush1.msra.mxu0 0.0
      %3483 = vmatprep.subr.mxu0 0.0
      %3484 = vmatpush1.msra.mxu0 0.0
      %3485 = vmatprep.subr.mxu0 0.0
      %3486 = vmatpush1.msra.mxu0 0.0
      %3487 = vmatprep.subr.mxu0 0.0
      %3488 = vmatpush1.msra.mxu0 0.0
      %3489 = vmatprep.subr.mxu0 0.0
      %3490 = vmatpush1.msra.mxu0 0.0
      %3491 = vmatprep.subr.mxu0 0.0
      %3492 = vmatpush1.msra.mxu0 0.0
      %3493 = vmatprep.subr.mxu0 0.0
      %3494 = vmatpush1.msra.mxu0 0.0
      %3495 = vmatprep.subr.mxu0 0.0
      %3496 = vmatpush1.msra.mxu0 0.0
      %3497 = vmatprep.subr.mxu0 %v3448
      %3498 = vmatpush1.msra.mxu0 %v3447
      %3499 = vmatprep.subr.mxu0 %v3446
      %3500 = vmatpush1.msra.mxu0 %v3445
      %3501 = vmatprep.subr.mxu0 %v3444
      %3502 = vmatpush1.msra.mxu0 %v3443
      %3503 = vmatprep.subr.mxu0 %v3442
      %3504 = vmatpush1.msra.mxu0 %v3441
      %3505 = vmatprep.subr.mxu0 0.0
      %3506 = vmatpush2.msra.mxu0 0.0
      %3507 = vmatprep.subr.mxu0 0.0
      %3508 = vmatpush2.msra.mxu0 0.0
      %3509 = vmatprep.subr.mxu0 0.0
      %3510 = vmatpush2.msra.mxu0 0.0
      %3511 = vmatprep.subr.mxu0 0.0
      %3512 = vmatpush2.msra.mxu0 0.0
      %3513 = vmatprep.subr.mxu0 0.0
      %3514 = vmatpush2.msra.mxu0 0.0
      %3515 = vmatprep.subr.mxu0 0.0
      %3516 = vmatpush2.msra.mxu0 0.0
      %3517 = vmatprep.subr.mxu0 0.0
      %3518 = vmatpush2.msra.mxu0 0.0
      %3519 = vmatprep.subr.mxu0 0.0
      %3520 = vmatpush2.msra.mxu0 0.0
      %3521 = vmatprep.subr.mxu0 0.0
      %3522 = vmatpush2.msra.mxu0 0.0
      %3523 = vmatprep.subr.mxu0 0.0
      %3524 = vmatpush2.msra.mxu0 0.0
      %3525 = vmatprep.subr.mxu0 0.0
      %3526 = vmatpush2.msra.mxu0 0.0
      %3527 = vmatprep.subr.mxu0 0.0
      %3528 = vmatpush2.msra.mxu0 0.0
      %3529 = vmatprep.subr.mxu0 0.0
      %3530 = vmatpush2.msra.mxu0 0.0
      %3531 = vmatprep.subr.mxu0 0.0
      %3532 = vmatpush2.msra.mxu0 0.0
      %3533 = vmatprep.subr.mxu0 0.0
      %3534 = vmatpush2.msra.mxu0 0.0
      %3535 = vmatprep.subr.mxu0 0.0
      %3536 = vmatpush2.msra.mxu0 0.0
      %3537 = vmatprep.mubr.f32.mxu0 0.0
      %3538 = vmatmul.mubr.f32.gmra.mxu0 %v3462
      %v3539 = vpop.f32.mrf.mxu0
      %v3540 = vadd.f32 0.0, %v3539
      %v3541 = vpop.f32.mrf.mxu0
      %v3542 = vadd.f32 0.0, %v3541
      %3543 = vmatprep.mubr.f32.mxu0 0.0
      %3544 = vmatmul.mubr.f32.gmra.mxu0 %v3465
      %v3545 = vpop.f32.mrf.mxu0
      %v3546 = vadd.f32 0.0, %v3545
      %v3547 = vpop.f32.mrf.mxu0
      %v3548 = vadd.f32 0.0, %v3547
      %3549 = vmatprep.mubr.f32.mxu0 0.0
      %3550 = vmatmul.mubr.f32.gmra.mxu0 %v3468
      %v3551 = vpop.f32.mrf.mxu0
      %v3552 = vadd.f32 0.0, %v3551
      %v3553 = vpop.f32.mrf.mxu0
      %v3554 = vadd.f32 0.0, %v3553
      %3555 = vmatprep.mubr.f32.mxu0 0.0
      %3556 = vmatmul.mubr.f32.gmra.mxu0 %v3471
      %v3557 = vpop.f32.mrf.mxu0
      %v3558 = vadd.f32 0.0, %v3557
      %v3559 = vpop.f32.mrf.mxu0
      %v3560 = vadd.f32 0.0, %v3559
      %3561 = vdwg.mxu0
      %3562 = vmatprep.subr.mxu0 0.0
      %3563 = vmatpush1.msra.mxu0 0.0
      %3564 = vmatprep.subr.mxu0 0.0
      %3565 = vmatpush1.msra.mxu0 0.0
      %3566 = vmatprep.subr.mxu0 0.0
      %3567 = vmatpush1.msra.mxu0 0.0
      %3568 = vmatprep.subr.mxu0 0.0
      %3569 = vmatpush1.msra.mxu0 0.0
      %3570 = vmatprep.subr.mxu0 0.0
      %3571 = vmatpush1.msra.mxu0 0.0
      %3572 = vmatprep.subr.mxu0 0.0
      %3573 = vmatpush1.msra.mxu0 0.0
      %3574 = vmatprep.subr.mxu0 0.0
      %3575 = vmatpush1.msra.mxu0 0.0
      %3576 = vmatprep.subr.mxu0 0.0
      %3577 = vmatpush1.msra.mxu0 0.0
      %3578 = vmatprep.subr.mxu0 0.0
      %3579 = vmatpush1.msra.mxu0 0.0
      %3580 = vmatprep.subr.mxu0 0.0
      %3581 = vmatpush1.msra.mxu0 0.0
      %3582 = vmatprep.subr.mxu0 0.0
      %3583 = vmatpush1.msra.mxu0 0.0
      %3584 = vmatprep.subr.mxu0 0.0
      %3585 = vmatpush1.msra.mxu0 0.0
      %3586 = vmatprep.subr.mxu0 0.0
      %3587 = vmatpush1.msra.mxu0 %v3440
      %3588 = vmatprep.subr.mxu0 0.0
      %3589 = vmatpush1.msra.mxu0 %v3434
      %3590 = vmatprep.subr.mxu0 0.0
      %3591 = vmatpush1.msra.mxu0 %v3428
      %3592 = vmatprep.subr.mxu0 0.0
      %3593 = vmatpush1.msra.mxu0 %v3422
      %3594 = vmatprep.subr.mxu0 0.0
      %3595 = vmatpush2.msra.mxu0 0.0
      %3596 = vmatprep.subr.mxu0 0.0
      %3597 = vmatpush2.msra.mxu0 0.0
      %3598 = vmatprep.subr.mxu0 0.0
      %3599 = vmatpush2.msra.mxu0 0.0
      %3600 = vmatprep.subr.mxu0 0.0
      %3601 = vmatpush2.msra.mxu0 0.0
      %3602 = vmatprep.subr.mxu0 0.0
      %3603 = vmatpush2.msra.mxu0 0.0
      %3604 = vmatprep.subr.mxu0 0.0
      %3605 = vmatpush2.msra.mxu0 0.0
      %3606 = vmatprep.subr.mxu0 0.0
      %3607 = vmatpush2.msra.mxu0 0.0
      %3608 = vmatprep.subr.mxu0 0.0
      %3609 = vmatpush2.msra.mxu0 0.0
      %3610 = vmatprep.subr.mxu0 0.0
      %3611 = vmatpush2.msra.mxu0 0.0
      %3612 = vmatprep.subr.mxu0 0.0
      %3613 = vmatpush2.msra.mxu0 0.0
      %3614 = vmatprep.subr.mxu0 0.0
      %3615 = vmatpush2.msra.mxu0 0.0
      %3616 = vmatprep.subr.mxu0 0.0
      %3617 = vmatpush2.msra.mxu0 0.0
      %3618 = vmatprep.subr.mxu0 0.0
      %3619 = vmatpush2.msra.mxu0 0.0
      %3620 = vmatprep.subr.mxu0 0.0
      %3621 = vmatpush2.msra.mxu0 0.0
      %3622 = vmatprep.subr.mxu0 0.0
      %3623 = vmatpush2.msra.mxu0 0.0
      %3624 = vmatprep.subr.mxu0 0.0
      %3625 = vmatpush2.msra.mxu0 0.0
      %3626 = vmatprep.mubr.f32.mxu0 0.0
      %3627 = vmatmul.mubr.f32.gmra.mxu0 %v3462
      %v3628 = vpop.f32.mrf.mxu0
      %v3629 = vadd.f32 0.0, %v3628
      %v3630 = vpop.f32.mrf.mxu0
      %3631 = vmatprep.mubr.f32.mxu0 0.0
      %3632 = vmatmul.mubr.f32.gmra.mxu0 %v3465
      %v3633 = vpop.f32.mrf.mxu0
      %v3634 = vadd.f32 0.0, %v3633
      %v3635 = vpop.f32.mrf.mxu0
      %3636 = vmatprep.mubr.f32.mxu0 0.0
      %3637 = vmatmul.mubr.f32.gmra.mxu0 %v3468
      %v3638 = vpop.f32.mrf.mxu0
      %v3639 = vadd.f32 0.0, %v3638
      %v3640 = vpop.f32.mrf.mxu0
      %3641 = vmatprep.mubr.f32.mxu0 0.0
      %3642 = vmatmul.mubr.f32.gmra.mxu0 %v3471
      %v3643 = vpop.f32.mrf.mxu0
      %v3644 = vadd.f32 0.0, %v3643
      %v3645 = vpop.f32.mrf.mxu0
      %3646 = vdwg.mxu0
      %v3647 = vadd.f32 %v3400, %v3540
      %v3648 = vadd.f32 %v3401, %v3542
      %v3649 = vadd.f32 %v3402, %v3629
      %v3650 = vadd.f32 %v3403, %v3546
      %v3651 = vadd.f32 %v3404, %v3548
      %v3652 = vadd.f32 %v3405, %v3634
      %v3653 = vadd.f32 %v3406, %v3552
      %v3654 = vadd.f32 %v3407, %v3554
      %v3655 = vadd.f32 %v3408, %v3639
      %v3656 = vadd.f32 %v3409, %v3558
      %v3657 = vadd.f32 %v3410, %v3560
      %v3658 = vadd.f32 %v3411, %v3644
      %s3659 = scalar_lea.vmem %s2, 64
      %v3660 = vld [vmem:[%s3659] sm:$0xff]
      %v3661 = vld [vmem:[%s3659 + $0x8] sm:$0xff]
      %v3662 = vld [vmem:[%s3659 + $0x10] sm:$0xff]
      %v3663 = vld [vmem:[%s3659 + $0x18] sm:$0xff]
      %3664 = vrot.lane.b32.xlu0 %v3142, 109
      %v3665 = vpop.permute.xlu0 %3664
      %3666 = vrot.lane.b32.xlu0 %v3143, 109
      %v3667 = vpop.permute.xlu0 %3666
      %3668 = vrot.lane.b32.xlu0 %v3144, 109
      %v3669 = vpop.permute.xlu0 %3668
      %3670 = vrot.lane.b32.xlu0 %v3145, 109
      %v3671 = vpop.permute.xlu0 %3670
      %3672 = vrot.lane.b32.xlu0 %v3146, 109
      %v3673 = vpop.permute.xlu0 %3672
      %3674 = vrot.lane.b32.xlu0 %v3147, 109
      %v3675 = vpop.permute.xlu0 %3674
      %3676 = vrot.lane.b32.xlu0 %v3148, 109
      %v3677 = vpop.permute.xlu0 %3676
      %3678 = vrot.lane.b32.xlu0 %v3149, 109
      %v3679 = vpop.permute.xlu0 %3678
      %3680 = vrot.lane.b32.xlu0 %v3150, 109
      %v3681 = vpop.permute.xlu0 %3680
      %3682 = vrot.lane.b32.xlu0 %v3151, 109
      %v3683 = vpop.permute.xlu0 %3682
      %3684 = vrot.lane.b32.xlu0 %v3152, 109
      %v3685 = vpop.permute.xlu0 %3684
      %3686 = vrot.lane.b32.xlu0 %v3153, 109
      %v3687 = vpop.permute.xlu0 %3686
      %v3688 = vsel %vm1286, %v3665, %v3667
      %v3689 = vsel %vm1286, %v3667, %v3669
      %v3690 = vsel %vm1286, %v3671, %v3673
      %v3691 = vsel %vm1286, %v3673, %v3675
      %v3692 = vsel %vm1286, %v3677, %v3679
      %v3693 = vsel %vm1286, %v3679, %v3681
      %v3694 = vsel %vm1286, %v3683, %v3685
      %v3695 = vsel %vm1286, %v3685, %v3687
      %v3709 = vsel %vm718, %v3660, 0
      %v3712 = vsel %vm718, %v3661, 0
      %v3715 = vsel %vm718, %v3662, 0
      %v3718 = vsel %vm718, %v3663, 0
      %3720 = vmatprep.subr.mxu0 0.0
      %3721 = vmatpush1.msra.mxu0 0.0
      %3722 = vmatprep.subr.mxu0 0.0
      %3723 = vmatpush1.msra.mxu0 0.0
      %3724 = vmatprep.subr.mxu0 0.0
      %3725 = vmatpush1.msra.mxu0 0.0
      %3726 = vmatprep.subr.mxu0 0.0
      %3727 = vmatpush1.msra.mxu0 0.0
      %3728 = vmatprep.subr.mxu0 0.0
      %3729 = vmatpush1.msra.mxu0 0.0
      %3730 = vmatprep.subr.mxu0 0.0
      %3731 = vmatpush1.msra.mxu0 0.0
      %3732 = vmatprep.subr.mxu0 0.0
      %3733 = vmatpush1.msra.mxu0 0.0
      %3734 = vmatprep.subr.mxu0 0.0
      %3735 = vmatpush1.msra.mxu0 0.0
      %3736 = vmatprep.subr.mxu0 0.0
      %3737 = vmatpush1.msra.mxu0 0.0
      %3738 = vmatprep.subr.mxu0 0.0
      %3739 = vmatpush1.msra.mxu0 0.0
      %3740 = vmatprep.subr.mxu0 0.0
      %3741 = vmatpush1.msra.mxu0 0.0
      %3742 = vmatprep.subr.mxu0 0.0
      %3743 = vmatpush1.msra.mxu0 0.0
      %3744 = vmatprep.subr.mxu0 %v3695
      %3745 = vmatpush1.msra.mxu0 %v3694
      %3746 = vmatprep.subr.mxu0 %v3693
      %3747 = vmatpush1.msra.mxu0 %v3692
      %3748 = vmatprep.subr.mxu0 %v3691
      %3749 = vmatpush1.msra.mxu0 %v3690
      %3750 = vmatprep.subr.mxu0 %v3689
      %3751 = vmatpush1.msra.mxu0 %v3688
      %3752 = vmatprep.subr.mxu0 0.0
      %3753 = vmatpush2.msra.mxu0 0.0
      %3754 = vmatprep.subr.mxu0 0.0
      %3755 = vmatpush2.msra.mxu0 0.0
      %3756 = vmatprep.subr.mxu0 0.0
      %3757 = vmatpush2.msra.mxu0 0.0
      %3758 = vmatprep.subr.mxu0 0.0
      %3759 = vmatpush2.msra.mxu0 0.0
      %3760 = vmatprep.subr.mxu0 0.0
      %3761 = vmatpush2.msra.mxu0 0.0
      %3762 = vmatprep.subr.mxu0 0.0
      %3763 = vmatpush2.msra.mxu0 0.0
      %3764 = vmatprep.subr.mxu0 0.0
      %3765 = vmatpush2.msra.mxu0 0.0
      %3766 = vmatprep.subr.mxu0 0.0
      %3767 = vmatpush2.msra.mxu0 0.0
      %3768 = vmatprep.subr.mxu0 0.0
      %3769 = vmatpush2.msra.mxu0 0.0
      %3770 = vmatprep.subr.mxu0 0.0
      %3771 = vmatpush2.msra.mxu0 0.0
      %3772 = vmatprep.subr.mxu0 0.0
      %3773 = vmatpush2.msra.mxu0 0.0
      %3774 = vmatprep.subr.mxu0 0.0
      %3775 = vmatpush2.msra.mxu0 0.0
      %3776 = vmatprep.subr.mxu0 0.0
      %3777 = vmatpush2.msra.mxu0 0.0
      %3778 = vmatprep.subr.mxu0 0.0
      %3779 = vmatpush2.msra.mxu0 0.0
      %3780 = vmatprep.subr.mxu0 0.0
      %3781 = vmatpush2.msra.mxu0 0.0
      %3782 = vmatprep.subr.mxu0 0.0
      %3783 = vmatpush2.msra.mxu0 0.0
      %3784 = vmatprep.mubr.f32.mxu0 0.0
      %3785 = vmatmul.mubr.f32.gmra.mxu0 %v3709
      %v3786 = vpop.f32.mrf.mxu0
      %v3787 = vadd.f32 0.0, %v3786
      %v3788 = vpop.f32.mrf.mxu0
      %v3789 = vadd.f32 0.0, %v3788
      %3790 = vmatprep.mubr.f32.mxu0 0.0
      %3791 = vmatmul.mubr.f32.gmra.mxu0 %v3712
      %v3792 = vpop.f32.mrf.mxu0
      %v3793 = vadd.f32 0.0, %v3792
      %v3794 = vpop.f32.mrf.mxu0
      %v3795 = vadd.f32 0.0, %v3794
      %3796 = vmatprep.mubr.f32.mxu0 0.0
      %3797 = vmatmul.mubr.f32.gmra.mxu0 %v3715
      %v3798 = vpop.f32.mrf.mxu0
      %v3799 = vadd.f32 0.0, %v3798
      %v3800 = vpop.f32.mrf.mxu0
      %v3801 = vadd.f32 0.0, %v3800
      %3802 = vmatprep.mubr.f32.mxu0 0.0
      %3803 = vmatmul.mubr.f32.gmra.mxu0 %v3718
      %v3804 = vpop.f32.mrf.mxu0
      %v3805 = vadd.f32 0.0, %v3804
      %v3806 = vpop.f32.mrf.mxu0
      %v3807 = vadd.f32 0.0, %v3806
      %3808 = vdwg.mxu0
      %3809 = vmatprep.subr.mxu0 0.0
      %3810 = vmatpush1.msra.mxu0 0.0
      %3811 = vmatprep.subr.mxu0 0.0
      %3812 = vmatpush1.msra.mxu0 0.0
      %3813 = vmatprep.subr.mxu0 0.0
      %3814 = vmatpush1.msra.mxu0 0.0
      %3815 = vmatprep.subr.mxu0 0.0
      %3816 = vmatpush1.msra.mxu0 0.0
      %3817 = vmatprep.subr.mxu0 0.0
      %3818 = vmatpush1.msra.mxu0 0.0
      %3819 = vmatprep.subr.mxu0 0.0
      %3820 = vmatpush1.msra.mxu0 0.0
      %3821 = vmatprep.subr.mxu0 0.0
      %3822 = vmatpush1.msra.mxu0 0.0
      %3823 = vmatprep.subr.mxu0 0.0
      %3824 = vmatpush1.msra.mxu0 0.0
      %3825 = vmatprep.subr.mxu0 0.0
      %3826 = vmatpush1.msra.mxu0 0.0
      %3827 = vmatprep.subr.mxu0 0.0
      %3828 = vmatpush1.msra.mxu0 0.0
      %3829 = vmatprep.subr.mxu0 0.0
      %3830 = vmatpush1.msra.mxu0 0.0
      %3831 = vmatprep.subr.mxu0 0.0
      %3832 = vmatpush1.msra.mxu0 0.0
      %3833 = vmatprep.subr.mxu0 0.0
      %3834 = vmatpush1.msra.mxu0 %v3687
      %3835 = vmatprep.subr.mxu0 0.0
      %3836 = vmatpush1.msra.mxu0 %v3681
      %3837 = vmatprep.subr.mxu0 0.0
      %3838 = vmatpush1.msra.mxu0 %v3675
      %3839 = vmatprep.subr.mxu0 0.0
      %3840 = vmatpush1.msra.mxu0 %v3669
      %3841 = vmatprep.subr.mxu0 0.0
      %3842 = vmatpush2.msra.mxu0 0.0
      %3843 = vmatprep.subr.mxu0 0.0
      %3844 = vmatpush2.msra.mxu0 0.0
      %3845 = vmatprep.subr.mxu0 0.0
      %3846 = vmatpush2.msra.mxu0 0.0
      %3847 = vmatprep.subr.mxu0 0.0
      %3848 = vmatpush2.msra.mxu0 0.0
      %3849 = vmatprep.subr.mxu0 0.0
      %3850 = vmatpush2.msra.mxu0 0.0
      %3851 = vmatprep.subr.mxu0 0.0
      %3852 = vmatpush2.msra.mxu0 0.0
      %3853 = vmatprep.subr.mxu0 0.0
      %3854 = vmatpush2.msra.mxu0 0.0
      %3855 = vmatprep.subr.mxu0 0.0
      %3856 = vmatpush2.msra.mxu0 0.0
      %3857 = vmatprep.subr.mxu0 0.0
      %3858 = vmatpush2.msra.mxu0 0.0
      %3859 = vmatprep.subr.mxu0 0.0
      %3860 = vmatpush2.msra.mxu0 0.0
      %3861 = vmatprep.subr.mxu0 0.0
      %3862 = vmatpush2.msra.mxu0 0.0
      %3863 = vmatprep.subr.mxu0 0.0
      %3864 = vmatpush2.msra.mxu0 0.0
      %3865 = vmatprep.subr.mxu0 0.0
      %3866 = vmatpush2.msra.mxu0 0.0
      %3867 = vmatprep.subr.mxu0 0.0
      %3868 = vmatpush2.msra.mxu0 0.0
      %3869 = vmatprep.subr.mxu0 0.0
      %3870 = vmatpush2.msra.mxu0 0.0
      %3871 = vmatprep.subr.mxu0 0.0
      %3872 = vmatpush2.msra.mxu0 0.0
      %3873 = vmatprep.mubr.f32.mxu0 0.0
      %3874 = vmatmul.mubr.f32.gmra.mxu0 %v3709
      %v3875 = vpop.f32.mrf.mxu0
      %v3876 = vadd.f32 0.0, %v3875
      %v3877 = vpop.f32.mrf.mxu0
      %3878 = vmatprep.mubr.f32.mxu0 0.0
      %3879 = vmatmul.mubr.f32.gmra.mxu0 %v3712
      %v3880 = vpop.f32.mrf.mxu0
      %v3881 = vadd.f32 0.0, %v3880
      %v3882 = vpop.f32.mrf.mxu0
      %3883 = vmatprep.mubr.f32.mxu0 0.0
      %3884 = vmatmul.mubr.f32.gmra.mxu0 %v3715
      %v3885 = vpop.f32.mrf.mxu0
      %v3886 = vadd.f32 0.0, %v3885
      %v3887 = vpop.f32.mrf.mxu0
      %3888 = vmatprep.mubr.f32.mxu0 0.0
      %3889 = vmatmul.mubr.f32.gmra.mxu0 %v3718
      %v3890 = vpop.f32.mrf.mxu0
      %v3891 = vadd.f32 0.0, %v3890
      %v3892 = vpop.f32.mrf.mxu0
      %3893 = vdwg.mxu0
      %v3894 = vadd.f32 %v3647, %v3787
      %v3895 = vadd.f32 %v3648, %v3789
      %v3896 = vadd.f32 %v3649, %v3876
      %v3897 = vadd.f32 %v3650, %v3793
      %v3898 = vadd.f32 %v3651, %v3795
      %v3899 = vadd.f32 %v3652, %v3881
      %v3900 = vadd.f32 %v3653, %v3799
      %v3901 = vadd.f32 %v3654, %v3801
      %v3902 = vadd.f32 %v3655, %v3886
      %v3903 = vadd.f32 %v3656, %v3805
      %v3904 = vadd.f32 %v3657, %v3807
      %v3905 = vadd.f32 %v3658, %v3891
      %v3906 = vld [vmem:[#allocation3] sm:$0xff]
      %v3907 = vld [vmem:[#allocation3 + $0x8] sm:$0xff]
      %v3908 = vld [vmem:[#allocation3 + $0x10] sm:$0xff]
      %v3909 = vld [vmem:[#allocation3 + $0x18] sm:$0xff]
      %v3910 = vld [vmem:[#allocation3 + $0x20] sm:$0xff]
      %v3911 = vld [vmem:[#allocation3 + $0x28] sm:$0xff]
      %v3912 = vld [vmem:[#allocation3 + $0x30] sm:$0xff]
      %v3913 = vld [vmem:[#allocation3 + $0x38] sm:$0xff]
      %v3914 = vld [vmem:[#allocation3 + $0x40] sm:$0xff]
      %v3915 = vld [vmem:[#allocation3 + $0x48] sm:$0xff]
      %v3916 = vld [vmem:[#allocation3 + $0x50] sm:$0xff]
      %v3917 = vld [vmem:[#allocation3 + $0x58] sm:$0xff]
      %v3918 = vld [vmem:[#allocation3 + $0x60] sm:$0xff]
      %v3919 = vld [vmem:[#allocation3 + $0x68] sm:$0xff]
      %v3920 = vld [vmem:[#allocation3 + $0x70] sm:$0xff]
      %v3921 = vld [vmem:[#allocation3 + $0x78] sm:$0xff]
      %s3922 = scalar_lea.vmem %s2, 96
      %v3923 = vld [vmem:[%s3922] sm:$0xff]
      %v3924 = vld [vmem:[%s3922 + $0x8] sm:$0xff]
      %v3925 = vld [vmem:[%s3922 + $0x10] sm:$0xff]
      %v3926 = vld [vmem:[%s3922 + $0x18] sm:$0xff]
      %3943 = vrot.lane.b32.xlu0 %v3906, 93
      %v3944 = vpop.permute.xlu0 %3943
      %3945 = vrot.lane.b32.xlu0 %v3907, 93
      %v3946 = vpop.permute.xlu0 %3945
      %3947 = vrot.lane.b32.xlu0 %v3908, 93
      %v3948 = vpop.permute.xlu0 %3947
      %3949 = vrot.lane.b32.xlu0 %v3909, 93
      %v3950 = vpop.permute.xlu0 %3949
      %3951 = vrot.lane.b32.xlu0 %v3910, 93
      %v3952 = vpop.permute.xlu0 %3951
      %3953 = vrot.lane.b32.xlu0 %v3911, 93
      %v3954 = vpop.permute.xlu0 %3953
      %3955 = vrot.lane.b32.xlu0 %v3912, 93
      %v3956 = vpop.permute.xlu0 %3955
      %3957 = vrot.lane.b32.xlu0 %v3913, 93
      %v3958 = vpop.permute.xlu0 %3957
      %3959 = vrot.lane.b32.xlu0 %v3914, 93
      %v3960 = vpop.permute.xlu0 %3959
      %3961 = vrot.lane.b32.xlu0 %v3915, 93
      %v3962 = vpop.permute.xlu0 %3961
      %3963 = vrot.lane.b32.xlu0 %v3916, 93
      %v3964 = vpop.permute.xlu0 %3963
      %3965 = vrot.lane.b32.xlu0 %v3917, 93
      %v3966 = vpop.permute.xlu0 %3965
      %3967 = vrot.lane.b32.xlu0 %v3918, 93
      %v3968 = vpop.permute.xlu0 %3967
      %3969 = vrot.lane.b32.xlu0 %v3919, 93
      %v3970 = vpop.permute.xlu0 %3969
      %3971 = vrot.lane.b32.xlu0 %v3920, 93
      %v3972 = vpop.permute.xlu0 %3971
      %3973 = vrot.lane.b32.xlu0 %v3921, 93
      %v3974 = vpop.permute.xlu0 %3973
      %v3975 = vsel %vm1523, %v3944, %v3946
      %v3976 = vsel %vm1523, %v3946, %v3948
      %v3977 = vsel %vm1523, %v3948, %v3950
      %v3978 = vsel %vm1523, %v3952, %v3954
      %v3979 = vsel %vm1523, %v3954, %v3956
      %v3980 = vsel %vm1523, %v3956, %v3958
      %v3981 = vsel %vm1523, %v3960, %v3962
      %v3982 = vsel %vm1523, %v3962, %v3964
      %v3983 = vsel %vm1523, %v3964, %v3966
      %v3984 = vsel %vm1523, %v3968, %v3970
      %v3985 = vsel %vm1523, %v3970, %v3972
      %v3986 = vsel %vm1523, %v3972, %v3974
      %v4000 = vsel %vm718, %v3923, 0
      %v4003 = vsel %vm718, %v3924, 0
      %v4006 = vsel %vm718, %v3925, 0
      %v4009 = vsel %vm718, %v3926, 0
      %4011 = vmatprep.subr.mxu0 0.0
      %4012 = vmatpush1.msra.mxu0 0.0
      %4013 = vmatprep.subr.mxu0 0.0
      %4014 = vmatpush1.msra.mxu0 0.0
      %4015 = vmatprep.subr.mxu0 0.0
      %4016 = vmatpush1.msra.mxu0 0.0
      %4017 = vmatprep.subr.mxu0 0.0
      %4018 = vmatpush1.msra.mxu0 0.0
      %4019 = vmatprep.subr.mxu0 0.0
      %4020 = vmatpush1.msra.mxu0 0.0
      %4021 = vmatprep.subr.mxu0 0.0
      %4022 = vmatpush1.msra.mxu0 0.0
      %4023 = vmatprep.subr.mxu0 0.0
      %4024 = vmatpush1.msra.mxu0 0.0
      %4025 = vmatprep.subr.mxu0 0.0
      %4026 = vmatpush1.msra.mxu0 0.0
      %4027 = vmatprep.subr.mxu0 0.0
      %4028 = vmatpush1.msra.mxu0 0.0
      %4029 = vmatprep.subr.mxu0 0.0
      %4030 = vmatpush1.msra.mxu0 0.0
      %4031 = vmatprep.subr.mxu0 0.0
      %4032 = vmatpush1.msra.mxu0 0.0
      %4033 = vmatprep.subr.mxu0 0.0
      %4034 = vmatpush1.msra.mxu0 0.0
      %4035 = vmatprep.subr.mxu0 %v3985
      %4036 = vmatpush1.msra.mxu0 %v3984
      %4037 = vmatprep.subr.mxu0 %v3982
      %4038 = vmatpush1.msra.mxu0 %v3981
      %4039 = vmatprep.subr.mxu0 %v3979
      %4040 = vmatpush1.msra.mxu0 %v3978
      %4041 = vmatprep.subr.mxu0 %v3976
      %4042 = vmatpush1.msra.mxu0 %v3975
      %4043 = vmatprep.subr.mxu0 0.0
      %4044 = vmatpush2.msra.mxu0 0.0
      %4045 = vmatprep.subr.mxu0 0.0
      %4046 = vmatpush2.msra.mxu0 0.0
      %4047 = vmatprep.subr.mxu0 0.0
      %4048 = vmatpush2.msra.mxu0 0.0
      %4049 = vmatprep.subr.mxu0 0.0
      %4050 = vmatpush2.msra.mxu0 0.0
      %4051 = vmatprep.subr.mxu0 0.0
      %4052 = vmatpush2.msra.mxu0 0.0
      %4053 = vmatprep.subr.mxu0 0.0
      %4054 = vmatpush2.msra.mxu0 0.0
      %4055 = vmatprep.subr.mxu0 0.0
      %4056 = vmatpush2.msra.mxu0 0.0
      %4057 = vmatprep.subr.mxu0 0.0
      %4058 = vmatpush2.msra.mxu0 0.0
      %4059 = vmatprep.subr.mxu0 0.0
      %4060 = vmatpush2.msra.mxu0 0.0
      %4061 = vmatprep.subr.mxu0 0.0
      %4062 = vmatpush2.msra.mxu0 0.0
      %4063 = vmatprep.subr.mxu0 0.0
      %4064 = vmatpush2.msra.mxu0 0.0
      %4065 = vmatprep.subr.mxu0 0.0
      %4066 = vmatpush2.msra.mxu0 0.0
      %4067 = vmatprep.subr.mxu0 0.0
      %4068 = vmatpush2.msra.mxu0 0.0
      %4069 = vmatprep.subr.mxu0 0.0
      %4070 = vmatpush2.msra.mxu0 0.0
      %4071 = vmatprep.subr.mxu0 0.0
      %4072 = vmatpush2.msra.mxu0 0.0
      %4073 = vmatprep.subr.mxu0 0.0
      %4074 = vmatpush2.msra.mxu0 0.0
      %4075 = vmatprep.mubr.f32.mxu0 0.0
      %4076 = vmatmul.mubr.f32.gmra.mxu0 %v4000
      %v4077 = vpop.f32.mrf.mxu0
      %v4078 = vadd.f32 0.0, %v4077
      %v4079 = vpop.f32.mrf.mxu0
      %v4080 = vadd.f32 0.0, %v4079
      %4081 = vmatprep.mubr.f32.mxu0 0.0
      %4082 = vmatmul.mubr.f32.gmra.mxu0 %v4003
      %v4083 = vpop.f32.mrf.mxu0
      %v4084 = vadd.f32 0.0, %v4083
      %v4085 = vpop.f32.mrf.mxu0
      %v4086 = vadd.f32 0.0, %v4085
      %4087 = vmatprep.mubr.f32.mxu0 0.0
      %4088 = vmatmul.mubr.f32.gmra.mxu0 %v4006
      %v4089 = vpop.f32.mrf.mxu0
      %v4090 = vadd.f32 0.0, %v4089
      %v4091 = vpop.f32.mrf.mxu0
      %v4092 = vadd.f32 0.0, %v4091
      %4093 = vmatprep.mubr.f32.mxu0 0.0
      %4094 = vmatmul.mubr.f32.gmra.mxu0 %v4009
      %v4095 = vpop.f32.mrf.mxu0
      %v4096 = vadd.f32 0.0, %v4095
      %v4097 = vpop.f32.mrf.mxu0
      %v4098 = vadd.f32 0.0, %v4097
      %4099 = vdwg.mxu0
      %4100 = vmatprep.subr.mxu0 0.0
      %4101 = vmatpush1.msra.mxu0 0.0
      %4102 = vmatprep.subr.mxu0 0.0
      %4103 = vmatpush1.msra.mxu0 0.0
      %4104 = vmatprep.subr.mxu0 0.0
      %4105 = vmatpush1.msra.mxu0 0.0
      %4106 = vmatprep.subr.mxu0 0.0
      %4107 = vmatpush1.msra.mxu0 0.0
      %4108 = vmatprep.subr.mxu0 0.0
      %4109 = vmatpush1.msra.mxu0 0.0
      %4110 = vmatprep.subr.mxu0 0.0
      %4111 = vmatpush1.msra.mxu0 0.0
      %4112 = vmatprep.subr.mxu0 0.0
      %4113 = vmatpush1.msra.mxu0 0.0
      %4114 = vmatprep.subr.mxu0 0.0
      %4115 = vmatpush1.msra.mxu0 0.0
      %4116 = vmatprep.subr.mxu0 0.0
      %4117 = vmatpush1.msra.mxu0 0.0
      %4118 = vmatprep.subr.mxu0 0.0
      %4119 = vmatpush1.msra.mxu0 0.0
      %4120 = vmatprep.subr.mxu0 0.0
      %4121 = vmatpush1.msra.mxu0 0.0
      %4122 = vmatprep.subr.mxu0 0.0
      %4123 = vmatpush1.msra.mxu0 0.0
      %4124 = vmatprep.subr.mxu0 0.0
      %4125 = vmatpush1.msra.mxu0 %v3986
      %4126 = vmatprep.subr.mxu0 0.0
      %4127 = vmatpush1.msra.mxu0 %v3983
      %4128 = vmatprep.subr.mxu0 0.0
      %4129 = vmatpush1.msra.mxu0 %v3980
      %4130 = vmatprep.subr.mxu0 0.0
      %4131 = vmatpush1.msra.mxu0 %v3977
      %4132 = vmatprep.subr.mxu0 0.0
      %4133 = vmatpush2.msra.mxu0 0.0
      %4134 = vmatprep.subr.mxu0 0.0
      %4135 = vmatpush2.msra.mxu0 0.0
      %4136 = vmatprep.subr.mxu0 0.0
      %4137 = vmatpush2.msra.mxu0 0.0
      %4138 = vmatprep.subr.mxu0 0.0
      %4139 = vmatpush2.msra.mxu0 0.0
      %4140 = vmatprep.subr.mxu0 0.0
      %4141 = vmatpush2.msra.mxu0 0.0
      %4142 = vmatprep.subr.mxu0 0.0
      %4143 = vmatpush2.msra.mxu0 0.0
      %4144 = vmatprep.subr.mxu0 0.0
      %4145 = vmatpush2.msra.mxu0 0.0
      %4146 = vmatprep.subr.mxu0 0.0
      %4147 = vmatpush2.msra.mxu0 0.0
      %4148 = vmatprep.subr.mxu0 0.0
      %4149 = vmatpush2.msra.mxu0 0.0
      %4150 = vmatprep.subr.mxu0 0.0
      %4151 = vmatpush2.msra.mxu0 0.0
      %4152 = vmatprep.subr.mxu0 0.0
      %4153 = vmatpush2.msra.mxu0 0.0
      %4154 = vmatprep.subr.mxu0 0.0
      %4155 = vmatpush2.msra.mxu0 0.0
      %4156 = vmatprep.subr.mxu0 0.0
      %4157 = vmatpush2.msra.mxu0 0.0
      %4158 = vmatprep.subr.mxu0 0.0
      %4159 = vmatpush2.msra.mxu0 0.0
      %4160 = vmatprep.subr.mxu0 0.0
      %4161 = vmatpush2.msra.mxu0 0.0
      %4162 = vmatprep.subr.mxu0 0.0
      %4163 = vmatpush2.msra.mxu0 0.0
      %4164 = vmatprep.mubr.f32.mxu0 0.0
      %4165 = vmatmul.mubr.f32.gmra.mxu0 %v4000
      %v4166 = vpop.f32.mrf.mxu0
      %v4167 = vadd.f32 0.0, %v4166
      %v4168 = vpop.f32.mrf.mxu0
      %4169 = vmatprep.mubr.f32.mxu0 0.0
      %4170 = vmatmul.mubr.f32.gmra.mxu0 %v4003
      %v4171 = vpop.f32.mrf.mxu0
      %v4172 = vadd.f32 0.0, %v4171
      %v4173 = vpop.f32.mrf.mxu0
      %4174 = vmatprep.mubr.f32.mxu0 0.0
      %4175 = vmatmul.mubr.f32.gmra.mxu0 %v4006
      %v4176 = vpop.f32.mrf.mxu0
      %v4177 = vadd.f32 0.0, %v4176
      %v4178 = vpop.f32.mrf.mxu0
      %4179 = vmatprep.mubr.f32.mxu0 0.0
      %4180 = vmatmul.mubr.f32.gmra.mxu0 %v4009
      %v4181 = vpop.f32.mrf.mxu0
      %v4182 = vadd.f32 0.0, %v4181
      %v4183 = vpop.f32.mrf.mxu0
      %4184 = vdwg.mxu0
      %v4185 = vadd.f32 %v3894, %v4078
      %v4186 = vadd.f32 %v3895, %v4080
      %v4187 = vadd.f32 %v3896, %v4167
      %v4188 = vadd.f32 %v3897, %v4084
      %v4189 = vadd.f32 %v3898, %v4086
      %v4190 = vadd.f32 %v3899, %v4172
      %v4191 = vadd.f32 %v3900, %v4090
      %v4192 = vadd.f32 %v3901, %v4092
      %v4193 = vadd.f32 %v3902, %v4177
      %v4194 = vadd.f32 %v3903, %v4096
      %v4195 = vadd.f32 %v3904, %v4098
      %v4196 = vadd.f32 %v3905, %v4182
      %s4197 = scalar_lea.vmem %s2, 128
      %v4198 = vld [vmem:[%s4197] sm:$0xff]
      %v4199 = vld [vmem:[%s4197 + $0x8] sm:$0xff]
      %v4200 = vld [vmem:[%s4197 + $0x10] sm:$0xff]
      %v4201 = vld [vmem:[%s4197 + $0x18] sm:$0xff]
      %4202 = vrot.lane.b32.xlu0 %v3906, 92
      %v4203 = vpop.permute.xlu0 %4202
      %4204 = vrot.lane.b32.xlu0 %v3907, 92
      %v4205 = vpop.permute.xlu0 %4204
      %4206 = vrot.lane.b32.xlu0 %v3908, 92
      %v4207 = vpop.permute.xlu0 %4206
      %4208 = vrot.lane.b32.xlu0 %v3909, 92
      %v4209 = vpop.permute.xlu0 %4208
      %4210 = vrot.lane.b32.xlu0 %v3910, 92
      %v4211 = vpop.permute.xlu0 %4210
      %4212 = vrot.lane.b32.xlu0 %v3911, 92
      %v4213 = vpop.permute.xlu0 %4212
      %4214 = vrot.lane.b32.xlu0 %v3912, 92
      %v4215 = vpop.permute.xlu0 %4214
      %4216 = vrot.lane.b32.xlu0 %v3913, 92
      %v4217 = vpop.permute.xlu0 %4216
      %4218 = vrot.lane.b32.xlu0 %v3914, 92
      %v4219 = vpop.permute.xlu0 %4218
      %4220 = vrot.lane.b32.xlu0 %v3915, 92
      %v4221 = vpop.permute.xlu0 %4220
      %4222 = vrot.lane.b32.xlu0 %v3916, 92
      %v4223 = vpop.permute.xlu0 %4222
      %4224 = vrot.lane.b32.xlu0 %v3917, 92
      %v4225 = vpop.permute.xlu0 %4224
      %4226 = vrot.lane.b32.xlu0 %v3918, 92
      %v4227 = vpop.permute.xlu0 %4226
      %4228 = vrot.lane.b32.xlu0 %v3919, 92
      %v4229 = vpop.permute.xlu0 %4228
      %4230 = vrot.lane.b32.xlu0 %v3920, 92
      %v4231 = vpop.permute.xlu0 %4230
      %4232 = vrot.lane.b32.xlu0 %v3921, 92
      %v4233 = vpop.permute.xlu0 %4232
      %v4234 = vsel %vm1760, %v4203, %v4205
      %v4235 = vsel %vm1760, %v4205, %v4207
      %v4236 = vsel %vm1760, %v4207, %v4209
      %v4237 = vsel %vm1760, %v4211, %v4213
      %v4238 = vsel %vm1760, %v4213, %v4215
      %v4239 = vsel %vm1760, %v4215, %v4217
      %v4240 = vsel %vm1760, %v4219, %v4221
      %v4241 = vsel %vm1760, %v4221, %v4223
      %v4242 = vsel %vm1760, %v4223, %v4225
      %v4243 = vsel %vm1760, %v4227, %v4229
      %v4244 = vsel %vm1760, %v4229, %v4231
      %v4245 = vsel %vm1760, %v4231, %v4233
      %v4259 = vsel %vm718, %v4198, 0
      %v4262 = vsel %vm718, %v4199, 0
      %v4265 = vsel %vm718, %v4200, 0
      %v4268 = vsel %vm718, %v4201, 0
      %4270 = vmatprep.subr.mxu0 0.0
      %4271 = vmatpush1.msra.mxu0 0.0
      %4272 = vmatprep.subr.mxu0 0.0
      %4273 = vmatpush1.msra.mxu0 0.0
      %4274 = vmatprep.subr.mxu0 0.0
      %4275 = vmatpush1.msra.mxu0 0.0
      %4276 = vmatprep.subr.mxu0 0.0
      %4277 = vmatpush1.msra.mxu0 0.0
      %4278 = vmatprep.subr.mxu0 0.0
      %4279 = vmatpush1.msra.mxu0 0.0
      %4280 = vmatprep.subr.mxu0 0.0
      %4281 = vmatpush1.msra.mxu0 0.0
      %4282 = vmatprep.subr.mxu0 0.0
      %4283 = vmatpush1.msra.mxu0 0.0
      %4284 = vmatprep.subr.mxu0 0.0
      %4285 = vmatpush1.msra.mxu0 0.0
      %4286 = vmatprep.subr.mxu0 0.0
      %4287 = vmatpush1.msra.mxu0 0.0
      %4288 = vmatprep.subr.mxu0 0.0
      %4289 = vmatpush1.msra.mxu0 0.0
      %4290 = vmatprep.subr.mxu0 0.0
      %4291 = vmatpush1.msra.mxu0 0.0
      %4292 = vmatprep.subr.mxu0 0.0
      %4293 = vmatpush1.msra.mxu0 0.0
      %4294 = vmatprep.subr.mxu0 %v4244
      %4295 = vmatpush1.msra.mxu0 %v4243
      %4296 = vmatprep.subr.mxu0 %v4241
      %4297 = vmatpush1.msra.mxu0 %v4240
      %4298 = vmatprep.subr.mxu0 %v4238
      %4299 = vmatpush1.msra.mxu0 %v4237
      %4300 = vmatprep.subr.mxu0 %v4235
      %4301 = vmatpush1.msra.mxu0 %v4234
      %4302 = vmatprep.subr.mxu0 0.0
      %4303 = vmatpush2.msra.mxu0 0.0
      %4304 = vmatprep.subr.mxu0 0.0
      %4305 = vmatpush2.msra.mxu0 0.0
      %4306 = vmatprep.subr.mxu0 0.0
      %4307 = vmatpush2.msra.mxu0 0.0
      %4308 = vmatprep.subr.mxu0 0.0
      %4309 = vmatpush2.msra.mxu0 0.0
      %4310 = vmatprep.subr.mxu0 0.0
      %4311 = vmatpush2.msra.mxu0 0.0
      %4312 = vmatprep.subr.mxu0 0.0
      %4313 = vmatpush2.msra.mxu0 0.0
      %4314 = vmatprep.subr.mxu0 0.0
      %4315 = vmatpush2.msra.mxu0 0.0
      %4316 = vmatprep.subr.mxu0 0.0
      %4317 = vmatpush2.msra.mxu0 0.0
      %4318 = vmatprep.subr.mxu0 0.0
      %4319 = vmatpush2.msra.mxu0 0.0
      %4320 = vmatprep.subr.mxu0 0.0
      %4321 = vmatpush2.msra.mxu0 0.0
      %4322 = vmatprep.subr.mxu0 0.0
      %4323 = vmatpush2.msra.mxu0 0.0
      %4324 = vmatprep.subr.mxu0 0.0
      %4325 = vmatpush2.msra.mxu0 0.0
      %4326 = vmatprep.subr.mxu0 0.0
      %4327 = vmatpush2.msra.mxu0 0.0
      %4328 = vmatprep.subr.mxu0 0.0
      %4329 = vmatpush2.msra.mxu0 0.0
      %4330 = vmatprep.subr.mxu0 0.0
      %4331 = vmatpush2.msra.mxu0 0.0
      %4332 = vmatprep.subr.mxu0 0.0
      %4333 = vmatpush2.msra.mxu0 0.0
      %4334 = vmatprep.mubr.f32.mxu0 0.0
      %4335 = vmatmul.mubr.f32.gmra.mxu0 %v4259
      %v4336 = vpop.f32.mrf.mxu0
      %v4337 = vadd.f32 0.0, %v4336
      %v4338 = vpop.f32.mrf.mxu0
      %v4339 = vadd.f32 0.0, %v4338
      %4340 = vmatprep.mubr.f32.mxu0 0.0
      %4341 = vmatmul.mubr.f32.gmra.mxu0 %v4262
      %v4342 = vpop.f32.mrf.mxu0
      %v4343 = vadd.f32 0.0, %v4342
      %v4344 = vpop.f32.mrf.mxu0
      %v4345 = vadd.f32 0.0, %v4344
      %4346 = vmatprep.mubr.f32.mxu0 0.0
      %4347 = vmatmul.mubr.f32.gmra.mxu0 %v4265
      %v4348 = vpop.f32.mrf.mxu0
      %v4349 = vadd.f32 0.0, %v4348
      %v4350 = vpop.f32.mrf.mxu0
      %v4351 = vadd.f32 0.0, %v4350
      %4352 = vmatprep.mubr.f32.mxu0 0.0
      %4353 = vmatmul.mubr.f32.gmra.mxu0 %v4268
      %v4354 = vpop.f32.mrf.mxu0
      %v4355 = vadd.f32 0.0, %v4354
      %v4356 = vpop.f32.mrf.mxu0
      %v4357 = vadd.f32 0.0, %v4356
      %4358 = vdwg.mxu0
      %4359 = vmatprep.subr.mxu0 0.0
      %4360 = vmatpush1.msra.mxu0 0.0
      %4361 = vmatprep.subr.mxu0 0.0
      %4362 = vmatpush1.msra.mxu0 0.0
      %4363 = vmatprep.subr.mxu0 0.0
      %4364 = vmatpush1.msra.mxu0 0.0
      %4365 = vmatprep.subr.mxu0 0.0
      %4366 = vmatpush1.msra.mxu0 0.0
      %4367 = vmatprep.subr.mxu0 0.0
      %4368 = vmatpush1.msra.mxu0 0.0
      %4369 = vmatprep.subr.mxu0 0.0
      %4370 = vmatpush1.msra.mxu0 0.0
      %4371 = vmatprep.subr.mxu0 0.0
      %4372 = vmatpush1.msra.mxu0 0.0
      %4373 = vmatprep.subr.mxu0 0.0
      %4374 = vmatpush1.msra.mxu0 0.0
      %4375 = vmatprep.subr.mxu0 0.0
      %4376 = vmatpush1.msra.mxu0 0.0
      %4377 = vmatprep.subr.mxu0 0.0
      %4378 = vmatpush1.msra.mxu0 0.0
      %4379 = vmatprep.subr.mxu0 0.0
      %4380 = vmatpush1.msra.mxu0 0.0
      %4381 = vmatprep.subr.mxu0 0.0
      %4382 = vmatpush1.msra.mxu0 0.0
      %4383 = vmatprep.subr.mxu0 0.0
      %4384 = vmatpush1.msra.mxu0 %v4245
      %4385 = vmatprep.subr.mxu0 0.0
      %4386 = vmatpush1.msra.mxu0 %v4242
      %4387 = vmatprep.subr.mxu0 0.0
      %4388 = vmatpush1.msra.mxu0 %v4239
      %4389 = vmatprep.subr.mxu0 0.0
      %4390 = vmatpush1.msra.mxu0 %v4236
      %4391 = vmatprep.subr.mxu0 0.0
      %4392 = vmatpush2.msra.mxu0 0.0
      %4393 = vmatprep.subr.mxu0 0.0
      %4394 = vmatpush2.msra.mxu0 0.0
      %4395 = vmatprep.subr.mxu0 0.0
      %4396 = vmatpush2.msra.mxu0 0.0
      %4397 = vmatprep.subr.mxu0 0.0
      %4398 = vmatpush2.msra.mxu0 0.0
      %4399 = vmatprep.subr.mxu0 0.0
      %4400 = vmatpush2.msra.mxu0 0.0
      %4401 = vmatprep.subr.mxu0 0.0
      %4402 = vmatpush2.msra.mxu0 0.0
      %4403 = vmatprep.subr.mxu0 0.0
      %4404 = vmatpush2.msra.mxu0 0.0
      %4405 = vmatprep.subr.mxu0 0.0
      %4406 = vmatpush2.msra.mxu0 0.0
      %4407 = vmatprep.subr.mxu0 0.0
      %4408 = vmatpush2.msra.mxu0 0.0
      %4409 = vmatprep.subr.mxu0 0.0
      %4410 = vmatpush2.msra.mxu0 0.0
      %4411 = vmatprep.subr.mxu0 0.0
      %4412 = vmatpush2.msra.mxu0 0.0
      %4413 = vmatprep.subr.mxu0 0.0
      %4414 = vmatpush2.msra.mxu0 0.0
      %4415 = vmatprep.subr.mxu0 0.0
      %4416 = vmatpush2.msra.mxu0 0.0
      %4417 = vmatprep.subr.mxu0 0.0
      %4418 = vmatpush2.msra.mxu0 0.0
      %4419 = vmatprep.subr.mxu0 0.0
      %4420 = vmatpush2.msra.mxu0 0.0
      %4421 = vmatprep.subr.mxu0 0.0
      %4422 = vmatpush2.msra.mxu0 0.0
      %4423 = vmatprep.mubr.f32.mxu0 0.0
      %4424 = vmatmul.mubr.f32.gmra.mxu0 %v4259
      %v4425 = vpop.f32.mrf.mxu0
      %v4426 = vadd.f32 0.0, %v4425
      %v4427 = vpop.f32.mrf.mxu0
      %4428 = vmatprep.mubr.f32.mxu0 0.0
      %4429 = vmatmul.mubr.f32.gmra.mxu0 %v4262
      %v4430 = vpop.f32.mrf.mxu0
      %v4431 = vadd.f32 0.0, %v4430
      %v4432 = vpop.f32.mrf.mxu0
      %4433 = vmatprep.mubr.f32.mxu0 0.0
      %4434 = vmatmul.mubr.f32.gmra.mxu0 %v4265
      %v4435 = vpop.f32.mrf.mxu0
      %v4436 = vadd.f32 0.0, %v4435
      %v4437 = vpop.f32.mrf.mxu0
      %4438 = vmatprep.mubr.f32.mxu0 0.0
      %4439 = vmatmul.mubr.f32.gmra.mxu0 %v4268
      %v4440 = vpop.f32.mrf.mxu0
      %v4441 = vadd.f32 0.0, %v4440
      %v4442 = vpop.f32.mrf.mxu0
      %4443 = vdwg.mxu0
      %v4444 = vadd.f32 %v4185, %v4337
      %v4445 = vadd.f32 %v4186, %v4339
      %v4446 = vadd.f32 %v4187, %v4426
      %v4447 = vadd.f32 %v4188, %v4343
      %v4448 = vadd.f32 %v4189, %v4345
      %v4449 = vadd.f32 %v4190, %v4431
      %v4450 = vadd.f32 %v4191, %v4349
      %v4451 = vadd.f32 %v4192, %v4351
      %v4452 = vadd.f32 %v4193, %v4436
      %v4453 = vadd.f32 %v4194, %v4355
      %v4454 = vadd.f32 %v4195, %v4357
      %v4455 = vadd.f32 %v4196, %v4441
      %s4456 = scalar_lea.vmem %s2, 160
      %v4457 = vld [vmem:[%s4456] sm:$0xff]
      %v4458 = vld [vmem:[%s4456 + $0x8] sm:$0xff]
      %v4459 = vld [vmem:[%s4456 + $0x10] sm:$0xff]
      %v4460 = vld [vmem:[%s4456 + $0x18] sm:$0xff]
      %4461 = vrot.lane.b32.xlu0 %v3906, 91
      %v4462 = vpop.permute.xlu0 %4461
      %4463 = vrot.lane.b32.xlu0 %v3907, 91
      %v4464 = vpop.permute.xlu0 %4463
      %4465 = vrot.lane.b32.xlu0 %v3908, 91
      %v4466 = vpop.permute.xlu0 %4465
      %4467 = vrot.lane.b32.xlu0 %v3909, 91
      %v4468 = vpop.permute.xlu0 %4467
      %4469 = vrot.lane.b32.xlu0 %v3910, 91
      %v4470 = vpop.permute.xlu0 %4469
      %4471 = vrot.lane.b32.xlu0 %v3911, 91
      %v4472 = vpop.permute.xlu0 %4471
      %4473 = vrot.lane.b32.xlu0 %v3912, 91
      %v4474 = vpop.permute.xlu0 %4473
      %4475 = vrot.lane.b32.xlu0 %v3913, 91
      %v4476 = vpop.permute.xlu0 %4475
      %4477 = vrot.lane.b32.xlu0 %v3914, 91
      %v4478 = vpop.permute.xlu0 %4477
      %4479 = vrot.lane.b32.xlu0 %v3915, 91
      %v4480 = vpop.permute.xlu0 %4479
      %4481 = vrot.lane.b32.xlu0 %v3916, 91
      %v4482 = vpop.permute.xlu0 %4481
      %4483 = vrot.lane.b32.xlu0 %v3917, 91
      %v4484 = vpop.permute.xlu0 %4483
      %4485 = vrot.lane.b32.xlu0 %v3918, 91
      %v4486 = vpop.permute.xlu0 %4485
      %4487 = vrot.lane.b32.xlu0 %v3919, 91
      %v4488 = vpop.permute.xlu0 %4487
      %4489 = vrot.lane.b32.xlu0 %v3920, 91
      %v4490 = vpop.permute.xlu0 %4489
      %4491 = vrot.lane.b32.xlu0 %v3921, 91
      %v4492 = vpop.permute.xlu0 %4491
      %v4493 = vsel %vm1997, %v4462, %v4464
      %v4494 = vsel %vm1997, %v4464, %v4466
      %v4495 = vsel %vm1997, %v4466, %v4468
      %v4496 = vsel %vm1997, %v4470, %v4472
      %v4497 = vsel %vm1997, %v4472, %v4474
      %v4498 = vsel %vm1997, %v4474, %v4476
      %v4499 = vsel %vm1997, %v4478, %v4480
      %v4500 = vsel %vm1997, %v4480, %v4482
      %v4501 = vsel %vm1997, %v4482, %v4484
      %v4502 = vsel %vm1997, %v4486, %v4488
      %v4503 = vsel %vm1997, %v4488, %v4490
      %v4504 = vsel %vm1997, %v4490, %v4492
      %v4518 = vsel %vm718, %v4457, 0
      %v4521 = vsel %vm718, %v4458, 0
      %v4524 = vsel %vm718, %v4459, 0
      %v4527 = vsel %vm718, %v4460, 0
      %4529 = vmatprep.subr.mxu0 0.0
      %4530 = vmatpush1.msra.mxu0 0.0
      %4531 = vmatprep.subr.mxu0 0.0
      %4532 = vmatpush1.msra.mxu0 0.0
      %4533 = vmatprep.subr.mxu0 0.0
      %4534 = vmatpush1.msra.mxu0 0.0
      %4535 = vmatprep.subr.mxu0 0.0
      %4536 = vmatpush1.msra.mxu0 0.0
      %4537 = vmatprep.subr.mxu0 0.0
      %4538 = vmatpush1.msra.mxu0 0.0
      %4539 = vmatprep.subr.mxu0 0.0
      %4540 = vmatpush1.msra.mxu0 0.0
      %4541 = vmatprep.subr.mxu0 0.0
      %4542 = vmatpush1.msra.mxu0 0.0
      %4543 = vmatprep.subr.mxu0 0.0
      %4544 = vmatpush1.msra.mxu0 0.0
      %4545 = vmatprep.subr.mxu0 0.0
      %4546 = vmatpush1.msra.mxu0 0.0
      %4547 = vmatprep.subr.mxu0 0.0
      %4548 = vmatpush1.msra.mxu0 0.0
      %4549 = vmatprep.subr.mxu0 0.0
      %4550 = vmatpush1.msra.mxu0 0.0
      %4551 = vmatprep.subr.mxu0 0.0
      %4552 = vmatpush1.msra.mxu0 0.0
      %4553 = vmatprep.subr.mxu0 %v4503
      %4554 = vmatpush1.msra.mxu0 %v4502
      %4555 = vmatprep.subr.mxu0 %v4500
      %4556 = vmatpush1.msra.mxu0 %v4499
      %4557 = vmatprep.subr.mxu0 %v4497
      %4558 = vmatpush1.msra.mxu0 %v4496
      %4559 = vmatprep.subr.mxu0 %v4494
      %4560 = vmatpush1.msra.mxu0 %v4493
      %4561 = vmatprep.subr.mxu0 0.0
      %4562 = vmatpush2.msra.mxu0 0.0
      %4563 = vmatprep.subr.mxu0 0.0
      %4564 = vmatpush2.msra.mxu0 0.0
      %4565 = vmatprep.subr.mxu0 0.0
      %4566 = vmatpush2.msra.mxu0 0.0
      %4567 = vmatprep.subr.mxu0 0.0
      %4568 = vmatpush2.msra.mxu0 0.0
      %4569 = vmatprep.subr.mxu0 0.0
      %4570 = vmatpush2.msra.mxu0 0.0
      %4571 = vmatprep.subr.mxu0 0.0
      %4572 = vmatpush2.msra.mxu0 0.0
      %4573 = vmatprep.subr.mxu0 0.0
      %4574 = vmatpush2.msra.mxu0 0.0
      %4575 = vmatprep.subr.mxu0 0.0
      %4576 = vmatpush2.msra.mxu0 0.0
      %4577 = vmatprep.subr.mxu0 0.0
      %4578 = vmatpush2.msra.mxu0 0.0
      %4579 = vmatprep.subr.mxu0 0.0
      %4580 = vmatpush2.msra.mxu0 0.0
      %4581 = vmatprep.subr.mxu0 0.0
      %4582 = vmatpush2.msra.mxu0 0.0
      %4583 = vmatprep.subr.mxu0 0.0
      %4584 = vmatpush2.msra.mxu0 0.0
      %4585 = vmatprep.subr.mxu0 0.0
      %4586 = vmatpush2.msra.mxu0 0.0
      %4587 = vmatprep.subr.mxu0 0.0
      %4588 = vmatpush2.msra.mxu0 0.0
      %4589 = vmatprep.subr.mxu0 0.0
      %4590 = vmatpush2.msra.mxu0 0.0
      %4591 = vmatprep.subr.mxu0 0.0
      %4592 = vmatpush2.msra.mxu0 0.0
      %4593 = vmatprep.mubr.f32.mxu0 0.0
      %4594 = vmatmul.mubr.f32.gmra.mxu0 %v4518
      %v4595 = vpop.f32.mrf.mxu0
      %v4596 = vadd.f32 0.0, %v4595
      %v4597 = vpop.f32.mrf.mxu0
      %v4598 = vadd.f32 0.0, %v4597
      %4599 = vmatprep.mubr.f32.mxu0 0.0
      %4600 = vmatmul.mubr.f32.gmra.mxu0 %v4521
      %v4601 = vpop.f32.mrf.mxu0
      %v4602 = vadd.f32 0.0, %v4601
      %v4603 = vpop.f32.mrf.mxu0
      %v4604 = vadd.f32 0.0, %v4603
      %4605 = vmatprep.mubr.f32.mxu0 0.0
      %4606 = vmatmul.mubr.f32.gmra.mxu0 %v4524
      %v4607 = vpop.f32.mrf.mxu0
      %v4608 = vadd.f32 0.0, %v4607
      %v4609 = vpop.f32.mrf.mxu0
      %v4610 = vadd.f32 0.0, %v4609
      %4611 = vmatprep.mubr.f32.mxu0 0.0
      %4612 = vmatmul.mubr.f32.gmra.mxu0 %v4527
      %v4613 = vpop.f32.mrf.mxu0
      %v4614 = vadd.f32 0.0, %v4613
      %v4615 = vpop.f32.mrf.mxu0
      %v4616 = vadd.f32 0.0, %v4615
      %4617 = vdwg.mxu0
      %4618 = vmatprep.subr.mxu0 0.0
      %4619 = vmatpush1.msra.mxu0 0.0
      %4620 = vmatprep.subr.mxu0 0.0
      %4621 = vmatpush1.msra.mxu0 0.0
      %4622 = vmatprep.subr.mxu0 0.0
      %4623 = vmatpush1.msra.mxu0 0.0
      %4624 = vmatprep.subr.mxu0 0.0
      %4625 = vmatpush1.msra.mxu0 0.0
      %4626 = vmatprep.subr.mxu0 0.0
      %4627 = vmatpush1.msra.mxu0 0.0
      %4628 = vmatprep.subr.mxu0 0.0
      %4629 = vmatpush1.msra.mxu0 0.0
      %4630 = vmatprep.subr.mxu0 0.0
      %4631 = vmatpush1.msra.mxu0 0.0
      %4632 = vmatprep.subr.mxu0 0.0
      %4633 = vmatpush1.msra.mxu0 0.0
      %4634 = vmatprep.subr.mxu0 0.0
      %4635 = vmatpush1.msra.mxu0 0.0
      %4636 = vmatprep.subr.mxu0 0.0
      %4637 = vmatpush1.msra.mxu0 0.0
      %4638 = vmatprep.subr.mxu0 0.0
      %4639 = vmatpush1.msra.mxu0 0.0
      %4640 = vmatprep.subr.mxu0 0.0
      %4641 = vmatpush1.msra.mxu0 0.0
      %4642 = vmatprep.subr.mxu0 0.0
      %4643 = vmatpush1.msra.mxu0 %v4504
      %4644 = vmatprep.subr.mxu0 0.0
      %4645 = vmatpush1.msra.mxu0 %v4501
      %4646 = vmatprep.subr.mxu0 0.0
      %4647 = vmatpush1.msra.mxu0 %v4498
      %4648 = vmatprep.subr.mxu0 0.0
      %4649 = vmatpush1.msra.mxu0 %v4495
      %4650 = vmatprep.subr.mxu0 0.0
      %4651 = vmatpush2.msra.mxu0 0.0
      %4652 = vmatprep.subr.mxu0 0.0
      %4653 = vmatpush2.msra.mxu0 0.0
      %4654 = vmatprep.subr.mxu0 0.0
      %4655 = vmatpush2.msra.mxu0 0.0
      %4656 = vmatprep.subr.mxu0 0.0
      %4657 = vmatpush2.msra.mxu0 0.0
      %4658 = vmatprep.subr.mxu0 0.0
      %4659 = vmatpush2.msra.mxu0 0.0
      %4660 = vmatprep.subr.mxu0 0.0
      %4661 = vmatpush2.msra.mxu0 0.0
      %4662 = vmatprep.subr.mxu0 0.0
      %4663 = vmatpush2.msra.mxu0 0.0
      %4664 = vmatprep.subr.mxu0 0.0
      %4665 = vmatpush2.msra.mxu0 0.0
      %4666 = vmatprep.subr.mxu0 0.0
      %4667 = vmatpush2.msra.mxu0 0.0
      %4668 = vmatprep.subr.mxu0 0.0
      %4669 = vmatpush2.msra.mxu0 0.0
      %4670 = vmatprep.subr.mxu0 0.0
      %4671 = vmatpush2.msra.mxu0 0.0
      %4672 = vmatprep.subr.mxu0 0.0
      %4673 = vmatpush2.msra.mxu0 0.0
      %4674 = vmatprep.subr.mxu0 0.0
      %4675 = vmatpush2.msra.mxu0 0.0
      %4676 = vmatprep.subr.mxu0 0.0
      %4677 = vmatpush2.msra.mxu0 0.0
      %4678 = vmatprep.subr.mxu0 0.0
      %4679 = vmatpush2.msra.mxu0 0.0
      %4680 = vmatprep.subr.mxu0 0.0
      %4681 = vmatpush2.msra.mxu0 0.0
      %4682 = vmatprep.mubr.f32.mxu0 0.0
      %4683 = vmatmul.mubr.f32.gmra.mxu0 %v4518
      %v4684 = vpop.f32.mrf.mxu0
      %v4685 = vadd.f32 0.0, %v4684
      %v4686 = vpop.f32.mrf.mxu0
      %4687 = vmatprep.mubr.f32.mxu0 0.0
      %4688 = vmatmul.mubr.f32.gmra.mxu0 %v4521
      %v4689 = vpop.f32.mrf.mxu0
      %v4690 = vadd.f32 0.0, %v4689
      %v4691 = vpop.f32.mrf.mxu0
      %4692 = vmatprep.mubr.f32.mxu0 0.0
      %4693 = vmatmul.mubr.f32.gmra.mxu0 %v4524
      %v4694 = vpop.f32.mrf.mxu0
      %v4695 = vadd.f32 0.0, %v4694
      %v4696 = vpop.f32.mrf.mxu0
      %4697 = vmatprep.mubr.f32.mxu0 0.0
      %4698 = vmatmul.mubr.f32.gmra.mxu0 %v4527
      %v4699 = vpop.f32.mrf.mxu0
      %v4700 = vadd.f32 0.0, %v4699
      %v4701 = vpop.f32.mrf.mxu0
      %4702 = vdwg.mxu0
      %v4703 = vadd.f32 %v4444, %v4596
      %v4704 = vadd.f32 %v4445, %v4598
      %v4705 = vadd.f32 %v4446, %v4685
      %v4706 = vadd.f32 %v4447, %v4602
      %v4707 = vadd.f32 %v4448, %v4604
      %v4708 = vadd.f32 %v4449, %v4690
      %v4709 = vadd.f32 %v4450, %v4608
      %v4710 = vadd.f32 %v4451, %v4610
      %v4711 = vadd.f32 %v4452, %v4695
      %v4712 = vadd.f32 %v4453, %v4614
      %v4713 = vadd.f32 %v4454, %v4616
      %v4714 = vadd.f32 %v4455, %v4700
      %s4715 = scalar_lea.vmem %s2, 192
      %v4716 = vld [vmem:[%s4715] sm:$0xff]
      %v4717 = vld [vmem:[%s4715 + $0x8] sm:$0xff]
      %v4718 = vld [vmem:[%s4715 + $0x10] sm:$0xff]
      %v4719 = vld [vmem:[%s4715 + $0x18] sm:$0xff]
      %4720 = vrot.lane.b32.xlu0 %v3906, 75
      %v4721 = vpop.permute.xlu0 %4720
      %4722 = vrot.lane.b32.xlu0 %v3907, 75
      %v4723 = vpop.permute.xlu0 %4722
      %4724 = vrot.lane.b32.xlu0 %v3908, 75
      %v4725 = vpop.permute.xlu0 %4724
      %4726 = vrot.lane.b32.xlu0 %v3909, 75
      %v4727 = vpop.permute.xlu0 %4726
      %4728 = vrot.lane.b32.xlu0 %v3910, 75
      %v4729 = vpop.permute.xlu0 %4728
      %4730 = vrot.lane.b32.xlu0 %v3911, 75
      %v4731 = vpop.permute.xlu0 %4730
      %4732 = vrot.lane.b32.xlu0 %v3912, 75
      %v4733 = vpop.permute.xlu0 %4732
      %4734 = vrot.lane.b32.xlu0 %v3913, 75
      %v4735 = vpop.permute.xlu0 %4734
      %4736 = vrot.lane.b32.xlu0 %v3914, 75
      %v4737 = vpop.permute.xlu0 %4736
      %4738 = vrot.lane.b32.xlu0 %v3915, 75
      %v4739 = vpop.permute.xlu0 %4738
      %4740 = vrot.lane.b32.xlu0 %v3916, 75
      %v4741 = vpop.permute.xlu0 %4740
      %4742 = vrot.lane.b32.xlu0 %v3917, 75
      %v4743 = vpop.permute.xlu0 %4742
      %4744 = vrot.lane.b32.xlu0 %v3918, 75
      %v4745 = vpop.permute.xlu0 %4744
      %4746 = vrot.lane.b32.xlu0 %v3919, 75
      %v4747 = vpop.permute.xlu0 %4746
      %4748 = vrot.lane.b32.xlu0 %v3920, 75
      %v4749 = vpop.permute.xlu0 %4748
      %4750 = vrot.lane.b32.xlu0 %v3921, 75
      %v4751 = vpop.permute.xlu0 %4750
      %v4752 = vsel %vm2234, %v4721, %v4723
      %v4753 = vsel %vm2234, %v4723, %v4725
      %v4754 = vsel %vm2234, %v4725, %v4727
      %v4755 = vsel %vm2234, %v4729, %v4731
      %v4756 = vsel %vm2234, %v4731, %v4733
      %v4757 = vsel %vm2234, %v4733, %v4735
      %v4758 = vsel %vm2234, %v4737, %v4739
      %v4759 = vsel %vm2234, %v4739, %v4741
      %v4760 = vsel %vm2234, %v4741, %v4743
      %v4761 = vsel %vm2234, %v4745, %v4747
      %v4762 = vsel %vm2234, %v4747, %v4749
      %v4763 = vsel %vm2234, %v4749, %v4751
      %v4777 = vsel %vm718, %v4716, 0
      %v4780 = vsel %vm718, %v4717, 0
      %v4783 = vsel %vm718, %v4718, 0
      %v4786 = vsel %vm718, %v4719, 0
      %4788 = vmatprep.subr.mxu0 0.0
      %4789 = vmatpush1.msra.mxu0 0.0
      %4790 = vmatprep.subr.mxu0 0.0
      %4791 = vmatpush1.msra.mxu0 0.0
      %4792 = vmatprep.subr.mxu0 0.0
      %4793 = vmatpush1.msra.mxu0 0.0
      %4794 = vmatprep.subr.mxu0 0.0
      %4795 = vmatpush1.msra.mxu0 0.0
      %4796 = vmatprep.subr.mxu0 0.0
      %4797 = vmatpush1.msra.mxu0 0.0
      %4798 = vmatprep.subr.mxu0 0.0
      %4799 = vmatpush1.msra.mxu0 0.0
      %4800 = vmatprep.subr.mxu0 0.0
      %4801 = vmatpush1.msra.mxu0 0.0
      %4802 = vmatprep.subr.mxu0 0.0
      %4803 = vmatpush1.msra.mxu0 0.0
      %4804 = vmatprep.subr.mxu0 0.0
      %4805 = vmatpush1.msra.mxu0 0.0
      %4806 = vmatprep.subr.mxu0 0.0
      %4807 = vmatpush1.msra.mxu0 0.0
      %4808 = vmatprep.subr.mxu0 0.0
      %4809 = vmatpush1.msra.mxu0 0.0
      %4810 = vmatprep.subr.mxu0 0.0
      %4811 = vmatpush1.msra.mxu0 0.0
      %4812 = vmatprep.subr.mxu0 %v4762
      %4813 = vmatpush1.msra.mxu0 %v4761
      %4814 = vmatprep.subr.mxu0 %v4759
      %4815 = vmatpush1.msra.mxu0 %v4758
      %4816 = vmatprep.subr.mxu0 %v4756
      %4817 = vmatpush1.msra.mxu0 %v4755
      %4818 = vmatprep.subr.mxu0 %v4753
      %4819 = vmatpush1.msra.mxu0 %v4752
      %4820 = vmatprep.subr.mxu0 0.0
      %4821 = vmatpush2.msra.mxu0 0.0
      %4822 = vmatprep.subr.mxu0 0.0
      %4823 = vmatpush2.msra.mxu0 0.0
      %4824 = vmatprep.subr.mxu0 0.0
      %4825 = vmatpush2.msra.mxu0 0.0
      %4826 = vmatprep.subr.mxu0 0.0
      %4827 = vmatpush2.msra.mxu0 0.0
      %4828 = vmatprep.subr.mxu0 0.0
      %4829 = vmatpush2.msra.mxu0 0.0
      %4830 = vmatprep.subr.mxu0 0.0
      %4831 = vmatpush2.msra.mxu0 0.0
      %4832 = vmatprep.subr.mxu0 0.0
      %4833 = vmatpush2.msra.mxu0 0.0
      %4834 = vmatprep.subr.mxu0 0.0
      %4835 = vmatpush2.msra.mxu0 0.0
      %4836 = vmatprep.subr.mxu0 0.0
      %4837 = vmatpush2.msra.mxu0 0.0
      %4838 = vmatprep.subr.mxu0 0.0
      %4839 = vmatpush2.msra.mxu0 0.0
      %4840 = vmatprep.subr.mxu0 0.0
      %4841 = vmatpush2.msra.mxu0 0.0
      %4842 = vmatprep.subr.mxu0 0.0
      %4843 = vmatpush2.msra.mxu0 0.0
      %4844 = vmatprep.subr.mxu0 0.0
      %4845 = vmatpush2.msra.mxu0 0.0
      %4846 = vmatprep.subr.mxu0 0.0
      %4847 = vmatpush2.msra.mxu0 0.0
      %4848 = vmatprep.subr.mxu0 0.0
      %4849 = vmatpush2.msra.mxu0 0.0
      %4850 = vmatprep.subr.mxu0 0.0
      %4851 = vmatpush2.msra.mxu0 0.0
      %4852 = vmatprep.mubr.f32.mxu0 0.0
      %4853 = vmatmul.mubr.f32.gmra.mxu0 %v4777
      %v4854 = vpop.f32.mrf.mxu0
      %v4855 = vadd.f32 0.0, %v4854
      %v4856 = vpop.f32.mrf.mxu0
      %v4857 = vadd.f32 0.0, %v4856
      %4858 = vmatprep.mubr.f32.mxu0 0.0
      %4859 = vmatmul.mubr.f32.gmra.mxu0 %v4780
      %v4860 = vpop.f32.mrf.mxu0
      %v4861 = vadd.f32 0.0, %v4860
      %v4862 = vpop.f32.mrf.mxu0
      %v4863 = vadd.f32 0.0, %v4862
      %4864 = vmatprep.mubr.f32.mxu0 0.0
      %4865 = vmatmul.mubr.f32.gmra.mxu0 %v4783
      %v4866 = vpop.f32.mrf.mxu0
      %v4867 = vadd.f32 0.0, %v4866
      %v4868 = vpop.f32.mrf.mxu0
      %v4869 = vadd.f32 0.0, %v4868
      %4870 = vmatprep.mubr.f32.mxu0 0.0
      %4871 = vmatmul.mubr.f32.gmra.mxu0 %v4786
      %v4872 = vpop.f32.mrf.mxu0
      %v4873 = vadd.f32 0.0, %v4872
      %v4874 = vpop.f32.mrf.mxu0
      %v4875 = vadd.f32 0.0, %v4874
      %4876 = vdwg.mxu0
      %4877 = vmatprep.subr.mxu0 0.0
      %4878 = vmatpush1.msra.mxu0 0.0
      %4879 = vmatprep.subr.mxu0 0.0
      %4880 = vmatpush1.msra.mxu0 0.0
      %4881 = vmatprep.subr.mxu0 0.0
      %4882 = vmatpush1.msra.mxu0 0.0
      %4883 = vmatprep.subr.mxu0 0.0
      %4884 = vmatpush1.msra.mxu0 0.0
      %4885 = vmatprep.subr.mxu0 0.0
      %4886 = vmatpush1.msra.mxu0 0.0
      %4887 = vmatprep.subr.mxu0 0.0
      %4888 = vmatpush1.msra.mxu0 0.0
      %4889 = vmatprep.subr.mxu0 0.0
      %4890 = vmatpush1.msra.mxu0 0.0
      %4891 = vmatprep.subr.mxu0 0.0
      %4892 = vmatpush1.msra.mxu0 0.0
      %4893 = vmatprep.subr.mxu0 0.0
      %4894 = vmatpush1.msra.mxu0 0.0
      %4895 = vmatprep.subr.mxu0 0.0
      %4896 = vmatpush1.msra.mxu0 0.0
      %4897 = vmatprep.subr.mxu0 0.0
      %4898 = vmatpush1.msra.mxu0 0.0
      %4899 = vmatprep.subr.mxu0 0.0
      %4900 = vmatpush1.msra.mxu0 0.0
      %4901 = vmatprep.subr.mxu0 0.0
      %4902 = vmatpush1.msra.mxu0 %v4763
      %4903 = vmatprep.subr.mxu0 0.0
      %4904 = vmatpush1.msra.mxu0 %v4760
      %4905 = vmatprep.subr.mxu0 0.0
      %4906 = vmatpush1.msra.mxu0 %v4757
      %4907 = vmatprep.subr.mxu0 0.0
      %4908 = vmatpush1.msra.mxu0 %v4754
      %4909 = vmatprep.subr.mxu0 0.0
      %4910 = vmatpush2.msra.mxu0 0.0
      %4911 = vmatprep.subr.mxu0 0.0
      %4912 = vmatpush2.msra.mxu0 0.0
      %4913 = vmatprep.subr.mxu0 0.0
      %4914 = vmatpush2.msra.mxu0 0.0
      %4915 = vmatprep.subr.mxu0 0.0
      %4916 = vmatpush2.msra.mxu0 0.0
      %4917 = vmatprep.subr.mxu0 0.0
      %4918 = vmatpush2.msra.mxu0 0.0
      %4919 = vmatprep.subr.mxu0 0.0
      %4920 = vmatpush2.msra.mxu0 0.0
      %4921 = vmatprep.subr.mxu0 0.0
      %4922 = vmatpush2.msra.mxu0 0.0
      %4923 = vmatprep.subr.mxu0 0.0
      %4924 = vmatpush2.msra.mxu0 0.0
      %4925 = vmatprep.subr.mxu0 0.0
      %4926 = vmatpush2.msra.mxu0 0.0
      %4927 = vmatprep.subr.mxu0 0.0
      %4928 = vmatpush2.msra.mxu0 0.0
      %4929 = vmatprep.subr.mxu0 0.0
      %4930 = vmatpush2.msra.mxu0 0.0
      %4931 = vmatprep.subr.mxu0 0.0
      %4932 = vmatpush2.msra.mxu0 0.0
      %4933 = vmatprep.subr.mxu0 0.0
      %4934 = vmatpush2.msra.mxu0 0.0
      %4935 = vmatprep.subr.mxu0 0.0
      %4936 = vmatpush2.msra.mxu0 0.0
      %4937 = vmatprep.subr.mxu0 0.0
      %4938 = vmatpush2.msra.mxu0 0.0
      %4939 = vmatprep.subr.mxu0 0.0
      %4940 = vmatpush2.msra.mxu0 0.0
      %4941 = vmatprep.mubr.f32.mxu0 0.0
      %4942 = vmatmul.mubr.f32.gmra.mxu0 %v4777
      %v4943 = vpop.f32.mrf.mxu0
      %v4944 = vadd.f32 0.0, %v4943
      %v4945 = vpop.f32.mrf.mxu0
      %4946 = vmatprep.mubr.f32.mxu0 0.0
      %4947 = vmatmul.mubr.f32.gmra.mxu0 %v4780
      %v4948 = vpop.f32.mrf.mxu0
      %v4949 = vadd.f32 0.0, %v4948
      %v4950 = vpop.f32.mrf.mxu0
      %4951 = vmatprep.mubr.f32.mxu0 0.0
      %4952 = vmatmul.mubr.f32.gmra.mxu0 %v4783
      %v4953 = vpop.f32.mrf.mxu0
      %v4954 = vadd.f32 0.0, %v4953
      %v4955 = vpop.f32.mrf.mxu0
      %4956 = vmatprep.mubr.f32.mxu0 0.0
      %4957 = vmatmul.mubr.f32.gmra.mxu0 %v4786
      %v4958 = vpop.f32.mrf.mxu0
      %v4959 = vadd.f32 0.0, %v4958
      %v4960 = vpop.f32.mrf.mxu0
      %4961 = vdwg.mxu0
      %v4962 = vadd.f32 %v4703, %v4855
      %v4963 = vadd.f32 %v4704, %v4857
      %v4964 = vadd.f32 %v4705, %v4944
      %v4965 = vadd.f32 %v4706, %v4861
      %v4966 = vadd.f32 %v4707, %v4863
      %v4967 = vadd.f32 %v4708, %v4949
      %v4968 = vadd.f32 %v4709, %v4867
      %v4969 = vadd.f32 %v4710, %v4869
      %v4970 = vadd.f32 %v4711, %v4954
      %v4971 = vadd.f32 %v4712, %v4873
      %v4972 = vadd.f32 %v4713, %v4875
      %v4973 = vadd.f32 %v4714, %v4959
      %s4974 = scalar_lea.vmem %s2, 224
      %v4975 = vld [vmem:[%s4974] sm:$0xff]
      %v4976 = vld [vmem:[%s4974 + $0x8] sm:$0xff]
      %v4977 = vld [vmem:[%s4974 + $0x10] sm:$0xff]
      %v4978 = vld [vmem:[%s4974 + $0x18] sm:$0xff]
      %4979 = vrot.lane.b32.xlu0 %v3906, 74
      %v4980 = vpop.permute.xlu0 %4979
      %4981 = vrot.lane.b32.xlu0 %v3907, 74
      %v4982 = vpop.permute.xlu0 %4981
      %4983 = vrot.lane.b32.xlu0 %v3908, 74
      %v4984 = vpop.permute.xlu0 %4983
      %4985 = vrot.lane.b32.xlu0 %v3909, 74
      %v4986 = vpop.permute.xlu0 %4985
      %4987 = vrot.lane.b32.xlu0 %v3910, 74
      %v4988 = vpop.permute.xlu0 %4987
      %4989 = vrot.lane.b32.xlu0 %v3911, 74
      %v4990 = vpop.permute.xlu0 %4989
      %4991 = vrot.lane.b32.xlu0 %v3912, 74
      %v4992 = vpop.permute.xlu0 %4991
      %4993 = vrot.lane.b32.xlu0 %v3913, 74
      %v4994 = vpop.permute.xlu0 %4993
      %4995 = vrot.lane.b32.xlu0 %v3914, 74
      %v4996 = vpop.permute.xlu0 %4995
      %4997 = vrot.lane.b32.xlu0 %v3915, 74
      %v4998 = vpop.permute.xlu0 %4997
      %4999 = vrot.lane.b32.xlu0 %v3916, 74
      %v5000 = vpop.permute.xlu0 %4999
      %5001 = vrot.lane.b32.xlu0 %v3917, 74
      %v5002 = vpop.permute.xlu0 %5001
      %5003 = vrot.lane.b32.xlu0 %v3918, 74
      %v5004 = vpop.permute.xlu0 %5003
      %5005 = vrot.lane.b32.xlu0 %v3919, 74
      %v5006 = vpop.permute.xlu0 %5005
      %5007 = vrot.lane.b32.xlu0 %v3920, 74
      %v5008 = vpop.permute.xlu0 %5007
      %5009 = vrot.lane.b32.xlu0 %v3921, 74
      %v5010 = vpop.permute.xlu0 %5009
      %v5011 = vsel %vm2471, %v4980, %v4982
      %v5012 = vsel %vm2471, %v4982, %v4984
      %v5013 = vsel %vm2471, %v4984, %v4986
      %v5014 = vsel %vm2471, %v4988, %v4990
      %v5015 = vsel %vm2471, %v4990, %v4992
      %v5016 = vsel %vm2471, %v4992, %v4994
      %v5017 = vsel %vm2471, %v4996, %v4998
      %v5018 = vsel %vm2471, %v4998, %v5000
      %v5019 = vsel %vm2471, %v5000, %v5002
      %v5020 = vsel %vm2471, %v5004, %v5006
      %v5021 = vsel %vm2471, %v5006, %v5008
      %v5022 = vsel %vm2471, %v5008, %v5010
      %v5036 = vsel %vm718, %v4975, 0
      %v5039 = vsel %vm718, %v4976, 0
      %v5042 = vsel %vm718, %v4977, 0
      %v5045 = vsel %vm718, %v4978, 0
      %5047 = vmatprep.subr.mxu0 0.0
      %5048 = vmatpush1.msra.mxu0 0.0
      %5049 = vmatprep.subr.mxu0 0.0
      %5050 = vmatpush1.msra.mxu0 0.0
      %5051 = vmatprep.subr.mxu0 0.0
      %5052 = vmatpush1.msra.mxu0 0.0
      %5053 = vmatprep.subr.mxu0 0.0
      %5054 = vmatpush1.msra.mxu0 0.0
      %5055 = vmatprep.subr.mxu0 0.0
      %5056 = vmatpush1.msra.mxu0 0.0
      %5057 = vmatprep.subr.mxu0 0.0
      %5058 = vmatpush1.msra.mxu0 0.0
      %5059 = vmatprep.subr.mxu0 0.0
      %5060 = vmatpush1.msra.mxu0 0.0
      %5061 = vmatprep.subr.mxu0 0.0
      %5062 = vmatpush1.msra.mxu0 0.0
      %5063 = vmatprep.subr.mxu0 0.0
      %5064 = vmatpush1.msra.mxu0 0.0
      %5065 = vmatprep.subr.mxu0 0.0
      %5066 = vmatpush1.msra.mxu0 0.0
      %5067 = vmatprep.subr.mxu0 0.0
      %5068 = vmatpush1.msra.mxu0 0.0
      %5069 = vmatprep.subr.mxu0 0.0
      %5070 = vmatpush1.msra.mxu0 0.0
      %5071 = vmatprep.subr.mxu0 %v5021
      %5072 = vmatpush1.msra.mxu0 %v5020
      %5073 = vmatprep.subr.mxu0 %v5018
      %5074 = vmatpush1.msra.mxu0 %v5017
      %5075 = vmatprep.subr.mxu0 %v5015
      %5076 = vmatpush1.msra.mxu0 %v5014
      %5077 = vmatprep.subr.mxu0 %v5012
      %5078 = vmatpush1.msra.mxu0 %v5011
      %5079 = vmatprep.subr.mxu0 0.0
      %5080 = vmatpush2.msra.mxu0 0.0
      %5081 = vmatprep.subr.mxu0 0.0
      %5082 = vmatpush2.msra.mxu0 0.0
      %5083 = vmatprep.subr.mxu0 0.0
      %5084 = vmatpush2.msra.mxu0 0.0
      %5085 = vmatprep.subr.mxu0 0.0
      %5086 = vmatpush2.msra.mxu0 0.0
      %5087 = vmatprep.subr.mxu0 0.0
      %5088 = vmatpush2.msra.mxu0 0.0
      %5089 = vmatprep.subr.mxu0 0.0
      %5090 = vmatpush2.msra.mxu0 0.0
      %5091 = vmatprep.subr.mxu0 0.0
      %5092 = vmatpush2.msra.mxu0 0.0
      %5093 = vmatprep.subr.mxu0 0.0
      %5094 = vmatpush2.msra.mxu0 0.0
      %5095 = vmatprep.subr.mxu0 0.0
      %5096 = vmatpush2.msra.mxu0 0.0
      %5097 = vmatprep.subr.mxu0 0.0
      %5098 = vmatpush2.msra.mxu0 0.0
      %5099 = vmatprep.subr.mxu0 0.0
      %5100 = vmatpush2.msra.mxu0 0.0
      %5101 = vmatprep.subr.mxu0 0.0
      %5102 = vmatpush2.msra.mxu0 0.0
      %5103 = vmatprep.subr.mxu0 0.0
      %5104 = vmatpush2.msra.mxu0 0.0
      %5105 = vmatprep.subr.mxu0 0.0
      %5106 = vmatpush2.msra.mxu0 0.0
      %5107 = vmatprep.subr.mxu0 0.0
      %5108 = vmatpush2.msra.mxu0 0.0
      %5109 = vmatprep.subr.mxu0 0.0
      %5110 = vmatpush2.msra.mxu0 0.0
      %5111 = vmatprep.mubr.f32.mxu0 0.0
      %5112 = vmatmul.mubr.f32.gmra.mxu0 %v5036
      %v5113 = vpop.f32.mrf.mxu0
      %v5114 = vadd.f32 0.0, %v5113
      %v5115 = vpop.f32.mrf.mxu0
      %v5116 = vadd.f32 0.0, %v5115
      %5117 = vmatprep.mubr.f32.mxu0 0.0
      %5118 = vmatmul.mubr.f32.gmra.mxu0 %v5039
      %v5119 = vpop.f32.mrf.mxu0
      %v5120 = vadd.f32 0.0, %v5119
      %v5121 = vpop.f32.mrf.mxu0
      %v5122 = vadd.f32 0.0, %v5121
      %5123 = vmatprep.mubr.f32.mxu0 0.0
      %5124 = vmatmul.mubr.f32.gmra.mxu0 %v5042
      %v5125 = vpop.f32.mrf.mxu0
      %v5126 = vadd.f32 0.0, %v5125
      %v5127 = vpop.f32.mrf.mxu0
      %v5128 = vadd.f32 0.0, %v5127
      %5129 = vmatprep.mubr.f32.mxu0 0.0
      %5130 = vmatmul.mubr.f32.gmra.mxu0 %v5045
      %v5131 = vpop.f32.mrf.mxu0
      %v5132 = vadd.f32 0.0, %v5131
      %v5133 = vpop.f32.mrf.mxu0
      %v5134 = vadd.f32 0.0, %v5133
      %5135 = vdwg.mxu0
      %5136 = vmatprep.subr.mxu0 0.0
      %5137 = vmatpush1.msra.mxu0 0.0
      %5138 = vmatprep.subr.mxu0 0.0
      %5139 = vmatpush1.msra.mxu0 0.0
      %5140 = vmatprep.subr.mxu0 0.0
      %5141 = vmatpush1.msra.mxu0 0.0
      %5142 = vmatprep.subr.mxu0 0.0
      %5143 = vmatpush1.msra.mxu0 0.0
      %5144 = vmatprep.subr.mxu0 0.0
      %5145 = vmatpush1.msra.mxu0 0.0
      %5146 = vmatprep.subr.mxu0 0.0
      %5147 = vmatpush1.msra.mxu0 0.0
      %5148 = vmatprep.subr.mxu0 0.0
      %5149 = vmatpush1.msra.mxu0 0.0
      %5150 = vmatprep.subr.mxu0 0.0
      %5151 = vmatpush1.msra.mxu0 0.0
      %5152 = vmatprep.subr.mxu0 0.0
      %5153 = vmatpush1.msra.mxu0 0.0
      %5154 = vmatprep.subr.mxu0 0.0
      %5155 = vmatpush1.msra.mxu0 0.0
      %5156 = vmatprep.subr.mxu0 0.0
      %5157 = vmatpush1.msra.mxu0 0.0
      %5158 = vmatprep.subr.mxu0 0.0
      %5159 = vmatpush1.msra.mxu0 0.0
      %5160 = vmatprep.subr.mxu0 0.0
      %5161 = vmatpush1.msra.mxu0 %v5022
      %5162 = vmatprep.subr.mxu0 0.0
      %5163 = vmatpush1.msra.mxu0 %v5019
      %5164 = vmatprep.subr.mxu0 0.0
      %5165 = vmatpush1.msra.mxu0 %v5016
      %5166 = vmatprep.subr.mxu0 0.0
      %5167 = vmatpush1.msra.mxu0 %v5013
      %5168 = vmatprep.subr.mxu0 0.0
      %5169 = vmatpush2.msra.mxu0 0.0
      %5170 = vmatprep.subr.mxu0 0.0
      %5171 = vmatpush2.msra.mxu0 0.0
      %5172 = vmatprep.subr.mxu0 0.0
      %5173 = vmatpush2.msra.mxu0 0.0
      %5174 = vmatprep.subr.mxu0 0.0
      %5175 = vmatpush2.msra.mxu0 0.0
      %5176 = vmatprep.subr.mxu0 0.0
      %5177 = vmatpush2.msra.mxu0 0.0
      %5178 = vmatprep.subr.mxu0 0.0
      %5179 = vmatpush2.msra.mxu0 0.0
      %5180 = vmatprep.subr.mxu0 0.0
      %5181 = vmatpush2.msra.mxu0 0.0
      %5182 = vmatprep.subr.mxu0 0.0
      %5183 = vmatpush2.msra.mxu0 0.0
      %5184 = vmatprep.subr.mxu0 0.0
      %5185 = vmatpush2.msra.mxu0 0.0
      %5186 = vmatprep.subr.mxu0 0.0
      %5187 = vmatpush2.msra.mxu0 0.0
      %5188 = vmatprep.subr.mxu0 0.0
      %5189 = vmatpush2.msra.mxu0 0.0
      %5190 = vmatprep.subr.mxu0 0.0
      %5191 = vmatpush2.msra.mxu0 0.0
      %5192 = vmatprep.subr.mxu0 0.0
      %5193 = vmatpush2.msra.mxu0 0.0
      %5194 = vmatprep.subr.mxu0 0.0
      %5195 = vmatpush2.msra.mxu0 0.0
      %5196 = vmatprep.subr.mxu0 0.0
      %5197 = vmatpush2.msra.mxu0 0.0
      %5198 = vmatprep.subr.mxu0 0.0
      %5199 = vmatpush2.msra.mxu0 0.0
      %5200 = vmatprep.mubr.f32.mxu0 0.0
      %5201 = vmatmul.mubr.f32.gmra.mxu0 %v5036
      %v5202 = vpop.f32.mrf.mxu0
      %v5203 = vadd.f32 0.0, %v5202
      %v5204 = vpop.f32.mrf.mxu0
      %5205 = vmatprep.mubr.f32.mxu0 0.0
      %5206 = vmatmul.mubr.f32.gmra.mxu0 %v5039
      %v5207 = vpop.f32.mrf.mxu0
      %v5208 = vadd.f32 0.0, %v5207
      %v5209 = vpop.f32.mrf.mxu0
      %5210 = vmatprep.mubr.f32.mxu0 0.0
      %5211 = vmatmul.mubr.f32.gmra.mxu0 %v5042
      %v5212 = vpop.f32.mrf.mxu0
      %v5213 = vadd.f32 0.0, %v5212
      %v5214 = vpop.f32.mrf.mxu0
      %5215 = vmatprep.mubr.f32.mxu0 0.0
      %5216 = vmatmul.mubr.f32.gmra.mxu0 %v5045
      %v5217 = vpop.f32.mrf.mxu0
      %v5218 = vadd.f32 0.0, %v5217
      %v5219 = vpop.f32.mrf.mxu0
      %5220 = vdwg.mxu0
      %v5221 = vadd.f32 %v4962, %v5114
      %v5222 = vadd.f32 %v4963, %v5116
      %v5223 = vadd.f32 %v4964, %v5203
      %v5224 = vadd.f32 %v4965, %v5120
      %v5225 = vadd.f32 %v4966, %v5122
      %v5226 = vadd.f32 %v4967, %v5208
      %v5227 = vadd.f32 %v4968, %v5126
      %v5228 = vadd.f32 %v4969, %v5128
      %v5229 = vadd.f32 %v4970, %v5213
      %v5230 = vadd.f32 %v4971, %v5132
      %v5231 = vadd.f32 %v4972, %v5134
      %v5232 = vadd.f32 %v4973, %v5218
      %s5233 = scalar_lea.vmem %s2, 256
      %v5234 = vld [vmem:[%s5233] sm:$0xff]
      %v5235 = vld [vmem:[%s5233 + $0x8] sm:$0xff]
      %v5236 = vld [vmem:[%s5233 + $0x10] sm:$0xff]
      %v5237 = vld [vmem:[%s5233 + $0x18] sm:$0xff]
      %5238 = vrot.lane.b32.xlu0 %v3906, 73
      %v5239 = vpop.permute.xlu0 %5238
      %5240 = vrot.lane.b32.xlu0 %v3907, 73
      %v5241 = vpop.permute.xlu0 %5240
      %5242 = vrot.lane.b32.xlu0 %v3908, 73
      %v5243 = vpop.permute.xlu0 %5242
      %5244 = vrot.lane.b32.xlu0 %v3909, 73
      %v5245 = vpop.permute.xlu0 %5244
      %5246 = vrot.lane.b32.xlu0 %v3910, 73
      %v5247 = vpop.permute.xlu0 %5246
      %5248 = vrot.lane.b32.xlu0 %v3911, 73
      %v5249 = vpop.permute.xlu0 %5248
      %5250 = vrot.lane.b32.xlu0 %v3912, 73
      %v5251 = vpop.permute.xlu0 %5250
      %5252 = vrot.lane.b32.xlu0 %v3913, 73
      %v5253 = vpop.permute.xlu0 %5252
      %5254 = vrot.lane.b32.xlu0 %v3914, 73
      %v5255 = vpop.permute.xlu0 %5254
      %5256 = vrot.lane.b32.xlu0 %v3915, 73
      %v5257 = vpop.permute.xlu0 %5256
      %5258 = vrot.lane.b32.xlu0 %v3916, 73
      %v5259 = vpop.permute.xlu0 %5258
      %5260 = vrot.lane.b32.xlu0 %v3917, 73
      %v5261 = vpop.permute.xlu0 %5260
      %5262 = vrot.lane.b32.xlu0 %v3918, 73
      %v5263 = vpop.permute.xlu0 %5262
      %5264 = vrot.lane.b32.xlu0 %v3919, 73
      %v5265 = vpop.permute.xlu0 %5264
      %5266 = vrot.lane.b32.xlu0 %v3920, 73
      %v5267 = vpop.permute.xlu0 %5266
      %5268 = vrot.lane.b32.xlu0 %v3921, 73
      %v5269 = vpop.permute.xlu0 %5268
      %v5270 = vsel %vm2708, %v5239, %v5241
      %v5271 = vsel %vm2708, %v5241, %v5243
      %v5272 = vsel %vm2708, %v5243, %v5245
      %v5273 = vsel %vm2708, %v5247, %v5249
      %v5274 = vsel %vm2708, %v5249, %v5251
      %v5275 = vsel %vm2708, %v5251, %v5253
      %v5276 = vsel %vm2708, %v5255, %v5257
      %v5277 = vsel %vm2708, %v5257, %v5259
      %v5278 = vsel %vm2708, %v5259, %v5261
      %v5279 = vsel %vm2708, %v5263, %v5265
      %v5280 = vsel %vm2708, %v5265, %v5267
      %v5281 = vsel %vm2708, %v5267, %v5269
      %v5295 = vsel %vm718, %v5234, 0
      %v5298 = vsel %vm718, %v5235, 0
      %v5301 = vsel %vm718, %v5236, 0
      %v5304 = vsel %vm718, %v5237, 0
      %5306 = vmatprep.subr.mxu0 0.0
      %5307 = vmatpush1.msra.mxu0 0.0
      %5308 = vmatprep.subr.mxu0 0.0
      %5309 = vmatpush1.msra.mxu0 0.0
      %5310 = vmatprep.subr.mxu0 0.0
      %5311 = vmatpush1.msra.mxu0 0.0
      %5312 = vmatprep.subr.mxu0 0.0
      %5313 = vmatpush1.msra.mxu0 0.0
      %5314 = vmatprep.subr.mxu0 0.0
      %5315 = vmatpush1.msra.mxu0 0.0
      %5316 = vmatprep.subr.mxu0 0.0
      %5317 = vmatpush1.msra.mxu0 0.0
      %5318 = vmatprep.subr.mxu0 0.0
      %5319 = vmatpush1.msra.mxu0 0.0
      %5320 = vmatprep.subr.mxu0 0.0
      %5321 = vmatpush1.msra.mxu0 0.0
      %5322 = vmatprep.subr.mxu0 0.0
      %5323 = vmatpush1.msra.mxu0 0.0
      %5324 = vmatprep.subr.mxu0 0.0
      %5325 = vmatpush1.msra.mxu0 0.0
      %5326 = vmatprep.subr.mxu0 0.0
      %5327 = vmatpush1.msra.mxu0 0.0
      %5328 = vmatprep.subr.mxu0 0.0
      %5329 = vmatpush1.msra.mxu0 0.0
      %5330 = vmatprep.subr.mxu0 %v5280
      %5331 = vmatpush1.msra.mxu0 %v5279
      %5332 = vmatprep.subr.mxu0 %v5277
      %5333 = vmatpush1.msra.mxu0 %v5276
      %5334 = vmatprep.subr.mxu0 %v5274
      %5335 = vmatpush1.msra.mxu0 %v5273
      %5336 = vmatprep.subr.mxu0 %v5271
      %5337 = vmatpush1.msra.mxu0 %v5270
      %5338 = vmatprep.subr.mxu0 0.0
      %5339 = vmatpush2.msra.mxu0 0.0
      %5340 = vmatprep.subr.mxu0 0.0
      %5341 = vmatpush2.msra.mxu0 0.0
      %5342 = vmatprep.subr.mxu0 0.0
      %5343 = vmatpush2.msra.mxu0 0.0
      %5344 = vmatprep.subr.mxu0 0.0
      %5345 = vmatpush2.msra.mxu0 0.0
      %5346 = vmatprep.subr.mxu0 0.0
      %5347 = vmatpush2.msra.mxu0 0.0
      %5348 = vmatprep.subr.mxu0 0.0
      %5349 = vmatpush2.msra.mxu0 0.0
      %5350 = vmatprep.subr.mxu0 0.0
      %5351 = vmatpush2.msra.mxu0 0.0
      %5352 = vmatprep.subr.mxu0 0.0
      %5353 = vmatpush2.msra.mxu0 0.0
      %5354 = vmatprep.subr.mxu0 0.0
      %5355 = vmatpush2.msra.mxu0 0.0
      %5356 = vmatprep.subr.mxu0 0.0
      %5357 = vmatpush2.msra.mxu0 0.0
      %5358 = vmatprep.subr.mxu0 0.0
      %5359 = vmatpush2.msra.mxu0 0.0
      %5360 = vmatprep.subr.mxu0 0.0
      %5361 = vmatpush2.msra.mxu0 0.0
      %5362 = vmatprep.subr.mxu0 0.0
      %5363 = vmatpush2.msra.mxu0 0.0
      %5364 = vmatprep.subr.mxu0 0.0
      %5365 = vmatpush2.msra.mxu0 0.0
      %5366 = vmatprep.subr.mxu0 0.0
      %5367 = vmatpush2.msra.mxu0 0.0
      %5368 = vmatprep.subr.mxu0 0.0
      %5369 = vmatpush2.msra.mxu0 0.0
      %5370 = vmatprep.mubr.f32.mxu0 0.0
      %5371 = vmatmul.mubr.f32.gmra.mxu0 %v5295
      %v5372 = vpop.f32.mrf.mxu0
      %v5373 = vadd.f32 0.0, %v5372
      %v5374 = vpop.f32.mrf.mxu0
      %v5375 = vadd.f32 0.0, %v5374
      %5376 = vmatprep.mubr.f32.mxu0 0.0
      %5377 = vmatmul.mubr.f32.gmra.mxu0 %v5298
      %v5378 = vpop.f32.mrf.mxu0
      %v5379 = vadd.f32 0.0, %v5378
      %v5380 = vpop.f32.mrf.mxu0
      %v5381 = vadd.f32 0.0, %v5380
      %5382 = vmatprep.mubr.f32.mxu0 0.0
      %5383 = vmatmul.mubr.f32.gmra.mxu0 %v5301
      %v5384 = vpop.f32.mrf.mxu0
      %v5385 = vadd.f32 0.0, %v5384
      %v5386 = vpop.f32.mrf.mxu0
      %v5387 = vadd.f32 0.0, %v5386
      %5388 = vmatprep.mubr.f32.mxu0 0.0
      %5389 = vmatmul.mubr.f32.gmra.mxu0 %v5304
      %v5390 = vpop.f32.mrf.mxu0
      %v5391 = vadd.f32 0.0, %v5390
      %v5392 = vpop.f32.mrf.mxu0
      %v5393 = vadd.f32 0.0, %v5392
      %5394 = vdwg.mxu0
      %5395 = vmatprep.subr.mxu0 0.0
      %5396 = vmatpush1.msra.mxu0 0.0
      %5397 = vmatprep.subr.mxu0 0.0
      %5398 = vmatpush1.msra.mxu0 0.0
      %5399 = vmatprep.subr.mxu0 0.0
      %5400 = vmatpush1.msra.mxu0 0.0
      %5401 = vmatprep.subr.mxu0 0.0
      %5402 = vmatpush1.msra.mxu0 0.0
      %5403 = vmatprep.subr.mxu0 0.0
      %5404 = vmatpush1.msra.mxu0 0.0
      %5405 = vmatprep.subr.mxu0 0.0
      %5406 = vmatpush1.msra.mxu0 0.0
      %5407 = vmatprep.subr.mxu0 0.0
      %5408 = vmatpush1.msra.mxu0 0.0
      %5409 = vmatprep.subr.mxu0 0.0
      %5410 = vmatpush1.msra.mxu0 0.0
      %5411 = vmatprep.subr.mxu0 0.0
      %5412 = vmatpush1.msra.mxu0 0.0
      %5413 = vmatprep.subr.mxu0 0.0
      %5414 = vmatpush1.msra.mxu0 0.0
      %5415 = vmatprep.subr.mxu0 0.0
      %5416 = vmatpush1.msra.mxu0 0.0
      %5417 = vmatprep.subr.mxu0 0.0
      %5418 = vmatpush1.msra.mxu0 0.0
      %5419 = vmatprep.subr.mxu0 0.0
      %5420 = vmatpush1.msra.mxu0 %v5281
      %5421 = vmatprep.subr.mxu0 0.0
      %5422 = vmatpush1.msra.mxu0 %v5278
      %5423 = vmatprep.subr.mxu0 0.0
      %5424 = vmatpush1.msra.mxu0 %v5275
      %5425 = vmatprep.subr.mxu0 0.0
      %5426 = vmatpush1.msra.mxu0 %v5272
      %5427 = vmatprep.subr.mxu0 0.0
      %5428 = vmatpush2.msra.mxu0 0.0
      %5429 = vmatprep.subr.mxu0 0.0
      %5430 = vmatpush2.msra.mxu0 0.0
      %5431 = vmatprep.subr.mxu0 0.0
      %5432 = vmatpush2.msra.mxu0 0.0
      %5433 = vmatprep.subr.mxu0 0.0
      %5434 = vmatpush2.msra.mxu0 0.0
      %5435 = vmatprep.subr.mxu0 0.0
      %5436 = vmatpush2.msra.mxu0 0.0
      %5437 = vmatprep.subr.mxu0 0.0
      %5438 = vmatpush2.msra.mxu0 0.0
      %5439 = vmatprep.subr.mxu0 0.0
      %5440 = vmatpush2.msra.mxu0 0.0
      %5441 = vmatprep.subr.mxu0 0.0
      %5442 = vmatpush2.msra.mxu0 0.0
      %5443 = vmatprep.subr.mxu0 0.0
      %5444 = vmatpush2.msra.mxu0 0.0
      %5445 = vmatprep.subr.mxu0 0.0
      %5446 = vmatpush2.msra.mxu0 0.0
      %5447 = vmatprep.subr.mxu0 0.0
      %5448 = vmatpush2.msra.mxu0 0.0
      %5449 = vmatprep.subr.mxu0 0.0
      %5450 = vmatpush2.msra.mxu0 0.0
      %5451 = vmatprep.subr.mxu0 0.0
      %5452 = vmatpush2.msra.mxu0 0.0
      %5453 = vmatprep.subr.mxu0 0.0
      %5454 = vmatpush2.msra.mxu0 0.0
      %5455 = vmatprep.subr.mxu0 0.0
      %5456 = vmatpush2.msra.mxu0 0.0
      %5457 = vmatprep.subr.mxu0 0.0
      %5458 = vmatpush2.msra.mxu0 0.0
      %5459 = vmatprep.mubr.f32.mxu0 0.0
      %5460 = vmatmul.mubr.f32.gmra.mxu0 %v5295
      %v5461 = vpop.f32.mrf.mxu0
      %v5462 = vadd.f32 0.0, %v5461
      %v5463 = vpop.f32.mrf.mxu0
      %5464 = vmatprep.mubr.f32.mxu0 0.0
      %5465 = vmatmul.mubr.f32.gmra.mxu0 %v5298
      %v5466 = vpop.f32.mrf.mxu0
      %v5467 = vadd.f32 0.0, %v5466
      %v5468 = vpop.f32.mrf.mxu0
      %5469 = vmatprep.mubr.f32.mxu0 0.0
      %5470 = vmatmul.mubr.f32.gmra.mxu0 %v5301
      %v5471 = vpop.f32.mrf.mxu0
      %v5472 = vadd.f32 0.0, %v5471
      %v5473 = vpop.f32.mrf.mxu0
      %5474 = vmatprep.mubr.f32.mxu0 0.0
      %5475 = vmatmul.mubr.f32.gmra.mxu0 %v5304
      %v5476 = vpop.f32.mrf.mxu0
      %v5477 = vadd.f32 0.0, %v5476
      %v5478 = vpop.f32.mrf.mxu0
      %5479 = vdwg.mxu0
      %v5480 = vadd.f32 %v5221, %v5373
      %v5481 = vadd.f32 %v5222, %v5375
      %v5482 = vadd.f32 %v5223, %v5462
      %v5483 = vadd.f32 %v5224, %v5379
      %v5484 = vadd.f32 %v5225, %v5381
      %v5485 = vadd.f32 %v5226, %v5467
      %v5486 = vadd.f32 %v5227, %v5385
      %v5487 = vadd.f32 %v5228, %v5387
      %v5488 = vadd.f32 %v5229, %v5472
      %v5489 = vadd.f32 %v5230, %v5391
      %v5490 = vadd.f32 %v5231, %v5393
      %v5491 = vadd.f32 %v5232, %v5477
      %vm5492 = vcmp.gt.f32.partialorder %v5480, 0.0
      %vm5493 = vcmp.gt.f32.partialorder %v5481, 0.0
      %vm5494 = vcmp.gt.f32.partialorder %v5482, 0.0
      %vm5495 = vcmp.gt.f32.partialorder %v5483, 0.0
      %vm5496 = vcmp.gt.f32.partialorder %v5484, 0.0
      %vm5497 = vcmp.gt.f32.partialorder %v5485, 0.0
      %vm5498 = vcmp.gt.f32.partialorder %v5486, 0.0
      %vm5499 = vcmp.gt.f32.partialorder %v5487, 0.0
      %vm5500 = vcmp.gt.f32.partialorder %v5488, 0.0
      %vm5501 = vcmp.gt.f32.partialorder %v5489, 0.0
      %vm5502 = vcmp.gt.f32.partialorder %v5490, 0.0
      %vm5503 = vcmp.gt.f32.partialorder %v5491, 0.0
      %v5504 = vmul.f32 %v5480, 0.2
      %v5505 = vmul.f32 %v5481, 0.2
      %v5506 = vmul.f32 %v5482, 0.2
      %v5507 = vmul.f32 %v5483, 0.2
      %v5508 = vmul.f32 %v5484, 0.2
      %v5509 = vmul.f32 %v5485, 0.2
      %v5510 = vmul.f32 %v5486, 0.2
      %v5511 = vmul.f32 %v5487, 0.2
      %v5512 = vmul.f32 %v5488, 0.2
      %v5513 = vmul.f32 %v5489, 0.2
      %v5514 = vmul.f32 %v5490, 0.2
      %v5515 = vmul.f32 %v5491, 0.2
      %v5516 = vsel %vm5492, %v5480, %v5504
      %v5517 = vsel %vm5493, %v5481, %v5505
      %v5518 = vsel %vm5494, %v5482, %v5506
      %v5519 = vsel %vm5495, %v5483, %v5507
      %v5520 = vsel %vm5496, %v5484, %v5508
      %v5521 = vsel %vm5497, %v5485, %v5509
      %v5522 = vsel %vm5498, %v5486, %v5510
      %v5523 = vsel %vm5499, %v5487, %v5511
      %v5524 = vsel %vm5500, %v5488, %v5512
      %v5525 = vsel %vm5501, %v5489, %v5513
      %v5526 = vsel %vm5502, %v5490, %v5514
      %v5527 = vsel %vm5503, %v5491, %v5515
      %v5528 = vld [vmem:[%s8] sm:$0x7]
      %v5529 = vld [vmem:[%s7] sm:$0x7]
      %vm5530 = vcmp.ge.s32.totalorder %v5528, 1
      %vm5531 = vcmp.le.s32.totalorder %v5528, 16
      %vm5532 = vmand %vm5530, %vm5531
      %v5533 = vstv %s3121
      %vm5534 = vcmp.ge.s32.totalorder %v5529, %v5533
      %vm5535 = vmand %vm5532, %vm5534
      %s5536 = ssub.s32 18, %s356
      %v5537 = vstv %s5536
      %vm5538 = vcmp.lt.s32.totalorder %v5529, %v5537
      %vm5539 = vmand %vm5535, %vm5538
      %v5540 = vsel %vm5539, 1, 0
      %v5541 = vlaneseq
      %v5542 = vshrl.u32 %v5541, 7
      %v5543 = vsub.s32 0, %v5542
      %v5544 = vrot.slane %v5540, %v5543
      %v5545 = vlaneseq
      %v5546 = vshrl.u32 %v5545, 7
      %v5547 = vsub.s32 1, %v5546
      %v5548 = vrot.slane %v5540, %v5547
      %v5549 = vlaneseq
      %v5550 = vshrl.u32 %v5549, 7
      %v5551 = vsub.s32 2, %v5550
      %v5552 = vrot.slane %v5540, %v5551
      %vm5553 = vcmp.eq.s32.totalorder %v5544, 1
      %vm5554 = vcmp.eq.s32.totalorder %v5548, 1
      %vm5555 = vcmp.eq.s32.totalorder %v5552, 1
      %v5556 = vsel %vm5553, %v5516, 0.0
      %v5557 = vsel %vm5554, %v5517, 0.0
      %v5558 = vsel %vm5555, %v5518, 0.0
      %v5559 = vsel %vm5553, %v5519, 0.0
      %v5560 = vsel %vm5554, %v5520, 0.0
      %v5561 = vsel %vm5555, %v5521, 0.0
      %v5562 = vsel %vm5553, %v5522, 0.0
      %v5563 = vsel %vm5554, %v5523, 0.0
      %v5564 = vsel %vm5555, %v5524, 0.0
      %v5565 = vsel %vm5553, %v5525, 0.0
      %v5566 = vsel %vm5554, %v5526, 0.0
      %v5567 = vsel %vm5555, %v5527, 0.0
      %5580 = vrot.lane.b32.xlu0 %v5556, 18
      %v5581 = vpop.permute.xlu0 %5580
      %5582 = vrot.lane.b32.xlu0 %v5557, 18
      %v5583 = vpop.permute.xlu0 %5582
      %5584 = vrot.lane.b32.xlu0 %v5558, 18
      %v5585 = vpop.permute.xlu0 %5584
      %5586 = vrot.lane.b32.xlu0 %v5559, 18
      %v5587 = vpop.permute.xlu0 %5586
      %5588 = vrot.lane.b32.xlu0 %v5560, 18
      %v5589 = vpop.permute.xlu0 %5588
      %5590 = vrot.lane.b32.xlu0 %v5561, 18
      %v5591 = vpop.permute.xlu0 %5590
      %5592 = vrot.lane.b32.xlu0 %v5562, 18
      %v5593 = vpop.permute.xlu0 %5592
      %5594 = vrot.lane.b32.xlu0 %v5563, 18
      %v5595 = vpop.permute.xlu0 %5594
      %5596 = vrot.lane.b32.xlu0 %v5564, 18
      %v5597 = vpop.permute.xlu0 %5596
      %5598 = vrot.lane.b32.xlu0 %v5565, 18
      %v5599 = vpop.permute.xlu0 %5598
      %5600 = vrot.lane.b32.xlu0 %v5566, 18
      %v5601 = vpop.permute.xlu0 %5600
      %5602 = vrot.lane.b32.xlu0 %v5567, 18
      %v5603 = vpop.permute.xlu0 %5602
      %v5604 = vsel %vm688, %v5581, %v5583
      %v5605 = vsel %vm688, %v5583, %v5585
      %v5606 = vsel %vm688, %v5587, %v5589
      %v5607 = vsel %vm688, %v5589, %v5591
      %v5608 = vsel %vm688, %v5593, %v5595
      %v5609 = vsel %vm688, %v5595, %v5597
      %v5610 = vsel %vm688, %v5599, %v5601
      %v5611 = vsel %vm688, %v5601, %v5603
      %5624 = vst.msk [vmem:[#allocation4] sm:$0xff] %vm3099, %v5581
      %5625 = vst [vmem:[#allocation4 + $0x8] sm:$0xff] %v5604
      %5626 = vst.msk [vmem:[#allocation4 + $0x10] sm:$0xff] %vm728, %v5605
      %5627 = vst.msk [vmem:[#allocation4 + $0x20] sm:$0xff] %vm3099, %v5587
      %5628 = vst [vmem:[#allocation4 + $0x28] sm:$0xff] %v5606
      %5629 = vst.msk [vmem:[#allocation4 + $0x30] sm:$0xff] %vm728, %v5607
      %5630 = vst.msk [vmem:[#allocation4 + $0x40] sm:$0xff] %vm3099, %v5593
      %5631 = vst [vmem:[#allocation4 + $0x48] sm:$0xff] %v5608
      %5632 = vst.msk [vmem:[#allocation4 + $0x50] sm:$0xff] %vm728, %v5609
      %5633 = vst.msk [vmem:[#allocation4 + $0x60] sm:$0xff] %vm3099, %v5599
      %5634 = vst [vmem:[#allocation4 + $0x68] sm:$0xff] %v5610
      %5635 = vst.msk [vmem:[#allocation4 + $0x70] sm:$0xff] %vm728, %v5611
      %s5636 = scalar_lea.vmem %s5, 64
      %v5637 = vld [vmem:[%s5636] sm:$0xff]
      %v5638 = vld [vmem:[%s5636 + $0x8] sm:$0xff]
      %v5639 = vld [vmem:[%s5636 + $0x10] sm:$0xff]
      %v5640 = vld [vmem:[%s5636 + $0x18] sm:$0xff]
      %s5641 = ssub.s32 1, %s356
      %5643 = vset.pattern.permute.xlu0 0
      %5644 = vperm.xlu0 %5643, %v5637
      %v5645 = vpop.permute.xlu0 %5644
      %5648 = vset.pattern.permute.xlu0 0
      %5649 = vperm.xlu0 %5648, %v5638
      %v5650 = vpop.permute.xlu0 %5649
      %5653 = vset.pattern.permute.xlu0 0
      %5654 = vperm.xlu0 %5653, %v5639
      %v5655 = vpop.permute.xlu0 %5654
      %5658 = vset.pattern.permute.xlu0 0
      %5659 = vperm.xlu0 %5658, %v5640
      %v5660 = vpop.permute.xlu0 %5659
      %v5662 = vld [vmem:[#allocation4] sm:$0xff]
      %v5663 = vld [vmem:[#allocation4 + $0x8] sm:$0xff]
      %v5664 = vld [vmem:[#allocation4 + $0x10] sm:$0xff]
      %v5665 = vld [vmem:[#allocation4 + $0x20] sm:$0xff]
      %v5666 = vld [vmem:[#allocation4 + $0x28] sm:$0xff]
      %v5667 = vld [vmem:[#allocation4 + $0x30] sm:$0xff]
      %v5668 = vld [vmem:[#allocation4 + $0x40] sm:$0xff]
      %v5669 = vld [vmem:[#allocation4 + $0x48] sm:$0xff]
      %v5670 = vld [vmem:[#allocation4 + $0x50] sm:$0xff]
      %v5671 = vld [vmem:[#allocation4 + $0x60] sm:$0xff]
      %v5672 = vld [vmem:[#allocation4 + $0x68] sm:$0xff]
      %v5673 = vld [vmem:[#allocation4 + $0x70] sm:$0xff]
      %v5674 = vld [vmem:[%s3] sm:$0xff]
      %v5675 = vld [vmem:[%s3 + $0x8] sm:$0xff]
      %v5676 = vld [vmem:[%s3 + $0x10] sm:$0xff]
      %v5677 = vld [vmem:[%s3 + $0x18] sm:$0xff]
      %5690 = vrot.lane.b32.xlu0 %v5662, 111
      %v5691 = vpop.permute.xlu0 %5690
      %5692 = vrot.lane.b32.xlu0 %v5663, 111
      %v5693 = vpop.permute.xlu0 %5692
      %5694 = vrot.lane.b32.xlu0 %v5664, 111
      %v5695 = vpop.permute.xlu0 %5694
      %5696 = vrot.lane.b32.xlu0 %v5665, 111
      %v5697 = vpop.permute.xlu0 %5696
      %5698 = vrot.lane.b32.xlu0 %v5666, 111
      %v5699 = vpop.permute.xlu0 %5698
      %5700 = vrot.lane.b32.xlu0 %v5667, 111
      %v5701 = vpop.permute.xlu0 %5700
      %5702 = vrot.lane.b32.xlu0 %v5668, 111
      %v5703 = vpop.permute.xlu0 %5702
      %5704 = vrot.lane.b32.xlu0 %v5669, 111
      %v5705 = vpop.permute.xlu0 %5704
      %5706 = vrot.lane.b32.xlu0 %v5670, 111
      %v5707 = vpop.permute.xlu0 %5706
      %5708 = vrot.lane.b32.xlu0 %v5671, 111
      %v5709 = vpop.permute.xlu0 %5708
      %5710 = vrot.lane.b32.xlu0 %v5672, 111
      %v5711 = vpop.permute.xlu0 %5710
      %5712 = vrot.lane.b32.xlu0 %v5673, 111
      %v5713 = vpop.permute.xlu0 %5712
      %v5714 = vsel %vm811, %v5691, %v5693
      %v5715 = vsel %vm811, %v5693, %v5695
      %v5716 = vsel %vm811, %v5697, %v5699
      %v5717 = vsel %vm811, %v5699, %v5701
      %v5718 = vsel %vm811, %v5703, %v5705
      %v5719 = vsel %vm811, %v5705, %v5707
      %v5720 = vsel %vm811, %v5709, %v5711
      %v5721 = vsel %vm811, %v5711, %v5713
      %v5735 = vsel %vm718, %v5674, 0
      %v5738 = vsel %vm718, %v5675, 0
      %v5741 = vsel %vm718, %v5676, 0
      %v5744 = vsel %vm718, %v5677, 0
      %5746 = vmatprep.subr.mxu0 0.0
      %5747 = vmatpush1.msra.mxu0 0.0
      %5748 = vmatprep.subr.mxu0 0.0
      %5749 = vmatpush1.msra.mxu0 0.0
      %5750 = vmatprep.subr.mxu0 0.0
      %5751 = vmatpush1.msra.mxu0 0.0
      %5752 = vmatprep.subr.mxu0 0.0
      %5753 = vmatpush1.msra.mxu0 0.0
      %5754 = vmatprep.subr.mxu0 0.0
      %5755 = vmatpush1.msra.mxu0 0.0
      %5756 = vmatprep.subr.mxu0 0.0
      %5757 = vmatpush1.msra.mxu0 0.0
      %5758 = vmatprep.subr.mxu0 0.0
      %5759 = vmatpush1.msra.mxu0 0.0
      %5760 = vmatprep.subr.mxu0 0.0
      %5761 = vmatpush1.msra.mxu0 0.0
      %5762 = vmatprep.subr.mxu0 0.0
      %5763 = vmatpush1.msra.mxu0 0.0
      %5764 = vmatprep.subr.mxu0 0.0
      %5765 = vmatpush1.msra.mxu0 0.0
      %5766 = vmatprep.subr.mxu0 0.0
      %5767 = vmatpush1.msra.mxu0 0.0
      %5768 = vmatprep.subr.mxu0 0.0
      %5769 = vmatpush1.msra.mxu0 0.0
      %5770 = vmatprep.subr.mxu0 %v5721
      %5771 = vmatpush1.msra.mxu0 %v5720
      %5772 = vmatprep.subr.mxu0 %v5719
      %5773 = vmatpush1.msra.mxu0 %v5718
      %5774 = vmatprep.subr.mxu0 %v5717
      %5775 = vmatpush1.msra.mxu0 %v5716
      %5776 = vmatprep.subr.mxu0 %v5715
      %5777 = vmatpush1.msra.mxu0 %v5714
      %5778 = vmatprep.subr.mxu0 0.0
      %5779 = vmatpush2.msra.mxu0 0.0
      %5780 = vmatprep.subr.mxu0 0.0
      %5781 = vmatpush2.msra.mxu0 0.0
      %5782 = vmatprep.subr.mxu0 0.0
      %5783 = vmatpush2.msra.mxu0 0.0
      %5784 = vmatprep.subr.mxu0 0.0
      %5785 = vmatpush2.msra.mxu0 0.0
      %5786 = vmatprep.subr.mxu0 0.0
      %5787 = vmatpush2.msra.mxu0 0.0
      %5788 = vmatprep.subr.mxu0 0.0
      %5789 = vmatpush2.msra.mxu0 0.0
      %5790 = vmatprep.subr.mxu0 0.0
      %5791 = vmatpush2.msra.mxu0 0.0
      %5792 = vmatprep.subr.mxu0 0.0
      %5793 = vmatpush2.msra.mxu0 0.0
      %5794 = vmatprep.subr.mxu0 0.0
      %5795 = vmatpush2.msra.mxu0 0.0
      %5796 = vmatprep.subr.mxu0 0.0
      %5797 = vmatpush2.msra.mxu0 0.0
      %5798 = vmatprep.subr.mxu0 0.0
      %5799 = vmatpush2.msra.mxu0 0.0
      %5800 = vmatprep.subr.mxu0 0.0
      %5801 = vmatpush2.msra.mxu0 0.0
      %5802 = vmatprep.subr.mxu0 0.0
      %5803 = vmatpush2.msra.mxu0 0.0
      %5804 = vmatprep.subr.mxu0 0.0
      %5805 = vmatpush2.msra.mxu0 0.0
      %5806 = vmatprep.subr.mxu0 0.0
      %5807 = vmatpush2.msra.mxu0 0.0
      %5808 = vmatprep.subr.mxu0 0.0
      %5809 = vmatpush2.msra.mxu0 0.0
      %5810 = vmatprep.mubr.f32.mxu0 0.0
      %5811 = vmatmul.mubr.f32.gmra.mxu0 %v5735
      %v5812 = vpop.f32.mrf.mxu0
      %v5813 = vadd.f32 0.0, %v5812
      %v5814 = vpop.f32.mrf.mxu0
      %v5815 = vadd.f32 0.0, %v5814
      %5816 = vmatprep.mubr.f32.mxu0 0.0
      %5817 = vmatmul.mubr.f32.gmra.mxu0 %v5738
      %v5818 = vpop.f32.mrf.mxu0
      %v5819 = vadd.f32 0.0, %v5818
      %v5820 = vpop.f32.mrf.mxu0
      %v5821 = vadd.f32 0.0, %v5820
      %5822 = vmatprep.mubr.f32.mxu0 0.0
      %5823 = vmatmul.mubr.f32.gmra.mxu0 %v5741
      %v5824 = vpop.f32.mrf.mxu0
      %v5825 = vadd.f32 0.0, %v5824
      %v5826 = vpop.f32.mrf.mxu0
      %v5827 = vadd.f32 0.0, %v5826
      %5828 = vmatprep.mubr.f32.mxu0 0.0
      %5829 = vmatmul.mubr.f32.gmra.mxu0 %v5744
      %v5830 = vpop.f32.mrf.mxu0
      %v5831 = vadd.f32 0.0, %v5830
      %v5832 = vpop.f32.mrf.mxu0
      %v5833 = vadd.f32 0.0, %v5832
      %5834 = vdwg.mxu0
      %5835 = vmatprep.subr.mxu0 0.0
      %5836 = vmatpush1.msra.mxu0 0.0
      %5837 = vmatprep.subr.mxu0 0.0
      %5838 = vmatpush1.msra.mxu0 0.0
      %5839 = vmatprep.subr.mxu0 0.0
      %5840 = vmatpush1.msra.mxu0 0.0
      %5841 = vmatprep.subr.mxu0 0.0
      %5842 = vmatpush1.msra.mxu0 0.0
      %5843 = vmatprep.subr.mxu0 0.0
      %5844 = vmatpush1.msra.mxu0 0.0
      %5845 = vmatprep.subr.mxu0 0.0
      %5846 = vmatpush1.msra.mxu0 0.0
      %5847 = vmatprep.subr.mxu0 0.0
      %5848 = vmatpush1.msra.mxu0 0.0
      %5849 = vmatprep.subr.mxu0 0.0
      %5850 = vmatpush1.msra.mxu0 0.0
      %5851 = vmatprep.subr.mxu0 0.0
      %5852 = vmatpush1.msra.mxu0 0.0
      %5853 = vmatprep.subr.mxu0 0.0
      %5854 = vmatpush1.msra.mxu0 0.0
      %5855 = vmatprep.subr.mxu0 0.0
      %5856 = vmatpush1.msra.mxu0 0.0
      %5857 = vmatprep.subr.mxu0 0.0
      %5858 = vmatpush1.msra.mxu0 0.0
      %5859 = vmatprep.subr.mxu0 0.0
      %5860 = vmatpush1.msra.mxu0 %v5713
      %5861 = vmatprep.subr.mxu0 0.0
      %5862 = vmatpush1.msra.mxu0 %v5707
      %5863 = vmatprep.subr.mxu0 0.0
      %5864 = vmatpush1.msra.mxu0 %v5701
      %5865 = vmatprep.subr.mxu0 0.0
      %5866 = vmatpush1.msra.mxu0 %v5695
      %5867 = vmatprep.subr.mxu0 0.0
      %5868 = vmatpush2.msra.mxu0 0.0
      %5869 = vmatprep.subr.mxu0 0.0
      %5870 = vmatpush2.msra.mxu0 0.0
      %5871 = vmatprep.subr.mxu0 0.0
      %5872 = vmatpush2.msra.mxu0 0.0
      %5873 = vmatprep.subr.mxu0 0.0
      %5874 = vmatpush2.msra.mxu0 0.0
      %5875 = vmatprep.subr.mxu0 0.0
      %5876 = vmatpush2.msra.mxu0 0.0
      %5877 = vmatprep.subr.mxu0 0.0
      %5878 = vmatpush2.msra.mxu0 0.0
      %5879 = vmatprep.subr.mxu0 0.0
      %5880 = vmatpush2.msra.mxu0 0.0
      %5881 = vmatprep.subr.mxu0 0.0
      %5882 = vmatpush2.msra.mxu0 0.0
      %5883 = vmatprep.subr.mxu0 0.0
      %5884 = vmatpush2.msra.mxu0 0.0
      %5885 = vmatprep.subr.mxu0 0.0
      %5886 = vmatpush2.msra.mxu0 0.0
      %5887 = vmatprep.subr.mxu0 0.0
      %5888 = vmatpush2.msra.mxu0 0.0
      %5889 = vmatprep.subr.mxu0 0.0
      %5890 = vmatpush2.msra.mxu0 0.0
      %5891 = vmatprep.subr.mxu0 0.0
      %5892 = vmatpush2.msra.mxu0 0.0
      %5893 = vmatprep.subr.mxu0 0.0
      %5894 = vmatpush2.msra.mxu0 0.0
      %5895 = vmatprep.subr.mxu0 0.0
      %5896 = vmatpush2.msra.mxu0 0.0
      %5897 = vmatprep.subr.mxu0 0.0
      %5898 = vmatpush2.msra.mxu0 0.0
      %5899 = vmatprep.mubr.f32.mxu0 0.0
      %5900 = vmatmul.mubr.f32.gmra.mxu0 %v5735
      %v5901 = vpop.f32.mrf.mxu0
      %v5902 = vadd.f32 0.0, %v5901
      %v5903 = vpop.f32.mrf.mxu0
      %5904 = vmatprep.mubr.f32.mxu0 0.0
      %5905 = vmatmul.mubr.f32.gmra.mxu0 %v5738
      %v5906 = vpop.f32.mrf.mxu0
      %v5907 = vadd.f32 0.0, %v5906
      %v5908 = vpop.f32.mrf.mxu0
      %5909 = vmatprep.mubr.f32.mxu0 0.0
      %5910 = vmatmul.mubr.f32.gmra.mxu0 %v5741
      %v5911 = vpop.f32.mrf.mxu0
      %v5912 = vadd.f32 0.0, %v5911
      %v5913 = vpop.f32.mrf.mxu0
      %5914 = vmatprep.mubr.f32.mxu0 0.0
      %5915 = vmatmul.mubr.f32.gmra.mxu0 %v5744
      %v5916 = vpop.f32.mrf.mxu0
      %v5917 = vadd.f32 0.0, %v5916
      %v5918 = vpop.f32.mrf.mxu0
      %5919 = vdwg.mxu0
      %v5920 = vadd.f32 %v5645, %v5813
      %v5921 = vadd.f32 %v5645, %v5815
      %v5922 = vadd.f32 %v5645, %v5902
      %v5923 = vadd.f32 %v5650, %v5819
      %v5924 = vadd.f32 %v5650, %v5821
      %v5925 = vadd.f32 %v5650, %v5907
      %v5926 = vadd.f32 %v5655, %v5825
      %v5927 = vadd.f32 %v5655, %v5827
      %v5928 = vadd.f32 %v5655, %v5912
      %v5929 = vadd.f32 %v5660, %v5831
      %v5930 = vadd.f32 %v5660, %v5833
      %v5931 = vadd.f32 %v5660, %v5917
      %s5932 = scalar_lea.vmem %s3, 32
      %v5933 = vld [vmem:[%s5932] sm:$0xff]
      %v5934 = vld [vmem:[%s5932 + $0x8] sm:$0xff]
      %v5935 = vld [vmem:[%s5932 + $0x10] sm:$0xff]
      %v5936 = vld [vmem:[%s5932 + $0x18] sm:$0xff]
      %5937 = vrot.lane.b32.xlu0 %v5662, 110
      %v5938 = vpop.permute.xlu0 %5937
      %5939 = vrot.lane.b32.xlu0 %v5663, 110
      %v5940 = vpop.permute.xlu0 %5939
      %5941 = vrot.lane.b32.xlu0 %v5664, 110
      %v5942 = vpop.permute.xlu0 %5941
      %5943 = vrot.lane.b32.xlu0 %v5665, 110
      %v5944 = vpop.permute.xlu0 %5943
      %5945 = vrot.lane.b32.xlu0 %v5666, 110
      %v5946 = vpop.permute.xlu0 %5945
      %5947 = vrot.lane.b32.xlu0 %v5667, 110
      %v5948 = vpop.permute.xlu0 %5947
      %5949 = vrot.lane.b32.xlu0 %v5668, 110
      %v5950 = vpop.permute.xlu0 %5949
      %5951 = vrot.lane.b32.xlu0 %v5669, 110
      %v5952 = vpop.permute.xlu0 %5951
      %5953 = vrot.lane.b32.xlu0 %v5670, 110
      %v5954 = vpop.permute.xlu0 %5953
      %5955 = vrot.lane.b32.xlu0 %v5671, 110
      %v5956 = vpop.permute.xlu0 %5955
      %5957 = vrot.lane.b32.xlu0 %v5672, 110
      %v5958 = vpop.permute.xlu0 %5957
      %5959 = vrot.lane.b32.xlu0 %v5673, 110
      %v5960 = vpop.permute.xlu0 %5959
      %v5961 = vsel %vm1049, %v5938, %v5940
      %v5962 = vsel %vm1049, %v5940, %v5942
      %v5963 = vsel %vm1049, %v5944, %v5946
      %v5964 = vsel %vm1049, %v5946, %v5948
      %v5965 = vsel %vm1049, %v5950, %v5952
      %v5966 = vsel %vm1049, %v5952, %v5954
      %v5967 = vsel %vm1049, %v5956, %v5958
      %v5968 = vsel %vm1049, %v5958, %v5960
      %v5982 = vsel %vm718, %v5933, 0
      %v5985 = vsel %vm718, %v5934, 0
      %v5988 = vsel %vm718, %v5935, 0
      %v5991 = vsel %vm718, %v5936, 0
      %5993 = vmatprep.subr.mxu0 0.0
      %5994 = vmatpush1.msra.mxu0 0.0
      %5995 = vmatprep.subr.mxu0 0.0
      %5996 = vmatpush1.msra.mxu0 0.0
      %5997 = vmatprep.subr.mxu0 0.0
      %5998 = vmatpush1.msra.mxu0 0.0
      %5999 = vmatprep.subr.mxu0 0.0
      %6000 = vmatpush1.msra.mxu0 0.0
      %6001 = vmatprep.subr.mxu0 0.0
      %6002 = vmatpush1.msra.mxu0 0.0
      %6003 = vmatprep.subr.mxu0 0.0
      %6004 = vmatpush1.msra.mxu0 0.0
      %6005 = vmatprep.subr.mxu0 0.0
      %6006 = vmatpush1.msra.mxu0 0.0
      %6007 = vmatprep.subr.mxu0 0.0
      %6008 = vmatpush1.msra.mxu0 0.0
      %6009 = vmatprep.subr.mxu0 0.0
      %6010 = vmatpush1.msra.mxu0 0.0
      %6011 = vmatprep.subr.mxu0 0.0
      %6012 = vmatpush1.msra.mxu0 0.0
      %6013 = vmatprep.subr.mxu0 0.0
      %6014 = vmatpush1.msra.mxu0 0.0
      %6015 = vmatprep.subr.mxu0 0.0
      %6016 = vmatpush1.msra.mxu0 0.0
      %6017 = vmatprep.subr.mxu0 %v5968
      %6018 = vmatpush1.msra.mxu0 %v5967
      %6019 = vmatprep.subr.mxu0 %v5966
      %6020 = vmatpush1.msra.mxu0 %v5965
      %6021 = vmatprep.subr.mxu0 %v5964
      %6022 = vmatpush1.msra.mxu0 %v5963
      %6023 = vmatprep.subr.mxu0 %v5962
      %6024 = vmatpush1.msra.mxu0 %v5961
      %6025 = vmatprep.subr.mxu0 0.0
      %6026 = vmatpush2.msra.mxu0 0.0
      %6027 = vmatprep.subr.mxu0 0.0
      %6028 = vmatpush2.msra.mxu0 0.0
      %6029 = vmatprep.subr.mxu0 0.0
      %6030 = vmatpush2.msra.mxu0 0.0
      %6031 = vmatprep.subr.mxu0 0.0
      %6032 = vmatpush2.msra.mxu0 0.0
      %6033 = vmatprep.subr.mxu0 0.0
      %6034 = vmatpush2.msra.mxu0 0.0
      %6035 = vmatprep.subr.mxu0 0.0
      %6036 = vmatpush2.msra.mxu0 0.0
      %6037 = vmatprep.subr.mxu0 0.0
      %6038 = vmatpush2.msra.mxu0 0.0
      %6039 = vmatprep.subr.mxu0 0.0
      %6040 = vmatpush2.msra.mxu0 0.0
      %6041 = vmatprep.subr.mxu0 0.0
      %6042 = vmatpush2.msra.mxu0 0.0
      %6043 = vmatprep.subr.mxu0 0.0
      %6044 = vmatpush2.msra.mxu0 0.0
      %6045 = vmatprep.subr.mxu0 0.0
      %6046 = vmatpush2.msra.mxu0 0.0
      %6047 = vmatprep.subr.mxu0 0.0
      %6048 = vmatpush2.msra.mxu0 0.0
      %6049 = vmatprep.subr.mxu0 0.0
      %6050 = vmatpush2.msra.mxu0 0.0
      %6051 = vmatprep.subr.mxu0 0.0
      %6052 = vmatpush2.msra.mxu0 0.0
      %6053 = vmatprep.subr.mxu0 0.0
      %6054 = vmatpush2.msra.mxu0 0.0
      %6055 = vmatprep.subr.mxu0 0.0
      %6056 = vmatpush2.msra.mxu0 0.0
      %6057 = vmatprep.mubr.f32.mxu0 0.0
      %6058 = vmatmul.mubr.f32.gmra.mxu0 %v5982
      %v6059 = vpop.f32.mrf.mxu0
      %v6060 = vadd.f32 0.0, %v6059
      %v6061 = vpop.f32.mrf.mxu0
      %v6062 = vadd.f32 0.0, %v6061
      %6063 = vmatprep.mubr.f32.mxu0 0.0
      %6064 = vmatmul.mubr.f32.gmra.mxu0 %v5985
      %v6065 = vpop.f32.mrf.mxu0
      %v6066 = vadd.f32 0.0, %v6065
      %v6067 = vpop.f32.mrf.mxu0
      %v6068 = vadd.f32 0.0, %v6067
      %6069 = vmatprep.mubr.f32.mxu0 0.0
      %6070 = vmatmul.mubr.f32.gmra.mxu0 %v5988
      %v6071 = vpop.f32.mrf.mxu0
      %v6072 = vadd.f32 0.0, %v6071
      %v6073 = vpop.f32.mrf.mxu0
      %v6074 = vadd.f32 0.0, %v6073
      %6075 = vmatprep.mubr.f32.mxu0 0.0
      %6076 = vmatmul.mubr.f32.gmra.mxu0 %v5991
      %v6077 = vpop.f32.mrf.mxu0
      %v6078 = vadd.f32 0.0, %v6077
      %v6079 = vpop.f32.mrf.mxu0
      %v6080 = vadd.f32 0.0, %v6079
      %6081 = vdwg.mxu0
      %6082 = vmatprep.subr.mxu0 0.0
      %6083 = vmatpush1.msra.mxu0 0.0
      %6084 = vmatprep.subr.mxu0 0.0
      %6085 = vmatpush1.msra.mxu0 0.0
      %6086 = vmatprep.subr.mxu0 0.0
      %6087 = vmatpush1.msra.mxu0 0.0
      %6088 = vmatprep.subr.mxu0 0.0
      %6089 = vmatpush1.msra.mxu0 0.0
      %6090 = vmatprep.subr.mxu0 0.0
      %6091 = vmatpush1.msra.mxu0 0.0
      %6092 = vmatprep.subr.mxu0 0.0
      %6093 = vmatpush1.msra.mxu0 0.0
      %6094 = vmatprep.subr.mxu0 0.0
      %6095 = vmatpush1.msra.mxu0 0.0
      %6096 = vmatprep.subr.mxu0 0.0
      %6097 = vmatpush1.msra.mxu0 0.0
      %6098 = vmatprep.subr.mxu0 0.0
      %6099 = vmatpush1.msra.mxu0 0.0
      %6100 = vmatprep.subr.mxu0 0.0
      %6101 = vmatpush1.msra.mxu0 0.0
      %6102 = vmatprep.subr.mxu0 0.0
      %6103 = vmatpush1.msra.mxu0 0.0
      %6104 = vmatprep.subr.mxu0 0.0
      %6105 = vmatpush1.msra.mxu0 0.0
      %6106 = vmatprep.subr.mxu0 0.0
      %6107 = vmatpush1.msra.mxu0 %v5960
      %6108 = vmatprep.subr.mxu0 0.0
      %6109 = vmatpush1.msra.mxu0 %v5954
      %6110 = vmatprep.subr.mxu0 0.0
      %6111 = vmatpush1.msra.mxu0 %v5948
      %6112 = vmatprep.subr.mxu0 0.0
      %6113 = vmatpush1.msra.mxu0 %v5942
      %6114 = vmatprep.subr.mxu0 0.0
      %6115 = vmatpush2.msra.mxu0 0.0
      %6116 = vmatprep.subr.mxu0 0.0
      %6117 = vmatpush2.msra.mxu0 0.0
      %6118 = vmatprep.subr.mxu0 0.0
      %6119 = vmatpush2.msra.mxu0 0.0
      %6120 = vmatprep.subr.mxu0 0.0
      %6121 = vmatpush2.msra.mxu0 0.0
      %6122 = vmatprep.subr.mxu0 0.0
      %6123 = vmatpush2.msra.mxu0 0.0
      %6124 = vmatprep.subr.mxu0 0.0
      %6125 = vmatpush2.msra.mxu0 0.0
      %6126 = vmatprep.subr.mxu0 0.0
      %6127 = vmatpush2.msra.mxu0 0.0
      %6128 = vmatprep.subr.mxu0 0.0
      %6129 = vmatpush2.msra.mxu0 0.0
      %6130 = vmatprep.subr.mxu0 0.0
      %6131 = vmatpush2.msra.mxu0 0.0
      %6132 = vmatprep.subr.mxu0 0.0
      %6133 = vmatpush2.msra.mxu0 0.0
      %6134 = vmatprep.subr.mxu0 0.0
      %6135 = vmatpush2.msra.mxu0 0.0
      %6136 = vmatprep.subr.mxu0 0.0
      %6137 = vmatpush2.msra.mxu0 0.0
      %6138 = vmatprep.subr.mxu0 0.0
      %6139 = vmatpush2.msra.mxu0 0.0
      %6140 = vmatprep.subr.mxu0 0.0
      %6141 = vmatpush2.msra.mxu0 0.0
      %6142 = vmatprep.subr.mxu0 0.0
      %6143 = vmatpush2.msra.mxu0 0.0
      %6144 = vmatprep.subr.mxu0 0.0
      %6145 = vmatpush2.msra.mxu0 0.0
      %6146 = vmatprep.mubr.f32.mxu0 0.0
      %6147 = vmatmul.mubr.f32.gmra.mxu0 %v5982
      %v6148 = vpop.f32.mrf.mxu0
      %v6149 = vadd.f32 0.0, %v6148
      %v6150 = vpop.f32.mrf.mxu0
      %6151 = vmatprep.mubr.f32.mxu0 0.0
      %6152 = vmatmul.mubr.f32.gmra.mxu0 %v5985
      %v6153 = vpop.f32.mrf.mxu0
      %v6154 = vadd.f32 0.0, %v6153
      %v6155 = vpop.f32.mrf.mxu0
      %6156 = vmatprep.mubr.f32.mxu0 0.0
      %6157 = vmatmul.mubr.f32.gmra.mxu0 %v5988
      %v6158 = vpop.f32.mrf.mxu0
      %v6159 = vadd.f32 0.0, %v6158
      %v6160 = vpop.f32.mrf.mxu0
      %6161 = vmatprep.mubr.f32.mxu0 0.0
      %6162 = vmatmul.mubr.f32.gmra.mxu0 %v5991
      %v6163 = vpop.f32.mrf.mxu0
      %v6164 = vadd.f32 0.0, %v6163
      %v6165 = vpop.f32.mrf.mxu0
      %6166 = vdwg.mxu0
      %v6167 = vadd.f32 %v5920, %v6060
      %v6168 = vadd.f32 %v5921, %v6062
      %v6169 = vadd.f32 %v5922, %v6149
      %v6170 = vadd.f32 %v5923, %v6066
      %v6171 = vadd.f32 %v5924, %v6068
      %v6172 = vadd.f32 %v5925, %v6154
      %v6173 = vadd.f32 %v5926, %v6072
      %v6174 = vadd.f32 %v5927, %v6074
      %v6175 = vadd.f32 %v5928, %v6159
      %v6176 = vadd.f32 %v5929, %v6078
      %v6177 = vadd.f32 %v5930, %v6080
      %v6178 = vadd.f32 %v5931, %v6164
      %s6179 = scalar_lea.vmem %s3, 64
      %v6180 = vld [vmem:[%s6179] sm:$0xff]
      %v6181 = vld [vmem:[%s6179 + $0x8] sm:$0xff]
      %v6182 = vld [vmem:[%s6179 + $0x10] sm:$0xff]
      %v6183 = vld [vmem:[%s6179 + $0x18] sm:$0xff]
      %6184 = vrot.lane.b32.xlu0 %v5662, 109
      %v6185 = vpop.permute.xlu0 %6184
      %6186 = vrot.lane.b32.xlu0 %v5663, 109
      %v6187 = vpop.permute.xlu0 %6186
      %6188 = vrot.lane.b32.xlu0 %v5664, 109
      %v6189 = vpop.permute.xlu0 %6188
      %6190 = vrot.lane.b32.xlu0 %v5665, 109
      %v6191 = vpop.permute.xlu0 %6190
      %6192 = vrot.lane.b32.xlu0 %v5666, 109
      %v6193 = vpop.permute.xlu0 %6192
      %6194 = vrot.lane.b32.xlu0 %v5667, 109
      %v6195 = vpop.permute.xlu0 %6194
      %6196 = vrot.lane.b32.xlu0 %v5668, 109
      %v6197 = vpop.permute.xlu0 %6196
      %6198 = vrot.lane.b32.xlu0 %v5669, 109
      %v6199 = vpop.permute.xlu0 %6198
      %6200 = vrot.lane.b32.xlu0 %v5670, 109
      %v6201 = vpop.permute.xlu0 %6200
      %6202 = vrot.lane.b32.xlu0 %v5671, 109
      %v6203 = vpop.permute.xlu0 %6202
      %6204 = vrot.lane.b32.xlu0 %v5672, 109
      %v6205 = vpop.permute.xlu0 %6204
      %6206 = vrot.lane.b32.xlu0 %v5673, 109
      %v6207 = vpop.permute.xlu0 %6206
      %v6208 = vsel %vm1286, %v6185, %v6187
      %v6209 = vsel %vm1286, %v6187, %v6189
      %v6210 = vsel %vm1286, %v6191, %v6193
      %v6211 = vsel %vm1286, %v6193, %v6195
      %v6212 = vsel %vm1286, %v6197, %v6199
      %v6213 = vsel %vm1286, %v6199, %v6201
      %v6214 = vsel %vm1286, %v6203, %v6205
      %v6215 = vsel %vm1286, %v6205, %v6207
      %v6229 = vsel %vm718, %v6180, 0
      %v6232 = vsel %vm718, %v6181, 0
      %v6235 = vsel %vm718, %v6182, 0
      %v6238 = vsel %vm718, %v6183, 0
      %6240 = vmatprep.subr.mxu0 0.0
      %6241 = vmatpush1.msra.mxu0 0.0
      %6242 = vmatprep.subr.mxu0 0.0
      %6243 = vmatpush1.msra.mxu0 0.0
      %6244 = vmatprep.subr.mxu0 0.0
      %6245 = vmatpush1.msra.mxu0 0.0
      %6246 = vmatprep.subr.mxu0 0.0
      %6247 = vmatpush1.msra.mxu0 0.0
      %6248 = vmatprep.subr.mxu0 0.0
      %6249 = vmatpush1.msra.mxu0 0.0
      %6250 = vmatprep.subr.mxu0 0.0
      %6251 = vmatpush1.msra.mxu0 0.0
      %6252 = vmatprep.subr.mxu0 0.0
      %6253 = vmatpush1.msra.mxu0 0.0
      %6254 = vmatprep.subr.mxu0 0.0
      %6255 = vmatpush1.msra.mxu0 0.0
      %6256 = vmatprep.subr.mxu0 0.0
      %6257 = vmatpush1.msra.mxu0 0.0
      %6258 = vmatprep.subr.mxu0 0.0
      %6259 = vmatpush1.msra.mxu0 0.0
      %6260 = vmatprep.subr.mxu0 0.0
      %6261 = vmatpush1.msra.mxu0 0.0
      %6262 = vmatprep.subr.mxu0 0.0
      %6263 = vmatpush1.msra.mxu0 0.0
      %6264 = vmatprep.subr.mxu0 %v6215
      %6265 = vmatpush1.msra.mxu0 %v6214
      %6266 = vmatprep.subr.mxu0 %v6213
      %6267 = vmatpush1.msra.mxu0 %v6212
      %6268 = vmatprep.subr.mxu0 %v6211
      %6269 = vmatpush1.msra.mxu0 %v6210
      %6270 = vmatprep.subr.mxu0 %v6209
      %6271 = vmatpush1.msra.mxu0 %v6208
      %6272 = vmatprep.subr.mxu0 0.0
      %6273 = vmatpush2.msra.mxu0 0.0
      %6274 = vmatprep.subr.mxu0 0.0
      %6275 = vmatpush2.msra.mxu0 0.0
      %6276 = vmatprep.subr.mxu0 0.0
      %6277 = vmatpush2.msra.mxu0 0.0
      %6278 = vmatprep.subr.mxu0 0.0
      %6279 = vmatpush2.msra.mxu0 0.0
      %6280 = vmatprep.subr.mxu0 0.0
      %6281 = vmatpush2.msra.mxu0 0.0
      %6282 = vmatprep.subr.mxu0 0.0
      %6283 = vmatpush2.msra.mxu0 0.0
      %6284 = vmatprep.subr.mxu0 0.0
      %6285 = vmatpush2.msra.mxu0 0.0
      %6286 = vmatprep.subr.mxu0 0.0
      %6287 = vmatpush2.msra.mxu0 0.0
      %6288 = vmatprep.subr.mxu0 0.0
      %6289 = vmatpush2.msra.mxu0 0.0
      %6290 = vmatprep.subr.mxu0 0.0
      %6291 = vmatpush2.msra.mxu0 0.0
      %6292 = vmatprep.subr.mxu0 0.0
      %6293 = vmatpush2.msra.mxu0 0.0
      %6294 = vmatprep.subr.mxu0 0.0
      %6295 = vmatpush2.msra.mxu0 0.0
      %6296 = vmatprep.subr.mxu0 0.0
      %6297 = vmatpush2.msra.mxu0 0.0
      %6298 = vmatprep.subr.mxu0 0.0
      %6299 = vmatpush2.msra.mxu0 0.0
      %6300 = vmatprep.subr.mxu0 0.0
      %6301 = vmatpush2.msra.mxu0 0.0
      %6302 = vmatprep.subr.mxu0 0.0
      %6303 = vmatpush2.msra.mxu0 0.0
      %6304 = vmatprep.mubr.f32.mxu0 0.0
      %6305 = vmatmul.mubr.f32.gmra.mxu0 %v6229
      %v6306 = vpop.f32.mrf.mxu0
      %v6307 = vadd.f32 0.0, %v6306
      %v6308 = vpop.f32.mrf.mxu0
      %v6309 = vadd.f32 0.0, %v6308
      %6310 = vmatprep.mubr.f32.mxu0 0.0
      %6311 = vmatmul.mubr.f32.gmra.mxu0 %v6232
      %v6312 = vpop.f32.mrf.mxu0
      %v6313 = vadd.f32 0.0, %v6312
      %v6314 = vpop.f32.mrf.mxu0
      %v6315 = vadd.f32 0.0, %v6314
      %6316 = vmatprep.mubr.f32.mxu0 0.0
      %6317 = vmatmul.mubr.f32.gmra.mxu0 %v6235
      %v6318 = vpop.f32.mrf.mxu0
      %v6319 = vadd.f32 0.0, %v6318
      %v6320 = vpop.f32.mrf.mxu0
      %v6321 = vadd.f32 0.0, %v6320
      %6322 = vmatprep.mubr.f32.mxu0 0.0
      %6323 = vmatmul.mubr.f32.gmra.mxu0 %v6238
      %v6324 = vpop.f32.mrf.mxu0
      %v6325 = vadd.f32 0.0, %v6324
      %v6326 = vpop.f32.mrf.mxu0
      %v6327 = vadd.f32 0.0, %v6326
      %6328 = vdwg.mxu0
      %6329 = vmatprep.subr.mxu0 0.0
      %6330 = vmatpush1.msra.mxu0 0.0
      %6331 = vmatprep.subr.mxu0 0.0
      %6332 = vmatpush1.msra.mxu0 0.0
      %6333 = vmatprep.subr.mxu0 0.0
      %6334 = vmatpush1.msra.mxu0 0.0
      %6335 = vmatprep.subr.mxu0 0.0
      %6336 = vmatpush1.msra.mxu0 0.0
      %6337 = vmatprep.subr.mxu0 0.0
      %6338 = vmatpush1.msra.mxu0 0.0
      %6339 = vmatprep.subr.mxu0 0.0
      %6340 = vmatpush1.msra.mxu0 0.0
      %6341 = vmatprep.subr.mxu0 0.0
      %6342 = vmatpush1.msra.mxu0 0.0
      %6343 = vmatprep.subr.mxu0 0.0
      %6344 = vmatpush1.msra.mxu0 0.0
      %6345 = vmatprep.subr.mxu0 0.0
      %6346 = vmatpush1.msra.mxu0 0.0
      %6347 = vmatprep.subr.mxu0 0.0
      %6348 = vmatpush1.msra.mxu0 0.0
      %6349 = vmatprep.subr.mxu0 0.0
      %6350 = vmatpush1.msra.mxu0 0.0
      %6351 = vmatprep.subr.mxu0 0.0
      %6352 = vmatpush1.msra.mxu0 0.0
      %6353 = vmatprep.subr.mxu0 0.0
      %6354 = vmatpush1.msra.mxu0 %v6207
      %6355 = vmatprep.subr.mxu0 0.0
      %6356 = vmatpush1.msra.mxu0 %v6201
      %6357 = vmatprep.subr.mxu0 0.0
      %6358 = vmatpush1.msra.mxu0 %v6195
      %6359 = vmatprep.subr.mxu0 0.0
      %6360 = vmatpush1.msra.mxu0 %v6189
      %6361 = vmatprep.subr.mxu0 0.0
      %6362 = vmatpush2.msra.mxu0 0.0
      %6363 = vmatprep.subr.mxu0 0.0
      %6364 = vmatpush2.msra.mxu0 0.0
      %6365 = vmatprep.subr.mxu0 0.0
      %6366 = vmatpush2.msra.mxu0 0.0
      %6367 = vmatprep.subr.mxu0 0.0
      %6368 = vmatpush2.msra.mxu0 0.0
      %6369 = vmatprep.subr.mxu0 0.0
      %6370 = vmatpush2.msra.mxu0 0.0
      %6371 = vmatprep.subr.mxu0 0.0
      %6372 = vmatpush2.msra.mxu0 0.0
      %6373 = vmatprep.subr.mxu0 0.0
      %6374 = vmatpush2.msra.mxu0 0.0
      %6375 = vmatprep.subr.mxu0 0.0
      %6376 = vmatpush2.msra.mxu0 0.0
      %6377 = vmatprep.subr.mxu0 0.0
      %6378 = vmatpush2.msra.mxu0 0.0
      %6379 = vmatprep.subr.mxu0 0.0
      %6380 = vmatpush2.msra.mxu0 0.0
      %6381 = vmatprep.subr.mxu0 0.0
      %6382 = vmatpush2.msra.mxu0 0.0
      %6383 = vmatprep.subr.mxu0 0.0
      %6384 = vmatpush2.msra.mxu0 0.0
      %6385 = vmatprep.subr.mxu0 0.0
      %6386 = vmatpush2.msra.mxu0 0.0
      %6387 = vmatprep.subr.mxu0 0.0
      %6388 = vmatpush2.msra.mxu0 0.0
      %6389 = vmatprep.subr.mxu0 0.0
      %6390 = vmatpush2.msra.mxu0 0.0
      %6391 = vmatprep.subr.mxu0 0.0
      %6392 = vmatpush2.msra.mxu0 0.0
      %6393 = vmatprep.mubr.f32.mxu0 0.0
      %6394 = vmatmul.mubr.f32.gmra.mxu0 %v6229
      %v6395 = vpop.f32.mrf.mxu0
      %v6396 = vadd.f32 0.0, %v6395
      %v6397 = vpop.f32.mrf.mxu0
      %6398 = vmatprep.mubr.f32.mxu0 0.0
      %6399 = vmatmul.mubr.f32.gmra.mxu0 %v6232
      %v6400 = vpop.f32.mrf.mxu0
      %v6401 = vadd.f32 0.0, %v6400
      %v6402 = vpop.f32.mrf.mxu0
      %6403 = vmatprep.mubr.f32.mxu0 0.0
      %6404 = vmatmul.mubr.f32.gmra.mxu0 %v6235
      %v6405 = vpop.f32.mrf.mxu0
      %v6406 = vadd.f32 0.0, %v6405
      %v6407 = vpop.f32.mrf.mxu0
      %6408 = vmatprep.mubr.f32.mxu0 0.0
      %6409 = vmatmul.mubr.f32.gmra.mxu0 %v6238
      %v6410 = vpop.f32.mrf.mxu0
      %v6411 = vadd.f32 0.0, %v6410
      %v6412 = vpop.f32.mrf.mxu0
      %6413 = vdwg.mxu0
      %v6414 = vadd.f32 %v6167, %v6307
      %v6415 = vadd.f32 %v6168, %v6309
      %v6416 = vadd.f32 %v6169, %v6396
      %v6417 = vadd.f32 %v6170, %v6313
      %v6418 = vadd.f32 %v6171, %v6315
      %v6419 = vadd.f32 %v6172, %v6401
      %v6420 = vadd.f32 %v6173, %v6319
      %v6421 = vadd.f32 %v6174, %v6321
      %v6422 = vadd.f32 %v6175, %v6406
      %v6423 = vadd.f32 %v6176, %v6325
      %v6424 = vadd.f32 %v6177, %v6327
      %v6425 = vadd.f32 %v6178, %v6411
      %s6426 = scalar_lea.vmem %s3, 96
      %v6427 = vld [vmem:[%s6426] sm:$0xff]
      %v6428 = vld [vmem:[%s6426 + $0x8] sm:$0xff]
      %v6429 = vld [vmem:[%s6426 + $0x10] sm:$0xff]
      %v6430 = vld [vmem:[%s6426 + $0x18] sm:$0xff]
      %6431 = vrot.lane.b32.xlu0 %v5662, 93
      %v6432 = vpop.permute.xlu0 %6431
      %6433 = vrot.lane.b32.xlu0 %v5663, 93
      %v6434 = vpop.permute.xlu0 %6433
      %6435 = vrot.lane.b32.xlu0 %v5664, 93
      %v6436 = vpop.permute.xlu0 %6435
      %6437 = vrot.lane.b32.xlu0 %v5665, 93
      %v6438 = vpop.permute.xlu0 %6437
      %6439 = vrot.lane.b32.xlu0 %v5666, 93
      %v6440 = vpop.permute.xlu0 %6439
      %6441 = vrot.lane.b32.xlu0 %v5667, 93
      %v6442 = vpop.permute.xlu0 %6441
      %6443 = vrot.lane.b32.xlu0 %v5668, 93
      %v6444 = vpop.permute.xlu0 %6443
      %6445 = vrot.lane.b32.xlu0 %v5669, 93
      %v6446 = vpop.permute.xlu0 %6445
      %6447 = vrot.lane.b32.xlu0 %v5670, 93
      %v6448 = vpop.permute.xlu0 %6447
      %6449 = vrot.lane.b32.xlu0 %v5671, 93
      %v6450 = vpop.permute.xlu0 %6449
      %6451 = vrot.lane.b32.xlu0 %v5672, 93
      %v6452 = vpop.permute.xlu0 %6451
      %6453 = vrot.lane.b32.xlu0 %v5673, 93
      %v6454 = vpop.permute.xlu0 %6453
      %v6455 = vsel %vm1523, %v6432, %v6434
      %v6456 = vsel %vm1523, %v6434, %v6436
      %v6457 = vsel %vm1523, %v6438, %v6440
      %v6458 = vsel %vm1523, %v6440, %v6442
      %v6459 = vsel %vm1523, %v6444, %v6446
      %v6460 = vsel %vm1523, %v6446, %v6448
      %v6461 = vsel %vm1523, %v6450, %v6452
      %v6462 = vsel %vm1523, %v6452, %v6454
      %v6476 = vsel %vm718, %v6427, 0
      %v6479 = vsel %vm718, %v6428, 0
      %v6482 = vsel %vm718, %v6429, 0
      %v6485 = vsel %vm718, %v6430, 0
      %6487 = vmatprep.subr.mxu0 0.0
      %6488 = vmatpush1.msra.mxu0 0.0
      %6489 = vmatprep.subr.mxu0 0.0
      %6490 = vmatpush1.msra.mxu0 0.0
      %6491 = vmatprep.subr.mxu0 0.0
      %6492 = vmatpush1.msra.mxu0 0.0
      %6493 = vmatprep.subr.mxu0 0.0
      %6494 = vmatpush1.msra.mxu0 0.0
      %6495 = vmatprep.subr.mxu0 0.0
      %6496 = vmatpush1.msra.mxu0 0.0
      %6497 = vmatprep.subr.mxu0 0.0
      %6498 = vmatpush1.msra.mxu0 0.0
      %6499 = vmatprep.subr.mxu0 0.0
      %6500 = vmatpush1.msra.mxu0 0.0
      %6501 = vmatprep.subr.mxu0 0.0
      %6502 = vmatpush1.msra.mxu0 0.0
      %6503 = vmatprep.subr.mxu0 0.0
      %6504 = vmatpush1.msra.mxu0 0.0
      %6505 = vmatprep.subr.mxu0 0.0
      %6506 = vmatpush1.msra.mxu0 0.0
      %6507 = vmatprep.subr.mxu0 0.0
      %6508 = vmatpush1.msra.mxu0 0.0
      %6509 = vmatprep.subr.mxu0 0.0
      %6510 = vmatpush1.msra.mxu0 0.0
      %6511 = vmatprep.subr.mxu0 %v6462
      %6512 = vmatpush1.msra.mxu0 %v6461
      %6513 = vmatprep.subr.mxu0 %v6460
      %6514 = vmatpush1.msra.mxu0 %v6459
      %6515 = vmatprep.subr.mxu0 %v6458
      %6516 = vmatpush1.msra.mxu0 %v6457
      %6517 = vmatprep.subr.mxu0 %v6456
      %6518 = vmatpush1.msra.mxu0 %v6455
      %6519 = vmatprep.subr.mxu0 0.0
      %6520 = vmatpush2.msra.mxu0 0.0
      %6521 = vmatprep.subr.mxu0 0.0
      %6522 = vmatpush2.msra.mxu0 0.0
      %6523 = vmatprep.subr.mxu0 0.0
      %6524 = vmatpush2.msra.mxu0 0.0
      %6525 = vmatprep.subr.mxu0 0.0
      %6526 = vmatpush2.msra.mxu0 0.0
      %6527 = vmatprep.subr.mxu0 0.0
      %6528 = vmatpush2.msra.mxu0 0.0
      %6529 = vmatprep.subr.mxu0 0.0
      %6530 = vmatpush2.msra.mxu0 0.0
      %6531 = vmatprep.subr.mxu0 0.0
      %6532 = vmatpush2.msra.mxu0 0.0
      %6533 = vmatprep.subr.mxu0 0.0
      %6534 = vmatpush2.msra.mxu0 0.0
      %6535 = vmatprep.subr.mxu0 0.0
      %6536 = vmatpush2.msra.mxu0 0.0
      %6537 = vmatprep.subr.mxu0 0.0
      %6538 = vmatpush2.msra.mxu0 0.0
      %6539 = vmatprep.subr.mxu0 0.0
      %6540 = vmatpush2.msra.mxu0 0.0
      %6541 = vmatprep.subr.mxu0 0.0
      %6542 = vmatpush2.msra.mxu0 0.0
      %6543 = vmatprep.subr.mxu0 0.0
      %6544 = vmatpush2.msra.mxu0 0.0
      %6545 = vmatprep.subr.mxu0 0.0
      %6546 = vmatpush2.msra.mxu0 0.0
      %6547 = vmatprep.subr.mxu0 0.0
      %6548 = vmatpush2.msra.mxu0 0.0
      %6549 = vmatprep.subr.mxu0 0.0
      %6550 = vmatpush2.msra.mxu0 0.0
      %6551 = vmatprep.mubr.f32.mxu0 0.0
      %6552 = vmatmul.mubr.f32.gmra.mxu0 %v6476
      %v6553 = vpop.f32.mrf.mxu0
      %v6554 = vadd.f32 0.0, %v6553
      %v6555 = vpop.f32.mrf.mxu0
      %v6556 = vadd.f32 0.0, %v6555
      %6557 = vmatprep.mubr.f32.mxu0 0.0
      %6558 = vmatmul.mubr.f32.gmra.mxu0 %v6479
      %v6559 = vpop.f32.mrf.mxu0
      %v6560 = vadd.f32 0.0, %v6559
      %v6561 = vpop.f32.mrf.mxu0
      %v6562 = vadd.f32 0.0, %v6561
      %6563 = vmatprep.mubr.f32.mxu0 0.0
      %6564 = vmatmul.mubr.f32.gmra.mxu0 %v6482
      %v6565 = vpop.f32.mrf.mxu0
      %v6566 = vadd.f32 0.0, %v6565
      %v6567 = vpop.f32.mrf.mxu0
      %v6568 = vadd.f32 0.0, %v6567
      %6569 = vmatprep.mubr.f32.mxu0 0.0
      %6570 = vmatmul.mubr.f32.gmra.mxu0 %v6485
      %v6571 = vpop.f32.mrf.mxu0
      %v6572 = vadd.f32 0.0, %v6571
      %v6573 = vpop.f32.mrf.mxu0
      %v6574 = vadd.f32 0.0, %v6573
      %6575 = vdwg.mxu0
      %6576 = vmatprep.subr.mxu0 0.0
      %6577 = vmatpush1.msra.mxu0 0.0
      %6578 = vmatprep.subr.mxu0 0.0
      %6579 = vmatpush1.msra.mxu0 0.0
      %6580 = vmatprep.subr.mxu0 0.0
      %6581 = vmatpush1.msra.mxu0 0.0
      %6582 = vmatprep.subr.mxu0 0.0
      %6583 = vmatpush1.msra.mxu0 0.0
      %6584 = vmatprep.subr.mxu0 0.0
      %6585 = vmatpush1.msra.mxu0 0.0
      %6586 = vmatprep.subr.mxu0 0.0
      %6587 = vmatpush1.msra.mxu0 0.0
      %6588 = vmatprep.subr.mxu0 0.0
      %6589 = vmatpush1.msra.mxu0 0.0
      %6590 = vmatprep.subr.mxu0 0.0
      %6591 = vmatpush1.msra.mxu0 0.0
      %6592 = vmatprep.subr.mxu0 0.0
      %6593 = vmatpush1.msra.mxu0 0.0
      %6594 = vmatprep.subr.mxu0 0.0
      %6595 = vmatpush1.msra.mxu0 0.0
      %6596 = vmatprep.subr.mxu0 0.0
      %6597 = vmatpush1.msra.mxu0 0.0
      %6598 = vmatprep.subr.mxu0 0.0
      %6599 = vmatpush1.msra.mxu0 0.0
      %6600 = vmatprep.subr.mxu0 0.0
      %6601 = vmatpush1.msra.mxu0 %v6454
      %6602 = vmatprep.subr.mxu0 0.0
      %6603 = vmatpush1.msra.mxu0 %v6448
      %6604 = vmatprep.subr.mxu0 0.0
      %6605 = vmatpush1.msra.mxu0 %v6442
      %6606 = vmatprep.subr.mxu0 0.0
      %6607 = vmatpush1.msra.mxu0 %v6436
      %6608 = vmatprep.subr.mxu0 0.0
      %6609 = vmatpush2.msra.mxu0 0.0
      %6610 = vmatprep.subr.mxu0 0.0
      %6611 = vmatpush2.msra.mxu0 0.0
      %6612 = vmatprep.subr.mxu0 0.0
      %6613 = vmatpush2.msra.mxu0 0.0
      %6614 = vmatprep.subr.mxu0 0.0
      %6615 = vmatpush2.msra.mxu0 0.0
      %6616 = vmatprep.subr.mxu0 0.0
      %6617 = vmatpush2.msra.mxu0 0.0
      %6618 = vmatprep.subr.mxu0 0.0
      %6619 = vmatpush2.msra.mxu0 0.0
      %6620 = vmatprep.subr.mxu0 0.0
      %6621 = vmatpush2.msra.mxu0 0.0
      %6622 = vmatprep.subr.mxu0 0.0
      %6623 = vmatpush2.msra.mxu0 0.0
      %6624 = vmatprep.subr.mxu0 0.0
      %6625 = vmatpush2.msra.mxu0 0.0
      %6626 = vmatprep.subr.mxu0 0.0
      %6627 = vmatpush2.msra.mxu0 0.0
      %6628 = vmatprep.subr.mxu0 0.0
      %6629 = vmatpush2.msra.mxu0 0.0
      %6630 = vmatprep.subr.mxu0 0.0
      %6631 = vmatpush2.msra.mxu0 0.0
      %6632 = vmatprep.subr.mxu0 0.0
      %6633 = vmatpush2.msra.mxu0 0.0
      %6634 = vmatprep.subr.mxu0 0.0
      %6635 = vmatpush2.msra.mxu0 0.0
      %6636 = vmatprep.subr.mxu0 0.0
      %6637 = vmatpush2.msra.mxu0 0.0
      %6638 = vmatprep.subr.mxu0 0.0
      %6639 = vmatpush2.msra.mxu0 0.0
      %6640 = vmatprep.mubr.f32.mxu0 0.0
      %6641 = vmatmul.mubr.f32.gmra.mxu0 %v6476
      %v6642 = vpop.f32.mrf.mxu0
      %v6643 = vadd.f32 0.0, %v6642
      %v6644 = vpop.f32.mrf.mxu0
      %6645 = vmatprep.mubr.f32.mxu0 0.0
      %6646 = vmatmul.mubr.f32.gmra.mxu0 %v6479
      %v6647 = vpop.f32.mrf.mxu0
      %v6648 = vadd.f32 0.0, %v6647
      %v6649 = vpop.f32.mrf.mxu0
      %6650 = vmatprep.mubr.f32.mxu0 0.0
      %6651 = vmatmul.mubr.f32.gmra.mxu0 %v6482
      %v6652 = vpop.f32.mrf.mxu0
      %v6653 = vadd.f32 0.0, %v6652
      %v6654 = vpop.f32.mrf.mxu0
      %6655 = vmatprep.mubr.f32.mxu0 0.0
      %6656 = vmatmul.mubr.f32.gmra.mxu0 %v6485
      %v6657 = vpop.f32.mrf.mxu0
      %v6658 = vadd.f32 0.0, %v6657
      %v6659 = vpop.f32.mrf.mxu0
      %6660 = vdwg.mxu0
      %v6661 = vadd.f32 %v6414, %v6554
      %v6662 = vadd.f32 %v6415, %v6556
      %v6663 = vadd.f32 %v6416, %v6643
      %v6664 = vadd.f32 %v6417, %v6560
      %v6665 = vadd.f32 %v6418, %v6562
      %v6666 = vadd.f32 %v6419, %v6648
      %v6667 = vadd.f32 %v6420, %v6566
      %v6668 = vadd.f32 %v6421, %v6568
      %v6669 = vadd.f32 %v6422, %v6653
      %v6670 = vadd.f32 %v6423, %v6572
      %v6671 = vadd.f32 %v6424, %v6574
      %v6672 = vadd.f32 %v6425, %v6658
      %s6673 = scalar_lea.vmem %s3, 128
      %v6674 = vld [vmem:[%s6673] sm:$0xff]
      %v6675 = vld [vmem:[%s6673 + $0x8] sm:$0xff]
      %v6676 = vld [vmem:[%s6673 + $0x10] sm:$0xff]
      %v6677 = vld [vmem:[%s6673 + $0x18] sm:$0xff]
      %6678 = vrot.lane.b32.xlu0 %v5662, 92
      %v6679 = vpop.permute.xlu0 %6678
      %6680 = vrot.lane.b32.xlu0 %v5663, 92
      %v6681 = vpop.permute.xlu0 %6680
      %6682 = vrot.lane.b32.xlu0 %v5664, 92
      %v6683 = vpop.permute.xlu0 %6682
      %6684 = vrot.lane.b32.xlu0 %v5665, 92
      %v6685 = vpop.permute.xlu0 %6684
      %6686 = vrot.lane.b32.xlu0 %v5666, 92
      %v6687 = vpop.permute.xlu0 %6686
      %6688 = vrot.lane.b32.xlu0 %v5667, 92
      %v6689 = vpop.permute.xlu0 %6688
      %6690 = vrot.lane.b32.xlu0 %v5668, 92
      %v6691 = vpop.permute.xlu0 %6690
      %6692 = vrot.lane.b32.xlu0 %v5669, 92
      %v6693 = vpop.permute.xlu0 %6692
      %6694 = vrot.lane.b32.xlu0 %v5670, 92
      %v6695 = vpop.permute.xlu0 %6694
      %6696 = vrot.lane.b32.xlu0 %v5671, 92
      %v6697 = vpop.permute.xlu0 %6696
      %6698 = vrot.lane.b32.xlu0 %v5672, 92
      %v6699 = vpop.permute.xlu0 %6698
      %6700 = vrot.lane.b32.xlu0 %v5673, 92
      %v6701 = vpop.permute.xlu0 %6700
      %v6702 = vsel %vm1760, %v6679, %v6681
      %v6703 = vsel %vm1760, %v6681, %v6683
      %v6704 = vsel %vm1760, %v6685, %v6687
      %v6705 = vsel %vm1760, %v6687, %v6689
      %v6706 = vsel %vm1760, %v6691, %v6693
      %v6707 = vsel %vm1760, %v6693, %v6695
      %v6708 = vsel %vm1760, %v6697, %v6699
      %v6709 = vsel %vm1760, %v6699, %v6701
      %v6723 = vsel %vm718, %v6674, 0
      %v6726 = vsel %vm718, %v6675, 0
      %v6729 = vsel %vm718, %v6676, 0
      %v6732 = vsel %vm718, %v6677, 0
      %6734 = vmatprep.subr.mxu0 0.0
      %6735 = vmatpush1.msra.mxu0 0.0
      %6736 = vmatprep.subr.mxu0 0.0
      %6737 = vmatpush1.msra.mxu0 0.0
      %6738 = vmatprep.subr.mxu0 0.0
      %6739 = vmatpush1.msra.mxu0 0.0
      %6740 = vmatprep.subr.mxu0 0.0
      %6741 = vmatpush1.msra.mxu0 0.0
      %6742 = vmatprep.subr.mxu0 0.0
      %6743 = vmatpush1.msra.mxu0 0.0
      %6744 = vmatprep.subr.mxu0 0.0
      %6745 = vmatpush1.msra.mxu0 0.0
      %6746 = vmatprep.subr.mxu0 0.0
      %6747 = vmatpush1.msra.mxu0 0.0
      %6748 = vmatprep.subr.mxu0 0.0
      %6749 = vmatpush1.msra.mxu0 0.0
      %6750 = vmatprep.subr.mxu0 0.0
      %6751 = vmatpush1.msra.mxu0 0.0
      %6752 = vmatprep.subr.mxu0 0.0
      %6753 = vmatpush1.msra.mxu0 0.0
      %6754 = vmatprep.subr.mxu0 0.0
      %6755 = vmatpush1.msra.mxu0 0.0
      %6756 = vmatprep.subr.mxu0 0.0
      %6757 = vmatpush1.msra.mxu0 0.0
      %6758 = vmatprep.subr.mxu0 %v6709
      %6759 = vmatpush1.msra.mxu0 %v6708
      %6760 = vmatprep.subr.mxu0 %v6707
      %6761 = vmatpush1.msra.mxu0 %v6706
      %6762 = vmatprep.subr.mxu0 %v6705
      %6763 = vmatpush1.msra.mxu0 %v6704
      %6764 = vmatprep.subr.mxu0 %v6703
      %6765 = vmatpush1.msra.mxu0 %v6702
      %6766 = vmatprep.subr.mxu0 0.0
      %6767 = vmatpush2.msra.mxu0 0.0
      %6768 = vmatprep.subr.mxu0 0.0
      %6769 = vmatpush2.msra.mxu0 0.0
      %6770 = vmatprep.subr.mxu0 0.0
      %6771 = vmatpush2.msra.mxu0 0.0
      %6772 = vmatprep.subr.mxu0 0.0
      %6773 = vmatpush2.msra.mxu0 0.0
      %6774 = vmatprep.subr.mxu0 0.0
      %6775 = vmatpush2.msra.mxu0 0.0
      %6776 = vmatprep.subr.mxu0 0.0
      %6777 = vmatpush2.msra.mxu0 0.0
      %6778 = vmatprep.subr.mxu0 0.0
      %6779 = vmatpush2.msra.mxu0 0.0
      %6780 = vmatprep.subr.mxu0 0.0
      %6781 = vmatpush2.msra.mxu0 0.0
      %6782 = vmatprep.subr.mxu0 0.0
      %6783 = vmatpush2.msra.mxu0 0.0
      %6784 = vmatprep.subr.mxu0 0.0
      %6785 = vmatpush2.msra.mxu0 0.0
      %6786 = vmatprep.subr.mxu0 0.0
      %6787 = vmatpush2.msra.mxu0 0.0
      %6788 = vmatprep.subr.mxu0 0.0
      %6789 = vmatpush2.msra.mxu0 0.0
      %6790 = vmatprep.subr.mxu0 0.0
      %6791 = vmatpush2.msra.mxu0 0.0
      %6792 = vmatprep.subr.mxu0 0.0
      %6793 = vmatpush2.msra.mxu0 0.0
      %6794 = vmatprep.subr.mxu0 0.0
      %6795 = vmatpush2.msra.mxu0 0.0
      %6796 = vmatprep.subr.mxu0 0.0
      %6797 = vmatpush2.msra.mxu0 0.0
      %6798 = vmatprep.mubr.f32.mxu0 0.0
      %6799 = vmatmul.mubr.f32.gmra.mxu0 %v6723
      %v6800 = vpop.f32.mrf.mxu0
      %v6801 = vadd.f32 0.0, %v6800
      %v6802 = vpop.f32.mrf.mxu0
      %v6803 = vadd.f32 0.0, %v6802
      %6804 = vmatprep.mubr.f32.mxu0 0.0
      %6805 = vmatmul.mubr.f32.gmra.mxu0 %v6726
      %v6806 = vpop.f32.mrf.mxu0
      %v6807 = vadd.f32 0.0, %v6806
      %v6808 = vpop.f32.mrf.mxu0
      %v6809 = vadd.f32 0.0, %v6808
      %6810 = vmatprep.mubr.f32.mxu0 0.0
      %6811 = vmatmul.mubr.f32.gmra.mxu0 %v6729
      %v6812 = vpop.f32.mrf.mxu0
      %v6813 = vadd.f32 0.0, %v6812
      %v6814 = vpop.f32.mrf.mxu0
      %v6815 = vadd.f32 0.0, %v6814
      %6816 = vmatprep.mubr.f32.mxu0 0.0
      %6817 = vmatmul.mubr.f32.gmra.mxu0 %v6732
      %v6818 = vpop.f32.mrf.mxu0
      %v6819 = vadd.f32 0.0, %v6818
      %v6820 = vpop.f32.mrf.mxu0
      %v6821 = vadd.f32 0.0, %v6820
      %6822 = vdwg.mxu0
      %6823 = vmatprep.subr.mxu0 0.0
      %6824 = vmatpush1.msra.mxu0 0.0
      %6825 = vmatprep.subr.mxu0 0.0
      %6826 = vmatpush1.msra.mxu0 0.0
      %6827 = vmatprep.subr.mxu0 0.0
      %6828 = vmatpush1.msra.mxu0 0.0
      %6829 = vmatprep.subr.mxu0 0.0
      %6830 = vmatpush1.msra.mxu0 0.0
      %6831 = vmatprep.subr.mxu0 0.0
      %6832 = vmatpush1.msra.mxu0 0.0
      %6833 = vmatprep.subr.mxu0 0.0
      %6834 = vmatpush1.msra.mxu0 0.0
      %6835 = vmatprep.subr.mxu0 0.0
      %6836 = vmatpush1.msra.mxu0 0.0
      %6837 = vmatprep.subr.mxu0 0.0
      %6838 = vmatpush1.msra.mxu0 0.0
      %6839 = vmatprep.subr.mxu0 0.0
      %6840 = vmatpush1.msra.mxu0 0.0
      %6841 = vmatprep.subr.mxu0 0.0
      %6842 = vmatpush1.msra.mxu0 0.0
      %6843 = vmatprep.subr.mxu0 0.0
      %6844 = vmatpush1.msra.mxu0 0.0
      %6845 = vmatprep.subr.mxu0 0.0
      %6846 = vmatpush1.msra.mxu0 0.0
      %6847 = vmatprep.subr.mxu0 0.0
      %6848 = vmatpush1.msra.mxu0 %v6701
      %6849 = vmatprep.subr.mxu0 0.0
      %6850 = vmatpush1.msra.mxu0 %v6695
      %6851 = vmatprep.subr.mxu0 0.0
      %6852 = vmatpush1.msra.mxu0 %v6689
      %6853 = vmatprep.subr.mxu0 0.0
      %6854 = vmatpush1.msra.mxu0 %v6683
      %6855 = vmatprep.subr.mxu0 0.0
      %6856 = vmatpush2.msra.mxu0 0.0
      %6857 = vmatprep.subr.mxu0 0.0
      %6858 = vmatpush2.msra.mxu0 0.0
      %6859 = vmatprep.subr.mxu0 0.0
      %6860 = vmatpush2.msra.mxu0 0.0
      %6861 = vmatprep.subr.mxu0 0.0
      %6862 = vmatpush2.msra.mxu0 0.0
      %6863 = vmatprep.subr.mxu0 0.0
      %6864 = vmatpush2.msra.mxu0 0.0
      %6865 = vmatprep.subr.mxu0 0.0
      %6866 = vmatpush2.msra.mxu0 0.0
      %6867 = vmatprep.subr.mxu0 0.0
      %6868 = vmatpush2.msra.mxu0 0.0
      %6869 = vmatprep.subr.mxu0 0.0
      %6870 = vmatpush2.msra.mxu0 0.0
      %6871 = vmatprep.subr.mxu0 0.0
      %6872 = vmatpush2.msra.mxu0 0.0
      %6873 = vmatprep.subr.mxu0 0.0
      %6874 = vmatpush2.msra.mxu0 0.0
      %6875 = vmatprep.subr.mxu0 0.0
      %6876 = vmatpush2.msra.mxu0 0.0
      %6877 = vmatprep.subr.mxu0 0.0
      %6878 = vmatpush2.msra.mxu0 0.0
      %6879 = vmatprep.subr.mxu0 0.0
      %6880 = vmatpush2.msra.mxu0 0.0
      %6881 = vmatprep.subr.mxu0 0.0
      %6882 = vmatpush2.msra.mxu0 0.0
      %6883 = vmatprep.subr.mxu0 0.0
      %6884 = vmatpush2.msra.mxu0 0.0
      %6885 = vmatprep.subr.mxu0 0.0
      %6886 = vmatpush2.msra.mxu0 0.0
      %6887 = vmatprep.mubr.f32.mxu0 0.0
      %6888 = vmatmul.mubr.f32.gmra.mxu0 %v6723
      %v6889 = vpop.f32.mrf.mxu0
      %v6890 = vadd.f32 0.0, %v6889
      %v6891 = vpop.f32.mrf.mxu0
      %6892 = vmatprep.mubr.f32.mxu0 0.0
      %6893 = vmatmul.mubr.f32.gmra.mxu0 %v6726
      %v6894 = vpop.f32.mrf.mxu0
      %v6895 = vadd.f32 0.0, %v6894
      %v6896 = vpop.f32.mrf.mxu0
      %6897 = vmatprep.mubr.f32.mxu0 0.0
      %6898 = vmatmul.mubr.f32.gmra.mxu0 %v6729
      %v6899 = vpop.f32.mrf.mxu0
      %v6900 = vadd.f32 0.0, %v6899
      %v6901 = vpop.f32.mrf.mxu0
      %6902 = vmatprep.mubr.f32.mxu0 0.0
      %6903 = vmatmul.mubr.f32.gmra.mxu0 %v6732
      %v6904 = vpop.f32.mrf.mxu0
      %v6905 = vadd.f32 0.0, %v6904
      %v6906 = vpop.f32.mrf.mxu0
      %6907 = vdwg.mxu0
      %v6908 = vadd.f32 %v6661, %v6801
      %v6909 = vadd.f32 %v6662, %v6803
      %v6910 = vadd.f32 %v6663, %v6890
      %v6911 = vadd.f32 %v6664, %v6807
      %v6912 = vadd.f32 %v6665, %v6809
      %v6913 = vadd.f32 %v6666, %v6895
      %v6914 = vadd.f32 %v6667, %v6813
      %v6915 = vadd.f32 %v6668, %v6815
      %v6916 = vadd.f32 %v6669, %v6900
      %v6917 = vadd.f32 %v6670, %v6819
      %v6918 = vadd.f32 %v6671, %v6821
      %v6919 = vadd.f32 %v6672, %v6905
      %s6920 = scalar_lea.vmem %s3, 160
      %v6921 = vld [vmem:[%s6920] sm:$0xff]
      %v6922 = vld [vmem:[%s6920 + $0x8] sm:$0xff]
      %v6923 = vld [vmem:[%s6920 + $0x10] sm:$0xff]
      %v6924 = vld [vmem:[%s6920 + $0x18] sm:$0xff]
      %6925 = vrot.lane.b32.xlu0 %v5662, 91
      %v6926 = vpop.permute.xlu0 %6925
      %6927 = vrot.lane.b32.xlu0 %v5663, 91
      %v6928 = vpop.permute.xlu0 %6927
      %6929 = vrot.lane.b32.xlu0 %v5664, 91
      %v6930 = vpop.permute.xlu0 %6929
      %6931 = vrot.lane.b32.xlu0 %v5665, 91
      %v6932 = vpop.permute.xlu0 %6931
      %6933 = vrot.lane.b32.xlu0 %v5666, 91
      %v6934 = vpop.permute.xlu0 %6933
      %6935 = vrot.lane.b32.xlu0 %v5667, 91
      %v6936 = vpop.permute.xlu0 %6935
      %6937 = vrot.lane.b32.xlu0 %v5668, 91
      %v6938 = vpop.permute.xlu0 %6937
      %6939 = vrot.lane.b32.xlu0 %v5669, 91
      %v6940 = vpop.permute.xlu0 %6939
      %6941 = vrot.lane.b32.xlu0 %v5670, 91
      %v6942 = vpop.permute.xlu0 %6941
      %6943 = vrot.lane.b32.xlu0 %v5671, 91
      %v6944 = vpop.permute.xlu0 %6943
      %6945 = vrot.lane.b32.xlu0 %v5672, 91
      %v6946 = vpop.permute.xlu0 %6945
      %6947 = vrot.lane.b32.xlu0 %v5673, 91
      %v6948 = vpop.permute.xlu0 %6947
      %v6949 = vsel %vm1997, %v6926, %v6928
      %v6950 = vsel %vm1997, %v6928, %v6930
      %v6951 = vsel %vm1997, %v6932, %v6934
      %v6952 = vsel %vm1997, %v6934, %v6936
      %v6953 = vsel %vm1997, %v6938, %v6940
      %v6954 = vsel %vm1997, %v6940, %v6942
      %v6955 = vsel %vm1997, %v6944, %v6946
      %v6956 = vsel %vm1997, %v6946, %v6948
      %v6970 = vsel %vm718, %v6921, 0
      %v6973 = vsel %vm718, %v6922, 0
      %v6976 = vsel %vm718, %v6923, 0
      %v6979 = vsel %vm718, %v6924, 0
      %6981 = vmatprep.subr.mxu0 0.0
      %6982 = vmatpush1.msra.mxu0 0.0
      %6983 = vmatprep.subr.mxu0 0.0
      %6984 = vmatpush1.msra.mxu0 0.0
      %6985 = vmatprep.subr.mxu0 0.0
      %6986 = vmatpush1.msra.mxu0 0.0
      %6987 = vmatprep.subr.mxu0 0.0
      %6988 = vmatpush1.msra.mxu0 0.0
      %6989 = vmatprep.subr.mxu0 0.0
      %6990 = vmatpush1.msra.mxu0 0.0
      %6991 = vmatprep.subr.mxu0 0.0
      %6992 = vmatpush1.msra.mxu0 0.0
      %6993 = vmatprep.subr.mxu0 0.0
      %6994 = vmatpush1.msra.mxu0 0.0
      %6995 = vmatprep.subr.mxu0 0.0
      %6996 = vmatpush1.msra.mxu0 0.0
      %6997 = vmatprep.subr.mxu0 0.0
      %6998 = vmatpush1.msra.mxu0 0.0
      %6999 = vmatprep.subr.mxu0 0.0
      %7000 = vmatpush1.msra.mxu0 0.0
      %7001 = vmatprep.subr.mxu0 0.0
      %7002 = vmatpush1.msra.mxu0 0.0
      %7003 = vmatprep.subr.mxu0 0.0
      %7004 = vmatpush1.msra.mxu0 0.0
      %7005 = vmatprep.subr.mxu0 %v6956
      %7006 = vmatpush1.msra.mxu0 %v6955
      %7007 = vmatprep.subr.mxu0 %v6954
      %7008 = vmatpush1.msra.mxu0 %v6953
      %7009 = vmatprep.subr.mxu0 %v6952
      %7010 = vmatpush1.msra.mxu0 %v6951
      %7011 = vmatprep.subr.mxu0 %v6950
      %7012 = vmatpush1.msra.mxu0 %v6949
      %7013 = vmatprep.subr.mxu0 0.0
      %7014 = vmatpush2.msra.mxu0 0.0
      %7015 = vmatprep.subr.mxu0 0.0
      %7016 = vmatpush2.msra.mxu0 0.0
      %7017 = vmatprep.subr.mxu0 0.0
      %7018 = vmatpush2.msra.mxu0 0.0
      %7019 = vmatprep.subr.mxu0 0.0
      %7020 = vmatpush2.msra.mxu0 0.0
      %7021 = vmatprep.subr.mxu0 0.0
      %7022 = vmatpush2.msra.mxu0 0.0
      %7023 = vmatprep.subr.mxu0 0.0
      %7024 = vmatpush2.msra.mxu0 0.0
      %7025 = vmatprep.subr.mxu0 0.0
      %7026 = vmatpush2.msra.mxu0 0.0
      %7027 = vmatprep.subr.mxu0 0.0
      %7028 = vmatpush2.msra.mxu0 0.0
      %7029 = vmatprep.subr.mxu0 0.0
      %7030 = vmatpush2.msra.mxu0 0.0
      %7031 = vmatprep.subr.mxu0 0.0
      %7032 = vmatpush2.msra.mxu0 0.0
      %7033 = vmatprep.subr.mxu0 0.0
      %7034 = vmatpush2.msra.mxu0 0.0
      %7035 = vmatprep.subr.mxu0 0.0
      %7036 = vmatpush2.msra.mxu0 0.0
      %7037 = vmatprep.subr.mxu0 0.0
      %7038 = vmatpush2.msra.mxu0 0.0
      %7039 = vmatprep.subr.mxu0 0.0
      %7040 = vmatpush2.msra.mxu0 0.0
      %7041 = vmatprep.subr.mxu0 0.0
      %7042 = vmatpush2.msra.mxu0 0.0
      %7043 = vmatprep.subr.mxu0 0.0
      %7044 = vmatpush2.msra.mxu0 0.0
      %7045 = vmatprep.mubr.f32.mxu0 0.0
      %7046 = vmatmul.mubr.f32.gmra.mxu0 %v6970
      %v7047 = vpop.f32.mrf.mxu0
      %v7048 = vadd.f32 0.0, %v7047
      %v7049 = vpop.f32.mrf.mxu0
      %v7050 = vadd.f32 0.0, %v7049
      %7051 = vmatprep.mubr.f32.mxu0 0.0
      %7052 = vmatmul.mubr.f32.gmra.mxu0 %v6973
      %v7053 = vpop.f32.mrf.mxu0
      %v7054 = vadd.f32 0.0, %v7053
      %v7055 = vpop.f32.mrf.mxu0
      %v7056 = vadd.f32 0.0, %v7055
      %7057 = vmatprep.mubr.f32.mxu0 0.0
      %7058 = vmatmul.mubr.f32.gmra.mxu0 %v6976
      %v7059 = vpop.f32.mrf.mxu0
      %v7060 = vadd.f32 0.0, %v7059
      %v7061 = vpop.f32.mrf.mxu0
      %v7062 = vadd.f32 0.0, %v7061
      %7063 = vmatprep.mubr.f32.mxu0 0.0
      %7064 = vmatmul.mubr.f32.gmra.mxu0 %v6979
      %v7065 = vpop.f32.mrf.mxu0
      %v7066 = vadd.f32 0.0, %v7065
      %v7067 = vpop.f32.mrf.mxu0
      %v7068 = vadd.f32 0.0, %v7067
      %7069 = vdwg.mxu0
      %7070 = vmatprep.subr.mxu0 0.0
      %7071 = vmatpush1.msra.mxu0 0.0
      %7072 = vmatprep.subr.mxu0 0.0
      %7073 = vmatpush1.msra.mxu0 0.0
      %7074 = vmatprep.subr.mxu0 0.0
      %7075 = vmatpush1.msra.mxu0 0.0
      %7076 = vmatprep.subr.mxu0 0.0
      %7077 = vmatpush1.msra.mxu0 0.0
      %7078 = vmatprep.subr.mxu0 0.0
      %7079 = vmatpush1.msra.mxu0 0.0
      %7080 = vmatprep.subr.mxu0 0.0
      %7081 = vmatpush1.msra.mxu0 0.0
      %7082 = vmatprep.subr.mxu0 0.0
      %7083 = vmatpush1.msra.mxu0 0.0
      %7084 = vmatprep.subr.mxu0 0.0
      %7085 = vmatpush1.msra.mxu0 0.0
      %7086 = vmatprep.subr.mxu0 0.0
      %7087 = vmatpush1.msra.mxu0 0.0
      %7088 = vmatprep.subr.mxu0 0.0
      %7089 = vmatpush1.msra.mxu0 0.0
      %7090 = vmatprep.subr.mxu0 0.0
      %7091 = vmatpush1.msra.mxu0 0.0
      %7092 = vmatprep.subr.mxu0 0.0
      %7093 = vmatpush1.msra.mxu0 0.0
      %7094 = vmatprep.subr.mxu0 0.0
      %7095 = vmatpush1.msra.mxu0 %v6948
      %7096 = vmatprep.subr.mxu0 0.0
      %7097 = vmatpush1.msra.mxu0 %v6942
      %7098 = vmatprep.subr.mxu0 0.0
      %7099 = vmatpush1.msra.mxu0 %v6936
      %7100 = vmatprep.subr.mxu0 0.0
      %7101 = vmatpush1.msra.mxu0 %v6930
      %7102 = vmatprep.subr.mxu0 0.0
      %7103 = vmatpush2.msra.mxu0 0.0
      %7104 = vmatprep.subr.mxu0 0.0
      %7105 = vmatpush2.msra.mxu0 0.0
      %7106 = vmatprep.subr.mxu0 0.0
      %7107 = vmatpush2.msra.mxu0 0.0
      %7108 = vmatprep.subr.mxu0 0.0
      %7109 = vmatpush2.msra.mxu0 0.0
      %7110 = vmatprep.subr.mxu0 0.0
      %7111 = vmatpush2.msra.mxu0 0.0
      %7112 = vmatprep.subr.mxu0 0.0
      %7113 = vmatpush2.msra.mxu0 0.0
      %7114 = vmatprep.subr.mxu0 0.0
      %7115 = vmatpush2.msra.mxu0 0.0
      %7116 = vmatprep.subr.mxu0 0.0
      %7117 = vmatpush2.msra.mxu0 0.0
      %7118 = vmatprep.subr.mxu0 0.0
      %7119 = vmatpush2.msra.mxu0 0.0
      %7120 = vmatprep.subr.mxu0 0.0
      %7121 = vmatpush2.msra.mxu0 0.0
      %7122 = vmatprep.subr.mxu0 0.0
      %7123 = vmatpush2.msra.mxu0 0.0
      %7124 = vmatprep.subr.mxu0 0.0
      %7125 = vmatpush2.msra.mxu0 0.0
      %7126 = vmatprep.subr.mxu0 0.0
      %7127 = vmatpush2.msra.mxu0 0.0
      %7128 = vmatprep.subr.mxu0 0.0
      %7129 = vmatpush2.msra.mxu0 0.0
      %7130 = vmatprep.subr.mxu0 0.0
      %7131 = vmatpush2.msra.mxu0 0.0
      %7132 = vmatprep.subr.mxu0 0.0
      %7133 = vmatpush2.msra.mxu0 0.0
      %7134 = vmatprep.mubr.f32.mxu0 0.0
      %7135 = vmatmul.mubr.f32.gmra.mxu0 %v6970
      %v7136 = vpop.f32.mrf.mxu0
      %v7137 = vadd.f32 0.0, %v7136
      %v7138 = vpop.f32.mrf.mxu0
      %7139 = vmatprep.mubr.f32.mxu0 0.0
      %7140 = vmatmul.mubr.f32.gmra.mxu0 %v6973
      %v7141 = vpop.f32.mrf.mxu0
      %v7142 = vadd.f32 0.0, %v7141
      %v7143 = vpop.f32.mrf.mxu0
      %7144 = vmatprep.mubr.f32.mxu0 0.0
      %7145 = vmatmul.mubr.f32.gmra.mxu0 %v6976
      %v7146 = vpop.f32.mrf.mxu0
      %v7147 = vadd.f32 0.0, %v7146
      %v7148 = vpop.f32.mrf.mxu0
      %7149 = vmatprep.mubr.f32.mxu0 0.0
      %7150 = vmatmul.mubr.f32.gmra.mxu0 %v6979
      %v7151 = vpop.f32.mrf.mxu0
      %v7152 = vadd.f32 0.0, %v7151
      %v7153 = vpop.f32.mrf.mxu0
      %7154 = vdwg.mxu0
      %v7155 = vadd.f32 %v6908, %v7048
      %v7156 = vadd.f32 %v6909, %v7050
      %v7157 = vadd.f32 %v6910, %v7137
      %v7158 = vadd.f32 %v6911, %v7054
      %v7159 = vadd.f32 %v6912, %v7056
      %v7160 = vadd.f32 %v6913, %v7142
      %v7161 = vadd.f32 %v6914, %v7060
      %v7162 = vadd.f32 %v6915, %v7062
      %v7163 = vadd.f32 %v6916, %v7147
      %v7164 = vadd.f32 %v6917, %v7066
      %v7165 = vadd.f32 %v6918, %v7068
      %v7166 = vadd.f32 %v6919, %v7152
      %s7167 = scalar_lea.vmem %s3, 192
      %v7168 = vld [vmem:[%s7167] sm:$0xff]
      %v7169 = vld [vmem:[%s7167 + $0x8] sm:$0xff]
      %v7170 = vld [vmem:[%s7167 + $0x10] sm:$0xff]
      %v7171 = vld [vmem:[%s7167 + $0x18] sm:$0xff]
      %7172 = vrot.lane.b32.xlu0 %v5662, 75
      %v7173 = vpop.permute.xlu0 %7172
      %7174 = vrot.lane.b32.xlu0 %v5663, 75
      %v7175 = vpop.permute.xlu0 %7174
      %7176 = vrot.lane.b32.xlu0 %v5664, 75
      %v7177 = vpop.permute.xlu0 %7176
      %7178 = vrot.lane.b32.xlu0 %v5665, 75
      %v7179 = vpop.permute.xlu0 %7178
      %7180 = vrot.lane.b32.xlu0 %v5666, 75
      %v7181 = vpop.permute.xlu0 %7180
      %7182 = vrot.lane.b32.xlu0 %v5667, 75
      %v7183 = vpop.permute.xlu0 %7182
      %7184 = vrot.lane.b32.xlu0 %v5668, 75
      %v7185 = vpop.permute.xlu0 %7184
      %7186 = vrot.lane.b32.xlu0 %v5669, 75
      %v7187 = vpop.permute.xlu0 %7186
      %7188 = vrot.lane.b32.xlu0 %v5670, 75
      %v7189 = vpop.permute.xlu0 %7188
      %7190 = vrot.lane.b32.xlu0 %v5671, 75
      %v7191 = vpop.permute.xlu0 %7190
      %7192 = vrot.lane.b32.xlu0 %v5672, 75
      %v7193 = vpop.permute.xlu0 %7192
      %7194 = vrot.lane.b32.xlu0 %v5673, 75
      %v7195 = vpop.permute.xlu0 %7194
      %v7196 = vsel %vm2234, %v7173, %v7175
      %v7197 = vsel %vm2234, %v7175, %v7177
      %v7198 = vsel %vm2234, %v7179, %v7181
      %v7199 = vsel %vm2234, %v7181, %v7183
      %v7200 = vsel %vm2234, %v7185, %v7187
      %v7201 = vsel %vm2234, %v7187, %v7189
      %v7202 = vsel %vm2234, %v7191, %v7193
      %v7203 = vsel %vm2234, %v7193, %v7195
      %v7217 = vsel %vm718, %v7168, 0
      %v7220 = vsel %vm718, %v7169, 0
      %v7223 = vsel %vm718, %v7170, 0
      %v7226 = vsel %vm718, %v7171, 0
      %7228 = vmatprep.subr.mxu0 0.0
      %7229 = vmatpush1.msra.mxu0 0.0
      %7230 = vmatprep.subr.mxu0 0.0
      %7231 = vmatpush1.msra.mxu0 0.0
      %7232 = vmatprep.subr.mxu0 0.0
      %7233 = vmatpush1.msra.mxu0 0.0
      %7234 = vmatprep.subr.mxu0 0.0
      %7235 = vmatpush1.msra.mxu0 0.0
      %7236 = vmatprep.subr.mxu0 0.0
      %7237 = vmatpush1.msra.mxu0 0.0
      %7238 = vmatprep.subr.mxu0 0.0
      %7239 = vmatpush1.msra.mxu0 0.0
      %7240 = vmatprep.subr.mxu0 0.0
      %7241 = vmatpush1.msra.mxu0 0.0
      %7242 = vmatprep.subr.mxu0 0.0
      %7243 = vmatpush1.msra.mxu0 0.0
      %7244 = vmatprep.subr.mxu0 0.0
      %7245 = vmatpush1.msra.mxu0 0.0
      %7246 = vmatprep.subr.mxu0 0.0
      %7247 = vmatpush1.msra.mxu0 0.0
      %7248 = vmatprep.subr.mxu0 0.0
      %7249 = vmatpush1.msra.mxu0 0.0
      %7250 = vmatprep.subr.mxu0 0.0
      %7251 = vmatpush1.msra.mxu0 0.0
      %7252 = vmatprep.subr.mxu0 %v7203
      %7253 = vmatpush1.msra.mxu0 %v7202
      %7254 = vmatprep.subr.mxu0 %v7201
      %7255 = vmatpush1.msra.mxu0 %v7200
      %7256 = vmatprep.subr.mxu0 %v7199
      %7257 = vmatpush1.msra.mxu0 %v7198
      %7258 = vmatprep.subr.mxu0 %v7197
      %7259 = vmatpush1.msra.mxu0 %v7196
      %7260 = vmatprep.subr.mxu0 0.0
      %7261 = vmatpush2.msra.mxu0 0.0
      %7262 = vmatprep.subr.mxu0 0.0
      %7263 = vmatpush2.msra.mxu0 0.0
      %7264 = vmatprep.subr.mxu0 0.0
      %7265 = vmatpush2.msra.mxu0 0.0
      %7266 = vmatprep.subr.mxu0 0.0
      %7267 = vmatpush2.msra.mxu0 0.0
      %7268 = vmatprep.subr.mxu0 0.0
      %7269 = vmatpush2.msra.mxu0 0.0
      %7270 = vmatprep.subr.mxu0 0.0
      %7271 = vmatpush2.msra.mxu0 0.0
      %7272 = vmatprep.subr.mxu0 0.0
      %7273 = vmatpush2.msra.mxu0 0.0
      %7274 = vmatprep.subr.mxu0 0.0
      %7275 = vmatpush2.msra.mxu0 0.0
      %7276 = vmatprep.subr.mxu0 0.0
      %7277 = vmatpush2.msra.mxu0 0.0
      %7278 = vmatprep.subr.mxu0 0.0
      %7279 = vmatpush2.msra.mxu0 0.0
      %7280 = vmatprep.subr.mxu0 0.0
      %7281 = vmatpush2.msra.mxu0 0.0
      %7282 = vmatprep.subr.mxu0 0.0
      %7283 = vmatpush2.msra.mxu0 0.0
      %7284 = vmatprep.subr.mxu0 0.0
      %7285 = vmatpush2.msra.mxu0 0.0
      %7286 = vmatprep.subr.mxu0 0.0
      %7287 = vmatpush2.msra.mxu0 0.0
      %7288 = vmatprep.subr.mxu0 0.0
      %7289 = vmatpush2.msra.mxu0 0.0
      %7290 = vmatprep.subr.mxu0 0.0
      %7291 = vmatpush2.msra.mxu0 0.0
      %7292 = vmatprep.mubr.f32.mxu0 0.0
      %7293 = vmatmul.mubr.f32.gmra.mxu0 %v7217
      %v7294 = vpop.f32.mrf.mxu0
      %v7295 = vadd.f32 0.0, %v7294
      %v7296 = vpop.f32.mrf.mxu0
      %v7297 = vadd.f32 0.0, %v7296
      %7298 = vmatprep.mubr.f32.mxu0 0.0
      %7299 = vmatmul.mubr.f32.gmra.mxu0 %v7220
      %v7300 = vpop.f32.mrf.mxu0
      %v7301 = vadd.f32 0.0, %v7300
      %v7302 = vpop.f32.mrf.mxu0
      %v7303 = vadd.f32 0.0, %v7302
      %7304 = vmatprep.mubr.f32.mxu0 0.0
      %7305 = vmatmul.mubr.f32.gmra.mxu0 %v7223
      %v7306 = vpop.f32.mrf.mxu0
      %v7307 = vadd.f32 0.0, %v7306
      %v7308 = vpop.f32.mrf.mxu0
      %v7309 = vadd.f32 0.0, %v7308
      %7310 = vmatprep.mubr.f32.mxu0 0.0
      %7311 = vmatmul.mubr.f32.gmra.mxu0 %v7226
      %v7312 = vpop.f32.mrf.mxu0
      %v7313 = vadd.f32 0.0, %v7312
      %v7314 = vpop.f32.mrf.mxu0
      %v7315 = vadd.f32 0.0, %v7314
      %7316 = vdwg.mxu0
      %7317 = vmatprep.subr.mxu0 0.0
      %7318 = vmatpush1.msra.mxu0 0.0
      %7319 = vmatprep.subr.mxu0 0.0
      %7320 = vmatpush1.msra.mxu0 0.0
      %7321 = vmatprep.subr.mxu0 0.0
      %7322 = vmatpush1.msra.mxu0 0.0
      %7323 = vmatprep.subr.mxu0 0.0
      %7324 = vmatpush1.msra.mxu0 0.0
      %7325 = vmatprep.subr.mxu0 0.0
      %7326 = vmatpush1.msra.mxu0 0.0
      %7327 = vmatprep.subr.mxu0 0.0
      %7328 = vmatpush1.msra.mxu0 0.0
      %7329 = vmatprep.subr.mxu0 0.0
      %7330 = vmatpush1.msra.mxu0 0.0
      %7331 = vmatprep.subr.mxu0 0.0
      %7332 = vmatpush1.msra.mxu0 0.0
      %7333 = vmatprep.subr.mxu0 0.0
      %7334 = vmatpush1.msra.mxu0 0.0
      %7335 = vmatprep.subr.mxu0 0.0
      %7336 = vmatpush1.msra.mxu0 0.0
      %7337 = vmatprep.subr.mxu0 0.0
      %7338 = vmatpush1.msra.mxu0 0.0
      %7339 = vmatprep.subr.mxu0 0.0
      %7340 = vmatpush1.msra.mxu0 0.0
      %7341 = vmatprep.subr.mxu0 0.0
      %7342 = vmatpush1.msra.mxu0 %v7195
      %7343 = vmatprep.subr.mxu0 0.0
      %7344 = vmatpush1.msra.mxu0 %v7189
      %7345 = vmatprep.subr.mxu0 0.0
      %7346 = vmatpush1.msra.mxu0 %v7183
      %7347 = vmatprep.subr.mxu0 0.0
      %7348 = vmatpush1.msra.mxu0 %v7177
      %7349 = vmatprep.subr.mxu0 0.0
      %7350 = vmatpush2.msra.mxu0 0.0
      %7351 = vmatprep.subr.mxu0 0.0
      %7352 = vmatpush2.msra.mxu0 0.0
      %7353 = vmatprep.subr.mxu0 0.0
      %7354 = vmatpush2.msra.mxu0 0.0
      %7355 = vmatprep.subr.mxu0 0.0
      %7356 = vmatpush2.msra.mxu0 0.0
      %7357 = vmatprep.subr.mxu0 0.0
      %7358 = vmatpush2.msra.mxu0 0.0
      %7359 = vmatprep.subr.mxu0 0.0
      %7360 = vmatpush2.msra.mxu0 0.0
      %7361 = vmatprep.subr.mxu0 0.0
      %7362 = vmatpush2.msra.mxu0 0.0
      %7363 = vmatprep.subr.mxu0 0.0
      %7364 = vmatpush2.msra.mxu0 0.0
      %7365 = vmatprep.subr.mxu0 0.0
      %7366 = vmatpush2.msra.mxu0 0.0
      %7367 = vmatprep.subr.mxu0 0.0
      %7368 = vmatpush2.msra.mxu0 0.0
      %7369 = vmatprep.subr.mxu0 0.0
      %7370 = vmatpush2.msra.mxu0 0.0
      %7371 = vmatprep.subr.mxu0 0.0
      %7372 = vmatpush2.msra.mxu0 0.0
      %7373 = vmatprep.subr.mxu0 0.0
      %7374 = vmatpush2.msra.mxu0 0.0
      %7375 = vmatprep.subr.mxu0 0.0
      %7376 = vmatpush2.msra.mxu0 0.0
      %7377 = vmatprep.subr.mxu0 0.0
      %7378 = vmatpush2.msra.mxu0 0.0
      %7379 = vmatprep.subr.mxu0 0.0
      %7380 = vmatpush2.msra.mxu0 0.0
      %7381 = vmatprep.mubr.f32.mxu0 0.0
      %7382 = vmatmul.mubr.f32.gmra.mxu0 %v7217
      %v7383 = vpop.f32.mrf.mxu0
      %v7384 = vadd.f32 0.0, %v7383
      %v7385 = vpop.f32.mrf.mxu0
      %7386 = vmatprep.mubr.f32.mxu0 0.0
      %7387 = vmatmul.mubr.f32.gmra.mxu0 %v7220
      %v7388 = vpop.f32.mrf.mxu0
      %v7389 = vadd.f32 0.0, %v7388
      %v7390 = vpop.f32.mrf.mxu0
      %7391 = vmatprep.mubr.f32.mxu0 0.0
      %7392 = vmatmul.mubr.f32.gmra.mxu0 %v7223
      %v7393 = vpop.f32.mrf.mxu0
      %v7394 = vadd.f32 0.0, %v7393
      %v7395 = vpop.f32.mrf.mxu0
      %7396 = vmatprep.mubr.f32.mxu0 0.0
      %7397 = vmatmul.mubr.f32.gmra.mxu0 %v7226
      %v7398 = vpop.f32.mrf.mxu0
      %v7399 = vadd.f32 0.0, %v7398
      %v7400 = vpop.f32.mrf.mxu0
      %7401 = vdwg.mxu0
      %v7402 = vadd.f32 %v7155, %v7295
      %v7403 = vadd.f32 %v7156, %v7297
      %v7404 = vadd.f32 %v7157, %v7384
      %v7405 = vadd.f32 %v7158, %v7301
      %v7406 = vadd.f32 %v7159, %v7303
      %v7407 = vadd.f32 %v7160, %v7389
      %v7408 = vadd.f32 %v7161, %v7307
      %v7409 = vadd.f32 %v7162, %v7309
      %v7410 = vadd.f32 %v7163, %v7394
      %v7411 = vadd.f32 %v7164, %v7313
      %v7412 = vadd.f32 %v7165, %v7315
      %v7413 = vadd.f32 %v7166, %v7399
      %s7414 = scalar_lea.vmem %s3, 224
      %v7415 = vld [vmem:[%s7414] sm:$0xff]
      %v7416 = vld [vmem:[%s7414 + $0x8] sm:$0xff]
      %v7417 = vld [vmem:[%s7414 + $0x10] sm:$0xff]
      %v7418 = vld [vmem:[%s7414 + $0x18] sm:$0xff]
      %7419 = vrot.lane.b32.xlu0 %v5662, 74
      %v7420 = vpop.permute.xlu0 %7419
      %7421 = vrot.lane.b32.xlu0 %v5663, 74
      %v7422 = vpop.permute.xlu0 %7421
      %7423 = vrot.lane.b32.xlu0 %v5664, 74
      %v7424 = vpop.permute.xlu0 %7423
      %7425 = vrot.lane.b32.xlu0 %v5665, 74
      %v7426 = vpop.permute.xlu0 %7425
      %7427 = vrot.lane.b32.xlu0 %v5666, 74
      %v7428 = vpop.permute.xlu0 %7427
      %7429 = vrot.lane.b32.xlu0 %v5667, 74
      %v7430 = vpop.permute.xlu0 %7429
      %7431 = vrot.lane.b32.xlu0 %v5668, 74
      %v7432 = vpop.permute.xlu0 %7431
      %7433 = vrot.lane.b32.xlu0 %v5669, 74
      %v7434 = vpop.permute.xlu0 %7433
      %7435 = vrot.lane.b32.xlu0 %v5670, 74
      %v7436 = vpop.permute.xlu0 %7435
      %7437 = vrot.lane.b32.xlu0 %v5671, 74
      %v7438 = vpop.permute.xlu0 %7437
      %7439 = vrot.lane.b32.xlu0 %v5672, 74
      %v7440 = vpop.permute.xlu0 %7439
      %7441 = vrot.lane.b32.xlu0 %v5673, 74
      %v7442 = vpop.permute.xlu0 %7441
      %v7443 = vsel %vm2471, %v7420, %v7422
      %v7444 = vsel %vm2471, %v7422, %v7424
      %v7445 = vsel %vm2471, %v7426, %v7428
      %v7446 = vsel %vm2471, %v7428, %v7430
      %v7447 = vsel %vm2471, %v7432, %v7434
      %v7448 = vsel %vm2471, %v7434, %v7436
      %v7449 = vsel %vm2471, %v7438, %v7440
      %v7450 = vsel %vm2471, %v7440, %v7442
      %v7464 = vsel %vm718, %v7415, 0
      %v7467 = vsel %vm718, %v7416, 0
      %v7470 = vsel %vm718, %v7417, 0
      %v7473 = vsel %vm718, %v7418, 0
      %7475 = vmatprep.subr.mxu0 0.0
      %7476 = vmatpush1.msra.mxu0 0.0
      %7477 = vmatprep.subr.mxu0 0.0
      %7478 = vmatpush1.msra.mxu0 0.0
      %7479 = vmatprep.subr.mxu0 0.0
      %7480 = vmatpush1.msra.mxu0 0.0
      %7481 = vmatprep.subr.mxu0 0.0
      %7482 = vmatpush1.msra.mxu0 0.0
      %7483 = vmatprep.subr.mxu0 0.0
      %7484 = vmatpush1.msra.mxu0 0.0
      %7485 = vmatprep.subr.mxu0 0.0
      %7486 = vmatpush1.msra.mxu0 0.0
      %7487 = vmatprep.subr.mxu0 0.0
      %7488 = vmatpush1.msra.mxu0 0.0
      %7489 = vmatprep.subr.mxu0 0.0
      %7490 = vmatpush1.msra.mxu0 0.0
      %7491 = vmatprep.subr.mxu0 0.0
      %7492 = vmatpush1.msra.mxu0 0.0
      %7493 = vmatprep.subr.mxu0 0.0
      %7494 = vmatpush1.msra.mxu0 0.0
      %7495 = vmatprep.subr.mxu0 0.0
      %7496 = vmatpush1.msra.mxu0 0.0
      %7497 = vmatprep.subr.mxu0 0.0
      %7498 = vmatpush1.msra.mxu0 0.0
      %7499 = vmatprep.subr.mxu0 %v7450
      %7500 = vmatpush1.msra.mxu0 %v7449
      %7501 = vmatprep.subr.mxu0 %v7448
      %7502 = vmatpush1.msra.mxu0 %v7447
      %7503 = vmatprep.subr.mxu0 %v7446
      %7504 = vmatpush1.msra.mxu0 %v7445
      %7505 = vmatprep.subr.mxu0 %v7444
      %7506 = vmatpush1.msra.mxu0 %v7443
      %7507 = vmatprep.subr.mxu0 0.0
      %7508 = vmatpush2.msra.mxu0 0.0
      %7509 = vmatprep.subr.mxu0 0.0
      %7510 = vmatpush2.msra.mxu0 0.0
      %7511 = vmatprep.subr.mxu0 0.0
      %7512 = vmatpush2.msra.mxu0 0.0
      %7513 = vmatprep.subr.mxu0 0.0
      %7514 = vmatpush2.msra.mxu0 0.0
      %7515 = vmatprep.subr.mxu0 0.0
      %7516 = vmatpush2.msra.mxu0 0.0
      %7517 = vmatprep.subr.mxu0 0.0
      %7518 = vmatpush2.msra.mxu0 0.0
      %7519 = vmatprep.subr.mxu0 0.0
      %7520 = vmatpush2.msra.mxu0 0.0
      %7521 = vmatprep.subr.mxu0 0.0
      %7522 = vmatpush2.msra.mxu0 0.0
      %7523 = vmatprep.subr.mxu0 0.0
      %7524 = vmatpush2.msra.mxu0 0.0
      %7525 = vmatprep.subr.mxu0 0.0
      %7526 = vmatpush2.msra.mxu0 0.0
      %7527 = vmatprep.subr.mxu0 0.0
      %7528 = vmatpush2.msra.mxu0 0.0
      %7529 = vmatprep.subr.mxu0 0.0
      %7530 = vmatpush2.msra.mxu0 0.0
      %7531 = vmatprep.subr.mxu0 0.0
      %7532 = vmatpush2.msra.mxu0 0.0
      %7533 = vmatprep.subr.mxu0 0.0
      %7534 = vmatpush2.msra.mxu0 0.0
      %7535 = vmatprep.subr.mxu0 0.0
      %7536 = vmatpush2.msra.mxu0 0.0
      %7537 = vmatprep.subr.mxu0 0.0
      %7538 = vmatpush2.msra.mxu0 0.0
      %7539 = vmatprep.mubr.f32.mxu0 0.0
      %7540 = vmatmul.mubr.f32.gmra.mxu0 %v7464
      %v7541 = vpop.f32.mrf.mxu0
      %v7542 = vadd.f32 0.0, %v7541
      %v7543 = vpop.f32.mrf.mxu0
      %v7544 = vadd.f32 0.0, %v7543
      %7545 = vmatprep.mubr.f32.mxu0 0.0
      %7546 = vmatmul.mubr.f32.gmra.mxu0 %v7467
      %v7547 = vpop.f32.mrf.mxu0
      %v7548 = vadd.f32 0.0, %v7547
      %v7549 = vpop.f32.mrf.mxu0
      %v7550 = vadd.f32 0.0, %v7549
      %7551 = vmatprep.mubr.f32.mxu0 0.0
      %7552 = vmatmul.mubr.f32.gmra.mxu0 %v7470
      %v7553 = vpop.f32.mrf.mxu0
      %v7554 = vadd.f32 0.0, %v7553
      %v7555 = vpop.f32.mrf.mxu0
      %v7556 = vadd.f32 0.0, %v7555
      %7557 = vmatprep.mubr.f32.mxu0 0.0
      %7558 = vmatmul.mubr.f32.gmra.mxu0 %v7473
      %v7559 = vpop.f32.mrf.mxu0
      %v7560 = vadd.f32 0.0, %v7559
      %v7561 = vpop.f32.mrf.mxu0
      %v7562 = vadd.f32 0.0, %v7561
      %7563 = vdwg.mxu0
      %7564 = vmatprep.subr.mxu0 0.0
      %7565 = vmatpush1.msra.mxu0 0.0
      %7566 = vmatprep.subr.mxu0 0.0
      %7567 = vmatpush1.msra.mxu0 0.0
      %7568 = vmatprep.subr.mxu0 0.0
      %7569 = vmatpush1.msra.mxu0 0.0
      %7570 = vmatprep.subr.mxu0 0.0
      %7571 = vmatpush1.msra.mxu0 0.0
      %7572 = vmatprep.subr.mxu0 0.0
      %7573 = vmatpush1.msra.mxu0 0.0
      %7574 = vmatprep.subr.mxu0 0.0
      %7575 = vmatpush1.msra.mxu0 0.0
      %7576 = vmatprep.subr.mxu0 0.0
      %7577 = vmatpush1.msra.mxu0 0.0
      %7578 = vmatprep.subr.mxu0 0.0
      %7579 = vmatpush1.msra.mxu0 0.0
      %7580 = vmatprep.subr.mxu0 0.0
      %7581 = vmatpush1.msra.mxu0 0.0
      %7582 = vmatprep.subr.mxu0 0.0
      %7583 = vmatpush1.msra.mxu0 0.0
      %7584 = vmatprep.subr.mxu0 0.0
      %7585 = vmatpush1.msra.mxu0 0.0
      %7586 = vmatprep.subr.mxu0 0.0
      %7587 = vmatpush1.msra.mxu0 0.0
      %7588 = vmatprep.subr.mxu0 0.0
      %7589 = vmatpush1.msra.mxu0 %v7442
      %7590 = vmatprep.subr.mxu0 0.0
      %7591 = vmatpush1.msra.mxu0 %v7436
      %7592 = vmatprep.subr.mxu0 0.0
      %7593 = vmatpush1.msra.mxu0 %v7430
      %7594 = vmatprep.subr.mxu0 0.0
      %7595 = vmatpush1.msra.mxu0 %v7424
      %7596 = vmatprep.subr.mxu0 0.0
      %7597 = vmatpush2.msra.mxu0 0.0
      %7598 = vmatprep.subr.mxu0 0.0
      %7599 = vmatpush2.msra.mxu0 0.0
      %7600 = vmatprep.subr.mxu0 0.0
      %7601 = vmatpush2.msra.mxu0 0.0
      %7602 = vmatprep.subr.mxu0 0.0
      %7603 = vmatpush2.msra.mxu0 0.0
      %7604 = vmatprep.subr.mxu0 0.0
      %7605 = vmatpush2.msra.mxu0 0.0
      %7606 = vmatprep.subr.mxu0 0.0
      %7607 = vmatpush2.msra.mxu0 0.0
      %7608 = vmatprep.subr.mxu0 0.0
      %7609 = vmatpush2.msra.mxu0 0.0
      %7610 = vmatprep.subr.mxu0 0.0
      %7611 = vmatpush2.msra.mxu0 0.0
      %7612 = vmatprep.subr.mxu0 0.0
      %7613 = vmatpush2.msra.mxu0 0.0
      %7614 = vmatprep.subr.mxu0 0.0
      %7615 = vmatpush2.msra.mxu0 0.0
      %7616 = vmatprep.subr.mxu0 0.0
      %7617 = vmatpush2.msra.mxu0 0.0
      %7618 = vmatprep.subr.mxu0 0.0
      %7619 = vmatpush2.msra.mxu0 0.0
      %7620 = vmatprep.subr.mxu0 0.0
      %7621 = vmatpush2.msra.mxu0 0.0
      %7622 = vmatprep.subr.mxu0 0.0
      %7623 = vmatpush2.msra.mxu0 0.0
      %7624 = vmatprep.subr.mxu0 0.0
      %7625 = vmatpush2.msra.mxu0 0.0
      %7626 = vmatprep.subr.mxu0 0.0
      %7627 = vmatpush2.msra.mxu0 0.0
      %7628 = vmatprep.mubr.f32.mxu0 0.0
      %7629 = vmatmul.mubr.f32.gmra.mxu0 %v7464
      %v7630 = vpop.f32.mrf.mxu0
      %v7631 = vadd.f32 0.0, %v7630
      %v7632 = vpop.f32.mrf.mxu0
      %7633 = vmatprep.mubr.f32.mxu0 0.0
      %7634 = vmatmul.mubr.f32.gmra.mxu0 %v7467
      %v7635 = vpop.f32.mrf.mxu0
      %v7636 = vadd.f32 0.0, %v7635
      %v7637 = vpop.f32.mrf.mxu0
      %7638 = vmatprep.mubr.f32.mxu0 0.0
      %7639 = vmatmul.mubr.f32.gmra.mxu0 %v7470
      %v7640 = vpop.f32.mrf.mxu0
      %v7641 = vadd.f32 0.0, %v7640
      %v7642 = vpop.f32.mrf.mxu0
      %7643 = vmatprep.mubr.f32.mxu0 0.0
      %7644 = vmatmul.mubr.f32.gmra.mxu0 %v7473
      %v7645 = vpop.f32.mrf.mxu0
      %v7646 = vadd.f32 0.0, %v7645
      %v7647 = vpop.f32.mrf.mxu0
      %7648 = vdwg.mxu0
      %v7649 = vadd.f32 %v7402, %v7542
      %v7650 = vadd.f32 %v7403, %v7544
      %v7651 = vadd.f32 %v7404, %v7631
      %v7652 = vadd.f32 %v7405, %v7548
      %v7653 = vadd.f32 %v7406, %v7550
      %v7654 = vadd.f32 %v7407, %v7636
      %v7655 = vadd.f32 %v7408, %v7554
      %v7656 = vadd.f32 %v7409, %v7556
      %v7657 = vadd.f32 %v7410, %v7641
      %v7658 = vadd.f32 %v7411, %v7560
      %v7659 = vadd.f32 %v7412, %v7562
      %v7660 = vadd.f32 %v7413, %v7646
      %s7661 = scalar_lea.vmem %s3, 256
      %v7662 = vld [vmem:[%s7661] sm:$0xff]
      %v7663 = vld [vmem:[%s7661 + $0x8] sm:$0xff]
      %v7664 = vld [vmem:[%s7661 + $0x10] sm:$0xff]
      %v7665 = vld [vmem:[%s7661 + $0x18] sm:$0xff]
      %7666 = vrot.lane.b32.xlu0 %v5662, 73
      %v7667 = vpop.permute.xlu0 %7666
      %7668 = vrot.lane.b32.xlu0 %v5663, 73
      %v7669 = vpop.permute.xlu0 %7668
      %7670 = vrot.lane.b32.xlu0 %v5664, 73
      %v7671 = vpop.permute.xlu0 %7670
      %7672 = vrot.lane.b32.xlu0 %v5665, 73
      %v7673 = vpop.permute.xlu0 %7672
      %7674 = vrot.lane.b32.xlu0 %v5666, 73
      %v7675 = vpop.permute.xlu0 %7674
      %7676 = vrot.lane.b32.xlu0 %v5667, 73
      %v7677 = vpop.permute.xlu0 %7676
      %7678 = vrot.lane.b32.xlu0 %v5668, 73
      %v7679 = vpop.permute.xlu0 %7678
      %7680 = vrot.lane.b32.xlu0 %v5669, 73
      %v7681 = vpop.permute.xlu0 %7680
      %7682 = vrot.lane.b32.xlu0 %v5670, 73
      %v7683 = vpop.permute.xlu0 %7682
      %7684 = vrot.lane.b32.xlu0 %v5671, 73
      %v7685 = vpop.permute.xlu0 %7684
      %7686 = vrot.lane.b32.xlu0 %v5672, 73
      %v7687 = vpop.permute.xlu0 %7686
      %7688 = vrot.lane.b32.xlu0 %v5673, 73
      %v7689 = vpop.permute.xlu0 %7688
      %v7690 = vsel %vm2708, %v7667, %v7669
      %v7691 = vsel %vm2708, %v7669, %v7671
      %v7692 = vsel %vm2708, %v7673, %v7675
      %v7693 = vsel %vm2708, %v7675, %v7677
      %v7694 = vsel %vm2708, %v7679, %v7681
      %v7695 = vsel %vm2708, %v7681, %v7683
      %v7696 = vsel %vm2708, %v7685, %v7687
      %v7697 = vsel %vm2708, %v7687, %v7689
      %v7711 = vsel %vm718, %v7662, 0
      %v7714 = vsel %vm718, %v7663, 0
      %v7717 = vsel %vm718, %v7664, 0
      %v7720 = vsel %vm718, %v7665, 0
      %7722 = vmatprep.subr.mxu0 0.0
      %7723 = vmatpush1.msra.mxu0 0.0
      %7724 = vmatprep.subr.mxu0 0.0
      %7725 = vmatpush1.msra.mxu0 0.0
      %7726 = vmatprep.subr.mxu0 0.0
      %7727 = vmatpush1.msra.mxu0 0.0
      %7728 = vmatprep.subr.mxu0 0.0
      %7729 = vmatpush1.msra.mxu0 0.0
      %7730 = vmatprep.subr.mxu0 0.0
      %7731 = vmatpush1.msra.mxu0 0.0
      %7732 = vmatprep.subr.mxu0 0.0
      %7733 = vmatpush1.msra.mxu0 0.0
      %7734 = vmatprep.subr.mxu0 0.0
      %7735 = vmatpush1.msra.mxu0 0.0
      %7736 = vmatprep.subr.mxu0 0.0
      %7737 = vmatpush1.msra.mxu0 0.0
      %7738 = vmatprep.subr.mxu0 0.0
      %7739 = vmatpush1.msra.mxu0 0.0
      %7740 = vmatprep.subr.mxu0 0.0
      %7741 = vmatpush1.msra.mxu0 0.0
      %7742 = vmatprep.subr.mxu0 0.0
      %7743 = vmatpush1.msra.mxu0 0.0
      %7744 = vmatprep.subr.mxu0 0.0
      %7745 = vmatpush1.msra.mxu0 0.0
      %7746 = vmatprep.subr.mxu0 %v7697
      %7747 = vmatpush1.msra.mxu0 %v7696
      %7748 = vmatprep.subr.mxu0 %v7695
      %7749 = vmatpush1.msra.mxu0 %v7694
      %7750 = vmatprep.subr.mxu0 %v7693
      %7751 = vmatpush1.msra.mxu0 %v7692
      %7752 = vmatprep.subr.mxu0 %v7691
      %7753 = vmatpush1.msra.mxu0 %v7690
      %7754 = vmatprep.subr.mxu0 0.0
      %7755 = vmatpush2.msra.mxu0 0.0
      %7756 = vmatprep.subr.mxu0 0.0
      %7757 = vmatpush2.msra.mxu0 0.0
      %7758 = vmatprep.subr.mxu0 0.0
      %7759 = vmatpush2.msra.mxu0 0.0
      %7760 = vmatprep.subr.mxu0 0.0
      %7761 = vmatpush2.msra.mxu0 0.0
      %7762 = vmatprep.subr.mxu0 0.0
      %7763 = vmatpush2.msra.mxu0 0.0
      %7764 = vmatprep.subr.mxu0 0.0
      %7765 = vmatpush2.msra.mxu0 0.0
      %7766 = vmatprep.subr.mxu0 0.0
      %7767 = vmatpush2.msra.mxu0 0.0
      %7768 = vmatprep.subr.mxu0 0.0
      %7769 = vmatpush2.msra.mxu0 0.0
      %7770 = vmatprep.subr.mxu0 0.0
      %7771 = vmatpush2.msra.mxu0 0.0
      %7772 = vmatprep.subr.mxu0 0.0
      %7773 = vmatpush2.msra.mxu0 0.0
      %7774 = vmatprep.subr.mxu0 0.0
      %7775 = vmatpush2.msra.mxu0 0.0
      %7776 = vmatprep.subr.mxu0 0.0
      %7777 = vmatpush2.msra.mxu0 0.0
      %7778 = vmatprep.subr.mxu0 0.0
      %7779 = vmatpush2.msra.mxu0 0.0
      %7780 = vmatprep.subr.mxu0 0.0
      %7781 = vmatpush2.msra.mxu0 0.0
      %7782 = vmatprep.subr.mxu0 0.0
      %7783 = vmatpush2.msra.mxu0 0.0
      %7784 = vmatprep.subr.mxu0 0.0
      %7785 = vmatpush2.msra.mxu0 0.0
      %7786 = vmatprep.mubr.f32.mxu0 0.0
      %7787 = vmatmul.mubr.f32.gmra.mxu0 %v7711
      %v7788 = vpop.f32.mrf.mxu0
      %v7789 = vadd.f32 0.0, %v7788
      %v7790 = vpop.f32.mrf.mxu0
      %v7791 = vadd.f32 0.0, %v7790
      %7792 = vmatprep.mubr.f32.mxu0 0.0
      %7793 = vmatmul.mubr.f32.gmra.mxu0 %v7714
      %v7794 = vpop.f32.mrf.mxu0
      %v7795 = vadd.f32 0.0, %v7794
      %v7796 = vpop.f32.mrf.mxu0
      %v7797 = vadd.f32 0.0, %v7796
      %7798 = vmatprep.mubr.f32.mxu0 0.0
      %7799 = vmatmul.mubr.f32.gmra.mxu0 %v7717
      %v7800 = vpop.f32.mrf.mxu0
      %v7801 = vadd.f32 0.0, %v7800
      %v7802 = vpop.f32.mrf.mxu0
      %v7803 = vadd.f32 0.0, %v7802
      %7804 = vmatprep.mubr.f32.mxu0 0.0
      %7805 = vmatmul.mubr.f32.gmra.mxu0 %v7720
      %v7806 = vpop.f32.mrf.mxu0
      %v7807 = vadd.f32 0.0, %v7806
      %v7808 = vpop.f32.mrf.mxu0
      %v7809 = vadd.f32 0.0, %v7808
      %7810 = vdwg.mxu0
      %7811 = vmatprep.subr.mxu0 0.0
      %7812 = vmatpush1.msra.mxu0 0.0
      %7813 = vmatprep.subr.mxu0 0.0
      %7814 = vmatpush1.msra.mxu0 0.0
      %7815 = vmatprep.subr.mxu0 0.0
      %7816 = vmatpush1.msra.mxu0 0.0
      %7817 = vmatprep.subr.mxu0 0.0
      %7818 = vmatpush1.msra.mxu0 0.0
      %7819 = vmatprep.subr.mxu0 0.0
      %7820 = vmatpush1.msra.mxu0 0.0
      %7821 = vmatprep.subr.mxu0 0.0
      %7822 = vmatpush1.msra.mxu0 0.0
      %7823 = vmatprep.subr.mxu0 0.0
      %7824 = vmatpush1.msra.mxu0 0.0
      %7825 = vmatprep.subr.mxu0 0.0
      %7826 = vmatpush1.msra.mxu0 0.0
      %7827 = vmatprep.subr.mxu0 0.0
      %7828 = vmatpush1.msra.mxu0 0.0
      %7829 = vmatprep.subr.mxu0 0.0
      %7830 = vmatpush1.msra.mxu0 0.0
      %7831 = vmatprep.subr.mxu0 0.0
      %7832 = vmatpush1.msra.mxu0 0.0
      %7833 = vmatprep.subr.mxu0 0.0
      %7834 = vmatpush1.msra.mxu0 0.0
      %7835 = vmatprep.subr.mxu0 0.0
      %7836 = vmatpush1.msra.mxu0 %v7689
      %7837 = vmatprep.subr.mxu0 0.0
      %7838 = vmatpush1.msra.mxu0 %v7683
      %7839 = vmatprep.subr.mxu0 0.0
      %7840 = vmatpush1.msra.mxu0 %v7677
      %7841 = vmatprep.subr.mxu0 0.0
      %7842 = vmatpush1.msra.mxu0 %v7671
      %7843 = vmatprep.subr.mxu0 0.0
      %7844 = vmatpush2.msra.mxu0 0.0
      %7845 = vmatprep.subr.mxu0 0.0
      %7846 = vmatpush2.msra.mxu0 0.0
      %7847 = vmatprep.subr.mxu0 0.0
      %7848 = vmatpush2.msra.mxu0 0.0
      %7849 = vmatprep.subr.mxu0 0.0
      %7850 = vmatpush2.msra.mxu0 0.0
      %7851 = vmatprep.subr.mxu0 0.0
      %7852 = vmatpush2.msra.mxu0 0.0
      %7853 = vmatprep.subr.mxu0 0.0
      %7854 = vmatpush2.msra.mxu0 0.0
      %7855 = vmatprep.subr.mxu0 0.0
      %7856 = vmatpush2.msra.mxu0 0.0
      %7857 = vmatprep.subr.mxu0 0.0
      %7858 = vmatpush2.msra.mxu0 0.0
      %7859 = vmatprep.subr.mxu0 0.0
      %7860 = vmatpush2.msra.mxu0 0.0
      %7861 = vmatprep.subr.mxu0 0.0
      %7862 = vmatpush2.msra.mxu0 0.0
      %7863 = vmatprep.subr.mxu0 0.0
      %7864 = vmatpush2.msra.mxu0 0.0
      %7865 = vmatprep.subr.mxu0 0.0
      %7866 = vmatpush2.msra.mxu0 0.0
      %7867 = vmatprep.subr.mxu0 0.0
      %7868 = vmatpush2.msra.mxu0 0.0
      %7869 = vmatprep.subr.mxu0 0.0
      %7870 = vmatpush2.msra.mxu0 0.0
      %7871 = vmatprep.subr.mxu0 0.0
      %7872 = vmatpush2.msra.mxu0 0.0
      %7873 = vmatprep.subr.mxu0 0.0
      %7874 = vmatpush2.msra.mxu0 0.0
      %7875 = vmatprep.mubr.f32.mxu0 0.0
      %7876 = vmatmul.mubr.f32.gmra.mxu0 %v7711
      %v7877 = vpop.f32.mrf.mxu0
      %v7878 = vadd.f32 0.0, %v7877
      %v7879 = vpop.f32.mrf.mxu0
      %7880 = vmatprep.mubr.f32.mxu0 0.0
      %7881 = vmatmul.mubr.f32.gmra.mxu0 %v7714
      %v7882 = vpop.f32.mrf.mxu0
      %v7883 = vadd.f32 0.0, %v7882
      %v7884 = vpop.f32.mrf.mxu0
      %7885 = vmatprep.mubr.f32.mxu0 0.0
      %7886 = vmatmul.mubr.f32.gmra.mxu0 %v7717
      %v7887 = vpop.f32.mrf.mxu0
      %v7888 = vadd.f32 0.0, %v7887
      %v7889 = vpop.f32.mrf.mxu0
      %7890 = vmatprep.mubr.f32.mxu0 0.0
      %7891 = vmatmul.mubr.f32.gmra.mxu0 %v7720
      %v7892 = vpop.f32.mrf.mxu0
      %v7893 = vadd.f32 0.0, %v7892
      %v7894 = vpop.f32.mrf.mxu0
      %7895 = vdwg.mxu0
      %v7896 = vadd.f32 %v7649, %v7789
      %v7897 = vadd.f32 %v7650, %v7791
      %v7898 = vadd.f32 %v7651, %v7878
      %v7899 = vadd.f32 %v7652, %v7795
      %v7900 = vadd.f32 %v7653, %v7797
      %v7901 = vadd.f32 %v7654, %v7883
      %v7902 = vadd.f32 %v7655, %v7801
      %v7903 = vadd.f32 %v7656, %v7803
      %v7904 = vadd.f32 %v7657, %v7888
      %v7905 = vadd.f32 %v7658, %v7807
      %v7906 = vadd.f32 %v7659, %v7809
      %v7907 = vadd.f32 %v7660, %v7893
      %vm7908 = vcmp.gt.f32.partialorder %v7896, 0.0
      %vm7909 = vcmp.gt.f32.partialorder %v7897, 0.0
      %vm7910 = vcmp.gt.f32.partialorder %v7898, 0.0
      %vm7911 = vcmp.gt.f32.partialorder %v7899, 0.0
      %vm7912 = vcmp.gt.f32.partialorder %v7900, 0.0
      %vm7913 = vcmp.gt.f32.partialorder %v7901, 0.0
      %vm7914 = vcmp.gt.f32.partialorder %v7902, 0.0
      %vm7915 = vcmp.gt.f32.partialorder %v7903, 0.0
      %vm7916 = vcmp.gt.f32.partialorder %v7904, 0.0
      %vm7917 = vcmp.gt.f32.partialorder %v7905, 0.0
      %vm7918 = vcmp.gt.f32.partialorder %v7906, 0.0
      %vm7919 = vcmp.gt.f32.partialorder %v7907, 0.0
      %v7920 = vmul.f32 %v7896, 0.2
      %v7921 = vmul.f32 %v7897, 0.2
      %v7922 = vmul.f32 %v7898, 0.2
      %v7923 = vmul.f32 %v7899, 0.2
      %v7924 = vmul.f32 %v7900, 0.2
      %v7925 = vmul.f32 %v7901, 0.2
      %v7926 = vmul.f32 %v7902, 0.2
      %v7927 = vmul.f32 %v7903, 0.2
      %v7928 = vmul.f32 %v7904, 0.2
      %v7929 = vmul.f32 %v7905, 0.2
      %v7930 = vmul.f32 %v7906, 0.2
      %v7931 = vmul.f32 %v7907, 0.2
      %v7932 = vsel %vm7908, %v7896, %v7920
      %v7933 = vsel %vm7909, %v7897, %v7921
      %v7934 = vsel %vm7910, %v7898, %v7922
      %v7935 = vsel %vm7911, %v7899, %v7923
      %v7936 = vsel %vm7912, %v7900, %v7924
      %v7937 = vsel %vm7913, %v7901, %v7925
      %v7938 = vsel %vm7914, %v7902, %v7926
      %v7939 = vsel %vm7915, %v7903, %v7927
      %v7940 = vsel %vm7916, %v7904, %v7928
      %v7941 = vsel %vm7917, %v7905, %v7929
      %v7942 = vsel %vm7918, %v7906, %v7930
      %v7943 = vsel %vm7919, %v7907, %v7931
      %v7944 = vld [vmem:[%s8] sm:$0x7]
      %v7945 = vld [vmem:[%s7] sm:$0x7]
      %vm7946 = vcmp.ge.s32.totalorder %v7944, 1
      %vm7947 = vcmp.le.s32.totalorder %v7944, 16
      %vm7948 = vmand %vm7946, %vm7947
      %v7949 = vstv %s5641
      %vm7950 = vcmp.ge.s32.totalorder %v7945, %v7949
      %vm7951 = vmand %vm7948, %vm7950
      %s7952 = ssub.s32 17, %s356
      %v7953 = vstv %s7952
      %vm7954 = vcmp.lt.s32.totalorder %v7945, %v7953
      %vm7955 = vmand %vm7951, %vm7954
      %v7956 = vsel %vm7955, 1, 0
      %v7957 = vlaneseq
      %v7958 = vshrl.u32 %v7957, 7
      %v7959 = vsub.s32 0, %v7958
      %v7960 = vrot.slane %v7956, %v7959
      %v7961 = vlaneseq
      %v7962 = vshrl.u32 %v7961, 7
      %v7963 = vsub.s32 1, %v7962
      %v7964 = vrot.slane %v7956, %v7963
      %v7965 = vlaneseq
      %v7966 = vshrl.u32 %v7965, 7
      %v7967 = vsub.s32 2, %v7966
      %v7968 = vrot.slane %v7956, %v7967
      %vm7969 = vcmp.eq.s32.totalorder %v7960, 1
      %vm7970 = vcmp.eq.s32.totalorder %v7964, 1
      %vm7971 = vcmp.eq.s32.totalorder %v7968, 1
      %v7972 = vsel %vm7969, %v7932, 0.0
      %v7973 = vsel %vm7970, %v7933, 0.0
      %v7974 = vsel %vm7971, %v7934, 0.0
      %v7975 = vsel %vm7969, %v7935, 0.0
      %v7976 = vsel %vm7970, %v7936, 0.0
      %v7977 = vsel %vm7971, %v7937, 0.0
      %v7978 = vsel %vm7969, %v7938, 0.0
      %v7979 = vsel %vm7970, %v7939, 0.0
      %v7980 = vsel %vm7971, %v7940, 0.0
      %v7981 = vsel %vm7969, %v7941, 0.0
      %v7982 = vsel %vm7970, %v7942, 0.0
      %v7983 = vsel %vm7971, %v7943, 0.0
      %7996 = vrot.lane.b32.xlu0 %v7972, 18
      %v7997 = vpop.permute.xlu0 %7996
      %7998 = vrot.lane.b32.xlu0 %v7973, 18
      %v7999 = vpop.permute.xlu0 %7998
      %8000 = vrot.lane.b32.xlu0 %v7974, 18
      %v8001 = vpop.permute.xlu0 %8000
      %8002 = vrot.lane.b32.xlu0 %v7975, 18
      %v8003 = vpop.permute.xlu0 %8002
      %8004 = vrot.lane.b32.xlu0 %v7976, 18
      %v8005 = vpop.permute.xlu0 %8004
      %8006 = vrot.lane.b32.xlu0 %v7977, 18
      %v8007 = vpop.permute.xlu0 %8006
      %8008 = vrot.lane.b32.xlu0 %v7978, 18
      %v8009 = vpop.permute.xlu0 %8008
      %8010 = vrot.lane.b32.xlu0 %v7979, 18
      %v8011 = vpop.permute.xlu0 %8010
      %8012 = vrot.lane.b32.xlu0 %v7980, 18
      %v8013 = vpop.permute.xlu0 %8012
      %8014 = vrot.lane.b32.xlu0 %v7981, 18
      %v8015 = vpop.permute.xlu0 %8014
      %8016 = vrot.lane.b32.xlu0 %v7982, 18
      %v8017 = vpop.permute.xlu0 %8016
      %8018 = vrot.lane.b32.xlu0 %v7983, 18
      %v8019 = vpop.permute.xlu0 %8018
      %v8020 = vsel %vm688, %v7997, %v7999
      %v8021 = vsel %vm688, %v7999, %v8001
      %v8022 = vsel %vm688, %v8003, %v8005
      %v8023 = vsel %vm688, %v8005, %v8007
      %v8024 = vsel %vm688, %v8009, %v8011
      %v8025 = vsel %vm688, %v8011, %v8013
      %v8026 = vsel %vm688, %v8015, %v8017
      %v8027 = vsel %vm688, %v8017, %v8019
      %8040 = vst.msk [vmem:[#allocation3] sm:$0xff] %vm3099, %v7997
      %8041 = vst [vmem:[#allocation3 + $0x8] sm:$0xff] %v8020
      %8042 = vst.msk [vmem:[#allocation3 + $0x10] sm:$0xff] %vm724, %v8021
      %8043 = vst.msk [vmem:[#allocation3 + $0x20] sm:$0xff] %vm3099, %v8003
      %8044 = vst [vmem:[#allocation3 + $0x28] sm:$0xff] %v8022
      %8045 = vst.msk [vmem:[#allocation3 + $0x30] sm:$0xff] %vm724, %v8023
      %8046 = vst.msk [vmem:[#allocation3 + $0x40] sm:$0xff] %vm3099, %v8009
      %8047 = vst [vmem:[#allocation3 + $0x48] sm:$0xff] %v8024
      %8048 = vst.msk [vmem:[#allocation3 + $0x50] sm:$0xff] %vm724, %v8025
      %8049 = vst.msk [vmem:[#allocation3 + $0x60] sm:$0xff] %vm3099, %v8015
      %8050 = vst [vmem:[#allocation3 + $0x68] sm:$0xff] %v8026
      %8051 = vst.msk [vmem:[#allocation3 + $0x70] sm:$0xff] %vm724, %v8027
      %v8052 = vld [vmem:[%s6] sm:$0xf]
      %8054 = vset.pattern.permute.xlu0 0
      %8055 = vperm.xlu0 %8054, %v8052
      %v8056 = vpop.permute.xlu0 %8055
      %v8058 = vld [vmem:[#allocation3] sm:$0xff]
      %v8059 = vld [vmem:[#allocation3 + $0x8] sm:$0xff]
      %v8060 = vld [vmem:[#allocation3 + $0x10] sm:$0xff]
      %v8061 = vld [vmem:[#allocation3 + $0x20] sm:$0xff]
      %v8062 = vld [vmem:[#allocation3 + $0x28] sm:$0xff]
      %v8063 = vld [vmem:[#allocation3 + $0x30] sm:$0xff]
      %v8064 = vld [vmem:[#allocation3 + $0x40] sm:$0xff]
      %v8065 = vld [vmem:[#allocation3 + $0x48] sm:$0xff]
      %v8066 = vld [vmem:[#allocation3 + $0x50] sm:$0xff]
      %v8067 = vld [vmem:[#allocation3 + $0x60] sm:$0xff]
      %v8068 = vld [vmem:[#allocation3 + $0x68] sm:$0xff]
      %v8069 = vld [vmem:[#allocation3 + $0x70] sm:$0xff]
      %v8070 = vld [vmem:[%s4] sm:$0xf]
      %8083 = vrot.lane.b32.xlu0 %v8058, 111
      %v8084 = vpop.permute.xlu0 %8083
      %8085 = vrot.lane.b32.xlu0 %v8059, 111
      %v8086 = vpop.permute.xlu0 %8085
      %8087 = vrot.lane.b32.xlu0 %v8060, 111
      %v8088 = vpop.permute.xlu0 %8087
      %8089 = vrot.lane.b32.xlu0 %v8061, 111
      %v8090 = vpop.permute.xlu0 %8089
      %8091 = vrot.lane.b32.xlu0 %v8062, 111
      %v8092 = vpop.permute.xlu0 %8091
      %8093 = vrot.lane.b32.xlu0 %v8063, 111
      %v8094 = vpop.permute.xlu0 %8093
      %8095 = vrot.lane.b32.xlu0 %v8064, 111
      %v8096 = vpop.permute.xlu0 %8095
      %8097 = vrot.lane.b32.xlu0 %v8065, 111
      %v8098 = vpop.permute.xlu0 %8097
      %8099 = vrot.lane.b32.xlu0 %v8066, 111
      %v8100 = vpop.permute.xlu0 %8099
      %8101 = vrot.lane.b32.xlu0 %v8067, 111
      %v8102 = vpop.permute.xlu0 %8101
      %8103 = vrot.lane.b32.xlu0 %v8068, 111
      %v8104 = vpop.permute.xlu0 %8103
      %8105 = vrot.lane.b32.xlu0 %v8069, 111
      %v8106 = vpop.permute.xlu0 %8105
      %v8107 = vsel %vm811, %v8084, %v8086
      %v8108 = vsel %vm811, %v8086, %v8088
      %v8109 = vsel %vm811, %v8090, %v8092
      %v8110 = vsel %vm811, %v8092, %v8094
      %v8111 = vsel %vm811, %v8096, %v8098
      %v8112 = vsel %vm811, %v8098, %v8100
      %v8113 = vsel %vm811, %v8102, %v8104
      %v8114 = vsel %vm811, %v8104, %v8106
      %v8128 = vsel %vm718, %v8070, 0
      %8130 = vmatprep.subr.mxu0 0.0
      %8131 = vmatpush1.msra.mxu0 0.0
      %8132 = vmatprep.subr.mxu0 0.0
      %8133 = vmatpush1.msra.mxu0 0.0
      %8134 = vmatprep.subr.mxu0 0.0
      %8135 = vmatpush1.msra.mxu0 0.0
      %8136 = vmatprep.subr.mxu0 0.0
      %8137 = vmatpush1.msra.mxu0 0.0
      %8138 = vmatprep.subr.mxu0 0.0
      %8139 = vmatpush1.msra.mxu0 0.0
      %8140 = vmatprep.subr.mxu0 0.0
      %8141 = vmatpush1.msra.mxu0 0.0
      %8142 = vmatprep.subr.mxu0 0.0
      %8143 = vmatpush1.msra.mxu0 0.0
      %8144 = vmatprep.subr.mxu0 0.0
      %8145 = vmatpush1.msra.mxu0 0.0
      %8146 = vmatprep.subr.mxu0 0.0
      %8147 = vmatpush1.msra.mxu0 0.0
      %8148 = vmatprep.subr.mxu0 0.0
      %8149 = vmatpush1.msra.mxu0 0.0
      %8150 = vmatprep.subr.mxu0 0.0
      %8151 = vmatpush1.msra.mxu0 0.0
      %8152 = vmatprep.subr.mxu0 0.0
      %8153 = vmatpush1.msra.mxu0 0.0
      %8154 = vmatprep.subr.mxu0 %v8114
      %8155 = vmatpush1.msra.mxu0 %v8113
      %8156 = vmatprep.subr.mxu0 %v8112
      %8157 = vmatpush1.msra.mxu0 %v8111
      %8158 = vmatprep.subr.mxu0 %v8110
      %8159 = vmatpush1.msra.mxu0 %v8109
      %8160 = vmatprep.subr.mxu0 %v8108
      %8161 = vmatpush1.msra.mxu0 %v8107
      %8162 = vmatprep.subr.mxu0 0.0
      %8163 = vmatpush2.msra.mxu0 0.0
      %8164 = vmatprep.subr.mxu0 0.0
      %8165 = vmatpush2.msra.mxu0 0.0
      %8166 = vmatprep.subr.mxu0 0.0
      %8167 = vmatpush2.msra.mxu0 0.0
      %8168 = vmatprep.subr.mxu0 0.0
      %8169 = vmatpush2.msra.mxu0 0.0
      %8170 = vmatprep.subr.mxu0 0.0
      %8171 = vmatpush2.msra.mxu0 0.0
      %8172 = vmatprep.subr.mxu0 0.0
      %8173 = vmatpush2.msra.mxu0 0.0
      %8174 = vmatprep.subr.mxu0 0.0
      %8175 = vmatpush2.msra.mxu0 0.0
      %8176 = vmatprep.subr.mxu0 0.0
      %8177 = vmatpush2.msra.mxu0 0.0
      %8178 = vmatprep.subr.mxu0 0.0
      %8179 = vmatpush2.msra.mxu0 0.0
      %8180 = vmatprep.subr.mxu0 0.0
      %8181 = vmatpush2.msra.mxu0 0.0
      %8182 = vmatprep.subr.mxu0 0.0
      %8183 = vmatpush2.msra.mxu0 0.0
      %8184 = vmatprep.subr.mxu0 0.0
      %8185 = vmatpush2.msra.mxu0 0.0
      %8186 = vmatprep.subr.mxu0 0.0
      %8187 = vmatpush2.msra.mxu0 0.0
      %8188 = vmatprep.subr.mxu0 0.0
      %8189 = vmatpush2.msra.mxu0 0.0
      %8190 = vmatprep.subr.mxu0 0.0
      %8191 = vmatpush2.msra.mxu0 0.0
      %8192 = vmatprep.subr.mxu0 0.0
      %8193 = vmatpush2.msra.mxu0 0.0
      %8194 = vmatprep.mubr.f32.mxu0 0.0
      %8195 = vmatmul.mubr.f32.gmra.mxu0 %v8128
      %v8196 = vpop.f32.mrf.mxu0
      %v8197 = vadd.f32 0.0, %v8196
      %v8198 = vpop.f32.mrf.mxu0
      %v8199 = vadd.f32 0.0, %v8198
      %8200 = vdwg.mxu0
      %8201 = vmatprep.subr.mxu0 0.0
      %8202 = vmatpush1.msra.mxu0 0.0
      %8203 = vmatprep.subr.mxu0 0.0
      %8204 = vmatpush1.msra.mxu0 0.0
      %8205 = vmatprep.subr.mxu0 0.0
      %8206 = vmatpush1.msra.mxu0 0.0
      %8207 = vmatprep.subr.mxu0 0.0
      %8208 = vmatpush1.msra.mxu0 0.0
      %8209 = vmatprep.subr.mxu0 0.0
      %8210 = vmatpush1.msra.mxu0 0.0
      %8211 = vmatprep.subr.mxu0 0.0
      %8212 = vmatpush1.msra.mxu0 0.0
      %8213 = vmatprep.subr.mxu0 0.0
      %8214 = vmatpush1.msra.mxu0 0.0
      %8215 = vmatprep.subr.mxu0 0.0
      %8216 = vmatpush1.msra.mxu0 0.0
      %8217 = vmatprep.subr.mxu0 0.0
      %8218 = vmatpush1.msra.mxu0 0.0
      %8219 = vmatprep.subr.mxu0 0.0
      %8220 = vmatpush1.msra.mxu0 0.0
      %8221 = vmatprep.subr.mxu0 0.0
      %8222 = vmatpush1.msra.mxu0 0.0
      %8223 = vmatprep.subr.mxu0 0.0
      %8224 = vmatpush1.msra.mxu0 0.0
      %8225 = vmatprep.subr.mxu0 0.0
      %8226 = vmatpush1.msra.mxu0 %v8106
      %8227 = vmatprep.subr.mxu0 0.0
      %8228 = vmatpush1.msra.mxu0 %v8100
      %8229 = vmatprep.subr.mxu0 0.0
      %8230 = vmatpush1.msra.mxu0 %v8094
      %8231 = vmatprep.subr.mxu0 0.0
      %8232 = vmatpush1.msra.mxu0 %v8088
      %8233 = vmatprep.subr.mxu0 0.0
      %8234 = vmatpush2.msra.mxu0 0.0
      %8235 = vmatprep.subr.mxu0 0.0
      %8236 = vmatpush2.msra.mxu0 0.0
      %8237 = vmatprep.subr.mxu0 0.0
      %8238 = vmatpush2.msra.mxu0 0.0
      %8239 = vmatprep.subr.mxu0 0.0
      %8240 = vmatpush2.msra.mxu0 0.0
      %8241 = vmatprep.subr.mxu0 0.0
      %8242 = vmatpush2.msra.mxu0 0.0
      %8243 = vmatprep.subr.mxu0 0.0
      %8244 = vmatpush2.msra.mxu0 0.0
      %8245 = vmatprep.subr.mxu0 0.0
      %8246 = vmatpush2.msra.mxu0 0.0
      %8247 = vmatprep.subr.mxu0 0.0
      %8248 = vmatpush2.msra.mxu0 0.0
      %8249 = vmatprep.subr.mxu0 0.0
      %8250 = vmatpush2.msra.mxu0 0.0
      %8251 = vmatprep.subr.mxu0 0.0
      %8252 = vmatpush2.msra.mxu0 0.0
      %8253 = vmatprep.subr.mxu0 0.0
      %8254 = vmatpush2.msra.mxu0 0.0
      %8255 = vmatprep.subr.mxu0 0.0
      %8256 = vmatpush2.msra.mxu0 0.0
      %8257 = vmatprep.subr.mxu0 0.0
      %8258 = vmatpush2.msra.mxu0 0.0
      %8259 = vmatprep.subr.mxu0 0.0
      %8260 = vmatpush2.msra.mxu0 0.0
      %8261 = vmatprep.subr.mxu0 0.0
      %8262 = vmatpush2.msra.mxu0 0.0
      %8263 = vmatprep.subr.mxu0 0.0
      %8264 = vmatpush2.msra.mxu0 0.0
      %8265 = vmatprep.mubr.f32.mxu0 0.0
      %8266 = vmatmul.mubr.f32.gmra.mxu0 %v8128
      %v8267 = vpop.f32.mrf.mxu0
      %v8268 = vadd.f32 0.0, %v8267
      %v8269 = vpop.f32.mrf.mxu0
      %8270 = vdwg.mxu0
      %v8271 = vadd.f32 %v8056, %v8197
      %v8272 = vadd.f32 %v8056, %v8199
      %v8273 = vadd.f32 %v8056, %v8268
      %s8274 = scalar_lea.vmem %s4, 4
      %v8275 = vld [vmem:[%s8274] sm:$0xf]
      %8276 = vrot.lane.b32.xlu0 %v8058, 110
      %v8277 = vpop.permute.xlu0 %8276
      %8278 = vrot.lane.b32.xlu0 %v8059, 110
      %v8279 = vpop.permute.xlu0 %8278
      %8280 = vrot.lane.b32.xlu0 %v8060, 110
      %v8281 = vpop.permute.xlu0 %8280
      %8282 = vrot.lane.b32.xlu0 %v8061, 110
      %v8283 = vpop.permute.xlu0 %8282
      %8284 = vrot.lane.b32.xlu0 %v8062, 110
      %v8285 = vpop.permute.xlu0 %8284
      %8286 = vrot.lane.b32.xlu0 %v8063, 110
      %v8287 = vpop.permute.xlu0 %8286
      %8288 = vrot.lane.b32.xlu0 %v8064, 110
      %v8289 = vpop.permute.xlu0 %8288
      %8290 = vrot.lane.b32.xlu0 %v8065, 110
      %v8291 = vpop.permute.xlu0 %8290
      %8292 = vrot.lane.b32.xlu0 %v8066, 110
      %v8293 = vpop.permute.xlu0 %8292
      %8294 = vrot.lane.b32.xlu0 %v8067, 110
      %v8295 = vpop.permute.xlu0 %8294
      %8296 = vrot.lane.b32.xlu0 %v8068, 110
      %v8297 = vpop.permute.xlu0 %8296
      %8298 = vrot.lane.b32.xlu0 %v8069, 110
      %v8299 = vpop.permute.xlu0 %8298
      %v8300 = vsel %vm1049, %v8277, %v8279
      %v8301 = vsel %vm1049, %v8279, %v8281
      %v8302 = vsel %vm1049, %v8283, %v8285
      %v8303 = vsel %vm1049, %v8285, %v8287
      %v8304 = vsel %vm1049, %v8289, %v8291
      %v8305 = vsel %vm1049, %v8291, %v8293
      %v8306 = vsel %vm1049, %v8295, %v8297
      %v8307 = vsel %vm1049, %v8297, %v8299
      %v8321 = vsel %vm718, %v8275, 0
      %8323 = vmatprep.subr.mxu0 0.0
      %8324 = vmatpush1.msra.mxu0 0.0
      %8325 = vmatprep.subr.mxu0 0.0
      %8326 = vmatpush1.msra.mxu0 0.0
      %8327 = vmatprep.subr.mxu0 0.0
      %8328 = vmatpush1.msra.mxu0 0.0
      %8329 = vmatprep.subr.mxu0 0.0
      %8330 = vmatpush1.msra.mxu0 0.0
      %8331 = vmatprep.subr.mxu0 0.0
      %8332 = vmatpush1.msra.mxu0 0.0
      %8333 = vmatprep.subr.mxu0 0.0
      %8334 = vmatpush1.msra.mxu0 0.0
      %8335 = vmatprep.subr.mxu0 0.0
      %8336 = vmatpush1.msra.mxu0 0.0
      %8337 = vmatprep.subr.mxu0 0.0
      %8338 = vmatpush1.msra.mxu0 0.0
      %8339 = vmatprep.subr.mxu0 0.0
      %8340 = vmatpush1.msra.mxu0 0.0
      %8341 = vmatprep.subr.mxu0 0.0
      %8342 = vmatpush1.msra.mxu0 0.0
      %8343 = vmatprep.subr.mxu0 0.0
      %8344 = vmatpush1.msra.mxu0 0.0
      %8345 = vmatprep.subr.mxu0 0.0
      %8346 = vmatpush1.msra.mxu0 0.0
      %8347 = vmatprep.subr.mxu0 %v8307
      %8348 = vmatpush1.msra.mxu0 %v8306
      %8349 = vmatprep.subr.mxu0 %v8305
      %8350 = vmatpush1.msra.mxu0 %v8304
      %8351 = vmatprep.subr.mxu0 %v8303
      %8352 = vmatpush1.msra.mxu0 %v8302
      %8353 = vmatprep.subr.mxu0 %v8301
      %8354 = vmatpush1.msra.mxu0 %v8300
      %8355 = vmatprep.subr.mxu0 0.0
      %8356 = vmatpush2.msra.mxu0 0.0
      %8357 = vmatprep.subr.mxu0 0.0
      %8358 = vmatpush2.msra.mxu0 0.0
      %8359 = vmatprep.subr.mxu0 0.0
      %8360 = vmatpush2.msra.mxu0 0.0
      %8361 = vmatprep.subr.mxu0 0.0
      %8362 = vmatpush2.msra.mxu0 0.0
      %8363 = vmatprep.subr.mxu0 0.0
      %8364 = vmatpush2.msra.mxu0 0.0
      %8365 = vmatprep.subr.mxu0 0.0
      %8366 = vmatpush2.msra.mxu0 0.0
      %8367 = vmatprep.subr.mxu0 0.0
      %8368 = vmatpush2.msra.mxu0 0.0
      %8369 = vmatprep.subr.mxu0 0.0
      %8370 = vmatpush2.msra.mxu0 0.0
      %8371 = vmatprep.subr.mxu0 0.0
      %8372 = vmatpush2.msra.mxu0 0.0
      %8373 = vmatprep.subr.mxu0 0.0
      %8374 = vmatpush2.msra.mxu0 0.0
      %8375 = vmatprep.subr.mxu0 0.0
      %8376 = vmatpush2.msra.mxu0 0.0
      %8377 = vmatprep.subr.mxu0 0.0
      %8378 = vmatpush2.msra.mxu0 0.0
      %8379 = vmatprep.subr.mxu0 0.0
      %8380 = vmatpush2.msra.mxu0 0.0
      %8381 = vmatprep.subr.mxu0 0.0
      %8382 = vmatpush2.msra.mxu0 0.0
      %8383 = vmatprep.subr.mxu0 0.0
      %8384 = vmatpush2.msra.mxu0 0.0
      %8385 = vmatprep.subr.mxu0 0.0
      %8386 = vmatpush2.msra.mxu0 0.0
      %8387 = vmatprep.mubr.f32.mxu0 0.0
      %8388 = vmatmul.mubr.f32.gmra.mxu0 %v8321
      %v8389 = vpop.f32.mrf.mxu0
      %v8390 = vadd.f32 0.0, %v8389
      %v8391 = vpop.f32.mrf.mxu0
      %v8392 = vadd.f32 0.0, %v8391
      %8393 = vdwg.mxu0
      %8394 = vmatprep.subr.mxu0 0.0
      %8395 = vmatpush1.msra.mxu0 0.0
      %8396 = vmatprep.subr.mxu0 0.0
      %8397 = vmatpush1.msra.mxu0 0.0
      %8398 = vmatprep.subr.mxu0 0.0
      %8399 = vmatpush1.msra.mxu0 0.0
      %8400 = vmatprep.subr.mxu0 0.0
      %8401 = vmatpush1.msra.mxu0 0.0
      %8402 = vmatprep.subr.mxu0 0.0
      %8403 = vmatpush1.msra.mxu0 0.0
      %8404 = vmatprep.subr.mxu0 0.0
      %8405 = vmatpush1.msra.mxu0 0.0
      %8406 = vmatprep.subr.mxu0 0.0
      %8407 = vmatpush1.msra.mxu0 0.0
      %8408 = vmatprep.subr.mxu0 0.0
      %8409 = vmatpush1.msra.mxu0 0.0
      %8410 = vmatprep.subr.mxu0 0.0
      %8411 = vmatpush1.msra.mxu0 0.0
      %8412 = vmatprep.subr.mxu0 0.0
      %8413 = vmatpush1.msra.mxu0 0.0
      %8414 = vmatprep.subr.mxu0 0.0
      %8415 = vmatpush1.msra.mxu0 0.0
      %8416 = vmatprep.subr.mxu0 0.0
      %8417 = vmatpush1.msra.mxu0 0.0
      %8418 = vmatprep.subr.mxu0 0.0
      %8419 = vmatpush1.msra.mxu0 %v8299
      %8420 = vmatprep.subr.mxu0 0.0
      %8421 = vmatpush1.msra.mxu0 %v8293
      %8422 = vmatprep.subr.mxu0 0.0
      %8423 = vmatpush1.msra.mxu0 %v8287
      %8424 = vmatprep.subr.mxu0 0.0
      %8425 = vmatpush1.msra.mxu0 %v8281
      %8426 = vmatprep.subr.mxu0 0.0
      %8427 = vmatpush2.msra.mxu0 0.0
      %8428 = vmatprep.subr.mxu0 0.0
      %8429 = vmatpush2.msra.mxu0 0.0
      %8430 = vmatprep.subr.mxu0 0.0
      %8431 = vmatpush2.msra.mxu0 0.0
      %8432 = vmatprep.subr.mxu0 0.0
      %8433 = vmatpush2.msra.mxu0 0.0
      %8434 = vmatprep.subr.mxu0 0.0
      %8435 = vmatpush2.msra.mxu0 0.0
      %8436 = vmatprep.subr.mxu0 0.0
      %8437 = vmatpush2.msra.mxu0 0.0
      %8438 = vmatprep.subr.mxu0 0.0
      %8439 = vmatpush2.msra.mxu0 0.0
      %8440 = vmatprep.subr.mxu0 0.0
      %8441 = vmatpush2.msra.mxu0 0.0
      %8442 = vmatprep.subr.mxu0 0.0
      %8443 = vmatpush2.msra.mxu0 0.0
      %8444 = vmatprep.subr.mxu0 0.0
      %8445 = vmatpush2.msra.mxu0 0.0
      %8446 = vmatprep.subr.mxu0 0.0
      %8447 = vmatpush2.msra.mxu0 0.0
      %8448 = vmatprep.subr.mxu0 0.0
      %8449 = vmatpush2.msra.mxu0 0.0
      %8450 = vmatprep.subr.mxu0 0.0
      %8451 = vmatpush2.msra.mxu0 0.0
      %8452 = vmatprep.subr.mxu0 0.0
      %8453 = vmatpush2.msra.mxu0 0.0
      %8454 = vmatprep.subr.mxu0 0.0
      %8455 = vmatpush2.msra.mxu0 0.0
      %8456 = vmatprep.subr.mxu0 0.0
      %8457 = vmatpush2.msra.mxu0 0.0
      %8458 = vmatprep.mubr.f32.mxu0 0.0
      %8459 = vmatmul.mubr.f32.gmra.mxu0 %v8321
      %v8460 = vpop.f32.mrf.mxu0
      %v8461 = vadd.f32 0.0, %v8460
      %v8462 = vpop.f32.mrf.mxu0
      %8463 = vdwg.mxu0
      %v8464 = vadd.f32 %v8271, %v8390
      %v8465 = vadd.f32 %v8272, %v8392
      %v8466 = vadd.f32 %v8273, %v8461
      %s8467 = scalar_lea.vmem %s4, 8
      %v8468 = vld [vmem:[%s8467] sm:$0xf]
      %8469 = vrot.lane.b32.xlu0 %v8058, 109
      %v8470 = vpop.permute.xlu0 %8469
      %8471 = vrot.lane.b32.xlu0 %v8059, 109
      %v8472 = vpop.permute.xlu0 %8471
      %8473 = vrot.lane.b32.xlu0 %v8060, 109
      %v8474 = vpop.permute.xlu0 %8473
      %8475 = vrot.lane.b32.xlu0 %v8061, 109
      %v8476 = vpop.permute.xlu0 %8475
      %8477 = vrot.lane.b32.xlu0 %v8062, 109
      %v8478 = vpop.permute.xlu0 %8477
      %8479 = vrot.lane.b32.xlu0 %v8063, 109
      %v8480 = vpop.permute.xlu0 %8479
      %8481 = vrot.lane.b32.xlu0 %v8064, 109
      %v8482 = vpop.permute.xlu0 %8481
      %8483 = vrot.lane.b32.xlu0 %v8065, 109
      %v8484 = vpop.permute.xlu0 %8483
      %8485 = vrot.lane.b32.xlu0 %v8066, 109
      %v8486 = vpop.permute.xlu0 %8485
      %8487 = vrot.lane.b32.xlu0 %v8067, 109
      %v8488 = vpop.permute.xlu0 %8487
      %8489 = vrot.lane.b32.xlu0 %v8068, 109
      %v8490 = vpop.permute.xlu0 %8489
      %8491 = vrot.lane.b32.xlu0 %v8069, 109
      %v8492 = vpop.permute.xlu0 %8491
      %v8493 = vsel %vm1286, %v8470, %v8472
      %v8494 = vsel %vm1286, %v8472, %v8474
      %v8495 = vsel %vm1286, %v8476, %v8478
      %v8496 = vsel %vm1286, %v8478, %v8480
      %v8497 = vsel %vm1286, %v8482, %v8484
      %v8498 = vsel %vm1286, %v8484, %v8486
      %v8499 = vsel %vm1286, %v8488, %v8490
      %v8500 = vsel %vm1286, %v8490, %v8492
      %v8514 = vsel %vm718, %v8468, 0
      %8516 = vmatprep.subr.mxu0 0.0
      %8517 = vmatpush1.msra.mxu0 0.0
      %8518 = vmatprep.subr.mxu0 0.0
      %8519 = vmatpush1.msra.mxu0 0.0
      %8520 = vmatprep.subr.mxu0 0.0
      %8521 = vmatpush1.msra.mxu0 0.0
      %8522 = vmatprep.subr.mxu0 0.0
      %8523 = vmatpush1.msra.mxu0 0.0
      %8524 = vmatprep.subr.mxu0 0.0
      %8525 = vmatpush1.msra.mxu0 0.0
      %8526 = vmatprep.subr.mxu0 0.0
      %8527 = vmatpush1.msra.mxu0 0.0
      %8528 = vmatprep.subr.mxu0 0.0
      %8529 = vmatpush1.msra.mxu0 0.0
      %8530 = vmatprep.subr.mxu0 0.0
      %8531 = vmatpush1.msra.mxu0 0.0
      %8532 = vmatprep.subr.mxu0 0.0
      %8533 = vmatpush1.msra.mxu0 0.0
      %8534 = vmatprep.subr.mxu0 0.0
      %8535 = vmatpush1.msra.mxu0 0.0
      %8536 = vmatprep.subr.mxu0 0.0
      %8537 = vmatpush1.msra.mxu0 0.0
      %8538 = vmatprep.subr.mxu0 0.0
      %8539 = vmatpush1.msra.mxu0 0.0
      %8540 = vmatprep.subr.mxu0 %v8500
      %8541 = vmatpush1.msra.mxu0 %v8499
      %8542 = vmatprep.subr.mxu0 %v8498
      %8543 = vmatpush1.msra.mxu0 %v8497
      %8544 = vmatprep.subr.mxu0 %v8496
      %8545 = vmatpush1.msra.mxu0 %v8495
      %8546 = vmatprep.subr.mxu0 %v8494
      %8547 = vmatpush1.msra.mxu0 %v8493
      %8548 = vmatprep.subr.mxu0 0.0
      %8549 = vmatpush2.msra.mxu0 0.0
      %8550 = vmatprep.subr.mxu0 0.0
      %8551 = vmatpush2.msra.mxu0 0.0
      %8552 = vmatprep.subr.mxu0 0.0
      %8553 = vmatpush2.msra.mxu0 0.0
      %8554 = vmatprep.subr.mxu0 0.0
      %8555 = vmatpush2.msra.mxu0 0.0
      %8556 = vmatprep.subr.mxu0 0.0
      %8557 = vmatpush2.msra.mxu0 0.0
      %8558 = vmatprep.subr.mxu0 0.0
      %8559 = vmatpush2.msra.mxu0 0.0
      %8560 = vmatprep.subr.mxu0 0.0
      %8561 = vmatpush2.msra.mxu0 0.0
      %8562 = vmatprep.subr.mxu0 0.0
      %8563 = vmatpush2.msra.mxu0 0.0
      %8564 = vmatprep.subr.mxu0 0.0
      %8565 = vmatpush2.msra.mxu0 0.0
      %8566 = vmatprep.subr.mxu0 0.0
      %8567 = vmatpush2.msra.mxu0 0.0
      %8568 = vmatprep.subr.mxu0 0.0
      %8569 = vmatpush2.msra.mxu0 0.0
      %8570 = vmatprep.subr.mxu0 0.0
      %8571 = vmatpush2.msra.mxu0 0.0
      %8572 = vmatprep.subr.mxu0 0.0
      %8573 = vmatpush2.msra.mxu0 0.0
      %8574 = vmatprep.subr.mxu0 0.0
      %8575 = vmatpush2.msra.mxu0 0.0
      %8576 = vmatprep.subr.mxu0 0.0
      %8577 = vmatpush2.msra.mxu0 0.0
      %8578 = vmatprep.subr.mxu0 0.0
      %8579 = vmatpush2.msra.mxu0 0.0
      %8580 = vmatprep.mubr.f32.mxu0 0.0
      %8581 = vmatmul.mubr.f32.gmra.mxu0 %v8514
      %v8582 = vpop.f32.mrf.mxu0
      %v8583 = vadd.f32 0.0, %v8582
      %v8584 = vpop.f32.mrf.mxu0
      %v8585 = vadd.f32 0.0, %v8584
      %8586 = vdwg.mxu0
      %8587 = vmatprep.subr.mxu0 0.0
      %8588 = vmatpush1.msra.mxu0 0.0
      %8589 = vmatprep.subr.mxu0 0.0
      %8590 = vmatpush1.msra.mxu0 0.0
      %8591 = vmatprep.subr.mxu0 0.0
      %8592 = vmatpush1.msra.mxu0 0.0
      %8593 = vmatprep.subr.mxu0 0.0
      %8594 = vmatpush1.msra.mxu0 0.0
      %8595 = vmatprep.subr.mxu0 0.0
      %8596 = vmatpush1.msra.mxu0 0.0
      %8597 = vmatprep.subr.mxu0 0.0
      %8598 = vmatpush1.msra.mxu0 0.0
      %8599 = vmatprep.subr.mxu0 0.0
      %8600 = vmatpush1.msra.mxu0 0.0
      %8601 = vmatprep.subr.mxu0 0.0
      %8602 = vmatpush1.msra.mxu0 0.0
      %8603 = vmatprep.subr.mxu0 0.0
      %8604 = vmatpush1.msra.mxu0 0.0
      %8605 = vmatprep.subr.mxu0 0.0
      %8606 = vmatpush1.msra.mxu0 0.0
      %8607 = vmatprep.subr.mxu0 0.0
      %8608 = vmatpush1.msra.mxu0 0.0
      %8609 = vmatprep.subr.mxu0 0.0
      %8610 = vmatpush1.msra.mxu0 0.0
      %8611 = vmatprep.subr.mxu0 0.0
      %8612 = vmatpush1.msra.mxu0 %v8492
      %8613 = vmatprep.subr.mxu0 0.0
      %8614 = vmatpush1.msra.mxu0 %v8486
      %8615 = vmatprep.subr.mxu0 0.0
      %8616 = vmatpush1.msra.mxu0 %v8480
      %8617 = vmatprep.subr.mxu0 0.0
      %8618 = vmatpush1.msra.mxu0 %v8474
      %8619 = vmatprep.subr.mxu0 0.0
      %8620 = vmatpush2.msra.mxu0 0.0
      %8621 = vmatprep.subr.mxu0 0.0
      %8622 = vmatpush2.msra.mxu0 0.0
      %8623 = vmatprep.subr.mxu0 0.0
      %8624 = vmatpush2.msra.mxu0 0.0
      %8625 = vmatprep.subr.mxu0 0.0
      %8626 = vmatpush2.msra.mxu0 0.0
      %8627 = vmatprep.subr.mxu0 0.0
      %8628 = vmatpush2.msra.mxu0 0.0
      %8629 = vmatprep.subr.mxu0 0.0
      %8630 = vmatpush2.msra.mxu0 0.0
      %8631 = vmatprep.subr.mxu0 0.0
      %8632 = vmatpush2.msra.mxu0 0.0
      %8633 = vmatprep.subr.mxu0 0.0
      %8634 = vmatpush2.msra.mxu0 0.0
      %8635 = vmatprep.subr.mxu0 0.0
      %8636 = vmatpush2.msra.mxu0 0.0
      %8637 = vmatprep.subr.mxu0 0.0
      %8638 = vmatpush2.msra.mxu0 0.0
      %8639 = vmatprep.subr.mxu0 0.0
      %8640 = vmatpush2.msra.mxu0 0.0
      %8641 = vmatprep.subr.mxu0 0.0
      %8642 = vmatpush2.msra.mxu0 0.0
      %8643 = vmatprep.subr.mxu0 0.0
      %8644 = vmatpush2.msra.mxu0 0.0
      %8645 = vmatprep.subr.mxu0 0.0
      %8646 = vmatpush2.msra.mxu0 0.0
      %8647 = vmatprep.subr.mxu0 0.0
      %8648 = vmatpush2.msra.mxu0 0.0
      %8649 = vmatprep.subr.mxu0 0.0
      %8650 = vmatpush2.msra.mxu0 0.0
      %8651 = vmatprep.mubr.f32.mxu0 0.0
      %8652 = vmatmul.mubr.f32.gmra.mxu0 %v8514
      %v8653 = vpop.f32.mrf.mxu0
      %v8654 = vadd.f32 0.0, %v8653
      %v8655 = vpop.f32.mrf.mxu0
      %8656 = vdwg.mxu0
      %v8657 = vadd.f32 %v8464, %v8583
      %v8658 = vadd.f32 %v8465, %v8585
      %v8659 = vadd.f32 %v8466, %v8654
      %s8660 = scalar_lea.vmem %s4, 12
      %v8661 = vld [vmem:[%s8660] sm:$0xf]
      %8662 = vrot.lane.b32.xlu0 %v8058, 93
      %v8663 = vpop.permute.xlu0 %8662
      %8664 = vrot.lane.b32.xlu0 %v8059, 93
      %v8665 = vpop.permute.xlu0 %8664
      %8666 = vrot.lane.b32.xlu0 %v8060, 93
      %v8667 = vpop.permute.xlu0 %8666
      %8668 = vrot.lane.b32.xlu0 %v8061, 93
      %v8669 = vpop.permute.xlu0 %8668
      %8670 = vrot.lane.b32.xlu0 %v8062, 93
      %v8671 = vpop.permute.xlu0 %8670
      %8672 = vrot.lane.b32.xlu0 %v8063, 93
      %v8673 = vpop.permute.xlu0 %8672
      %8674 = vrot.lane.b32.xlu0 %v8064, 93
      %v8675 = vpop.permute.xlu0 %8674
      %8676 = vrot.lane.b32.xlu0 %v8065, 93
      %v8677 = vpop.permute.xlu0 %8676
      %8678 = vrot.lane.b32.xlu0 %v8066, 93
      %v8679 = vpop.permute.xlu0 %8678
      %8680 = vrot.lane.b32.xlu0 %v8067, 93
      %v8681 = vpop.permute.xlu0 %8680
      %8682 = vrot.lane.b32.xlu0 %v8068, 93
      %v8683 = vpop.permute.xlu0 %8682
      %8684 = vrot.lane.b32.xlu0 %v8069, 93
      %v8685 = vpop.permute.xlu0 %8684
      %v8686 = vsel %vm1523, %v8663, %v8665
      %v8687 = vsel %vm1523, %v8665, %v8667
      %v8688 = vsel %vm1523, %v8669, %v8671
      %v8689 = vsel %vm1523, %v8671, %v8673
      %v8690 = vsel %vm1523, %v8675, %v8677
      %v8691 = vsel %vm1523, %v8677, %v8679
      %v8692 = vsel %vm1523, %v8681, %v8683
      %v8693 = vsel %vm1523, %v8683, %v8685
      %v8707 = vsel %vm718, %v8661, 0
      %8709 = vmatprep.subr.mxu0 0.0
      %8710 = vmatpush1.msra.mxu0 0.0
      %8711 = vmatprep.subr.mxu0 0.0
      %8712 = vmatpush1.msra.mxu0 0.0
      %8713 = vmatprep.subr.mxu0 0.0
      %8714 = vmatpush1.msra.mxu0 0.0
      %8715 = vmatprep.subr.mxu0 0.0
      %8716 = vmatpush1.msra.mxu0 0.0
      %8717 = vmatprep.subr.mxu0 0.0
      %8718 = vmatpush1.msra.mxu0 0.0
      %8719 = vmatprep.subr.mxu0 0.0
      %8720 = vmatpush1.msra.mxu0 0.0
      %8721 = vmatprep.subr.mxu0 0.0
      %8722 = vmatpush1.msra.mxu0 0.0
      %8723 = vmatprep.subr.mxu0 0.0
      %8724 = vmatpush1.msra.mxu0 0.0
      %8725 = vmatprep.subr.mxu0 0.0
      %8726 = vmatpush1.msra.mxu0 0.0
      %8727 = vmatprep.subr.mxu0 0.0
      %8728 = vmatpush1.msra.mxu0 0.0
      %8729 = vmatprep.subr.mxu0 0.0
      %8730 = vmatpush1.msra.mxu0 0.0
      %8731 = vmatprep.subr.mxu0 0.0
      %8732 = vmatpush1.msra.mxu0 0.0
      %8733 = vmatprep.subr.mxu0 %v8693
      %8734 = vmatpush1.msra.mxu0 %v8692
      %8735 = vmatprep.subr.mxu0 %v8691
      %8736 = vmatpush1.msra.mxu0 %v8690
      %8737 = vmatprep.subr.mxu0 %v8689
      %8738 = vmatpush1.msra.mxu0 %v8688
      %8739 = vmatprep.subr.mxu0 %v8687
      %8740 = vmatpush1.msra.mxu0 %v8686
      %8741 = vmatprep.subr.mxu0 0.0
      %8742 = vmatpush2.msra.mxu0 0.0
      %8743 = vmatprep.subr.mxu0 0.0
      %8744 = vmatpush2.msra.mxu0 0.0
      %8745 = vmatprep.subr.mxu0 0.0
      %8746 = vmatpush2.msra.mxu0 0.0
      %8747 = vmatprep.subr.mxu0 0.0
      %8748 = vmatpush2.msra.mxu0 0.0
      %8749 = vmatprep.subr.mxu0 0.0
      %8750 = vmatpush2.msra.mxu0 0.0
      %8751 = vmatprep.subr.mxu0 0.0
      %8752 = vmatpush2.msra.mxu0 0.0
      %8753 = vmatprep.subr.mxu0 0.0
      %8754 = vmatpush2.msra.mxu0 0.0
      %8755 = vmatprep.subr.mxu0 0.0
      %8756 = vmatpush2.msra.mxu0 0.0
      %8757 = vmatprep.subr.mxu0 0.0
      %8758 = vmatpush2.msra.mxu0 0.0
      %8759 = vmatprep.subr.mxu0 0.0
      %8760 = vmatpush2.msra.mxu0 0.0
      %8761 = vmatprep.subr.mxu0 0.0
      %8762 = vmatpush2.msra.mxu0 0.0
      %8763 = vmatprep.subr.mxu0 0.0
      %8764 = vmatpush2.msra.mxu0 0.0
      %8765 = vmatprep.subr.mxu0 0.0
      %8766 = vmatpush2.msra.mxu0 0.0
      %8767 = vmatprep.subr.mxu0 0.0
      %8768 = vmatpush2.msra.mxu0 0.0
      %8769 = vmatprep.subr.mxu0 0.0
      %8770 = vmatpush2.msra.mxu0 0.0
      %8771 = vmatprep.subr.mxu0 0.0
      %8772 = vmatpush2.msra.mxu0 0.0
      %8773 = vmatprep.mubr.f32.mxu0 0.0
      %8774 = vmatmul.mubr.f32.gmra.mxu0 %v8707
      %v8775 = vpop.f32.mrf.mxu0
      %v8776 = vadd.f32 0.0, %v8775
      %v8777 = vpop.f32.mrf.mxu0
      %v8778 = vadd.f32 0.0, %v8777
      %8779 = vdwg.mxu0
      %8780 = vmatprep.subr.mxu0 0.0
      %8781 = vmatpush1.msra.mxu0 0.0
      %8782 = vmatprep.subr.mxu0 0.0
      %8783 = vmatpush1.msra.mxu0 0.0
      %8784 = vmatprep.subr.mxu0 0.0
      %8785 = vmatpush1.msra.mxu0 0.0
      %8786 = vmatprep.subr.mxu0 0.0
      %8787 = vmatpush1.msra.mxu0 0.0
      %8788 = vmatprep.subr.mxu0 0.0
      %8789 = vmatpush1.msra.mxu0 0.0
      %8790 = vmatprep.subr.mxu0 0.0
      %8791 = vmatpush1.msra.mxu0 0.0
      %8792 = vmatprep.subr.mxu0 0.0
      %8793 = vmatpush1.msra.mxu0 0.0
      %8794 = vmatprep.subr.mxu0 0.0
      %8795 = vmatpush1.msra.mxu0 0.0
      %8796 = vmatprep.subr.mxu0 0.0
      %8797 = vmatpush1.msra.mxu0 0.0
      %8798 = vmatprep.subr.mxu0 0.0
      %8799 = vmatpush1.msra.mxu0 0.0
      %8800 = vmatprep.subr.mxu0 0.0
      %8801 = vmatpush1.msra.mxu0 0.0
      %8802 = vmatprep.subr.mxu0 0.0
      %8803 = vmatpush1.msra.mxu0 0.0
      %8804 = vmatprep.subr.mxu0 0.0
      %8805 = vmatpush1.msra.mxu0 %v8685
      %8806 = vmatprep.subr.mxu0 0.0
      %8807 = vmatpush1.msra.mxu0 %v8679
      %8808 = vmatprep.subr.mxu0 0.0
      %8809 = vmatpush1.msra.mxu0 %v8673
      %8810 = vmatprep.subr.mxu0 0.0
      %8811 = vmatpush1.msra.mxu0 %v8667
      %8812 = vmatprep.subr.mxu0 0.0
      %8813 = vmatpush2.msra.mxu0 0.0
      %8814 = vmatprep.subr.mxu0 0.0
      %8815 = vmatpush2.msra.mxu0 0.0
      %8816 = vmatprep.subr.mxu0 0.0
      %8817 = vmatpush2.msra.mxu0 0.0
      %8818 = vmatprep.subr.mxu0 0.0
      %8819 = vmatpush2.msra.mxu0 0.0
      %8820 = vmatprep.subr.mxu0 0.0
      %8821 = vmatpush2.msra.mxu0 0.0
      %8822 = vmatprep.subr.mxu0 0.0
      %8823 = vmatpush2.msra.mxu0 0.0
      %8824 = vmatprep.subr.mxu0 0.0
      %8825 = vmatpush2.msra.mxu0 0.0
      %8826 = vmatprep.subr.mxu0 0.0
      %8827 = vmatpush2.msra.mxu0 0.0
      %8828 = vmatprep.subr.mxu0 0.0
      %8829 = vmatpush2.msra.mxu0 0.0
      %8830 = vmatprep.subr.mxu0 0.0
      %8831 = vmatpush2.msra.mxu0 0.0
      %8832 = vmatprep.subr.mxu0 0.0
      %8833 = vmatpush2.msra.mxu0 0.0
      %8834 = vmatprep.subr.mxu0 0.0
      %8835 = vmatpush2.msra.mxu0 0.0
      %8836 = vmatprep.subr.mxu0 0.0
      %8837 = vmatpush2.msra.mxu0 0.0
      %8838 = vmatprep.subr.mxu0 0.0
      %8839 = vmatpush2.msra.mxu0 0.0
      %8840 = vmatprep.subr.mxu0 0.0
      %8841 = vmatpush2.msra.mxu0 0.0
      %8842 = vmatprep.subr.mxu0 0.0
      %8843 = vmatpush2.msra.mxu0 0.0
      %8844 = vmatprep.mubr.f32.mxu0 0.0
      %8845 = vmatmul.mubr.f32.gmra.mxu0 %v8707
      %v8846 = vpop.f32.mrf.mxu0
      %v8847 = vadd.f32 0.0, %v8846
      %v8848 = vpop.f32.mrf.mxu0
      %8849 = vdwg.mxu0
      %v8850 = vadd.f32 %v8657, %v8776
      %v8851 = vadd.f32 %v8658, %v8778
      %v8852 = vadd.f32 %v8659, %v8847
      %s8853 = scalar_lea.vmem %s4, 16
      %v8854 = vld [vmem:[%s8853] sm:$0xf]
      %8855 = vrot.lane.b32.xlu0 %v8058, 92
      %v8856 = vpop.permute.xlu0 %8855
      %8857 = vrot.lane.b32.xlu0 %v8059, 92
      %v8858 = vpop.permute.xlu0 %8857
      %8859 = vrot.lane.b32.xlu0 %v8060, 92
      %v8860 = vpop.permute.xlu0 %8859
      %8861 = vrot.lane.b32.xlu0 %v8061, 92
      %v8862 = vpop.permute.xlu0 %8861
      %8863 = vrot.lane.b32.xlu0 %v8062, 92
      %v8864 = vpop.permute.xlu0 %8863
      %8865 = vrot.lane.b32.xlu0 %v8063, 92
      %v8866 = vpop.permute.xlu0 %8865
      %8867 = vrot.lane.b32.xlu0 %v8064, 92
      %v8868 = vpop.permute.xlu0 %8867
      %8869 = vrot.lane.b32.xlu0 %v8065, 92
      %v8870 = vpop.permute.xlu0 %8869
      %8871 = vrot.lane.b32.xlu0 %v8066, 92
      %v8872 = vpop.permute.xlu0 %8871
      %8873 = vrot.lane.b32.xlu0 %v8067, 92
      %v8874 = vpop.permute.xlu0 %8873
      %8875 = vrot.lane.b32.xlu0 %v8068, 92
      %v8876 = vpop.permute.xlu0 %8875
      %8877 = vrot.lane.b32.xlu0 %v8069, 92
      %v8878 = vpop.permute.xlu0 %8877
      %v8879 = vsel %vm1760, %v8856, %v8858
      %v8880 = vsel %vm1760, %v8858, %v8860
      %v8881 = vsel %vm1760, %v8862, %v8864
      %v8882 = vsel %vm1760, %v8864, %v8866
      %v8883 = vsel %vm1760, %v8868, %v8870
      %v8884 = vsel %vm1760, %v8870, %v8872
      %v8885 = vsel %vm1760, %v8874, %v8876
      %v8886 = vsel %vm1760, %v8876, %v8878
      %v8900 = vsel %vm718, %v8854, 0
      %8902 = vmatprep.subr.mxu0 0.0
      %8903 = vmatpush1.msra.mxu0 0.0
      %8904 = vmatprep.subr.mxu0 0.0
      %8905 = vmatpush1.msra.mxu0 0.0
      %8906 = vmatprep.subr.mxu0 0.0
      %8907 = vmatpush1.msra.mxu0 0.0
      %8908 = vmatprep.subr.mxu0 0.0
      %8909 = vmatpush1.msra.mxu0 0.0
      %8910 = vmatprep.subr.mxu0 0.0
      %8911 = vmatpush1.msra.mxu0 0.0
      %8912 = vmatprep.subr.mxu0 0.0
      %8913 = vmatpush1.msra.mxu0 0.0
      %8914 = vmatprep.subr.mxu0 0.0
      %8915 = vmatpush1.msra.mxu0 0.0
      %8916 = vmatprep.subr.mxu0 0.0
      %8917 = vmatpush1.msra.mxu0 0.0
      %8918 = vmatprep.subr.mxu0 0.0
      %8919 = vmatpush1.msra.mxu0 0.0
      %8920 = vmatprep.subr.mxu0 0.0
      %8921 = vmatpush1.msra.mxu0 0.0
      %8922 = vmatprep.subr.mxu0 0.0
      %8923 = vmatpush1.msra.mxu0 0.0
      %8924 = vmatprep.subr.mxu0 0.0
      %8925 = vmatpush1.msra.mxu0 0.0
      %8926 = vmatprep.subr.mxu0 %v8886
      %8927 = vmatpush1.msra.mxu0 %v8885
      %8928 = vmatprep.subr.mxu0 %v8884
      %8929 = vmatpush1.msra.mxu0 %v8883
      %8930 = vmatprep.subr.mxu0 %v8882
      %8931 = vmatpush1.msra.mxu0 %v8881
      %8932 = vmatprep.subr.mxu0 %v8880
      %8933 = vmatpush1.msra.mxu0 %v8879
      %8934 = vmatprep.subr.mxu0 0.0
      %8935 = vmatpush2.msra.mxu0 0.0
      %8936 = vmatprep.subr.mxu0 0.0
      %8937 = vmatpush2.msra.mxu0 0.0
      %8938 = vmatprep.subr.mxu0 0.0
      %8939 = vmatpush2.msra.mxu0 0.0
      %8940 = vmatprep.subr.mxu0 0.0
      %8941 = vmatpush2.msra.mxu0 0.0
      %8942 = vmatprep.subr.mxu0 0.0
      %8943 = vmatpush2.msra.mxu0 0.0
      %8944 = vmatprep.subr.mxu0 0.0
      %8945 = vmatpush2.msra.mxu0 0.0
      %8946 = vmatprep.subr.mxu0 0.0
      %8947 = vmatpush2.msra.mxu0 0.0
      %8948 = vmatprep.subr.mxu0 0.0
      %8949 = vmatpush2.msra.mxu0 0.0
      %8950 = vmatprep.subr.mxu0 0.0
      %8951 = vmatpush2.msra.mxu0 0.0
      %8952 = vmatprep.subr.mxu0 0.0
      %8953 = vmatpush2.msra.mxu0 0.0
      %8954 = vmatprep.subr.mxu0 0.0
      %8955 = vmatpush2.msra.mxu0 0.0
      %8956 = vmatprep.subr.mxu0 0.0
      %8957 = vmatpush2.msra.mxu0 0.0
      %8958 = vmatprep.subr.mxu0 0.0
      %8959 = vmatpush2.msra.mxu0 0.0
      %8960 = vmatprep.subr.mxu0 0.0
      %8961 = vmatpush2.msra.mxu0 0.0
      %8962 = vmatprep.subr.mxu0 0.0
      %8963 = vmatpush2.msra.mxu0 0.0
      %8964 = vmatprep.subr.mxu0 0.0
      %8965 = vmatpush2.msra.mxu0 0.0
      %8966 = vmatprep.mubr.f32.mxu0 0.0
      %8967 = vmatmul.mubr.f32.gmra.mxu0 %v8900
      %v8968 = vpop.f32.mrf.mxu0
      %v8969 = vadd.f32 0.0, %v8968
      %v8970 = vpop.f32.mrf.mxu0
      %v8971 = vadd.f32 0.0, %v8970
      %8972 = vdwg.mxu0
      %8973 = vmatprep.subr.mxu0 0.0
      %8974 = vmatpush1.msra.mxu0 0.0
      %8975 = vmatprep.subr.mxu0 0.0
      %8976 = vmatpush1.msra.mxu0 0.0
      %8977 = vmatprep.subr.mxu0 0.0
      %8978 = vmatpush1.msra.mxu0 0.0
      %8979 = vmatprep.subr.mxu0 0.0
      %8980 = vmatpush1.msra.mxu0 0.0
      %8981 = vmatprep.subr.mxu0 0.0
      %8982 = vmatpush1.msra.mxu0 0.0
      %8983 = vmatprep.subr.mxu0 0.0
      %8984 = vmatpush1.msra.mxu0 0.0
      %8985 = vmatprep.subr.mxu0 0.0
      %8986 = vmatpush1.msra.mxu0 0.0
      %8987 = vmatprep.subr.mxu0 0.0
      %8988 = vmatpush1.msra.mxu0 0.0
      %8989 = vmatprep.subr.mxu0 0.0
      %8990 = vmatpush1.msra.mxu0 0.0
      %8991 = vmatprep.subr.mxu0 0.0
      %8992 = vmatpush1.msra.mxu0 0.0
      %8993 = vmatprep.subr.mxu0 0.0
      %8994 = vmatpush1.msra.mxu0 0.0
      %8995 = vmatprep.subr.mxu0 0.0
      %8996 = vmatpush1.msra.mxu0 0.0
      %8997 = vmatprep.subr.mxu0 0.0
      %8998 = vmatpush1.msra.mxu0 %v8878
      %8999 = vmatprep.subr.mxu0 0.0
      %9000 = vmatpush1.msra.mxu0 %v8872
      %9001 = vmatprep.subr.mxu0 0.0
      %9002 = vmatpush1.msra.mxu0 %v8866
      %9003 = vmatprep.subr.mxu0 0.0
      %9004 = vmatpush1.msra.mxu0 %v8860
      %9005 = vmatprep.subr.mxu0 0.0
      %9006 = vmatpush2.msra.mxu0 0.0
      %9007 = vmatprep.subr.mxu0 0.0
      %9008 = vmatpush2.msra.mxu0 0.0
      %9009 = vmatprep.subr.mxu0 0.0
      %9010 = vmatpush2.msra.mxu0 0.0
      %9011 = vmatprep.subr.mxu0 0.0
      %9012 = vmatpush2.msra.mxu0 0.0
      %9013 = vmatprep.subr.mxu0 0.0
      %9014 = vmatpush2.msra.mxu0 0.0
      %9015 = vmatprep.subr.mxu0 0.0
      %9016 = vmatpush2.msra.mxu0 0.0
      %9017 = vmatprep.subr.mxu0 0.0
      %9018 = vmatpush2.msra.mxu0 0.0
      %9019 = vmatprep.subr.mxu0 0.0
      %9020 = vmatpush2.msra.mxu0 0.0
      %9021 = vmatprep.subr.mxu0 0.0
      %9022 = vmatpush2.msra.mxu0 0.0
      %9023 = vmatprep.subr.mxu0 0.0
      %9024 = vmatpush2.msra.mxu0 0.0
      %9025 = vmatprep.subr.mxu0 0.0
      %9026 = vmatpush2.msra.mxu0 0.0
      %9027 = vmatprep.subr.mxu0 0.0
      %9028 = vmatpush2.msra.mxu0 0.0
      %9029 = vmatprep.subr.mxu0 0.0
      %9030 = vmatpush2.msra.mxu0 0.0
      %9031 = vmatprep.subr.mxu0 0.0
      %9032 = vmatpush2.msra.mxu0 0.0
      %9033 = vmatprep.subr.mxu0 0.0
      %9034 = vmatpush2.msra.mxu0 0.0
      %9035 = vmatprep.subr.mxu0 0.0
      %9036 = vmatpush2.msra.mxu0 0.0
      %9037 = vmatprep.mubr.f32.mxu0 0.0
      %9038 = vmatmul.mubr.f32.gmra.mxu0 %v8900
      %v9039 = vpop.f32.mrf.mxu0
      %v9040 = vadd.f32 0.0, %v9039
      %v9041 = vpop.f32.mrf.mxu0
      %9042 = vdwg.mxu0
      %v9043 = vadd.f32 %v8850, %v8969
      %v9044 = vadd.f32 %v8851, %v8971
      %v9045 = vadd.f32 %v8852, %v9040
      %s9046 = scalar_lea.vmem %s4, 20
      %v9047 = vld [vmem:[%s9046] sm:$0xf]
      %9048 = vrot.lane.b32.xlu0 %v8058, 91
      %v9049 = vpop.permute.xlu0 %9048
      %9050 = vrot.lane.b32.xlu0 %v8059, 91
      %v9051 = vpop.permute.xlu0 %9050
      %9052 = vrot.lane.b32.xlu0 %v8060, 91
      %v9053 = vpop.permute.xlu0 %9052
      %9054 = vrot.lane.b32.xlu0 %v8061, 91
      %v9055 = vpop.permute.xlu0 %9054
      %9056 = vrot.lane.b32.xlu0 %v8062, 91
      %v9057 = vpop.permute.xlu0 %9056
      %9058 = vrot.lane.b32.xlu0 %v8063, 91
      %v9059 = vpop.permute.xlu0 %9058
      %9060 = vrot.lane.b32.xlu0 %v8064, 91
      %v9061 = vpop.permute.xlu0 %9060
      %9062 = vrot.lane.b32.xlu0 %v8065, 91
      %v9063 = vpop.permute.xlu0 %9062
      %9064 = vrot.lane.b32.xlu0 %v8066, 91
      %v9065 = vpop.permute.xlu0 %9064
      %9066 = vrot.lane.b32.xlu0 %v8067, 91
      %v9067 = vpop.permute.xlu0 %9066
      %9068 = vrot.lane.b32.xlu0 %v8068, 91
      %v9069 = vpop.permute.xlu0 %9068
      %9070 = vrot.lane.b32.xlu0 %v8069, 91
      %v9071 = vpop.permute.xlu0 %9070
      %v9072 = vsel %vm1997, %v9049, %v9051
      %v9073 = vsel %vm1997, %v9051, %v9053
      %v9074 = vsel %vm1997, %v9055, %v9057
      %v9075 = vsel %vm1997, %v9057, %v9059
      %v9076 = vsel %vm1997, %v9061, %v9063
      %v9077 = vsel %vm1997, %v9063, %v9065
      %v9078 = vsel %vm1997, %v9067, %v9069
      %v9079 = vsel %vm1997, %v9069, %v9071
      %v9093 = vsel %vm718, %v9047, 0
      %9095 = vmatprep.subr.mxu0 0.0
      %9096 = vmatpush1.msra.mxu0 0.0
      %9097 = vmatprep.subr.mxu0 0.0
      %9098 = vmatpush1.msra.mxu0 0.0
      %9099 = vmatprep.subr.mxu0 0.0
      %9100 = vmatpush1.msra.mxu0 0.0
      %9101 = vmatprep.subr.mxu0 0.0
      %9102 = vmatpush1.msra.mxu0 0.0
      %9103 = vmatprep.subr.mxu0 0.0
      %9104 = vmatpush1.msra.mxu0 0.0
      %9105 = vmatprep.subr.mxu0 0.0
      %9106 = vmatpush1.msra.mxu0 0.0
      %9107 = vmatprep.subr.mxu0 0.0
      %9108 = vmatpush1.msra.mxu0 0.0
      %9109 = vmatprep.subr.mxu0 0.0
      %9110 = vmatpush1.msra.mxu0 0.0
      %9111 = vmatprep.subr.mxu0 0.0
      %9112 = vmatpush1.msra.mxu0 0.0
      %9113 = vmatprep.subr.mxu0 0.0
      %9114 = vmatpush1.msra.mxu0 0.0
      %9115 = vmatprep.subr.mxu0 0.0
      %9116 = vmatpush1.msra.mxu0 0.0
      %9117 = vmatprep.subr.mxu0 0.0
      %9118 = vmatpush1.msra.mxu0 0.0
      %9119 = vmatprep.subr.mxu0 %v9079
      %9120 = vmatpush1.msra.mxu0 %v9078
      %9121 = vmatprep.subr.mxu0 %v9077
      %9122 = vmatpush1.msra.mxu0 %v9076
      %9123 = vmatprep.subr.mxu0 %v9075
      %9124 = vmatpush1.msra.mxu0 %v9074
      %9125 = vmatprep.subr.mxu0 %v9073
      %9126 = vmatpush1.msra.mxu0 %v9072
      %9127 = vmatprep.subr.mxu0 0.0
      %9128 = vmatpush2.msra.mxu0 0.0
      %9129 = vmatprep.subr.mxu0 0.0
      %9130 = vmatpush2.msra.mxu0 0.0
      %9131 = vmatprep.subr.mxu0 0.0
      %9132 = vmatpush2.msra.mxu0 0.0
      %9133 = vmatprep.subr.mxu0 0.0
      %9134 = vmatpush2.msra.mxu0 0.0
      %9135 = vmatprep.subr.mxu0 0.0
      %9136 = vmatpush2.msra.mxu0 0.0
      %9137 = vmatprep.subr.mxu0 0.0
      %9138 = vmatpush2.msra.mxu0 0.0
      %9139 = vmatprep.subr.mxu0 0.0
      %9140 = vmatpush2.msra.mxu0 0.0
      %9141 = vmatprep.subr.mxu0 0.0
      %9142 = vmatpush2.msra.mxu0 0.0
      %9143 = vmatprep.subr.mxu0 0.0
      %9144 = vmatpush2.msra.mxu0 0.0
      %9145 = vmatprep.subr.mxu0 0.0
      %9146 = vmatpush2.msra.mxu0 0.0
      %9147 = vmatprep.subr.mxu0 0.0
      %9148 = vmatpush2.msra.mxu0 0.0
      %9149 = vmatprep.subr.mxu0 0.0
      %9150 = vmatpush2.msra.mxu0 0.0
      %9151 = vmatprep.subr.mxu0 0.0
      %9152 = vmatpush2.msra.mxu0 0.0
      %9153 = vmatprep.subr.mxu0 0.0
      %9154 = vmatpush2.msra.mxu0 0.0
      %9155 = vmatprep.subr.mxu0 0.0
      %9156 = vmatpush2.msra.mxu0 0.0
      %9157 = vmatprep.subr.mxu0 0.0
      %9158 = vmatpush2.msra.mxu0 0.0
      %9159 = vmatprep.mubr.f32.mxu0 0.0
      %9160 = vmatmul.mubr.f32.gmra.mxu0 %v9093
      %v9161 = vpop.f32.mrf.mxu0
      %v9162 = vadd.f32 0.0, %v9161
      %v9163 = vpop.f32.mrf.mxu0
      %v9164 = vadd.f32 0.0, %v9163
      %9165 = vdwg.mxu0
      %9166 = vmatprep.subr.mxu0 0.0
      %9167 = vmatpush1.msra.mxu0 0.0
      %9168 = vmatprep.subr.mxu0 0.0
      %9169 = vmatpush1.msra.mxu0 0.0
      %9170 = vmatprep.subr.mxu0 0.0
      %9171 = vmatpush1.msra.mxu0 0.0
      %9172 = vmatprep.subr.mxu0 0.0
      %9173 = vmatpush1.msra.mxu0 0.0
      %9174 = vmatprep.subr.mxu0 0.0
      %9175 = vmatpush1.msra.mxu0 0.0
      %9176 = vmatprep.subr.mxu0 0.0
      %9177 = vmatpush1.msra.mxu0 0.0
      %9178 = vmatprep.subr.mxu0 0.0
      %9179 = vmatpush1.msra.mxu0 0.0
      %9180 = vmatprep.subr.mxu0 0.0
      %9181 = vmatpush1.msra.mxu0 0.0
      %9182 = vmatprep.subr.mxu0 0.0
      %9183 = vmatpush1.msra.mxu0 0.0
      %9184 = vmatprep.subr.mxu0 0.0
      %9185 = vmatpush1.msra.mxu0 0.0
      %9186 = vmatprep.subr.mxu0 0.0
      %9187 = vmatpush1.msra.mxu0 0.0
      %9188 = vmatprep.subr.mxu0 0.0
      %9189 = vmatpush1.msra.mxu0 0.0
      %9190 = vmatprep.subr.mxu0 0.0
      %9191 = vmatpush1.msra.mxu0 %v9071
      %9192 = vmatprep.subr.mxu0 0.0
      %9193 = vmatpush1.msra.mxu0 %v9065
      %9194 = vmatprep.subr.mxu0 0.0
      %9195 = vmatpush1.msra.mxu0 %v9059
      %9196 = vmatprep.subr.mxu0 0.0
      %9197 = vmatpush1.msra.mxu0 %v9053
      %9198 = vmatprep.subr.mxu0 0.0
      %9199 = vmatpush2.msra.mxu0 0.0
      %9200 = vmatprep.subr.mxu0 0.0
      %9201 = vmatpush2.msra.mxu0 0.0
      %9202 = vmatprep.subr.mxu0 0.0
      %9203 = vmatpush2.msra.mxu0 0.0
      %9204 = vmatprep.subr.mxu0 0.0
      %9205 = vmatpush2.msra.mxu0 0.0
      %9206 = vmatprep.subr.mxu0 0.0
      %9207 = vmatpush2.msra.mxu0 0.0
      %9208 = vmatprep.subr.mxu0 0.0
      %9209 = vmatpush2.msra.mxu0 0.0
      %9210 = vmatprep.subr.mxu0 0.0
      %9211 = vmatpush2.msra.mxu0 0.0
      %9212 = vmatprep.subr.mxu0 0.0
      %9213 = vmatpush2.msra.mxu0 0.0
      %9214 = vmatprep.subr.mxu0 0.0
      %9215 = vmatpush2.msra.mxu0 0.0
      %9216 = vmatprep.subr.mxu0 0.0
      %9217 = vmatpush2.msra.mxu0 0.0
      %9218 = vmatprep.subr.mxu0 0.0
      %9219 = vmatpush2.msra.mxu0 0.0
      %9220 = vmatprep.subr.mxu0 0.0
      %9221 = vmatpush2.msra.mxu0 0.0
      %9222 = vmatprep.subr.mxu0 0.0
      %9223 = vmatpush2.msra.mxu0 0.0
      %9224 = vmatprep.subr.mxu0 0.0
      %9225 = vmatpush2.msra.mxu0 0.0
      %9226 = vmatprep.subr.mxu0 0.0
      %9227 = vmatpush2.msra.mxu0 0.0
      %9228 = vmatprep.subr.mxu0 0.0
      %9229 = vmatpush2.msra.mxu0 0.0
      %9230 = vmatprep.mubr.f32.mxu0 0.0
      %9231 = vmatmul.mubr.f32.gmra.mxu0 %v9093
      %v9232 = vpop.f32.mrf.mxu0
      %v9233 = vadd.f32 0.0, %v9232
      %v9234 = vpop.f32.mrf.mxu0
      %9235 = vdwg.mxu0
      %v9236 = vadd.f32 %v9043, %v9162
      %v9237 = vadd.f32 %v9044, %v9164
      %v9238 = vadd.f32 %v9045, %v9233
      %s9239 = scalar_lea.vmem %s4, 24
      %v9240 = vld [vmem:[%s9239] sm:$0xf]
      %9241 = vrot.lane.b32.xlu0 %v8058, 75
      %v9242 = vpop.permute.xlu0 %9241
      %9243 = vrot.lane.b32.xlu0 %v8059, 75
      %v9244 = vpop.permute.xlu0 %9243
      %9245 = vrot.lane.b32.xlu0 %v8060, 75
      %v9246 = vpop.permute.xlu0 %9245
      %9247 = vrot.lane.b32.xlu0 %v8061, 75
      %v9248 = vpop.permute.xlu0 %9247
      %9249 = vrot.lane.b32.xlu0 %v8062, 75
      %v9250 = vpop.permute.xlu0 %9249
      %9251 = vrot.lane.b32.xlu0 %v8063, 75
      %v9252 = vpop.permute.xlu0 %9251
      %9253 = vrot.lane.b32.xlu0 %v8064, 75
      %v9254 = vpop.permute.xlu0 %9253
      %9255 = vrot.lane.b32.xlu0 %v8065, 75
      %v9256 = vpop.permute.xlu0 %9255
      %9257 = vrot.lane.b32.xlu0 %v8066, 75
      %v9258 = vpop.permute.xlu0 %9257
      %9259 = vrot.lane.b32.xlu0 %v8067, 75
      %v9260 = vpop.permute.xlu0 %9259
      %9261 = vrot.lane.b32.xlu0 %v8068, 75
      %v9262 = vpop.permute.xlu0 %9261
      %9263 = vrot.lane.b32.xlu0 %v8069, 75
      %v9264 = vpop.permute.xlu0 %9263
      %v9265 = vsel %vm2234, %v9242, %v9244
      %v9266 = vsel %vm2234, %v9244, %v9246
      %v9267 = vsel %vm2234, %v9248, %v9250
      %v9268 = vsel %vm2234, %v9250, %v9252
      %v9269 = vsel %vm2234, %v9254, %v9256
      %v9270 = vsel %vm2234, %v9256, %v9258
      %v9271 = vsel %vm2234, %v9260, %v9262
      %v9272 = vsel %vm2234, %v9262, %v9264
      %v9286 = vsel %vm718, %v9240, 0
      %9288 = vmatprep.subr.mxu0 0.0
      %9289 = vmatpush1.msra.mxu0 0.0
      %9290 = vmatprep.subr.mxu0 0.0
      %9291 = vmatpush1.msra.mxu0 0.0
      %9292 = vmatprep.subr.mxu0 0.0
      %9293 = vmatpush1.msra.mxu0 0.0
      %9294 = vmatprep.subr.mxu0 0.0
      %9295 = vmatpush1.msra.mxu0 0.0
      %9296 = vmatprep.subr.mxu0 0.0
      %9297 = vmatpush1.msra.mxu0 0.0
      %9298 = vmatprep.subr.mxu0 0.0
      %9299 = vmatpush1.msra.mxu0 0.0
      %9300 = vmatprep.subr.mxu0 0.0
      %9301 = vmatpush1.msra.mxu0 0.0
      %9302 = vmatprep.subr.mxu0 0.0
      %9303 = vmatpush1.msra.mxu0 0.0
      %9304 = vmatprep.subr.mxu0 0.0
      %9305 = vmatpush1.msra.mxu0 0.0
      %9306 = vmatprep.subr.mxu0 0.0
      %9307 = vmatpush1.msra.mxu0 0.0
      %9308 = vmatprep.subr.mxu0 0.0
      %9309 = vmatpush1.msra.mxu0 0.0
      %9310 = vmatprep.subr.mxu0 0.0
      %9311 = vmatpush1.msra.mxu0 0.0
      %9312 = vmatprep.subr.mxu0 %v9272
      %9313 = vmatpush1.msra.mxu0 %v9271
      %9314 = vmatprep.subr.mxu0 %v9270
      %9315 = vmatpush1.msra.mxu0 %v9269
      %9316 = vmatprep.subr.mxu0 %v9268
      %9317 = vmatpush1.msra.mxu0 %v9267
      %9318 = vmatprep.subr.mxu0 %v9266
      %9319 = vmatpush1.msra.mxu0 %v9265
      %9320 = vmatprep.subr.mxu0 0.0
      %9321 = vmatpush2.msra.mxu0 0.0
      %9322 = vmatprep.subr.mxu0 0.0
      %9323 = vmatpush2.msra.mxu0 0.0
      %9324 = vmatprep.subr.mxu0 0.0
      %9325 = vmatpush2.msra.mxu0 0.0
      %9326 = vmatprep.subr.mxu0 0.0
      %9327 = vmatpush2.msra.mxu0 0.0
      %9328 = vmatprep.subr.mxu0 0.0
      %9329 = vmatpush2.msra.mxu0 0.0
      %9330 = vmatprep.subr.mxu0 0.0
      %9331 = vmatpush2.msra.mxu0 0.0
      %9332 = vmatprep.subr.mxu0 0.0
      %9333 = vmatpush2.msra.mxu0 0.0
      %9334 = vmatprep.subr.mxu0 0.0
      %9335 = vmatpush2.msra.mxu0 0.0
      %9336 = vmatprep.subr.mxu0 0.0
      %9337 = vmatpush2.msra.mxu0 0.0
      %9338 = vmatprep.subr.mxu0 0.0
      %9339 = vmatpush2.msra.mxu0 0.0
      %9340 = vmatprep.subr.mxu0 0.0
      %9341 = vmatpush2.msra.mxu0 0.0
      %9342 = vmatprep.subr.mxu0 0.0
      %9343 = vmatpush2.msra.mxu0 0.0
      %9344 = vmatprep.subr.mxu0 0.0
      %9345 = vmatpush2.msra.mxu0 0.0
      %9346 = vmatprep.subr.mxu0 0.0
      %9347 = vmatpush2.msra.mxu0 0.0
      %9348 = vmatprep.subr.mxu0 0.0
      %9349 = vmatpush2.msra.mxu0 0.0
      %9350 = vmatprep.subr.mxu0 0.0
      %9351 = vmatpush2.msra.mxu0 0.0
      %9352 = vmatprep.mubr.f32.mxu0 0.0
      %9353 = vmatmul.mubr.f32.gmra.mxu0 %v9286
      %v9354 = vpop.f32.mrf.mxu0
      %v9355 = vadd.f32 0.0, %v9354
      %v9356 = vpop.f32.mrf.mxu0
      %v9357 = vadd.f32 0.0, %v9356
      %9358 = vdwg.mxu0
      %9359 = vmatprep.subr.mxu0 0.0
      %9360 = vmatpush1.msra.mxu0 0.0
      %9361 = vmatprep.subr.mxu0 0.0
      %9362 = vmatpush1.msra.mxu0 0.0
      %9363 = vmatprep.subr.mxu0 0.0
      %9364 = vmatpush1.msra.mxu0 0.0
      %9365 = vmatprep.subr.mxu0 0.0
      %9366 = vmatpush1.msra.mxu0 0.0
      %9367 = vmatprep.subr.mxu0 0.0
      %9368 = vmatpush1.msra.mxu0 0.0
      %9369 = vmatprep.subr.mxu0 0.0
      %9370 = vmatpush1.msra.mxu0 0.0
      %9371 = vmatprep.subr.mxu0 0.0
      %9372 = vmatpush1.msra.mxu0 0.0
      %9373 = vmatprep.subr.mxu0 0.0
      %9374 = vmatpush1.msra.mxu0 0.0
      %9375 = vmatprep.subr.mxu0 0.0
      %9376 = vmatpush1.msra.mxu0 0.0
      %9377 = vmatprep.subr.mxu0 0.0
      %9378 = vmatpush1.msra.mxu0 0.0
      %9379 = vmatprep.subr.mxu0 0.0
      %9380 = vmatpush1.msra.mxu0 0.0
      %9381 = vmatprep.subr.mxu0 0.0
      %9382 = vmatpush1.msra.mxu0 0.0
      %9383 = vmatprep.subr.mxu0 0.0
      %9384 = vmatpush1.msra.mxu0 %v9264
      %9385 = vmatprep.subr.mxu0 0.0
      %9386 = vmatpush1.msra.mxu0 %v9258
      %9387 = vmatprep.subr.mxu0 0.0
      %9388 = vmatpush1.msra.mxu0 %v9252
      %9389 = vmatprep.subr.mxu0 0.0
      %9390 = vmatpush1.msra.mxu0 %v9246
      %9391 = vmatprep.subr.mxu0 0.0
      %9392 = vmatpush2.msra.mxu0 0.0
      %9393 = vmatprep.subr.mxu0 0.0
      %9394 = vmatpush2.msra.mxu0 0.0
      %9395 = vmatprep.subr.mxu0 0.0
      %9396 = vmatpush2.msra.mxu0 0.0
      %9397 = vmatprep.subr.mxu0 0.0
      %9398 = vmatpush2.msra.mxu0 0.0
      %9399 = vmatprep.subr.mxu0 0.0
      %9400 = vmatpush2.msra.mxu0 0.0
      %9401 = vmatprep.subr.mxu0 0.0
      %9402 = vmatpush2.msra.mxu0 0.0
      %9403 = vmatprep.subr.mxu0 0.0
      %9404 = vmatpush2.msra.mxu0 0.0
      %9405 = vmatprep.subr.mxu0 0.0
      %9406 = vmatpush2.msra.mxu0 0.0
      %9407 = vmatprep.subr.mxu0 0.0
      %9408 = vmatpush2.msra.mxu0 0.0
      %9409 = vmatprep.subr.mxu0 0.0
      %9410 = vmatpush2.msra.mxu0 0.0
      %9411 = vmatprep.subr.mxu0 0.0
      %9412 = vmatpush2.msra.mxu0 0.0
      %9413 = vmatprep.subr.mxu0 0.0
      %9414 = vmatpush2.msra.mxu0 0.0
      %9415 = vmatprep.subr.mxu0 0.0
      %9416 = vmatpush2.msra.mxu0 0.0
      %9417 = vmatprep.subr.mxu0 0.0
      %9418 = vmatpush2.msra.mxu0 0.0
      %9419 = vmatprep.subr.mxu0 0.0
      %9420 = vmatpush2.msra.mxu0 0.0
      %9421 = vmatprep.subr.mxu0 0.0
      %9422 = vmatpush2.msra.mxu0 0.0
      %9423 = vmatprep.mubr.f32.mxu0 0.0
      %9424 = vmatmul.mubr.f32.gmra.mxu0 %v9286
      %v9425 = vpop.f32.mrf.mxu0
      %v9426 = vadd.f32 0.0, %v9425
      %v9427 = vpop.f32.mrf.mxu0
      %9428 = vdwg.mxu0
      %v9429 = vadd.f32 %v9236, %v9355
      %v9430 = vadd.f32 %v9237, %v9357
      %v9431 = vadd.f32 %v9238, %v9426
      %s9432 = scalar_lea.vmem %s4, 28
      %v9433 = vld [vmem:[%s9432] sm:$0xf]
      %9434 = vrot.lane.b32.xlu0 %v8058, 74
      %v9435 = vpop.permute.xlu0 %9434
      %9436 = vrot.lane.b32.xlu0 %v8059, 74
      %v9437 = vpop.permute.xlu0 %9436
      %9438 = vrot.lane.b32.xlu0 %v8060, 74
      %v9439 = vpop.permute.xlu0 %9438
      %9440 = vrot.lane.b32.xlu0 %v8061, 74
      %v9441 = vpop.permute.xlu0 %9440
      %9442 = vrot.lane.b32.xlu0 %v8062, 74
      %v9443 = vpop.permute.xlu0 %9442
      %9444 = vrot.lane.b32.xlu0 %v8063, 74
      %v9445 = vpop.permute.xlu0 %9444
      %9446 = vrot.lane.b32.xlu0 %v8064, 74
      %v9447 = vpop.permute.xlu0 %9446
      %9448 = vrot.lane.b32.xlu0 %v8065, 74
      %v9449 = vpop.permute.xlu0 %9448
      %9450 = vrot.lane.b32.xlu0 %v8066, 74
      %v9451 = vpop.permute.xlu0 %9450
      %9452 = vrot.lane.b32.xlu0 %v8067, 74
      %v9453 = vpop.permute.xlu0 %9452
      %9454 = vrot.lane.b32.xlu0 %v8068, 74
      %v9455 = vpop.permute.xlu0 %9454
      %9456 = vrot.lane.b32.xlu0 %v8069, 74
      %v9457 = vpop.permute.xlu0 %9456
      %v9458 = vsel %vm2471, %v9435, %v9437
      %v9459 = vsel %vm2471, %v9437, %v9439
      %v9460 = vsel %vm2471, %v9441, %v9443
      %v9461 = vsel %vm2471, %v9443, %v9445
      %v9462 = vsel %vm2471, %v9447, %v9449
      %v9463 = vsel %vm2471, %v9449, %v9451
      %v9464 = vsel %vm2471, %v9453, %v9455
      %v9465 = vsel %vm2471, %v9455, %v9457
      %v9479 = vsel %vm718, %v9433, 0
      %9481 = vmatprep.subr.mxu0 0.0
      %9482 = vmatpush1.msra.mxu0 0.0
      %9483 = vmatprep.subr.mxu0 0.0
      %9484 = vmatpush1.msra.mxu0 0.0
      %9485 = vmatprep.subr.mxu0 0.0
      %9486 = vmatpush1.msra.mxu0 0.0
      %9487 = vmatprep.subr.mxu0 0.0
      %9488 = vmatpush1.msra.mxu0 0.0
      %9489 = vmatprep.subr.mxu0 0.0
      %9490 = vmatpush1.msra.mxu0 0.0
      %9491 = vmatprep.subr.mxu0 0.0
      %9492 = vmatpush1.msra.mxu0 0.0
      %9493 = vmatprep.subr.mxu0 0.0
      %9494 = vmatpush1.msra.mxu0 0.0
      %9495 = vmatprep.subr.mxu0 0.0
      %9496 = vmatpush1.msra.mxu0 0.0
      %9497 = vmatprep.subr.mxu0 0.0
      %9498 = vmatpush1.msra.mxu0 0.0
      %9499 = vmatprep.subr.mxu0 0.0
      %9500 = vmatpush1.msra.mxu0 0.0
      %9501 = vmatprep.subr.mxu0 0.0
      %9502 = vmatpush1.msra.mxu0 0.0
      %9503 = vmatprep.subr.mxu0 0.0
      %9504 = vmatpush1.msra.mxu0 0.0
      %9505 = vmatprep.subr.mxu0 %v9465
      %9506 = vmatpush1.msra.mxu0 %v9464
      %9507 = vmatprep.subr.mxu0 %v9463
      %9508 = vmatpush1.msra.mxu0 %v9462
      %9509 = vmatprep.subr.mxu0 %v9461
      %9510 = vmatpush1.msra.mxu0 %v9460
      %9511 = vmatprep.subr.mxu0 %v9459
      %9512 = vmatpush1.msra.mxu0 %v9458
      %9513 = vmatprep.subr.mxu0 0.0
      %9514 = vmatpush2.msra.mxu0 0.0
      %9515 = vmatprep.subr.mxu0 0.0
      %9516 = vmatpush2.msra.mxu0 0.0
      %9517 = vmatprep.subr.mxu0 0.0
      %9518 = vmatpush2.msra.mxu0 0.0
      %9519 = vmatprep.subr.mxu0 0.0
      %9520 = vmatpush2.msra.mxu0 0.0
      %9521 = vmatprep.subr.mxu0 0.0
      %9522 = vmatpush2.msra.mxu0 0.0
      %9523 = vmatprep.subr.mxu0 0.0
      %9524 = vmatpush2.msra.mxu0 0.0
      %9525 = vmatprep.subr.mxu0 0.0
      %9526 = vmatpush2.msra.mxu0 0.0
      %9527 = vmatprep.subr.mxu0 0.0
      %9528 = vmatpush2.msra.mxu0 0.0
      %9529 = vmatprep.subr.mxu0 0.0
      %9530 = vmatpush2.msra.mxu0 0.0
      %9531 = vmatprep.subr.mxu0 0.0
      %9532 = vmatpush2.msra.mxu0 0.0
      %9533 = vmatprep.subr.mxu0 0.0
      %9534 = vmatpush2.msra.mxu0 0.0
      %9535 = vmatprep.subr.mxu0 0.0
      %9536 = vmatpush2.msra.mxu0 0.0
      %9537 = vmatprep.subr.mxu0 0.0
      %9538 = vmatpush2.msra.mxu0 0.0
      %9539 = vmatprep.subr.mxu0 0.0
      %9540 = vmatpush2.msra.mxu0 0.0
      %9541 = vmatprep.subr.mxu0 0.0
      %9542 = vmatpush2.msra.mxu0 0.0
      %9543 = vmatprep.subr.mxu0 0.0
      %9544 = vmatpush2.msra.mxu0 0.0
      %9545 = vmatprep.mubr.f32.mxu0 0.0
      %9546 = vmatmul.mubr.f32.gmra.mxu0 %v9479
      %v9547 = vpop.f32.mrf.mxu0
      %v9548 = vadd.f32 0.0, %v9547
      %v9549 = vpop.f32.mrf.mxu0
      %v9550 = vadd.f32 0.0, %v9549
      %9551 = vdwg.mxu0
      %9552 = vmatprep.subr.mxu0 0.0
      %9553 = vmatpush1.msra.mxu0 0.0
      %9554 = vmatprep.subr.mxu0 0.0
      %9555 = vmatpush1.msra.mxu0 0.0
      %9556 = vmatprep.subr.mxu0 0.0
      %9557 = vmatpush1.msra.mxu0 0.0
      %9558 = vmatprep.subr.mxu0 0.0
      %9559 = vmatpush1.msra.mxu0 0.0
      %9560 = vmatprep.subr.mxu0 0.0
      %9561 = vmatpush1.msra.mxu0 0.0
      %9562 = vmatprep.subr.mxu0 0.0
      %9563 = vmatpush1.msra.mxu0 0.0
      %9564 = vmatprep.subr.mxu0 0.0
      %9565 = vmatpush1.msra.mxu0 0.0
      %9566 = vmatprep.subr.mxu0 0.0
      %9567 = vmatpush1.msra.mxu0 0.0
      %9568 = vmatprep.subr.mxu0 0.0
      %9569 = vmatpush1.msra.mxu0 0.0
      %9570 = vmatprep.subr.mxu0 0.0
      %9571 = vmatpush1.msra.mxu0 0.0
      %9572 = vmatprep.subr.mxu0 0.0
      %9573 = vmatpush1.msra.mxu0 0.0
      %9574 = vmatprep.subr.mxu0 0.0
      %9575 = vmatpush1.msra.mxu0 0.0
      %9576 = vmatprep.subr.mxu0 0.0
      %9577 = vmatpush1.msra.mxu0 %v9457
      %9578 = vmatprep.subr.mxu0 0.0
      %9579 = vmatpush1.msra.mxu0 %v9451
      %9580 = vmatprep.subr.mxu0 0.0
      %9581 = vmatpush1.msra.mxu0 %v9445
      %9582 = vmatprep.subr.mxu0 0.0
      %9583 = vmatpush1.msra.mxu0 %v9439
      %9584 = vmatprep.subr.mxu0 0.0
      %9585 = vmatpush2.msra.mxu0 0.0
      %9586 = vmatprep.subr.mxu0 0.0
      %9587 = vmatpush2.msra.mxu0 0.0
      %9588 = vmatprep.subr.mxu0 0.0
      %9589 = vmatpush2.msra.mxu0 0.0
      %9590 = vmatprep.subr.mxu0 0.0
      %9591 = vmatpush2.msra.mxu0 0.0
      %9592 = vmatprep.subr.mxu0 0.0
      %9593 = vmatpush2.msra.mxu0 0.0
      %9594 = vmatprep.subr.mxu0 0.0
      %9595 = vmatpush2.msra.mxu0 0.0
      %9596 = vmatprep.subr.mxu0 0.0
      %9597 = vmatpush2.msra.mxu0 0.0
      %9598 = vmatprep.subr.mxu0 0.0
      %9599 = vmatpush2.msra.mxu0 0.0
      %9600 = vmatprep.subr.mxu0 0.0
      %9601 = vmatpush2.msra.mxu0 0.0
      %9602 = vmatprep.subr.mxu0 0.0
      %9603 = vmatpush2.msra.mxu0 0.0
      %9604 = vmatprep.subr.mxu0 0.0
      %9605 = vmatpush2.msra.mxu0 0.0
      %9606 = vmatprep.subr.mxu0 0.0
      %9607 = vmatpush2.msra.mxu0 0.0
      %9608 = vmatprep.subr.mxu0 0.0
      %9609 = vmatpush2.msra.mxu0 0.0
      %9610 = vmatprep.subr.mxu0 0.0
      %9611 = vmatpush2.msra.mxu0 0.0
      %9612 = vmatprep.subr.mxu0 0.0
      %9613 = vmatpush2.msra.mxu0 0.0
      %9614 = vmatprep.subr.mxu0 0.0
      %9615 = vmatpush2.msra.mxu0 0.0
      %9616 = vmatprep.mubr.f32.mxu0 0.0
      %9617 = vmatmul.mubr.f32.gmra.mxu0 %v9479
      %v9618 = vpop.f32.mrf.mxu0
      %v9619 = vadd.f32 0.0, %v9618
      %v9620 = vpop.f32.mrf.mxu0
      %9621 = vdwg.mxu0
      %v9622 = vadd.f32 %v9429, %v9548
      %v9623 = vadd.f32 %v9430, %v9550
      %v9624 = vadd.f32 %v9431, %v9619
      %s9625 = scalar_lea.vmem %s4, 32
      %v9626 = vld [vmem:[%s9625] sm:$0xf]
      %9627 = vrot.lane.b32.xlu0 %v8058, 73
      %v9628 = vpop.permute.xlu0 %9627
      %9629 = vrot.lane.b32.xlu0 %v8059, 73
      %v9630 = vpop.permute.xlu0 %9629
      %9631 = vrot.lane.b32.xlu0 %v8060, 73
      %v9632 = vpop.permute.xlu0 %9631
      %9633 = vrot.lane.b32.xlu0 %v8061, 73
      %v9634 = vpop.permute.xlu0 %9633
      %9635 = vrot.lane.b32.xlu0 %v8062, 73
      %v9636 = vpop.permute.xlu0 %9635
      %9637 = vrot.lane.b32.xlu0 %v8063, 73
      %v9638 = vpop.permute.xlu0 %9637
      %9639 = vrot.lane.b32.xlu0 %v8064, 73
      %v9640 = vpop.permute.xlu0 %9639
      %9641 = vrot.lane.b32.xlu0 %v8065, 73
      %v9642 = vpop.permute.xlu0 %9641
      %9643 = vrot.lane.b32.xlu0 %v8066, 73
      %v9644 = vpop.permute.xlu0 %9643
      %9645 = vrot.lane.b32.xlu0 %v8067, 73
      %v9646 = vpop.permute.xlu0 %9645
      %9647 = vrot.lane.b32.xlu0 %v8068, 73
      %v9648 = vpop.permute.xlu0 %9647
      %9649 = vrot.lane.b32.xlu0 %v8069, 73
      %v9650 = vpop.permute.xlu0 %9649
      %v9651 = vsel %vm2708, %v9628, %v9630
      %v9652 = vsel %vm2708, %v9630, %v9632
      %v9653 = vsel %vm2708, %v9634, %v9636
      %v9654 = vsel %vm2708, %v9636, %v9638
      %v9655 = vsel %vm2708, %v9640, %v9642
      %v9656 = vsel %vm2708, %v9642, %v9644
      %v9657 = vsel %vm2708, %v9646, %v9648
      %v9658 = vsel %vm2708, %v9648, %v9650
      %v9672 = vsel %vm718, %v9626, 0
      %9674 = vmatprep.subr.mxu0 0.0
      %9675 = vmatpush1.msra.mxu0 0.0
      %9676 = vmatprep.subr.mxu0 0.0
      %9677 = vmatpush1.msra.mxu0 0.0
      %9678 = vmatprep.subr.mxu0 0.0
      %9679 = vmatpush1.msra.mxu0 0.0
      %9680 = vmatprep.subr.mxu0 0.0
      %9681 = vmatpush1.msra.mxu0 0.0
      %9682 = vmatprep.subr.mxu0 0.0
      %9683 = vmatpush1.msra.mxu0 0.0
      %9684 = vmatprep.subr.mxu0 0.0
      %9685 = vmatpush1.msra.mxu0 0.0
      %9686 = vmatprep.subr.mxu0 0.0
      %9687 = vmatpush1.msra.mxu0 0.0
      %9688 = vmatprep.subr.mxu0 0.0
      %9689 = vmatpush1.msra.mxu0 0.0
      %9690 = vmatprep.subr.mxu0 0.0
      %9691 = vmatpush1.msra.mxu0 0.0
      %9692 = vmatprep.subr.mxu0 0.0
      %9693 = vmatpush1.msra.mxu0 0.0
      %9694 = vmatprep.subr.mxu0 0.0
      %9695 = vmatpush1.msra.mxu0 0.0
      %9696 = vmatprep.subr.mxu0 0.0
      %9697 = vmatpush1.msra.mxu0 0.0
      %9698 = vmatprep.subr.mxu0 %v9658
      %9699 = vmatpush1.msra.mxu0 %v9657
      %9700 = vmatprep.subr.mxu0 %v9656
      %9701 = vmatpush1.msra.mxu0 %v9655
      %9702 = vmatprep.subr.mxu0 %v9654
      %9703 = vmatpush1.msra.mxu0 %v9653
      %9704 = vmatprep.subr.mxu0 %v9652
      %9705 = vmatpush1.msra.mxu0 %v9651
      %9706 = vmatprep.subr.mxu0 0.0
      %9707 = vmatpush2.msra.mxu0 0.0
      %9708 = vmatprep.subr.mxu0 0.0
      %9709 = vmatpush2.msra.mxu0 0.0
      %9710 = vmatprep.subr.mxu0 0.0
      %9711 = vmatpush2.msra.mxu0 0.0
      %9712 = vmatprep.subr.mxu0 0.0
      %9713 = vmatpush2.msra.mxu0 0.0
      %9714 = vmatprep.subr.mxu0 0.0
      %9715 = vmatpush2.msra.mxu0 0.0
      %9716 = vmatprep.subr.mxu0 0.0
      %9717 = vmatpush2.msra.mxu0 0.0
      %9718 = vmatprep.subr.mxu0 0.0
      %9719 = vmatpush2.msra.mxu0 0.0
      %9720 = vmatprep.subr.mxu0 0.0
      %9721 = vmatpush2.msra.mxu0 0.0
      %9722 = vmatprep.subr.mxu0 0.0
      %9723 = vmatpush2.msra.mxu0 0.0
      %9724 = vmatprep.subr.mxu0 0.0
      %9725 = vmatpush2.msra.mxu0 0.0
      %9726 = vmatprep.subr.mxu0 0.0
      %9727 = vmatpush2.msra.mxu0 0.0
      %9728 = vmatprep.subr.mxu0 0.0
      %9729 = vmatpush2.msra.mxu0 0.0
      %9730 = vmatprep.subr.mxu0 0.0
      %9731 = vmatpush2.msra.mxu0 0.0
      %9732 = vmatprep.subr.mxu0 0.0
      %9733 = vmatpush2.msra.mxu0 0.0
      %9734 = vmatprep.subr.mxu0 0.0
      %9735 = vmatpush2.msra.mxu0 0.0
      %9736 = vmatprep.subr.mxu0 0.0
      %9737 = vmatpush2.msra.mxu0 0.0
      %9738 = vmatprep.mubr.f32.mxu0 0.0
      %9739 = vmatmul.mubr.f32.gmra.mxu0 %v9672
      %v9740 = vpop.f32.mrf.mxu0
      %v9741 = vadd.f32 0.0, %v9740
      %v9742 = vpop.f32.mrf.mxu0
      %v9743 = vadd.f32 0.0, %v9742
      %9744 = vdwg.mxu0
      %9745 = vmatprep.subr.mxu0 0.0
      %9746 = vmatpush1.msra.mxu0 0.0
      %9747 = vmatprep.subr.mxu0 0.0
      %9748 = vmatpush1.msra.mxu0 0.0
      %9749 = vmatprep.subr.mxu0 0.0
      %9750 = vmatpush1.msra.mxu0 0.0
      %9751 = vmatprep.subr.mxu0 0.0
      %9752 = vmatpush1.msra.mxu0 0.0
      %9753 = vmatprep.subr.mxu0 0.0
      %9754 = vmatpush1.msra.mxu0 0.0
      %9755 = vmatprep.subr.mxu0 0.0
      %9756 = vmatpush1.msra.mxu0 0.0
      %9757 = vmatprep.subr.mxu0 0.0
      %9758 = vmatpush1.msra.mxu0 0.0
      %9759 = vmatprep.subr.mxu0 0.0
      %9760 = vmatpush1.msra.mxu0 0.0
      %9761 = vmatprep.subr.mxu0 0.0
      %9762 = vmatpush1.msra.mxu0 0.0
      %9763 = vmatprep.subr.mxu0 0.0
      %9764 = vmatpush1.msra.mxu0 0.0
      %9765 = vmatprep.subr.mxu0 0.0
      %9766 = vmatpush1.msra.mxu0 0.0
      %9767 = vmatprep.subr.mxu0 0.0
      %9768 = vmatpush1.msra.mxu0 0.0
      %9769 = vmatprep.subr.mxu0 0.0
      %9770 = vmatpush1.msra.mxu0 %v9650
      %9771 = vmatprep.subr.mxu0 0.0
      %9772 = vmatpush1.msra.mxu0 %v9644
      %9773 = vmatprep.subr.mxu0 0.0
      %9774 = vmatpush1.msra.mxu0 %v9638
      %9775 = vmatprep.subr.mxu0 0.0
      %9776 = vmatpush1.msra.mxu0 %v9632
      %9777 = vmatprep.subr.mxu0 0.0
      %9778 = vmatpush2.msra.mxu0 0.0
      %9779 = vmatprep.subr.mxu0 0.0
      %9780 = vmatpush2.msra.mxu0 0.0
      %9781 = vmatprep.subr.mxu0 0.0
      %9782 = vmatpush2.msra.mxu0 0.0
      %9783 = vmatprep.subr.mxu0 0.0
      %9784 = vmatpush2.msra.mxu0 0.0
      %9785 = vmatprep.subr.mxu0 0.0
      %9786 = vmatpush2.msra.mxu0 0.0
      %9787 = vmatprep.subr.mxu0 0.0
      %9788 = vmatpush2.msra.mxu0 0.0
      %9789 = vmatprep.subr.mxu0 0.0
      %9790 = vmatpush2.msra.mxu0 0.0
      %9791 = vmatprep.subr.mxu0 0.0
      %9792 = vmatpush2.msra.mxu0 0.0
      %9793 = vmatprep.subr.mxu0 0.0
      %9794 = vmatpush2.msra.mxu0 0.0
      %9795 = vmatprep.subr.mxu0 0.0
      %9796 = vmatpush2.msra.mxu0 0.0
      %9797 = vmatprep.subr.mxu0 0.0
      %9798 = vmatpush2.msra.mxu0 0.0
      %9799 = vmatprep.subr.mxu0 0.0
      %9800 = vmatpush2.msra.mxu0 0.0
      %9801 = vmatprep.subr.mxu0 0.0
      %9802 = vmatpush2.msra.mxu0 0.0
      %9803 = vmatprep.subr.mxu0 0.0
      %9804 = vmatpush2.msra.mxu0 0.0
      %9805 = vmatprep.subr.mxu0 0.0
      %9806 = vmatpush2.msra.mxu0 0.0
      %9807 = vmatprep.subr.mxu0 0.0
      %9808 = vmatpush2.msra.mxu0 0.0
      %9809 = vmatprep.mubr.f32.mxu0 0.0
      %9810 = vmatmul.mubr.f32.gmra.mxu0 %v9672
      %v9811 = vpop.f32.mrf.mxu0
      %v9812 = vadd.f32 0.0, %v9811
      %v9813 = vpop.f32.mrf.mxu0
      %9814 = vdwg.mxu0
      %v9815 = vadd.f32 %v9622, %v9741
      %v9816 = vadd.f32 %v9623, %v9743
      %v9817 = vadd.f32 %v9624, %v9812
      %vm9818 = vcmp.gt.f32.partialorder %v9815, 0.0
      %vm9819 = vcmp.gt.f32.partialorder %v9816, 0.0
      %vm9820 = vcmp.gt.f32.partialorder %v9817, 0.0
      %v9821 = vmul.f32 %v9815, 0.0
      %v9822 = vmul.f32 %v9816, 0.0
      %v9823 = vmul.f32 %v9817, 0.0
      %v9824 = vsel %vm9818, %v9815, %v9821
      %v9825 = vsel %vm9819, %v9816, %v9822
      %v9826 = vsel %vm9820, %v9817, %v9823
      %9828 = vrot.lane.b32.xlu0 %v9824, 110
      %v9829 = vpop.permute.xlu0 %9828
      %9831 = vrot.lane.b32.xlu0 %v9824, 92
      %v9832 = vpop.permute.xlu0 %9831
      %9834 = vrot.lane.b32.xlu0 %v9824, 74
      %v9835 = vpop.permute.xlu0 %9834
      %9837 = vrot.lane.b32.xlu0 %v9824, 56
      %v9838 = vpop.permute.xlu0 %9837
      %9840 = vrot.lane.b32.xlu0 %v9824, 38
      %v9841 = vpop.permute.xlu0 %9840
      %9843 = vrot.lane.b32.xlu0 %v9824, 20
      %v9844 = vpop.permute.xlu0 %9843
      %9847 = vrot.lane.b32.xlu0 %v9824, 2
      %v9848 = vpop.permute.xlu0 %9847
      %9849 = vrot.lane.b32.xlu0 %v9825, 2
      %v9850 = vpop.permute.xlu0 %9849
      %vm9851 = vcmask 15360
      %v9852 = vsel %vm9851, %v9848, %v9850
      %9854 = vrot.lane.b32.xlu0 %v9825, 112
      %v9855 = vpop.permute.xlu0 %9854
      %9857 = vrot.lane.b32.xlu0 %v9825, 94
      %v9858 = vpop.permute.xlu0 %9857
      %9860 = vrot.lane.b32.xlu0 %v9825, 76
      %v9861 = vpop.permute.xlu0 %9860
      %9863 = vrot.lane.b32.xlu0 %v9825, 58
      %v9864 = vpop.permute.xlu0 %9863
      %9866 = vrot.lane.b32.xlu0 %v9825, 40
      %v9867 = vpop.permute.xlu0 %9866
      %9869 = vrot.lane.b32.xlu0 %v9825, 22
      %v9870 = vpop.permute.xlu0 %9869
      %9873 = vrot.lane.b32.xlu0 %v9825, 4
      %v9874 = vpop.permute.xlu0 %9873
      %9875 = vrot.lane.b32.xlu0 %v9826, 4
      %v9876 = vpop.permute.xlu0 %9875
      %vm9877 = vcmask 31744
      %v9878 = vsel %vm9877, %v9874, %v9876
      %9880 = vrot.lane.b32.xlu0 %v9826, 114
      %v9881 = vpop.permute.xlu0 %9880
      %v9883 = vcombine.low %v9824, %v9832
      %v9885 = vunpack.c.l.s4 1983009808
      %v9886 = vunpack.c.0.s8 %v9885
      %v9887 = vlaneseq
      %v9888 = vshrl.u32 %v9887, 7
      %v9889 = vsub.s32 %v9886, %v9888
      %v9890 = vrot.slane %v9883, %v9889
      %v9891 = vcombine.low %v9829, %v9835
      %v9893 = vunpack.c.l.s4 1983009808
      %v9894 = vunpack.c.0.s8 %v9893
      %v9895 = vlaneseq
      %v9896 = vshrl.u32 %v9895, 7
      %v9897 = vsub.s32 %v9894, %v9896
      %v9898 = vrot.slane %v9891, %v9897
      %v9899 = vcombine.low %v9838, %v9844
      %v9901 = vunpack.c.l.s4 1983009808
      %v9902 = vunpack.c.0.s8 %v9901
      %v9903 = vlaneseq
      %v9904 = vshrl.u32 %v9903, 7
      %v9905 = vsub.s32 %v9902, %v9904
      %v9906 = vrot.slane %v9899, %v9905
      %v9907 = vcombine.low %v9841, %v9852
      %v9909 = vunpack.c.l.s4 1983009808
      %v9910 = vunpack.c.0.s8 %v9909
      %v9911 = vlaneseq
      %v9912 = vshrl.u32 %v9911, 7
      %v9913 = vsub.s32 %v9910, %v9912
      %v9914 = vrot.slane %v9907, %v9913
      %v9915 = vcombine.low %v9890, %v9898
      %v9916 = vcombine.high %v9890, %v9898
      %v9918 = vunpack.c.l.s4 1934713408
      %v9919 = vunpack.c.0.s8 %v9918
      %v9920 = vlaneseq
      %v9921 = vshrl.u32 %v9920, 7
      %v9922 = vsub.s32 %v9919, %v9921
      %v9923 = vrot.slane %v9915, %v9922
      %v9925 = vunpack.c.l.s4 1934713408
      %v9926 = vunpack.c.0.s8 %v9925
      %v9927 = vlaneseq
      %v9928 = vshrl.u32 %v9927, 7
      %v9929 = vsub.s32 %v9926, %v9928
      %v9930 = vrot.slane %v9916, %v9929
      %v9931 = vcombine.low %v9906, %v9914
      %v9932 = vcombine.high %v9906, %v9914
      %v9934 = vunpack.c.l.s4 1934713408
      %v9935 = vunpack.c.0.s8 %v9934
      %v9936 = vlaneseq
      %v9937 = vshrl.u32 %v9936, 7
      %v9938 = vsub.s32 %v9935, %v9937
      %v9939 = vrot.slane %v9931, %v9938
      %v9941 = vunpack.c.l.s4 1934713408
      %v9942 = vunpack.c.0.s8 %v9941
      %v9943 = vlaneseq
      %v9944 = vshrl.u32 %v9943, 7
      %v9945 = vsub.s32 %v9942, %v9944
      %v9946 = vrot.slane %v9932, %v9945
      %v9947 = vcombine.low %v9923, %v9939
      %v9948 = vcombine.high %v9923, %v9939
      %v9949 = vcombine.low %v9930, %v9946
      %v9950 = vcombine.high %v9930, %v9946
      %v9951 = vcombine.low %v9855, %v9861
      %v9953 = vunpack.c.l.s4 1983009808
      %v9954 = vunpack.c.0.s8 %v9953
      %v9955 = vlaneseq
      %v9956 = vshrl.u32 %v9955, 7
      %v9957 = vsub.s32 %v9954, %v9956
      %v9958 = vrot.slane %v9951, %v9957
      %v9959 = vcombine.low %v9858, %v9864
      %v9961 = vunpack.c.l.s4 1983009808
      %v9962 = vunpack.c.0.s8 %v9961
      %v9963 = vlaneseq
      %v9964 = vshrl.u32 %v9963, 7
      %v9965 = vsub.s32 %v9962, %v9964
      %v9966 = vrot.slane %v9959, %v9965
      %v9967 = vcombine.low %v9867, %v9878
      %v9969 = vunpack.c.l.s4 1983009808
      %v9970 = vunpack.c.0.s8 %v9969
      %v9971 = vlaneseq
      %v9972 = vshrl.u32 %v9971, 7
      %v9973 = vsub.s32 %v9970, %v9972
      %v9974 = vrot.slane %v9967, %v9973
      %v9975 = vcombine.low %v9870, %v9881
      %v9977 = vunpack.c.l.s4 1983009808
      %v9978 = vunpack.c.0.s8 %v9977
      %v9979 = vlaneseq
      %v9980 = vshrl.u32 %v9979, 7
      %v9981 = vsub.s32 %v9978, %v9980
      %v9982 = vrot.slane %v9975, %v9981
      %v9983 = vcombine.low %v9958, %v9966
      %v9984 = vcombine.high %v9958, %v9966
      %v9986 = vunpack.c.l.s4 1934713408
      %v9987 = vunpack.c.0.s8 %v9986
      %v9988 = vlaneseq
      %v9989 = vshrl.u32 %v9988, 7
      %v9990 = vsub.s32 %v9987, %v9989
      %v9991 = vrot.slane %v9983, %v9990
      %v9993 = vunpack.c.l.s4 1934713408
      %v9994 = vunpack.c.0.s8 %v9993
      %v9995 = vlaneseq
      %v9996 = vshrl.u32 %v9995, 7
      %v9997 = vsub.s32 %v9994, %v9996
      %v9998 = vrot.slane %v9984, %v9997
      %v9999 = vcombine.low %v9974, %v9982
      %v10000 = vcombine.high %v9974, %v9982
      %v10002 = vunpack.c.l.s4 1934713408
      %v10003 = vunpack.c.0.s8 %v10002
      %v10004 = vlaneseq
      %v10005 = vshrl.u32 %v10004, 7
      %v10006 = vsub.s32 %v10003, %v10005
      %v10007 = vrot.slane %v9999, %v10006
      %v10009 = vunpack.c.l.s4 1934713408
      %v10010 = vunpack.c.0.s8 %v10009
      %v10011 = vlaneseq
      %v10012 = vshrl.u32 %v10011, 7
      %v10013 = vsub.s32 %v10010, %v10012
      %v10014 = vrot.slane %v10000, %v10013
      %v10015 = vcombine.low %v9991, %v10007
      %v10016 = vcombine.high %v9991, %v10007
      %v10017 = vcombine.low %v9998, %v10014
      %v10018 = vcombine.high %v9998, %v10014
      %10027 = vrot.lane.b32.xlu0 %v9947, 127
      %v10028 = vpop.permute.xlu0 %10027
      %10029 = vrot.lane.b32.xlu0 %v10015, 127
      %v10030 = vpop.permute.xlu0 %10029
      %10031 = vrot.lane.b32.xlu0 %v9948, 127
      %v10032 = vpop.permute.xlu0 %10031
      %10033 = vrot.lane.b32.xlu0 %v10016, 127
      %v10034 = vpop.permute.xlu0 %10033
      %10035 = vrot.lane.b32.xlu0 %v9949, 127
      %v10036 = vpop.permute.xlu0 %10035
      %10037 = vrot.lane.b32.xlu0 %v10017, 127
      %v10038 = vpop.permute.xlu0 %10037
      %10039 = vrot.lane.b32.xlu0 %v9950, 127
      %v10040 = vpop.permute.xlu0 %10039
      %10041 = vrot.lane.b32.xlu0 %v10018, 127
      %v10042 = vpop.permute.xlu0 %10041
      %10051 = vst.msk [vmem:[%s354] sm:$0xff] %vm702, %v10028
      %10052 = vst.msk [vmem:[%s354 + $0x8] sm:$0xff] %vm702, %v10030
      %10053 = vst.msk [vmem:[%s354 + $0x10] sm:$0xff] %vm702, %v10032
      %10054 = vst.msk [vmem:[%s354 + $0x18] sm:$0xff] %vm702, %v10034
      %10055 = vst.msk [vmem:[%s354 + $0x20] sm:$0xff] %vm702, %v10036
      %10056 = vst.msk [vmem:[%s354 + $0x28] sm:$0xff] %vm702, %v10038
      %10057 = vst.msk [vmem:[%s354 + $0x30] sm:$0xff] %vm702, %v10040
      %10058 = vst.msk [vmem:[%s354 + $0x38] sm:$0xff] %vm702, %v10042
      %s10059 = smul.u32 2, %s25
      %p10060 = scmp.lt.s32.totalorder %s24, 1
      %s10061 = scalar_select %p10060, %s24, 1
      %p10062 = scmp.lt.s32.totalorder %s10059, 1
      %s10063 = scalar_select %p10062, %s10059, 1
      %s10064 = smul.addr %s10061, 8
      %s10065 = sadd.s32 %s10063, %s10064
      %s10066 = smul.addr %s10065, 8
      %s10067 = scalar_lea.vmem %s9, %s10066
      // Predicated region
      $region57: #{decom_forward.1} parent=55 // pred_check
        %p10068 = pneg %p246
      $region58: #{decom_forward.1} parent=55 // pred_check_branch
        %10070 = sbr.rel (%p10068) target = $region60
      $region59: #{decom_forward.1} parent=55 // pred_region
        %s10071 = smul.u32 2, %s25
      $region60: #{decom_forward.1} parent=55 // pred_fallthru
        _
    $region56: #{decom_forward.1} parent=5 // pred_fallthru
      _
    %p10072 = scmp.le.s32.totalorder 2, %s15
    // Predicated region
    $region61: #{decom_forward.1} parent=5 // pred_check
      %p10073 = pneg %p10072
    $region62: #{decom_forward.1} parent=5 // pred_check_branch
      %10075 = sbr.rel (%p10073) target = $region64
    $region63: #{decom_forward.1} parent=5 // pred_region
      %s10076 = ssub.s32 %s15, 2
      // Predicated region
      $region65: #{decom_forward.1} parent=63 // pred_check
        %p10077 = pneg %p252
      $region66: #{decom_forward.1} parent=63 // pred_check_branch
        %10079 = sbr.rel (%p10077) target = $region68
      $region67: #{decom_forward.1} parent=63 // pred_region
        %s10080 = smul.u32 2, %s27
        %p10081 = scmp.lt.s32.totalorder %s26, 1
        %s10082 = scalar_select %p10081, %s26, 1
        %p10083 = scmp.lt.s32.totalorder %s10080, 1
        %s10084 = scalar_select %p10083, %s10080, 1
        %s10085 = smul.addr %s10082, 8
        %s10086 = sadd.s32 %s10084, %s10085
        %s10087 = smul.addr %s10086, 8
        %s10088 = scalar_lea.vmem %s9, %s10087
      $region68: #{decom_forward.1} parent=63 // pred_fallthru
        _
    $region64: #{decom_forward.1} parent=5 // pred_fallthru
      _
  $region6: #{decom_forward.1} parent=0 // loop_footer
    %s19 = sadd.s32 1, %s15
  $region7: #{decom_forward.1} parent=0 // loop_footer_branch
    %14 = sbr.rel target = $region3
  $region8: #{decom_forward.1} parent=0 // loop_exit
    _

</llo_original>
